<compile_context>
chip_gen: v7x
topology: tpu7x:2x2x1
jax: 0.10.0
libtpu: 0.0.40
codegen_flags: <defaults>
</compile_context>

<pallas_src>
import functools

import jax
import jax.numpy as jnp
from jax.experimental import pallas as pl
from jax.experimental.pallas import tpu as pltpu

# --- hyperparameters mirroring the PyTorch module defaults ---
INPUT_SIZE = 7          # vocab size
V_PAD = 8               # vocab padded to 8 for a clean one-hot matmul
HIDDEN = 64
OUTPUT_SIZE = 48
OUT_PAD = 128           # lane-dense output width (sliced to 48 in wrapper)
NUM_LAYERS = 2
NUM_EXPERTS = 4
NUM_HEADS = 4
HEAD_DIM = HIDDEN // NUM_HEADS
D_FF = 2048             # nn.TransformerEncoderLayer default dim_feedforward
LN_EPS = 1e-5
MATMUL_DTYPE = jnp.bfloat16   # MXU input dtype; accumulation stays f32

# order in which packed parameter arrays are passed to the kernel
PARAM_ORDER = ("emb", "wqkv", "bqkv", "wo", "w1", "b1", "w2", "vec",
               "we1", "we2", "bexp", "wfc", "bfc")
# arrays that feed the MXU -> stored bf16; LN vectors / biases stay f32
BF16_PARAMS = frozenset({"emb", "wqkv", "wo", "w1", "w2", "we1", "we2", "wfc"})


def _mm(a, b):
    """MXU matmul: bf16 inputs, f32 accumulation (weights already bf16)."""
    return jnp.dot(a.astype(MATMUL_DTYPE), b.astype(MATMUL_DTYPE),
                   preferred_element_type=jnp.float32)


def _layernorm(x, w, b):
    mu = jnp.mean(x, axis=-1, keepdims=True)
    xc = x - mu
    var = jnp.mean(xc * xc, axis=-1, keepdims=True)
    return xc * jax.lax.rsqrt(var + LN_EPS) * w + b


def _softmax(x, approx):
    m = jnp.max(x, axis=-1, keepdims=True)
    e = jnp.exp(x - m)
    s = jnp.sum(e, axis=-1, keepdims=True)
    if approx:
        return e * pl.reciprocal(s, approx=True)   # EUP slot; kernel-only path
    return e / s


def _forward_block(tok2d, p, tile_b, seq_len, approx):
    """PrFormer forward on one tile of whole sequences.

    tok2d: (tile_b*seq_len, 1) int32, batch-major rows (row = b*seq_len + s).
    p: dict name -> Ref (kernel) or jnp array (reference); indexed identically.
    Returns (tile_b*seq_len, OUT_PAD) float32.
    """
    tile_t = tile_b * seq_len

    # embedding lookup as a tiny one-hot matmul on raw int32 tokens
    iota = jax.lax.broadcasted_iota(jnp.int32, (tile_t, V_PAD), 1)
    onehot = jnp.where(tok2d == iota, 1.0, 0.0).astype(MATMUL_DTYPE)
    x = _mm(onehot, p["emb"][...])                       # (T, H) f32

    for l in range(NUM_LAYERS):
        wqkv = p["wqkv"][l]                              # (H, 3H) fused QKV (bf16)
        bqkv = p["bqkv"][l]                              # (1, 3H) f32
        wo = p["wo"][l]                                  # (H, H)  bf16
        w1 = p["w1"][l]                                  # (H, D_FF) bf16
        b1 = p["b1"][l]                                  # (1, D_FF) f32
        w2 = p["w2"][l]                                  # (D_FF, H) bf16
        vec = p["vec"][l]                                # (6, H) packed f32 vectors
        bo, ln1_w, ln1_b = vec[0:1, :], vec[1:2, :], vec[2:3, :]
        b2, ln2_w, ln2_b = vec[3:4, :], vec[4:5, :], vec[5:6, :]

        # fused QKV projection; 1/sqrt(head_dim) is pre-folded into the Q slice
        qkv = _mm(x, wqkv) + bqkv                        # (T, 3H) f32
        q3 = qkv[:, :HIDDEN].astype(MATMUL_DTYPE).reshape(tile_b, seq_len, HIDDEN)
        k3 = qkv[:, HIDDEN:2 * HIDDEN].astype(MATMUL_DTYPE).reshape(
            tile_b, seq_len, HIDDEN)
        v3 = qkv[:, 2 * HIDDEN:].astype(MATMUL_DTYPE).reshape(
            tile_b, seq_len, HIDDEN)

        # multi-head attention: bf16 operands, f32 accumulation, f32 softmax
        heads = []
        for h in range(NUM_HEADS):
            c0 = h * HEAD_DIM
            qh = q3[:, :, c0:c0 + HEAD_DIM]
            kh = k3[:, :, c0:c0 + HEAD_DIM]
            vh = v3[:, :, c0:c0 + HEAD_DIM]
            s = jnp.einsum("bqd,bkd->bqk", qh, kh,
                           preferred_element_type=jnp.float32)
            pr = _softmax(s, approx)
            heads.append(jnp.einsum("bqk,bkd->bqd", pr.astype(MATMUL_DTYPE), vh,
                                    preferred_element_type=jnp.float32))
        attn = jnp.concatenate(heads, axis=-1).reshape(tile_t, HIDDEN)

        attn = _mm(attn, wo) + bo                        # out_proj
        x = _layernorm(x + attn, ln1_w, ln1_b)           # post-norm

        hdn = jnp.maximum(_mm(x, w1) + b1, 0.0)          # FFN, ReLU
        ff = _mm(hdn, w2) + b2
        x = _layernorm(x + ff, ln2_w, ln2_b)

    # experts: fused first layers (H,4H); block-diagonal second layer (4H,4H)
    # so torch.cat(expert_outputs, dim=-1) is exactly the matmul result.
    h1 = _mm(x, p["we1"][...]) + p["bexp"][0:1, :]       # (T, 4H)
    comb = _mm(h1, p["we2"][...]) + p["bexp"][1:2, :]    # (T, 4H)
    return _mm(comb, p["wfc"][...]) + p["bfc"][...]      # (T, OUT_PAD)


def prformer_kernel(tile_b, seq_len, *refs):
    tok_ref = refs[0]
    param_refs = refs[1:-1]
    out_ref = refs[-1]
    p = dict(zip(PARAM_ORDER, param_refs))
    out_ref[...] = _forward_block(tok_ref[...], p, tile_b, seq_len, approx=True)


def make_params(key):
    ks = iter(jax.random.split(key, 128))

    def rnd(shape, scale):
        return scale * jax.random.normal(next(ks), shape, jnp.float32)

    p = {}
    emb = rnd((INPUT_SIZE, HIDDEN), 0.1)                 # (vocab, H), pad vocab
    p["emb"] = jnp.concatenate(
        [emb, jnp.zeros((V_PAD - INPUT_SIZE, HIDDEN), jnp.float32)], axis=0)

    # fold 1/sqrt(head_dim) into the Q columns of the fused QKV projection
    scale = HEAD_DIM ** -0.5
    qscale = jnp.concatenate([jnp.full((1, HIDDEN), scale, jnp.float32),
                              jnp.ones((1, 2 * HIDDEN), jnp.float32)], axis=1)

    wqkv, bqkv, wo, w1, b1, w2, vec = [], [], [], [], [], [], []
    for _ in range(NUM_LAYERS):
        wqkv.append(rnd((HIDDEN, 3 * HIDDEN), HIDDEN ** -0.5) * qscale)
        bqkv.append(rnd((1, 3 * HIDDEN), 0.01) * qscale)
        wo.append(rnd((HIDDEN, HIDDEN), HIDDEN ** -0.5))
        w1.append(rnd((HIDDEN, D_FF), HIDDEN ** -0.5))
        b1.append(rnd((1, D_FF), 0.01))
        w2.append(rnd((D_FF, HIDDEN), D_FF ** -0.5))
        vec.append(jnp.concatenate([
            rnd((1, HIDDEN), 0.01),                      # out_proj bias
            jnp.ones((1, HIDDEN), jnp.float32),          # ln1 weight
            jnp.zeros((1, HIDDEN), jnp.float32),         # ln1 bias
            rnd((1, HIDDEN), 0.01),                      # linear2 bias
            jnp.ones((1, HIDDEN), jnp.float32),          # ln2 weight
            jnp.zeros((1, HIDDEN), jnp.float32),         # ln2 bias
        ], axis=0))                                      # (6, H)
    p["wqkv"] = jnp.stack(wqkv)
    p["bqkv"] = jnp.stack(bqkv)
    p["wo"] = jnp.stack(wo)
    p["w1"] = jnp.stack(w1)
    p["b1"] = jnp.stack(b1)
    p["w2"] = jnp.stack(w2)
    p["vec"] = jnp.stack(vec)

    # experts: fuse 4 first-layer Linears along output dim; second layers as a
    # block-diagonal matrix (equivalent to per-expert Linear + concat).
    we1 = jnp.concatenate([rnd((HIDDEN, HIDDEN), HIDDEN ** -0.5)
                           for _ in range(NUM_EXPERTS)], axis=1)       # (H, 4H)
    be1 = jnp.concatenate([rnd((1, HIDDEN), 0.01)
                           for _ in range(NUM_EXPERTS)], axis=1)       # (1, 4H)
    we2 = jnp.zeros((NUM_EXPERTS * HIDDEN, NUM_EXPERTS * HIDDEN), jnp.float32)
    for e in range(NUM_EXPERTS):
        blk = rnd((HIDDEN, HIDDEN), HIDDEN ** -0.5)
        we2 = we2.at[e * HIDDEN:(e + 1) * HIDDEN,
                     e * HIDDEN:(e + 1) * HIDDEN].set(blk)
    be2 = jnp.concatenate([rnd((1, HIDDEN), 0.01)
                           for _ in range(NUM_EXPERTS)], axis=1)
    p["we1"] = we1
    p["we2"] = we2
    p["bexp"] = jnp.concatenate([be1, be2], axis=0)                    # (2, 4H)

    # final Linear, zero-padded to a lane-dense 128-wide output
    wfc = rnd((NUM_EXPERTS * HIDDEN, OUTPUT_SIZE),
              (NUM_EXPERTS * HIDDEN) ** -0.5)
    bfc = rnd((1, OUTPUT_SIZE), 0.01)
    p["wfc"] = jnp.concatenate(
        [wfc, jnp.zeros((NUM_EXPERTS * HIDDEN, OUT_PAD - OUTPUT_SIZE),
                        jnp.float32)], axis=1)
    p["bfc"] = jnp.concatenate(
        [bfc, jnp.zeros((1, OUT_PAD - OUTPUT_SIZE), jnp.float32)], axis=1)

    # MXU-facing weights are stored bf16 once (halves their HBM/VMEM footprint
    # and removes per-grid-step f32->bf16 casts); LN vectors / biases stay f32.
    for name in BF16_PARAMS:
        p[name] = p[name].astype(MATMUL_DTYPE)
    return p


def _vmem_limit_bytes():
    """Per-generation VMEM limit: ~3/4 of capacity, capped at 100 MiB."""
    cap = 64 * 1024 * 1024            # conservative fallback (v7x per-core)
    try:
        info = pltpu.get_tpu_info()
        cap = int(getattr(info, "vmem_capacity_bytes", cap)) or cap
    except Exception:
        pass
    return min(cap * 3 // 4, 100 * 1024 * 1024)


def _pick_tile_b(batch, seq_len, tile_rows):
    """Sequences per tile: rows multiple of 8, prefer a divisor of the batch."""
    tile_b = max(1, min(batch, tile_rows // max(1, seq_len)))
    while (tile_b * seq_len) % 8 != 0:
        tile_b += 1
    for cand in range(min(tile_b, batch), 0, -1):
        if (cand * seq_len) % 8 == 0 and batch % cand == 0:
            if 2 * cand >= tile_b:     # only take it if not much smaller
                tile_b = cand
            break
    return tile_b


def prformer_forward(tokens, params, *, tile_rows=512):
    """tokens: (S, N) int32 in [0, INPUT_SIZE).  Returns (S, N, OUTPUT_SIZE) f32."""
    S, N = tokens.shape

    tile_b = _pick_tile_b(N, S, tile_rows)
    n_pad = -(-N // tile_b) * tile_b
    tile_t = tile_b * S
    t_pad = n_pad * S
    num_tiles = n_pad // tile_b

    tok_bm = jnp.transpose(tokens)                       # (N, S), batch-major
    if n_pad != N:
        tok_bm = jnp.concatenate(
            [tok_bm, jnp.zeros((n_pad - N, S), tokens.dtype)], axis=0)
    tok2d = tok_bm.reshape(t_pad, 1)                     # 4 B/token kernel input

    weight_args = [params[name] for name in PARAM_ORDER]
    # Constant index_maps -> weights fetched once and kept VMEM-resident.
    weight_specs = [
        pl.BlockSpec(a.shape, lambda i, _nd=a.ndim: (0,) * _nd)
        for a in weight_args
    ]

    kernel = functools.partial(prformer_kernel, tile_b, S)
    out2d = pl.pallas_call(
        kernel,
        out_shape=jax.ShapeDtypeStruct((t_pad, OUT_PAD), jnp.float32),
        grid=(num_tiles,),
        in_specs=[pl.BlockSpec((tile_t, 1), lambda i: (i, 0))] + weight_specs,
        out_specs=pl.BlockSpec((tile_t, OUT_PAD), lambda i: (i, 0)),
        compiler_params=pltpu.CompilerParams(
            dimension_semantics=("parallel",),
            vmem_limit_bytes=_vmem_limit_bytes()),
    )(tok2d, *weight_args)

    out = out2d.reshape(n_pad, S, OUT_PAD)[:N, :, :OUTPUT_SIZE]
    return jnp.transpose(out, (1, 0, 2))                 # (S, N, OUTPUT_SIZE)


if __name__ == "__main__":
    key = jax.random.PRNGKey(0)
    pkey, tkey = jax.random.split(key)
    params = make_params(pkey)

    S, N = 8, 4                                          # small seq / batch
    tokens = jax.random.randint(tkey, (S, N), 0, INPUT_SIZE, dtype=jnp.int32)

    # tile_rows=16 -> tile_b=2 -> 2 grid steps: exercises the token-grid pipeline.
    out = jax.block_until_ready(prformer_forward(tokens, params, tile_rows=16))
    assert out.shape == (S, N, OUTPUT_SIZE), out.shape
    assert bool(jnp.all(jnp.isfinite(out)))

    # pure-JAX reference on the same packed (bf16) weights, exact softmax recip.
    tok2d = jnp.transpose(tokens).reshape(N * S, 1)
    ref2d = _forward_block(tok2d, params, N, S, approx=False)
    ref = jnp.transpose(
        ref2d.reshape(N, S, OUT_PAD)[:, :, :OUTPUT_SIZE], (1, 0, 2))

    # Tolerance covers the documented numeric drift between the Pallas kernel
    # and the XLA reference: bf16 MXU operands, EUP approx reciprocal in the
    # kernel softmax, hardware exp/rsqrt implementation differences, compounded
    # over 2 encoder layers + experts + final Linear.
    err = float(jnp.max(jnp.abs(out - ref)))
    tol = 3e-2 + 3e-2 * float(jnp.max(jnp.abs(ref)))
    assert err <= tol, (err, tol)
    print("KERNEL_OK")
</pallas_src>

<mosaic_0001>
module attributes {stable_mosaic.version = 11 : i64} {
  func.func @prformer_kernel(%arg0: i32, %arg1: memref<16x1xi32, #tpu.memory_space<vmem>>, %arg2: memref<8x64xbf16, #tpu.memory_space<vmem>>, %arg3: memref<2x64x192xbf16, #tpu.memory_space<vmem>>, %arg4: memref<2x1x192xf32, #tpu.memory_space<vmem>>, %arg5: memref<2x64x64xbf16, #tpu.memory_space<vmem>>, %arg6: memref<2x64x2048xbf16, #tpu.memory_space<vmem>>, %arg7: memref<2x1x2048xf32, #tpu.memory_space<vmem>>, %arg8: memref<2x2048x64xbf16, #tpu.memory_space<vmem>>, %arg9: memref<2x6x64xf32, #tpu.memory_space<vmem>>, %arg10: memref<64x256xbf16, #tpu.memory_space<vmem>>, %arg11: memref<256x256xbf16, #tpu.memory_space<vmem>>, %arg12: memref<2x256xf32, #tpu.memory_space<vmem>>, %arg13: memref<256x128xbf16, #tpu.memory_space<vmem>>, %arg14: memref<1x128xf32, #tpu.memory_space<vmem>>, %arg15: memref<16x128xf32, #tpu.memory_space<vmem>>) attributes {dimension_semantics = [#tpu.dimension_semantics<parallel>], iteration_bounds = array<i64: 2>, scalar_prefetch = 0 : i64, scratch_operands = 0 : i64, tpu.core_type = #tpu.core_type<tc>, window_params = [{transform_indices = @transform_0, window_bounds = array<i64: 16, 1>}, {pipeline_mode = #tpu.pipeline_mode<synchronous>, transform_indices = @transform_1, window_bounds = array<i64: 8, 64>}, {pipeline_mode = #tpu.pipeline_mode<synchronous>, transform_indices = @transform_2, window_bounds = array<i64: 2, 64, 192>}, {pipeline_mode = #tpu.pipeline_mode<synchronous>, transform_indices = @transform_3, window_bounds = array<i64: 2, 1, 192>}, {pipeline_mode = #tpu.pipeline_mode<synchronous>, transform_indices = @transform_4, window_bounds = array<i64: 2, 64, 64>}, {pipeline_mode = #tpu.pipeline_mode<synchronous>, transform_indices = @transform_5, window_bounds = array<i64: 2, 64, 2048>}, {pipeline_mode = #tpu.pipeline_mode<synchronous>, transform_indices = @transform_6, window_bounds = array<i64: 2, 1, 2048>}, {pipeline_mode = #tpu.pipeline_mode<synchronous>, transform_indices = @transform_7, window_bounds = array<i64: 2, 2048, 64>}, {pipeline_mode = #tpu.pipeline_mode<synchronous>, transform_indices = @transform_8, window_bounds = array<i64: 2, 6, 64>}, {pipeline_mode = #tpu.pipeline_mode<synchronous>, transform_indices = @transform_9, window_bounds = array<i64: 64, 256>}, {pipeline_mode = #tpu.pipeline_mode<synchronous>, transform_indices = @transform_10, window_bounds = array<i64: 256, 256>}, {pipeline_mode = #tpu.pipeline_mode<synchronous>, transform_indices = @transform_11, window_bounds = array<i64: 2, 256>}, {pipeline_mode = #tpu.pipeline_mode<synchronous>, transform_indices = @transform_12, window_bounds = array<i64: 256, 128>}, {pipeline_mode = #tpu.pipeline_mode<synchronous>, transform_indices = @transform_13, window_bounds = array<i64: 1, 128>}, {transform_indices = @transform_14, window_bounds = array<i64: 16, 128>}]} {
    %c0 = arith.constant 0 : index
    %c0_0 = arith.constant 0 : index
    %0 = vector.load %arg1[%c0, %c0_0] : memref<16x1xi32, #tpu.memory_space<vmem>>, vector<16x1xi32>
    %1 = tpu.iota {dimensions = array<i32: 1>} : vector<16x8xi32>
    %2 = vector.broadcast %0 : vector<16x1xi32> to vector<16x8xi32>
    %3 = arith.cmpi eq, %2, %1 : vector<16x8xi32>
    %cst = arith.constant 1.000000e+00 : f32
    %cst_1 = arith.constant 0.000000e+00 : f32
    %4 = vector.broadcast %cst : f32 to vector<16x8xf32>
    %5 = vector.broadcast %cst_1 : f32 to vector<16x8xf32>
    %6 = arith.select %3, %4, %5 : vector<16x8xi1>, vector<16x8xf32>
    %7 = arith.truncf %6 : vector<16x8xf32> to vector<16x8xbf16>
    %c0_2 = arith.constant 0 : index
    %c0_3 = arith.constant 0 : index
    %8 = vector.load %arg2[%c0_2, %c0_3] : memref<8x64xbf16, #tpu.memory_space<vmem>>, vector<8x64xbf16>
    %cst_4 = arith.constant dense<0.000000e+00> : vector<16x64xf32>
    %9 = tpu.matmul %7, %8, %cst_4 {dimension_numbers = #tpu.dot_dimension_numbers<[1], [0], [0], [1], [0, 0, 1, 1], [], []>} : vector<16x8xbf16>, vector<8x64xbf16>, vector<16x64xf32> -> vector<16x64xf32>
    %c0_5 = arith.constant 0 : index
    %c0_6 = arith.constant 0 : index
    %c0_7 = arith.constant 0 : index
    %10 = vector.load %arg3[%c0_5, %c0_6, %c0_7] : memref<2x64x192xbf16, #tpu.memory_space<vmem>>, vector<1x64x192xbf16>
    %11 = vector.shape_cast %10 : vector<1x64x192xbf16> to vector<64x192xbf16>
    %c0_8 = arith.constant 0 : index
    %c0_9 = arith.constant 0 : index
    %c0_10 = arith.constant 0 : index
    %12 = vector.load %arg4[%c0_8, %c0_9, %c0_10] : memref<2x1x192xf32, #tpu.memory_space<vmem>>, vector<1x1x192xf32>
    %13 = vector.shape_cast %12 : vector<1x1x192xf32> to vector<1x192xf32>
    %c0_11 = arith.constant 0 : index
    %c0_12 = arith.constant 0 : index
    %c0_13 = arith.constant 0 : index
    %14 = vector.load %arg5[%c0_11, %c0_12, %c0_13] : memref<2x64x64xbf16, #tpu.memory_space<vmem>>, vector<1x64x64xbf16>
    %15 = vector.shape_cast %14 : vector<1x64x64xbf16> to vector<64x64xbf16>
    %c0_14 = arith.constant 0 : index
    %c0_15 = arith.constant 0 : index
    %c0_16 = arith.constant 0 : index
    %16 = vector.load %arg6[%c0_14, %c0_15, %c0_16] : memref<2x64x2048xbf16, #tpu.memory_space<vmem>>, vector<1x64x2048xbf16>
    %17 = vector.shape_cast %16 : vector<1x64x2048xbf16> to vector<64x2048xbf16>
    %c0_17 = arith.constant 0 : index
    %c0_18 = arith.constant 0 : index
    %c0_19 = arith.constant 0 : index
    %18 = vector.load %arg7[%c0_17, %c0_18, %c0_19] : memref<2x1x2048xf32, #tpu.memory_space<vmem>>, vector<1x1x2048xf32>
    %19 = vector.shape_cast %18 : vector<1x1x2048xf32> to vector<1x2048xf32>
    %c0_20 = arith.constant 0 : index
    %c0_21 = arith.constant 0 : index
    %c0_22 = arith.constant 0 : index
    %20 = vector.load %arg8[%c0_20, %c0_21, %c0_22] : memref<2x2048x64xbf16, #tpu.memory_space<vmem>>, vector<1x2048x64xbf16>
    %21 = vector.shape_cast %20 : vector<1x2048x64xbf16> to vector<2048x64xbf16>
    %c0_23 = arith.constant 0 : index
    %c0_24 = arith.constant 0 : index
    %c0_25 = arith.constant 0 : index
    %22 = vector.load %arg9[%c0_23, %c0_24, %c0_25] : memref<2x6x64xf32, #tpu.memory_space<vmem>>, vector<1x6x64xf32>
    %23 = vector.shape_cast %22 : vector<1x6x64xf32> to vector<6x64xf32>
    %24 = vector.extract_strided_slice %23 {offsets = [0, 0], sizes = [1, 64], strides = [1, 1]} : vector<6x64xf32> to vector<1x64xf32>
    %25 = vector.extract_strided_slice %23 {offsets = [1, 0], sizes = [1, 64], strides = [1, 1]} : vector<6x64xf32> to vector<1x64xf32>
    %26 = vector.extract_strided_slice %23 {offsets = [2, 0], sizes = [1, 64], strides = [1, 1]} : vector<6x64xf32> to vector<1x64xf32>
    %27 = vector.extract_strided_slice %23 {offsets = [3, 0], sizes = [1, 64], strides = [1, 1]} : vector<6x64xf32> to vector<1x64xf32>
    %28 = vector.extract_strided_slice %23 {offsets = [4, 0], sizes = [1, 64], strides = [1, 1]} : vector<6x64xf32> to vector<1x64xf32>
    %29 = vector.extract_strided_slice %23 {offsets = [5, 0], sizes = [1, 64], strides = [1, 1]} : vector<6x64xf32> to vector<1x64xf32>
    %30 = arith.truncf %9 : vector<16x64xf32> to vector<16x64xbf16>
    %cst_26 = arith.constant dense<0.000000e+00> : vector<16x192xf32>
    %31 = tpu.matmul %30, %11, %cst_26 {dimension_numbers = #tpu.dot_dimension_numbers<[1], [0], [0], [1], [0, 0, 1, 1], [], []>} : vector<16x64xbf16>, vector<64x192xbf16>, vector<16x192xf32> -> vector<16x192xf32>
    %32 = vector.broadcast %13 : vector<1x192xf32> to vector<16x192xf32>
    %33 = arith.addf %31, %32 : vector<16x192xf32>
    %34 = vector.extract_strided_slice %33 {offsets = [0, 0], sizes = [16, 64], strides = [1, 1]} : vector<16x192xf32> to vector<16x64xf32>
    %35 = arith.truncf %34 : vector<16x64xf32> to vector<16x64xbf16>
    %36 = vector.shape_cast %35 : vector<16x64xbf16> to vector<2x8x64xbf16>
    %37 = vector.extract_strided_slice %33 {offsets = [0, 64], sizes = [16, 64], strides = [1, 1]} : vector<16x192xf32> to vector<16x64xf32>
    %38 = arith.truncf %37 : vector<16x64xf32> to vector<16x64xbf16>
    %39 = vector.shape_cast %38 : vector<16x64xbf16> to vector<2x8x64xbf16>
    %40 = vector.extract_strided_slice %33 {offsets = [0, 128], sizes = [16, 64], strides = [1, 1]} : vector<16x192xf32> to vector<16x64xf32>
    %41 = arith.truncf %40 : vector<16x64xf32> to vector<16x64xbf16>
    %42 = vector.shape_cast %41 : vector<16x64xbf16> to vector<2x8x64xbf16>
    %43 = vector.extract_strided_slice %36 {offsets = [0, 0, 0], sizes = [2, 8, 16], strides = [1, 1, 1]} : vector<2x8x64xbf16> to vector<2x8x16xbf16>
    %44 = vector.extract_strided_slice %39 {offsets = [0, 0, 0], sizes = [2, 8, 16], strides = [1, 1, 1]} : vector<2x8x64xbf16> to vector<2x8x16xbf16>
    %45 = vector.extract_strided_slice %42 {offsets = [0, 0, 0], sizes = [2, 8, 16], strides = [1, 1, 1]} : vector<2x8x64xbf16> to vector<2x8x16xbf16>
    "tpu.trace_start"() <{level = 10 : i32, message = "bqd,bkd->bqk"}> : () -> ()
    %cst_27 = arith.constant dense<0.000000e+00> : vector<2x8x8xf32>
    %46 = tpu.matmul %43, %44, %cst_27 {dimension_numbers = #tpu.dot_dimension_numbers<[2], [2], [1], [1], [0, 0, 0, 1, 1, 1], [0], [0]>} : vector<2x8x16xbf16>, vector<2x8x16xbf16>, vector<2x8x8xf32> -> vector<2x8x8xf32>
    "tpu.trace_stop"() : () -> ()
    %cst_28 = arith.constant dense<0xFF800000> : vector<2x8xf32>
    %47 = vector.multi_reduction <maximumf>, %46, %cst_28 [2] : vector<2x8x8xf32> to vector<2x8xf32>
    %48 = vector.shape_cast %47 : vector<2x8xf32> to vector<2x8x1xf32>
    %49 = vector.broadcast %48 : vector<2x8x1xf32> to vector<2x8x8xf32>
    %50 = arith.subf %46, %49 : vector<2x8x8xf32>
    %51 = math.exp %50 : vector<2x8x8xf32>
    %cst_29 = arith.constant dense<0.000000e+00> : vector<2x8xf32>
    %52 = vector.multi_reduction <add>, %51, %cst_29 [2] : vector<2x8x8xf32> to vector<2x8xf32>
    %53 = vector.shape_cast %52 : vector<2x8xf32> to vector<2x8x1xf32>
    %54 = tpu.reciprocal %53 {approx = true} : vector<2x8x1xf32> -> vector<2x8x1xf32>
    %55 = vector.broadcast %54 : vector<2x8x1xf32> to vector<2x8x8xf32>
    %56 = arith.mulf %51, %55 : vector<2x8x8xf32>
    %57 = arith.truncf %56 : vector<2x8x8xf32> to vector<2x8x8xbf16>
    "tpu.trace_start"() <{level = 10 : i32, message = "bqk,bkd->bqd"}> : () -> ()
    %cst_30 = arith.constant dense<0.000000e+00> : vector<2x8x16xf32>
    %58 = tpu.matmul %57, %45, %cst_30 {dimension_numbers = #tpu.dot_dimension_numbers<[2], [1], [1], [2], [0, 0, 0, 1, 1, 2], [0], [0]>} : vector<2x8x8xbf16>, vector<2x8x16xbf16>, vector<2x8x16xf32> -> vector<2x8x16xf32>
    "tpu.trace_stop"() : () -> ()
    %59 = vector.extract_strided_slice %36 {offsets = [0, 0, 16], sizes = [2, 8, 16], strides = [1, 1, 1]} : vector<2x8x64xbf16> to vector<2x8x16xbf16>
    %60 = vector.extract_strided_slice %39 {offsets = [0, 0, 16], sizes = [2, 8, 16], strides = [1, 1, 1]} : vector<2x8x64xbf16> to vector<2x8x16xbf16>
    %61 = vector.extract_strided_slice %42 {offsets = [0, 0, 16], sizes = [2, 8, 16], strides = [1, 1, 1]} : vector<2x8x64xbf16> to vector<2x8x16xbf16>
    "tpu.trace_start"() <{level = 10 : i32, message = "bqd,bkd->bqk"}> : () -> ()
    %cst_31 = arith.constant dense<0.000000e+00> : vector<2x8x8xf32>
    %62 = tpu.matmul %59, %60, %cst_31 {dimension_numbers = #tpu.dot_dimension_numbers<[2], [2], [1], [1], [0, 0, 0, 1, 1, 1], [0], [0]>} : vector<2x8x16xbf16>, vector<2x8x16xbf16>, vector<2x8x8xf32> -> vector<2x8x8xf32>
    "tpu.trace_stop"() : () -> ()
    %cst_32 = arith.constant dense<0xFF800000> : vector<2x8xf32>
    %63 = vector.multi_reduction <maximumf>, %62, %cst_32 [2] : vector<2x8x8xf32> to vector<2x8xf32>
    %64 = vector.shape_cast %63 : vector<2x8xf32> to vector<2x8x1xf32>
    %65 = vector.broadcast %64 : vector<2x8x1xf32> to vector<2x8x8xf32>
    %66 = arith.subf %62, %65 : vector<2x8x8xf32>
    %67 = math.exp %66 : vector<2x8x8xf32>
    %cst_33 = arith.constant dense<0.000000e+00> : vector<2x8xf32>
    %68 = vector.multi_reduction <add>, %67, %cst_33 [2] : vector<2x8x8xf32> to vector<2x8xf32>
    %69 = vector.shape_cast %68 : vector<2x8xf32> to vector<2x8x1xf32>
    %70 = tpu.reciprocal %69 {approx = true} : vector<2x8x1xf32> -> vector<2x8x1xf32>
    %71 = vector.broadcast %70 : vector<2x8x1xf32> to vector<2x8x8xf32>
    %72 = arith.mulf %67, %71 : vector<2x8x8xf32>
    %73 = arith.truncf %72 : vector<2x8x8xf32> to vector<2x8x8xbf16>
    "tpu.trace_start"() <{level = 10 : i32, message = "bqk,bkd->bqd"}> : () -> ()
    %cst_34 = arith.constant dense<0.000000e+00> : vector<2x8x16xf32>
    %74 = tpu.matmul %73, %61, %cst_34 {dimension_numbers = #tpu.dot_dimension_numbers<[2], [1], [1], [2], [0, 0, 0, 1, 1, 2], [0], [0]>} : vector<2x8x8xbf16>, vector<2x8x16xbf16>, vector<2x8x16xf32> -> vector<2x8x16xf32>
    "tpu.trace_stop"() : () -> ()
    %75 = vector.extract_strided_slice %36 {offsets = [0, 0, 32], sizes = [2, 8, 16], strides = [1, 1, 1]} : vector<2x8x64xbf16> to vector<2x8x16xbf16>
    %76 = vector.extract_strided_slice %39 {offsets = [0, 0, 32], sizes = [2, 8, 16], strides = [1, 1, 1]} : vector<2x8x64xbf16> to vector<2x8x16xbf16>
    %77 = vector.extract_strided_slice %42 {offsets = [0, 0, 32], sizes = [2, 8, 16], strides = [1, 1, 1]} : vector<2x8x64xbf16> to vector<2x8x16xbf16>
    "tpu.trace_start"() <{level = 10 : i32, message = "bqd,bkd->bqk"}> : () -> ()
    %cst_35 = arith.constant dense<0.000000e+00> : vector<2x8x8xf32>
    %78 = tpu.matmul %75, %76, %cst_35 {dimension_numbers = #tpu.dot_dimension_numbers<[2], [2], [1], [1], [0, 0, 0, 1, 1, 1], [0], [0]>} : vector<2x8x16xbf16>, vector<2x8x16xbf16>, vector<2x8x8xf32> -> vector<2x8x8xf32>
    "tpu.trace_stop"() : () -> ()
    %cst_36 = arith.constant dense<0xFF800000> : vector<2x8xf32>
    %79 = vector.multi_reduction <maximumf>, %78, %cst_36 [2] : vector<2x8x8xf32> to vector<2x8xf32>
    %80 = vector.shape_cast %79 : vector<2x8xf32> to vector<2x8x1xf32>
    %81 = vector.broadcast %80 : vector<2x8x1xf32> to vector<2x8x8xf32>
    %82 = arith.subf %78, %81 : vector<2x8x8xf32>
    %83 = math.exp %82 : vector<2x8x8xf32>
    %cst_37 = arith.constant dense<0.000000e+00> : vector<2x8xf32>
    %84 = vector.multi_reduction <add>, %83, %cst_37 [2] : vector<2x8x8xf32> to vector<2x8xf32>
    %85 = vector.shape_cast %84 : vector<2x8xf32> to vector<2x8x1xf32>
    %86 = tpu.reciprocal %85 {approx = true} : vector<2x8x1xf32> -> vector<2x8x1xf32>
    %87 = vector.broadcast %86 : vector<2x8x1xf32> to vector<2x8x8xf32>
    %88 = arith.mulf %83, %87 : vector<2x8x8xf32>
    %89 = arith.truncf %88 : vector<2x8x8xf32> to vector<2x8x8xbf16>
    "tpu.trace_start"() <{level = 10 : i32, message = "bqk,bkd->bqd"}> : () -> ()
    %cst_38 = arith.constant dense<0.000000e+00> : vector<2x8x16xf32>
    %90 = tpu.matmul %89, %77, %cst_38 {dimension_numbers = #tpu.dot_dimension_numbers<[2], [1], [1], [2], [0, 0, 0, 1, 1, 2], [0], [0]>} : vector<2x8x8xbf16>, vector<2x8x16xbf16>, vector<2x8x16xf32> -> vector<2x8x16xf32>
    "tpu.trace_stop"() : () -> ()
    %91 = vector.extract_strided_slice %36 {offsets = [0, 0, 48], sizes = [2, 8, 16], strides = [1, 1, 1]} : vector<2x8x64xbf16> to vector<2x8x16xbf16>
    %92 = vector.extract_strided_slice %39 {offsets = [0, 0, 48], sizes = [2, 8, 16], strides = [1, 1, 1]} : vector<2x8x64xbf16> to vector<2x8x16xbf16>
    %93 = vector.extract_strided_slice %42 {offsets = [0, 0, 48], sizes = [2, 8, 16], strides = [1, 1, 1]} : vector<2x8x64xbf16> to vector<2x8x16xbf16>
    "tpu.trace_start"() <{level = 10 : i32, message = "bqd,bkd->bqk"}> : () -> ()
    %cst_39 = arith.constant dense<0.000000e+00> : vector<2x8x8xf32>
    %94 = tpu.matmul %91, %92, %cst_39 {dimension_numbers = #tpu.dot_dimension_numbers<[2], [2], [1], [1], [0, 0, 0, 1, 1, 1], [0], [0]>} : vector<2x8x16xbf16>, vector<2x8x16xbf16>, vector<2x8x8xf32> -> vector<2x8x8xf32>
    "tpu.trace_stop"() : () -> ()
    %cst_40 = arith.constant dense<0xFF800000> : vector<2x8xf32>
    %95 = vector.multi_reduction <maximumf>, %94, %cst_40 [2] : vector<2x8x8xf32> to vector<2x8xf32>
    %96 = vector.shape_cast %95 : vector<2x8xf32> to vector<2x8x1xf32>
    %97 = vector.broadcast %96 : vector<2x8x1xf32> to vector<2x8x8xf32>
    %98 = arith.subf %94, %97 : vector<2x8x8xf32>
    %99 = math.exp %98 : vector<2x8x8xf32>
    %cst_41 = arith.constant dense<0.000000e+00> : vector<2x8xf32>
    %100 = vector.multi_reduction <add>, %99, %cst_41 [2] : vector<2x8x8xf32> to vector<2x8xf32>
    %101 = vector.shape_cast %100 : vector<2x8xf32> to vector<2x8x1xf32>
    %102 = tpu.reciprocal %101 {approx = true} : vector<2x8x1xf32> -> vector<2x8x1xf32>
    %103 = vector.broadcast %102 : vector<2x8x1xf32> to vector<2x8x8xf32>
    %104 = arith.mulf %99, %103 : vector<2x8x8xf32>
    %105 = arith.truncf %104 : vector<2x8x8xf32> to vector<2x8x8xbf16>
    "tpu.trace_start"() <{level = 10 : i32, message = "bqk,bkd->bqd"}> : () -> ()
    %cst_42 = arith.constant dense<0.000000e+00> : vector<2x8x16xf32>
    %106 = tpu.matmul %105, %93, %cst_42 {dimension_numbers = #tpu.dot_dimension_numbers<[2], [1], [1], [2], [0, 0, 0, 1, 1, 2], [0], [0]>} : vector<2x8x8xbf16>, vector<2x8x16xbf16>, vector<2x8x16xf32> -> vector<2x8x16xf32>
    "tpu.trace_stop"() : () -> ()
    %107 = tpu.concatenate %58, %74, %90, %106 in 2 : vector<2x8x16xf32>, vector<2x8x16xf32>, vector<2x8x16xf32>, vector<2x8x16xf32> -> vector<2x8x64xf32>
    %108 = vector.shape_cast %107 : vector<2x8x64xf32> to vector<16x64xf32>
    %109 = arith.truncf %108 : vector<16x64xf32> to vector<16x64xbf16>
    %cst_43 = arith.constant dense<0.000000e+00> : vector<16x64xf32>
    %110 = tpu.matmul %109, %15, %cst_43 {dimension_numbers = #tpu.dot_dimension_numbers<[1], [0], [0], [1], [0, 0, 1, 1], [], []>} : vector<16x64xbf16>, vector<64x64xbf16>, vector<16x64xf32> -> vector<16x64xf32>
    %111 = vector.broadcast %24 : vector<1x64xf32> to vector<16x64xf32>
    %112 = arith.addf %110, %111 : vector<16x64xf32>
    %113 = arith.addf %9, %112 : vector<16x64xf32>
    %cst_44 = arith.constant dense<0.000000e+00> : vector<16xf32>
    %114 = vector.multi_reduction <add>, %113, %cst_44 [1] : vector<16x64xf32> to vector<16xf32>
    %115 = vector.shape_cast %114 : vector<16xf32> to vector<16x1xf32>
    %cst_45 = arith.constant 6.400000e+01 : f32
    %116 = vector.broadcast %cst_45 : f32 to vector<16x1xf32>
    %117 = arith.divf %115, %116 : vector<16x1xf32>
    %118 = vector.broadcast %117 : vector<16x1xf32> to vector<16x64xf32>
    %119 = arith.subf %113, %118 : vector<16x64xf32>
    %120 = arith.mulf %119, %119 : vector<16x64xf32>
    %cst_46 = arith.constant dense<0.000000e+00> : vector<16xf32>
    %121 = vector.multi_reduction <add>, %120, %cst_46 [1] : vector<16x64xf32> to vector<16xf32>
    %122 = vector.shape_cast %121 : vector<16xf32> to vector<16x1xf32>
    %cst_47 = arith.constant 6.400000e+01 : f32
    %123 = vector.broadcast %cst_47 : f32 to vector<16x1xf32>
    %124 = arith.divf %122, %123 : vector<16x1xf32>
    %cst_48 = arith.constant 9.99999974E-6 : f32
    %125 = vector.broadcast %cst_48 : f32 to vector<16x1xf32>
    %126 = arith.addf %124, %125 : vector<16x1xf32>
    %127 = math.rsqrt %126 : vector<16x1xf32>
    %128 = vector.broadcast %127 : vector<16x1xf32> to vector<16x64xf32>
    %129 = arith.mulf %119, %128 : vector<16x64xf32>
    %130 = vector.broadcast %25 : vector<1x64xf32> to vector<16x64xf32>
    %131 = arith.mulf %129, %130 : vector<16x64xf32>
    %132 = vector.broadcast %26 : vector<1x64xf32> to vector<16x64xf32>
    %133 = arith.addf %131, %132 : vector<16x64xf32>
    %134 = arith.truncf %133 : vector<16x64xf32> to vector<16x64xbf16>
    %cst_49 = arith.constant dense<0.000000e+00> : vector<16x2048xf32>
    %135 = tpu.matmul %134, %17, %cst_49 {dimension_numbers = #tpu.dot_dimension_numbers<[1], [0], [0], [1], [0, 0, 1, 1], [], []>} : vector<16x64xbf16>, vector<64x2048xbf16>, vector<16x2048xf32> -> vector<16x2048xf32>
    %136 = vector.broadcast %19 : vector<1x2048xf32> to vector<16x2048xf32>
    %137 = arith.addf %135, %136 : vector<16x2048xf32>
    %cst_50 = arith.constant 0.000000e+00 : f32
    %138 = vector.broadcast %cst_50 : f32 to vector<16x2048xf32>
    %139 = arith.maximumf %137, %138 : vector<16x2048xf32>
    %140 = arith.truncf %139 : vector<16x2048xf32> to vector<16x2048xbf16>
    %cst_51 = arith.constant dense<0.000000e+00> : vector<16x64xf32>
    %141 = tpu.matmul %140, %21, %cst_51 {dimension_numbers = #tpu.dot_dimension_numbers<[1], [0], [0], [1], [0, 0, 1, 1], [], []>} : vector<16x2048xbf16>, vector<2048x64xbf16>, vector<16x64xf32> -> vector<16x64xf32>
    %142 = vector.broadcast %27 : vector<1x64xf32> to vector<16x64xf32>
    %143 = arith.addf %141, %142 : vector<16x64xf32>
    %144 = arith.addf %133, %143 : vector<16x64xf32>
    %cst_52 = arith.constant dense<0.000000e+00> : vector<16xf32>
    %145 = vector.multi_reduction <add>, %144, %cst_52 [1] : vector<16x64xf32> to vector<16xf32>
    %146 = vector.shape_cast %145 : vector<16xf32> to vector<16x1xf32>
    %cst_53 = arith.constant 6.400000e+01 : f32
    %147 = vector.broadcast %cst_53 : f32 to vector<16x1xf32>
    %148 = arith.divf %146, %147 : vector<16x1xf32>
    %149 = vector.broadcast %148 : vector<16x1xf32> to vector<16x64xf32>
    %150 = arith.subf %144, %149 : vector<16x64xf32>
    %151 = arith.mulf %150, %150 : vector<16x64xf32>
    %cst_54 = arith.constant dense<0.000000e+00> : vector<16xf32>
    %152 = vector.multi_reduction <add>, %151, %cst_54 [1] : vector<16x64xf32> to vector<16xf32>
    %153 = vector.shape_cast %152 : vector<16xf32> to vector<16x1xf32>
    %cst_55 = arith.constant 6.400000e+01 : f32
    %154 = vector.broadcast %cst_55 : f32 to vector<16x1xf32>
    %155 = arith.divf %153, %154 : vector<16x1xf32>
    %cst_56 = arith.constant 9.99999974E-6 : f32
    %156 = vector.broadcast %cst_56 : f32 to vector<16x1xf32>
    %157 = arith.addf %155, %156 : vector<16x1xf32>
    %158 = math.rsqrt %157 : vector<16x1xf32>
    %159 = vector.broadcast %158 : vector<16x1xf32> to vector<16x64xf32>
    %160 = arith.mulf %150, %159 : vector<16x64xf32>
    %161 = vector.broadcast %28 : vector<1x64xf32> to vector<16x64xf32>
    %162 = arith.mulf %160, %161 : vector<16x64xf32>
    %163 = vector.broadcast %29 : vector<1x64xf32> to vector<16x64xf32>
    %164 = arith.addf %162, %163 : vector<16x64xf32>
    %c1 = arith.constant 1 : index
    %c0_57 = arith.constant 0 : index
    %c0_58 = arith.constant 0 : index
    %165 = vector.load %arg3[%c1, %c0_57, %c0_58] : memref<2x64x192xbf16, #tpu.memory_space<vmem>>, vector<1x64x192xbf16>
    %166 = vector.shape_cast %165 : vector<1x64x192xbf16> to vector<64x192xbf16>
    %c1_59 = arith.constant 1 : index
    %c0_60 = arith.constant 0 : index
    %c0_61 = arith.constant 0 : index
    %167 = vector.load %arg4[%c1_59, %c0_60, %c0_61] : memref<2x1x192xf32, #tpu.memory_space<vmem>>, vector<1x1x192xf32>
    %168 = vector.shape_cast %167 : vector<1x1x192xf32> to vector<1x192xf32>
    %c1_62 = arith.constant 1 : index
    %c0_63 = arith.constant 0 : index
    %c0_64 = arith.constant 0 : index
    %169 = vector.load %arg5[%c1_62, %c0_63, %c0_64] : memref<2x64x64xbf16, #tpu.memory_space<vmem>>, vector<1x64x64xbf16>
    %170 = vector.shape_cast %169 : vector<1x64x64xbf16> to vector<64x64xbf16>
    %c1_65 = arith.constant 1 : index
    %c0_66 = arith.constant 0 : index
    %c0_67 = arith.constant 0 : index
    %171 = vector.load %arg6[%c1_65, %c0_66, %c0_67] : memref<2x64x2048xbf16, #tpu.memory_space<vmem>>, vector<1x64x2048xbf16>
    %172 = vector.shape_cast %171 : vector<1x64x2048xbf16> to vector<64x2048xbf16>
    %c1_68 = arith.constant 1 : index
    %c0_69 = arith.constant 0 : index
    %c0_70 = arith.constant 0 : index
    %173 = vector.load %arg7[%c1_68, %c0_69, %c0_70] : memref<2x1x2048xf32, #tpu.memory_space<vmem>>, vector<1x1x2048xf32>
    %174 = vector.shape_cast %173 : vector<1x1x2048xf32> to vector<1x2048xf32>
    %c1_71 = arith.constant 1 : index
    %c0_72 = arith.constant 0 : index
    %c0_73 = arith.constant 0 : index
    %175 = vector.load %arg8[%c1_71, %c0_72, %c0_73] : memref<2x2048x64xbf16, #tpu.memory_space<vmem>>, vector<1x2048x64xbf16>
    %176 = vector.shape_cast %175 : vector<1x2048x64xbf16> to vector<2048x64xbf16>
    %c1_74 = arith.constant 1 : index
    %c0_75 = arith.constant 0 : index
    %c0_76 = arith.constant 0 : index
    %177 = vector.load %arg9[%c1_74, %c0_75, %c0_76] : memref<2x6x64xf32, #tpu.memory_space<vmem>>, vector<1x6x64xf32>
    %178 = vector.shape_cast %177 : vector<1x6x64xf32> to vector<6x64xf32>
    %179 = vector.extract_strided_slice %178 {offsets = [0, 0], sizes = [1, 64], strides = [1, 1]} : vector<6x64xf32> to vector<1x64xf32>
    %180 = vector.extract_strided_slice %178 {offsets = [1, 0], sizes = [1, 64], strides = [1, 1]} : vector<6x64xf32> to vector<1x64xf32>
    %181 = vector.extract_strided_slice %178 {offsets = [2, 0], sizes = [1, 64], strides = [1, 1]} : vector<6x64xf32> to vector<1x64xf32>
    %182 = vector.extract_strided_slice %178 {offsets = [3, 0], sizes = [1, 64], strides = [1, 1]} : vector<6x64xf32> to vector<1x64xf32>
    %183 = vector.extract_strided_slice %178 {offsets = [4, 0], sizes = [1, 64], strides = [1, 1]} : vector<6x64xf32> to vector<1x64xf32>
    %184 = vector.extract_strided_slice %178 {offsets = [5, 0], sizes = [1, 64], strides = [1, 1]} : vector<6x64xf32> to vector<1x64xf32>
    %185 = arith.truncf %164 : vector<16x64xf32> to vector<16x64xbf16>
    %cst_77 = arith.constant dense<0.000000e+00> : vector<16x192xf32>
    %186 = tpu.matmul %185, %166, %cst_77 {dimension_numbers = #tpu.dot_dimension_numbers<[1], [0], [0], [1], [0, 0, 1, 1], [], []>} : vector<16x64xbf16>, vector<64x192xbf16>, vector<16x192xf32> -> vector<16x192xf32>
    %187 = vector.broadcast %168 : vector<1x192xf32> to vector<16x192xf32>
    %188 = arith.addf %186, %187 : vector<16x192xf32>
    %189 = vector.extract_strided_slice %188 {offsets = [0, 0], sizes = [16, 64], strides = [1, 1]} : vector<16x192xf32> to vector<16x64xf32>
    %190 = arith.truncf %189 : vector<16x64xf32> to vector<16x64xbf16>
    %191 = vector.shape_cast %190 : vector<16x64xbf16> to vector<2x8x64xbf16>
    %192 = vector.extract_strided_slice %188 {offsets = [0, 64], sizes = [16, 64], strides = [1, 1]} : vector<16x192xf32> to vector<16x64xf32>
    %193 = arith.truncf %192 : vector<16x64xf32> to vector<16x64xbf16>
    %194 = vector.shape_cast %193 : vector<16x64xbf16> to vector<2x8x64xbf16>
    %195 = vector.extract_strided_slice %188 {offsets = [0, 128], sizes = [16, 64], strides = [1, 1]} : vector<16x192xf32> to vector<16x64xf32>
    %196 = arith.truncf %195 : vector<16x64xf32> to vector<16x64xbf16>
    %197 = vector.shape_cast %196 : vector<16x64xbf16> to vector<2x8x64xbf16>
    %198 = vector.extract_strided_slice %191 {offsets = [0, 0, 0], sizes = [2, 8, 16], strides = [1, 1, 1]} : vector<2x8x64xbf16> to vector<2x8x16xbf16>
    %199 = vector.extract_strided_slice %194 {offsets = [0, 0, 0], sizes = [2, 8, 16], strides = [1, 1, 1]} : vector<2x8x64xbf16> to vector<2x8x16xbf16>
    %200 = vector.extract_strided_slice %197 {offsets = [0, 0, 0], sizes = [2, 8, 16], strides = [1, 1, 1]} : vector<2x8x64xbf16> to vector<2x8x16xbf16>
    "tpu.trace_start"() <{level = 10 : i32, message = "bqd,bkd->bqk"}> : () -> ()
    %cst_78 = arith.constant dense<0.000000e+00> : vector<2x8x8xf32>
    %201 = tpu.matmul %198, %199, %cst_78 {dimension_numbers = #tpu.dot_dimension_numbers<[2], [2], [1], [1], [0, 0, 0, 1, 1, 1], [0], [0]>} : vector<2x8x16xbf16>, vector<2x8x16xbf16>, vector<2x8x8xf32> -> vector<2x8x8xf32>
    "tpu.trace_stop"() : () -> ()
    %cst_79 = arith.constant dense<0xFF800000> : vector<2x8xf32>
    %202 = vector.multi_reduction <maximumf>, %201, %cst_79 [2] : vector<2x8x8xf32> to vector<2x8xf32>
    %203 = vector.shape_cast %202 : vector<2x8xf32> to vector<2x8x1xf32>
    %204 = vector.broadcast %203 : vector<2x8x1xf32> to vector<2x8x8xf32>
    %205 = arith.subf %201, %204 : vector<2x8x8xf32>
    %206 = math.exp %205 : vector<2x8x8xf32>
    %cst_80 = arith.constant dense<0.000000e+00> : vector<2x8xf32>
    %207 = vector.multi_reduction <add>, %206, %cst_80 [2] : vector<2x8x8xf32> to vector<2x8xf32>
    %208 = vector.shape_cast %207 : vector<2x8xf32> to vector<2x8x1xf32>
    %209 = tpu.reciprocal %208 {approx = true} : vector<2x8x1xf32> -> vector<2x8x1xf32>
    %210 = vector.broadcast %209 : vector<2x8x1xf32> to vector<2x8x8xf32>
    %211 = arith.mulf %206, %210 : vector<2x8x8xf32>
    %212 = arith.truncf %211 : vector<2x8x8xf32> to vector<2x8x8xbf16>
    "tpu.trace_start"() <{level = 10 : i32, message = "bqk,bkd->bqd"}> : () -> ()
    %cst_81 = arith.constant dense<0.000000e+00> : vector<2x8x16xf32>
    %213 = tpu.matmul %212, %200, %cst_81 {dimension_numbers = #tpu.dot_dimension_numbers<[2], [1], [1], [2], [0, 0, 0, 1, 1, 2], [0], [0]>} : vector<2x8x8xbf16>, vector<2x8x16xbf16>, vector<2x8x16xf32> -> vector<2x8x16xf32>
    "tpu.trace_stop"() : () -> ()
    %214 = vector.extract_strided_slice %191 {offsets = [0, 0, 16], sizes = [2, 8, 16], strides = [1, 1, 1]} : vector<2x8x64xbf16> to vector<2x8x16xbf16>
    %215 = vector.extract_strided_slice %194 {offsets = [0, 0, 16], sizes = [2, 8, 16], strides = [1, 1, 1]} : vector<2x8x64xbf16> to vector<2x8x16xbf16>
    %216 = vector.extract_strided_slice %197 {offsets = [0, 0, 16], sizes = [2, 8, 16], strides = [1, 1, 1]} : vector<2x8x64xbf16> to vector<2x8x16xbf16>
    "tpu.trace_start"() <{level = 10 : i32, message = "bqd,bkd->bqk"}> : () -> ()
    %cst_82 = arith.constant dense<0.000000e+00> : vector<2x8x8xf32>
    %217 = tpu.matmul %214, %215, %cst_82 {dimension_numbers = #tpu.dot_dimension_numbers<[2], [2], [1], [1], [0, 0, 0, 1, 1, 1], [0], [0]>} : vector<2x8x16xbf16>, vector<2x8x16xbf16>, vector<2x8x8xf32> -> vector<2x8x8xf32>
    "tpu.trace_stop"() : () -> ()
    %cst_83 = arith.constant dense<0xFF800000> : vector<2x8xf32>
    %218 = vector.multi_reduction <maximumf>, %217, %cst_83 [2] : vector<2x8x8xf32> to vector<2x8xf32>
    %219 = vector.shape_cast %218 : vector<2x8xf32> to vector<2x8x1xf32>
    %220 = vector.broadcast %219 : vector<2x8x1xf32> to vector<2x8x8xf32>
    %221 = arith.subf %217, %220 : vector<2x8x8xf32>
    %222 = math.exp %221 : vector<2x8x8xf32>
    %cst_84 = arith.constant dense<0.000000e+00> : vector<2x8xf32>
    %223 = vector.multi_reduction <add>, %222, %cst_84 [2] : vector<2x8x8xf32> to vector<2x8xf32>
    %224 = vector.shape_cast %223 : vector<2x8xf32> to vector<2x8x1xf32>
    %225 = tpu.reciprocal %224 {approx = true} : vector<2x8x1xf32> -> vector<2x8x1xf32>
    %226 = vector.broadcast %225 : vector<2x8x1xf32> to vector<2x8x8xf32>
    %227 = arith.mulf %222, %226 : vector<2x8x8xf32>
    %228 = arith.truncf %227 : vector<2x8x8xf32> to vector<2x8x8xbf16>
    "tpu.trace_start"() <{level = 10 : i32, message = "bqk,bkd->bqd"}> : () -> ()
    %cst_85 = arith.constant dense<0.000000e+00> : vector<2x8x16xf32>
    %229 = tpu.matmul %228, %216, %cst_85 {dimension_numbers = #tpu.dot_dimension_numbers<[2], [1], [1], [2], [0, 0, 0, 1, 1, 2], [0], [0]>} : vector<2x8x8xbf16>, vector<2x8x16xbf16>, vector<2x8x16xf32> -> vector<2x8x16xf32>
    "tpu.trace_stop"() : () -> ()
    %230 = vector.extract_strided_slice %191 {offsets = [0, 0, 32], sizes = [2, 8, 16], strides = [1, 1, 1]} : vector<2x8x64xbf16> to vector<2x8x16xbf16>
    %231 = vector.extract_strided_slice %194 {offsets = [0, 0, 32], sizes = [2, 8, 16], strides = [1, 1, 1]} : vector<2x8x64xbf16> to vector<2x8x16xbf16>
    %232 = vector.extract_strided_slice %197 {offsets = [0, 0, 32], sizes = [2, 8, 16], strides = [1, 1, 1]} : vector<2x8x64xbf16> to vector<2x8x16xbf16>
    "tpu.trace_start"() <{level = 10 : i32, message = "bqd,bkd->bqk"}> : () -> ()
    %cst_86 = arith.constant dense<0.000000e+00> : vector<2x8x8xf32>
    %233 = tpu.matmul %230, %231, %cst_86 {dimension_numbers = #tpu.dot_dimension_numbers<[2], [2], [1], [1], [0, 0, 0, 1, 1, 1], [0], [0]>} : vector<2x8x16xbf16>, vector<2x8x16xbf16>, vector<2x8x8xf32> -> vector<2x8x8xf32>
    "tpu.trace_stop"() : () -> ()
    %cst_87 = arith.constant dense<0xFF800000> : vector<2x8xf32>
    %234 = vector.multi_reduction <maximumf>, %233, %cst_87 [2] : vector<2x8x8xf32> to vector<2x8xf32>
    %235 = vector.shape_cast %234 : vector<2x8xf32> to vector<2x8x1xf32>
    %236 = vector.broadcast %235 : vector<2x8x1xf32> to vector<2x8x8xf32>
    %237 = arith.subf %233, %236 : vector<2x8x8xf32>
    %238 = math.exp %237 : vector<2x8x8xf32>
    %cst_88 = arith.constant dense<0.000000e+00> : vector<2x8xf32>
    %239 = vector.multi_reduction <add>, %238, %cst_88 [2] : vector<2x8x8xf32> to vector<2x8xf32>
    %240 = vector.shape_cast %239 : vector<2x8xf32> to vector<2x8x1xf32>
    %241 = tpu.reciprocal %240 {approx = true} : vector<2x8x1xf32> -> vector<2x8x1xf32>
    %242 = vector.broadcast %241 : vector<2x8x1xf32> to vector<2x8x8xf32>
    %243 = arith.mulf %238, %242 : vector<2x8x8xf32>
    %244 = arith.truncf %243 : vector<2x8x8xf32> to vector<2x8x8xbf16>
    "tpu.trace_start"() <{level = 10 : i32, message = "bqk,bkd->bqd"}> : () -> ()
    %cst_89 = arith.constant dense<0.000000e+00> : vector<2x8x16xf32>
    %245 = tpu.matmul %244, %232, %cst_89 {dimension_numbers = #tpu.dot_dimension_numbers<[2], [1], [1], [2], [0, 0, 0, 1, 1, 2], [0], [0]>} : vector<2x8x8xbf16>, vector<2x8x16xbf16>, vector<2x8x16xf32> -> vector<2x8x16xf32>
    "tpu.trace_stop"() : () -> ()
    %246 = vector.extract_strided_slice %191 {offsets = [0, 0, 48], sizes = [2, 8, 16], strides = [1, 1, 1]} : vector<2x8x64xbf16> to vector<2x8x16xbf16>
    %247 = vector.extract_strided_slice %194 {offsets = [0, 0, 48], sizes = [2, 8, 16], strides = [1, 1, 1]} : vector<2x8x64xbf16> to vector<2x8x16xbf16>
    %248 = vector.extract_strided_slice %197 {offsets = [0, 0, 48], sizes = [2, 8, 16], strides = [1, 1, 1]} : vector<2x8x64xbf16> to vector<2x8x16xbf16>
    "tpu.trace_start"() <{level = 10 : i32, message = "bqd,bkd->bqk"}> : () -> ()
    %cst_90 = arith.constant dense<0.000000e+00> : vector<2x8x8xf32>
    %249 = tpu.matmul %246, %247, %cst_90 {dimension_numbers = #tpu.dot_dimension_numbers<[2], [2], [1], [1], [0, 0, 0, 1, 1, 1], [0], [0]>} : vector<2x8x16xbf16>, vector<2x8x16xbf16>, vector<2x8x8xf32> -> vector<2x8x8xf32>
    "tpu.trace_stop"() : () -> ()
    %cst_91 = arith.constant dense<0xFF800000> : vector<2x8xf32>
    %250 = vector.multi_reduction <maximumf>, %249, %cst_91 [2] : vector<2x8x8xf32> to vector<2x8xf32>
    %251 = vector.shape_cast %250 : vector<2x8xf32> to vector<2x8x1xf32>
    %252 = vector.broadcast %251 : vector<2x8x1xf32> to vector<2x8x8xf32>
    %253 = arith.subf %249, %252 : vector<2x8x8xf32>
    %254 = math.exp %253 : vector<2x8x8xf32>
    %cst_92 = arith.constant dense<0.000000e+00> : vector<2x8xf32>
    %255 = vector.multi_reduction <add>, %254, %cst_92 [2] : vector<2x8x8xf32> to vector<2x8xf32>
    %256 = vector.shape_cast %255 : vector<2x8xf32> to vector<2x8x1xf32>
    %257 = tpu.reciprocal %256 {approx = true} : vector<2x8x1xf32> -> vector<2x8x1xf32>
    %258 = vector.broadcast %257 : vector<2x8x1xf32> to vector<2x8x8xf32>
    %259 = arith.mulf %254, %258 : vector<2x8x8xf32>
    %260 = arith.truncf %259 : vector<2x8x8xf32> to vector<2x8x8xbf16>
    "tpu.trace_start"() <{level = 10 : i32, message = "bqk,bkd->bqd"}> : () -> ()
    %cst_93 = arith.constant dense<0.000000e+00> : vector<2x8x16xf32>
    %261 = tpu.matmul %260, %248, %cst_93 {dimension_numbers = #tpu.dot_dimension_numbers<[2], [1], [1], [2], [0, 0, 0, 1, 1, 2], [0], [0]>} : vector<2x8x8xbf16>, vector<2x8x16xbf16>, vector<2x8x16xf32> -> vector<2x8x16xf32>
    "tpu.trace_stop"() : () -> ()
    %262 = tpu.concatenate %213, %229, %245, %261 in 2 : vector<2x8x16xf32>, vector<2x8x16xf32>, vector<2x8x16xf32>, vector<2x8x16xf32> -> vector<2x8x64xf32>
    %263 = vector.shape_cast %262 : vector<2x8x64xf32> to vector<16x64xf32>
    %264 = arith.truncf %263 : vector<16x64xf32> to vector<16x64xbf16>
    %cst_94 = arith.constant dense<0.000000e+00> : vector<16x64xf32>
    %265 = tpu.matmul %264, %170, %cst_94 {dimension_numbers = #tpu.dot_dimension_numbers<[1], [0], [0], [1], [0, 0, 1, 1], [], []>} : vector<16x64xbf16>, vector<64x64xbf16>, vector<16x64xf32> -> vector<16x64xf32>
    %266 = vector.broadcast %179 : vector<1x64xf32> to vector<16x64xf32>
    %267 = arith.addf %265, %266 : vector<16x64xf32>
    %268 = arith.addf %164, %267 : vector<16x64xf32>
    %cst_95 = arith.constant dense<0.000000e+00> : vector<16xf32>
    %269 = vector.multi_reduction <add>, %268, %cst_95 [1] : vector<16x64xf32> to vector<16xf32>
    %270 = vector.shape_cast %269 : vector<16xf32> to vector<16x1xf32>
    %cst_96 = arith.constant 6.400000e+01 : f32
    %271 = vector.broadcast %cst_96 : f32 to vector<16x1xf32>
    %272 = arith.divf %270, %271 : vector<16x1xf32>
    %273 = vector.broadcast %272 : vector<16x1xf32> to vector<16x64xf32>
    %274 = arith.subf %268, %273 : vector<16x64xf32>
    %275 = arith.mulf %274, %274 : vector<16x64xf32>
    %cst_97 = arith.constant dense<0.000000e+00> : vector<16xf32>
    %276 = vector.multi_reduction <add>, %275, %cst_97 [1] : vector<16x64xf32> to vector<16xf32>
    %277 = vector.shape_cast %276 : vector<16xf32> to vector<16x1xf32>
    %cst_98 = arith.constant 6.400000e+01 : f32
    %278 = vector.broadcast %cst_98 : f32 to vector<16x1xf32>
    %279 = arith.divf %277, %278 : vector<16x1xf32>
    %cst_99 = arith.constant 9.99999974E-6 : f32
    %280 = vector.broadcast %cst_99 : f32 to vector<16x1xf32>
    %281 = arith.addf %279, %280 : vector<16x1xf32>
    %282 = math.rsqrt %281 : vector<16x1xf32>
    %283 = vector.broadcast %282 : vector<16x1xf32> to vector<16x64xf32>
    %284 = arith.mulf %274, %283 : vector<16x64xf32>
    %285 = vector.broadcast %180 : vector<1x64xf32> to vector<16x64xf32>
    %286 = arith.mulf %284, %285 : vector<16x64xf32>
    %287 = vector.broadcast %181 : vector<1x64xf32> to vector<16x64xf32>
    %288 = arith.addf %286, %287 : vector<16x64xf32>
    %289 = arith.truncf %288 : vector<16x64xf32> to vector<16x64xbf16>
    %cst_100 = arith.constant dense<0.000000e+00> : vector<16x2048xf32>
    %290 = tpu.matmul %289, %172, %cst_100 {dimension_numbers = #tpu.dot_dimension_numbers<[1], [0], [0], [1], [0, 0, 1, 1], [], []>} : vector<16x64xbf16>, vector<64x2048xbf16>, vector<16x2048xf32> -> vector<16x2048xf32>
    %291 = vector.broadcast %174 : vector<1x2048xf32> to vector<16x2048xf32>
    %292 = arith.addf %290, %291 : vector<16x2048xf32>
    %cst_101 = arith.constant 0.000000e+00 : f32
    %293 = vector.broadcast %cst_101 : f32 to vector<16x2048xf32>
    %294 = arith.maximumf %292, %293 : vector<16x2048xf32>
    %295 = arith.truncf %294 : vector<16x2048xf32> to vector<16x2048xbf16>
    %cst_102 = arith.constant dense<0.000000e+00> : vector<16x64xf32>
    %296 = tpu.matmul %295, %176, %cst_102 {dimension_numbers = #tpu.dot_dimension_numbers<[1], [0], [0], [1], [0, 0, 1, 1], [], []>} : vector<16x2048xbf16>, vector<2048x64xbf16>, vector<16x64xf32> -> vector<16x64xf32>
    %297 = vector.broadcast %182 : vector<1x64xf32> to vector<16x64xf32>
    %298 = arith.addf %296, %297 : vector<16x64xf32>
    %299 = arith.addf %288, %298 : vector<16x64xf32>
    %cst_103 = arith.constant dense<0.000000e+00> : vector<16xf32>
    %300 = vector.multi_reduction <add>, %299, %cst_103 [1] : vector<16x64xf32> to vector<16xf32>
    %301 = vector.shape_cast %300 : vector<16xf32> to vector<16x1xf32>
    %cst_104 = arith.constant 6.400000e+01 : f32
    %302 = vector.broadcast %cst_104 : f32 to vector<16x1xf32>
    %303 = arith.divf %301, %302 : vector<16x1xf32>
    %304 = vector.broadcast %303 : vector<16x1xf32> to vector<16x64xf32>
    %305 = arith.subf %299, %304 : vector<16x64xf32>
    %306 = arith.mulf %305, %305 : vector<16x64xf32>
    %cst_105 = arith.constant dense<0.000000e+00> : vector<16xf32>
    %307 = vector.multi_reduction <add>, %306, %cst_105 [1] : vector<16x64xf32> to vector<16xf32>
    %308 = vector.shape_cast %307 : vector<16xf32> to vector<16x1xf32>
    %cst_106 = arith.constant 6.400000e+01 : f32
    %309 = vector.broadcast %cst_106 : f32 to vector<16x1xf32>
    %310 = arith.divf %308, %309 : vector<16x1xf32>
    %cst_107 = arith.constant 9.99999974E-6 : f32
    %311 = vector.broadcast %cst_107 : f32 to vector<16x1xf32>
    %312 = arith.addf %310, %311 : vector<16x1xf32>
    %313 = math.rsqrt %312 : vector<16x1xf32>
    %314 = vector.broadcast %313 : vector<16x1xf32> to vector<16x64xf32>
    %315 = arith.mulf %305, %314 : vector<16x64xf32>
    %316 = vector.broadcast %183 : vector<1x64xf32> to vector<16x64xf32>
    %317 = arith.mulf %315, %316 : vector<16x64xf32>
    %318 = vector.broadcast %184 : vector<1x64xf32> to vector<16x64xf32>
    %319 = arith.addf %317, %318 : vector<16x64xf32>
    %c0_108 = arith.constant 0 : index
    %c0_109 = arith.constant 0 : index
    %320 = vector.load %arg10[%c0_108, %c0_109] : memref<64x256xbf16, #tpu.memory_space<vmem>>, vector<64x256xbf16>
    %321 = arith.truncf %319 : vector<16x64xf32> to vector<16x64xbf16>
    %cst_110 = arith.constant dense<0.000000e+00> : vector<16x256xf32>
    %322 = tpu.matmul %321, %320, %cst_110 {dimension_numbers = #tpu.dot_dimension_numbers<[1], [0], [0], [1], [0, 0, 1, 1], [], []>} : vector<16x64xbf16>, vector<64x256xbf16>, vector<16x256xf32> -> vector<16x256xf32>
    %c0_111 = arith.constant 0 : index
    %c0_112 = arith.constant 0 : index
    %323 = vector.load %arg12[%c0_111, %c0_112] : memref<2x256xf32, #tpu.memory_space<vmem>>, vector<1x256xf32>
    %324 = vector.broadcast %323 : vector<1x256xf32> to vector<16x256xf32>
    %325 = arith.addf %322, %324 : vector<16x256xf32>
    %c0_113 = arith.constant 0 : index
    %c0_114 = arith.constant 0 : index
    %326 = vector.load %arg11[%c0_113, %c0_114] : memref<256x256xbf16, #tpu.memory_space<vmem>>, vector<256x256xbf16>
    %327 = arith.truncf %325 : vector<16x256xf32> to vector<16x256xbf16>
    %cst_115 = arith.constant dense<0.000000e+00> : vector<16x256xf32>
    %328 = tpu.matmul %327, %326, %cst_115 {dimension_numbers = #tpu.dot_dimension_numbers<[1], [0], [0], [1], [0, 0, 1, 1], [], []>} : vector<16x256xbf16>, vector<256x256xbf16>, vector<16x256xf32> -> vector<16x256xf32>
    %c1_116 = arith.constant 1 : index
    %c0_117 = arith.constant 0 : index
    %329 = vector.load %arg12[%c1_116, %c0_117] : memref<2x256xf32, #tpu.memory_space<vmem>>, vector<1x256xf32>
    %330 = vector.broadcast %329 : vector<1x256xf32> to vector<16x256xf32>
    %331 = arith.addf %328, %330 : vector<16x256xf32>
    %c0_118 = arith.constant 0 : index
    %c0_119 = arith.constant 0 : index
    %332 = vector.load %arg13[%c0_118, %c0_119] : memref<256x128xbf16, #tpu.memory_space<vmem>>, vector<256x128xbf16>
    %333 = arith.truncf %331 : vector<16x256xf32> to vector<16x256xbf16>
    %cst_120 = arith.constant dense<0.000000e+00> : vector<16x128xf32>
    %334 = tpu.matmul %333, %332, %cst_120 {dimension_numbers = #tpu.dot_dimension_numbers<[1], [0], [0], [1], [0, 0, 1, 1], [], []>} : vector<16x256xbf16>, vector<256x128xbf16>, vector<16x128xf32> -> vector<16x128xf32>
    %c0_121 = arith.constant 0 : index
    %c0_122 = arith.constant 0 : index
    %335 = vector.load %arg14[%c0_121, %c0_122] : memref<1x128xf32, #tpu.memory_space<vmem>>, vector<1x128xf32>
    %336 = vector.broadcast %335 : vector<1x128xf32> to vector<16x128xf32>
    %337 = arith.addf %334, %336 : vector<16x128xf32>
    %c0_123 = arith.constant 0 : index
    %c0_124 = arith.constant 0 : index
    %338 = vector.load %arg15[%c0_123, %c0_124] : memref<16x128xf32, #tpu.memory_space<vmem>>, vector<16x128xf32>
    tpu.vector_store %arg15[%c0_123, %c0_124], %337 {strides = array<i32>} : memref<16x128xf32, #tpu.memory_space<vmem>>, vector<16x128xf32>,
    return
  }
  func.func @transform_0(%arg0: i32) -> (i32, i32) {
    %c0_i32 = arith.constant 0 : i32
    %c0_i32_0 = arith.constant 0 : i32
    return %arg0, %c0_i32 : i32, i32
  }
  func.func @transform_1(%arg0: i32) -> (i32, i32) {
    %c0_i32 = arith.constant 0 : i32
    %c0_i32_0 = arith.constant 0 : i32
    %c0_i32_1 = arith.constant 0 : i32
    return %c0_i32, %c0_i32_0 : i32, i32
  }
  func.func @transform_2(%arg0: i32) -> (i32, i32, i32) {
    %c0_i32 = arith.constant 0 : i32
    %c0_i32_0 = arith.constant 0 : i32
    %c0_i32_1 = arith.constant 0 : i32
    %c0_i32_2 = arith.constant 0 : i32
    return %c0_i32, %c0_i32_0, %c0_i32_1 : i32, i32, i32
  }
  func.func @transform_3(%arg0: i32) -> (i32, i32, i32) {
    %c0_i32 = arith.constant 0 : i32
    %c0_i32_0 = arith.constant 0 : i32
    %c0_i32_1 = arith.constant 0 : i32
    %c0_i32_2 = arith.constant 0 : i32
    return %c0_i32, %c0_i32_0, %c0_i32_1 : i32, i32, i32
  }
  func.func @transform_4(%arg0: i32) -> (i32, i32, i32) {
    %c0_i32 = arith.constant 0 : i32
    %c0_i32_0 = arith.constant 0 : i32
    %c0_i32_1 = arith.constant 0 : i32
    %c0_i32_2 = arith.constant 0 : i32
    return %c0_i32, %c0_i32_0, %c0_i32_1 : i32, i32, i32
  }
  func.func @transform_5(%arg0: i32) -> (i32, i32, i32) {
    %c0_i32 = arith.constant 0 : i32
    %c0_i32_0 = arith.constant 0 : i32
    %c0_i32_1 = arith.constant 0 : i32
    %c0_i32_2 = arith.constant 0 : i32
    return %c0_i32, %c0_i32_0, %c0_i32_1 : i32, i32, i32
  }
  func.func @transform_6(%arg0: i32) -> (i32, i32, i32) {
    %c0_i32 = arith.constant 0 : i32
    %c0_i32_0 = arith.constant 0 : i32
    %c0_i32_1 = arith.constant 0 : i32
    %c0_i32_2 = arith.constant 0 : i32
    return %c0_i32, %c0_i32_0, %c0_i32_1 : i32, i32, i32
  }
  func.func @transform_7(%arg0: i32) -> (i32, i32, i32) {
    %c0_i32 = arith.constant 0 : i32
    %c0_i32_0 = arith.constant 0 : i32
    %c0_i32_1 = arith.constant 0 : i32
    %c0_i32_2 = arith.constant 0 : i32
    return %c0_i32, %c0_i32_0, %c0_i32_1 : i32, i32, i32
  }
  func.func @transform_8(%arg0: i32) -> (i32, i32, i32) {
    %c0_i32 = arith.constant 0 : i32
    %c0_i32_0 = arith.constant 0 : i32
    %c0_i32_1 = arith.constant 0 : i32
    %c0_i32_2 = arith.constant 0 : i32
    return %c0_i32, %c0_i32_0, %c0_i32_1 : i32, i32, i32
  }
  func.func @transform_9(%arg0: i32) -> (i32, i32) {
    %c0_i32 = arith.constant 0 : i32
    %c0_i32_0 = arith.constant 0 : i32
    %c0_i32_1 = arith.constant 0 : i32
    return %c0_i32, %c0_i32_0 : i32, i32
  }
  func.func @transform_10(%arg0: i32) -> (i32, i32) {
    %c0_i32 = arith.constant 0 : i32
    %c0_i32_0 = arith.constant 0 : i32
    %c0_i32_1 = arith.constant 0 : i32
    return %c0_i32, %c0_i32_0 : i32, i32
  }
  func.func @transform_11(%arg0: i32) -> (i32, i32) {
    %c0_i32 = arith.constant 0 : i32
    %c0_i32_0 = arith.constant 0 : i32
    %c0_i32_1 = arith.constant 0 : i32
    return %c0_i32, %c0_i32_0 : i32, i32
  }
  func.func @transform_12(%arg0: i32) -> (i32, i32) {
    %c0_i32 = arith.constant 0 : i32
    %c0_i32_0 = arith.constant 0 : i32
    %c0_i32_1 = arith.constant 0 : i32
    return %c0_i32, %c0_i32_0 : i32, i32
  }
  func.func @transform_13(%arg0: i32) -> (i32, i32) {
    %c0_i32 = arith.constant 0 : i32
    %c0_i32_0 = arith.constant 0 : i32
    %c0_i32_1 = arith.constant 0 : i32
    return %c0_i32, %c0_i32_0 : i32, i32
  }
  func.func @transform_14(%arg0: i32) -> (i32, i32) {
    %c0_i32 = arith.constant 0 : i32
    %c0_i32_0 = arith.constant 0 : i32
    return %arg0, %c0_i32 : i32, i32
  }
}

</mosaic_0001>

<llo_original>
// kernel: tpu_custom_call.1
$region0: #{tpu_custom_call.1}
  #allocation0 [shape = 'u32[]', space=smem, size = 0x4, offset = 0x4, fixed_abs, tag = 'smem constant byte address 0x4 - core index']
  #allocation1 [shape = 'u32[144,128]{1,0:T(1,128)}', space=vmem, size = 0x12000, scoped, tag = 'internal scratch']
  %s0 = inlined_call_operand.vmem [shape: s32[32,1], index: 0, kind: input, shape index: {}]
  %s1 = inlined_call_operand.vmem [shape: bf16[8,64], index: 1, kind: input, shape index: {}]
  %s2 = inlined_call_operand.vmem [shape: bf16[2,64,192], index: 2, kind: input, shape index: {}]
  %s3 = inlined_call_operand.vmem [shape: f32[2,1,192], index: 3, kind: input, shape index: {}]
  %s4 = inlined_call_operand.vmem [shape: bf16[2,64,64], index: 4, kind: input, shape index: {}]
  %s5 = inlined_call_operand.vmem [shape: bf16[2,64,2048], index: 5, kind: input, shape index: {}]
  %s6 = inlined_call_operand.vmem [shape: f32[2,1,2048], index: 6, kind: input, shape index: {}]
  %s7 = inlined_call_operand.vmem [shape: bf16[2,2048,64], index: 7, kind: input, shape index: {}]
  %s8 = inlined_call_operand.vmem [shape: f32[2,6,64], index: 8, kind: input, shape index: {}]
  %s9 = inlined_call_operand.vmem [shape: bf16[64,256], index: 9, kind: input, shape index: {}]
  %s10 = inlined_call_operand.vmem [shape: bf16[256,256], index: 10, kind: input, shape index: {}]
  %s11 = inlined_call_operand.vmem [shape: f32[2,256], index: 11, kind: input, shape index: {}]
  %s12 = inlined_call_operand.vmem [shape: bf16[256,128], index: 12, kind: input, shape index: {}]
  %s13 = inlined_call_operand.vmem [shape: f32[1,128], index: 13, kind: input, shape index: {}]
  %s14 = inlined_call_operand.hbm [shape: f32[32,128], index: 14, kind: output, shape index: {}]
  %s15 = sld [smem:[#allocation0]]
  $region89: #{tpu_custom_call.1} parent=0
    _
  %s17 = ssub.s32 1, %s15
  %s18 = scalar_select 0, %s17, %s15
  $region1: #{tpu_custom_call.1} parent=0
    #allocation2 [shape = 'u8[16384]{0}', space=vmem, size = 0x4000, scoped, tag = 'output window, operand 0']
    #allocation3 [shape = 's32[2]{0}', space=sflag, size = 0x8, scoped, tag = 'scoped memory for tpu_custom_call.1']
    %19 = vsyncpa [#allocation3], 0
    %s20 = scalar_lea.sflag [#allocation3], 1
    %21 = vsyncpa %s20, 0
    loop: start=0, step=1, limit=4
    $region2: #{tpu_custom_call.1} parent=1 // loop_pre_header
      _
    $region3: #{tpu_custom_call.1} parent=1 // loop_header
      %s23 = sphi 0, %s27
      %p24 = scmp.ge.s32.totalorder %s23, 4
      %s33 = sphi 0, %s35
      %s36 = sphi 0, %s33
      %s37 = sphi 0, %s36
      %s53 = sphi 0, %s37
      %s57 = sphi 0, %s57
      %s59 = sphi 0, %s57
      %s60 = sphi 0, %s59
      %s74 = sphi 0, %s60
      %s78 = sphi 0, %s78
      %s80 = sphi 0, %s78
      %s81 = sphi 0, %s80
      %s95 = sphi 0, %s81
      %s99 = sphi 0, %s99
      %s101 = sphi 0, %s99
      %s102 = sphi 0, %s101
      %s116 = sphi 0, %s102
      %s120 = sphi 0, %s120
      %s122 = sphi 0, %s120
      %s123 = sphi 0, %s122
      %s137 = sphi 0, %s123
      %s141 = sphi 0, %s141
      %s143 = sphi 0, %s141
      %s144 = sphi 0, %s143
      %s158 = sphi 0, %s144
      %s162 = sphi 0, %s162
      %s164 = sphi 0, %s162
      %s165 = sphi 0, %s164
      %s179 = sphi 0, %s165
      %s183 = sphi 0, %s183
      %s185 = sphi 0, %s183
      %s186 = sphi 0, %s185
      %s200 = sphi 0, %s186
      %s204 = sphi 0, %s204
      %s206 = sphi 0, %s204
      %s207 = sphi 0, %s206
      %s221 = sphi 0, %s207
      %s225 = sphi 0, %s225
      %s227 = sphi 0, %s225
      %s228 = sphi 0, %s227
      %s242 = sphi 0, %s228
      %s246 = sphi 0, %s246
      %s248 = sphi 0, %s246
      %s249 = sphi 0, %s248
      %s263 = sphi 0, %s249
      %s267 = sphi 0, %s267
      %s269 = sphi 0, %s267
      %s270 = sphi 0, %s269
      %s284 = sphi 0, %s270
      %s288 = sphi 0, %s288
      %s290 = sphi 0, %s288
      %s291 = sphi 0, %s290
      %s305 = sphi 0, %s291
      %s309 = sphi 0, %s309
      %s311 = sphi 0, %s309
      %s312 = sphi 0, %s311
      %s326 = sphi 0, %s312
      %s332 = sphi 0, %s334
      %s335 = sphi 0, %s332
      %s336 = sphi 0, %s335
      %s352 = sphi 0, %s336
    $region4: #{tpu_custom_call.1} parent=1 // loop_header_branch
      %26 = sbr.rel (%p24) target = $region8
    $region5: #{tpu_custom_call.1} parent=1 // loop_body
      %s28 = ssub.s32 %s23, 1
      %s29 = ssub.s32 %s23, 2
      %s30 = sadd.s32 %s23, 1
      %s31 = ssub.s32 %s23, %s30
      %p32 = scmp.eq.s32.totalorder %s31, 0
      %s34 = sadd.s32 %s33, 1
      %s35 = scalar_select %p32, %s33, %s34
      %p38 = pneg %p32
      %p39 = scmp.eq.s32.totalorder %s23, 1
      %p40 = por %p38, %p39
      %p41 = scmp.ne.s32.totalorder %s33, %s36
      %p42 = scmp.eq.s32.totalorder %s23, 0
      %p43 = por %p41, %p42
      %p44 = scmp.ne.s32.totalorder %s33, %s36
      %p45 = scmp.eq.s32.totalorder %s28, 1
      %p46 = por %p44, %p45
      %p47 = scmp.ne.s32.totalorder %s36, %s37
      %p48 = scmp.eq.s32.totalorder %s28, 0
      %p49 = por %p47, %p48
      %p50 = scmp.ne.s32.totalorder %s36, %s37
      %p51 = scmp.eq.s32.totalorder %s29, 1
      %p52 = por %p50, %p51
      %p54 = scmp.ne.s32.totalorder %s37, %s53
      %p55 = scmp.eq.s32.totalorder %s29, 0
      %p56 = por %p54, %p55
      %s58 = sadd.s32 %s57, 1
      %p61 = scmp.eq.s32.totalorder %s23, 1
      %p62 = scmp.ne.s32.totalorder %s57, %s59
      %p63 = scmp.eq.s32.totalorder %s23, 0
      %p64 = por %p62, %p63
      %p65 = scmp.ne.s32.totalorder %s57, %s59
      %p66 = scmp.eq.s32.totalorder %s28, 1
      %p67 = por %p65, %p66
      %p68 = scmp.ne.s32.totalorder %s59, %s60
      %p69 = scmp.eq.s32.totalorder %s28, 0
      %p70 = por %p68, %p69
      %p71 = scmp.ne.s32.totalorder %s59, %s60
      %p72 = scmp.eq.s32.totalorder %s29, 1
      %p73 = por %p71, %p72
      %p75 = scmp.ne.s32.totalorder %s60, %s74
      %p76 = scmp.eq.s32.totalorder %s29, 0
      %p77 = por %p75, %p76
      %s79 = sadd.s32 %s78, 1
      %p82 = scmp.eq.s32.totalorder %s23, 1
      %p83 = scmp.ne.s32.totalorder %s78, %s80
      %p84 = scmp.eq.s32.totalorder %s23, 0
      %p85 = por %p83, %p84
      %p86 = scmp.ne.s32.totalorder %s78, %s80
      %p87 = scmp.eq.s32.totalorder %s28, 1
      %p88 = por %p86, %p87
      %p89 = scmp.ne.s32.totalorder %s80, %s81
      %p90 = scmp.eq.s32.totalorder %s28, 0
      %p91 = por %p89, %p90
      %p92 = scmp.ne.s32.totalorder %s80, %s81
      %p93 = scmp.eq.s32.totalorder %s29, 1
      %p94 = por %p92, %p93
      %p96 = scmp.ne.s32.totalorder %s81, %s95
      %p97 = scmp.eq.s32.totalorder %s29, 0
      %p98 = por %p96, %p97
      %s100 = sadd.s32 %s99, 1
      %p103 = scmp.eq.s32.totalorder %s23, 1
      %p104 = scmp.ne.s32.totalorder %s99, %s101
      %p105 = scmp.eq.s32.totalorder %s23, 0
      %p106 = por %p104, %p105
      %p107 = scmp.ne.s32.totalorder %s99, %s101
      %p108 = scmp.eq.s32.totalorder %s28, 1
      %p109 = por %p107, %p108
      %p110 = scmp.ne.s32.totalorder %s101, %s102
      %p111 = scmp.eq.s32.totalorder %s28, 0
      %p112 = por %p110, %p111
      %p113 = scmp.ne.s32.totalorder %s101, %s102
      %p114 = scmp.eq.s32.totalorder %s29, 1
      %p115 = por %p113, %p114
      %p117 = scmp.ne.s32.totalorder %s102, %s116
      %p118 = scmp.eq.s32.totalorder %s29, 0
      %p119 = por %p117, %p118
      %s121 = sadd.s32 %s120, 1
      %p124 = scmp.eq.s32.totalorder %s23, 1
      %p125 = scmp.ne.s32.totalorder %s120, %s122
      %p126 = scmp.eq.s32.totalorder %s23, 0
      %p127 = por %p125, %p126
      %p128 = scmp.ne.s32.totalorder %s120, %s122
      %p129 = scmp.eq.s32.totalorder %s28, 1
      %p130 = por %p128, %p129
      %p131 = scmp.ne.s32.totalorder %s122, %s123
      %p132 = scmp.eq.s32.totalorder %s28, 0
      %p133 = por %p131, %p132
      %p134 = scmp.ne.s32.totalorder %s122, %s123
      %p135 = scmp.eq.s32.totalorder %s29, 1
      %p136 = por %p134, %p135
      %p138 = scmp.ne.s32.totalorder %s123, %s137
      %p139 = scmp.eq.s32.totalorder %s29, 0
      %p140 = por %p138, %p139
      %s142 = sadd.s32 %s141, 1
      %p145 = scmp.eq.s32.totalorder %s23, 1
      %p146 = scmp.ne.s32.totalorder %s141, %s143
      %p147 = scmp.eq.s32.totalorder %s23, 0
      %p148 = por %p146, %p147
      %p149 = scmp.ne.s32.totalorder %s141, %s143
      %p150 = scmp.eq.s32.totalorder %s28, 1
      %p151 = por %p149, %p150
      %p152 = scmp.ne.s32.totalorder %s143, %s144
      %p153 = scmp.eq.s32.totalorder %s28, 0
      %p154 = por %p152, %p153
      %p155 = scmp.ne.s32.totalorder %s143, %s144
      %p156 = scmp.eq.s32.totalorder %s29, 1
      %p157 = por %p155, %p156
      %p159 = scmp.ne.s32.totalorder %s144, %s158
      %p160 = scmp.eq.s32.totalorder %s29, 0
      %p161 = por %p159, %p160
      %s163 = sadd.s32 %s162, 1
      %p166 = scmp.eq.s32.totalorder %s23, 1
      %p167 = scmp.ne.s32.totalorder %s162, %s164
      %p168 = scmp.eq.s32.totalorder %s23, 0
      %p169 = por %p167, %p168
      %p170 = scmp.ne.s32.totalorder %s162, %s164
      %p171 = scmp.eq.s32.totalorder %s28, 1
      %p172 = por %p170, %p171
      %p173 = scmp.ne.s32.totalorder %s164, %s165
      %p174 = scmp.eq.s32.totalorder %s28, 0
      %p175 = por %p173, %p174
      %p176 = scmp.ne.s32.totalorder %s164, %s165
      %p177 = scmp.eq.s32.totalorder %s29, 1
      %p178 = por %p176, %p177
      %p180 = scmp.ne.s32.totalorder %s165, %s179
      %p181 = scmp.eq.s32.totalorder %s29, 0
      %p182 = por %p180, %p181
      %s184 = sadd.s32 %s183, 1
      %p187 = scmp.eq.s32.totalorder %s23, 1
      %p188 = scmp.ne.s32.totalorder %s183, %s185
      %p189 = scmp.eq.s32.totalorder %s23, 0
      %p190 = por %p188, %p189
      %p191 = scmp.ne.s32.totalorder %s183, %s185
      %p192 = scmp.eq.s32.totalorder %s28, 1
      %p193 = por %p191, %p192
      %p194 = scmp.ne.s32.totalorder %s185, %s186
      %p195 = scmp.eq.s32.totalorder %s28, 0
      %p196 = por %p194, %p195
      %p197 = scmp.ne.s32.totalorder %s185, %s186
      %p198 = scmp.eq.s32.totalorder %s29, 1
      %p199 = por %p197, %p198
      %p201 = scmp.ne.s32.totalorder %s186, %s200
      %p202 = scmp.eq.s32.totalorder %s29, 0
      %p203 = por %p201, %p202
      %s205 = sadd.s32 %s204, 1
      %p208 = scmp.eq.s32.totalorder %s23, 1
      %p209 = scmp.ne.s32.totalorder %s204, %s206
      %p210 = scmp.eq.s32.totalorder %s23, 0
      %p211 = por %p209, %p210
      %p212 = scmp.ne.s32.totalorder %s204, %s206
      %p213 = scmp.eq.s32.totalorder %s28, 1
      %p214 = por %p212, %p213
      %p215 = scmp.ne.s32.totalorder %s206, %s207
      %p216 = scmp.eq.s32.totalorder %s28, 0
      %p217 = por %p215, %p216
      %p218 = scmp.ne.s32.totalorder %s206, %s207
      %p219 = scmp.eq.s32.totalorder %s29, 1
      %p220 = por %p218, %p219
      %p222 = scmp.ne.s32.totalorder %s207, %s221
      %p223 = scmp.eq.s32.totalorder %s29, 0
      %p224 = por %p222, %p223
      %s226 = sadd.s32 %s225, 1
      %p229 = scmp.eq.s32.totalorder %s23, 1
      %p230 = scmp.ne.s32.totalorder %s225, %s227
      %p231 = scmp.eq.s32.totalorder %s23, 0
      %p232 = por %p230, %p231
      %p233 = scmp.ne.s32.totalorder %s225, %s227
      %p234 = scmp.eq.s32.totalorder %s28, 1
      %p235 = por %p233, %p234
      %p236 = scmp.ne.s32.totalorder %s227, %s228
      %p237 = scmp.eq.s32.totalorder %s28, 0
      %p238 = por %p236, %p237
      %p239 = scmp.ne.s32.totalorder %s227, %s228
      %p240 = scmp.eq.s32.totalorder %s29, 1
      %p241 = por %p239, %p240
      %p243 = scmp.ne.s32.totalorder %s228, %s242
      %p244 = scmp.eq.s32.totalorder %s29, 0
      %p245 = por %p243, %p244
      %s247 = sadd.s32 %s246, 1
      %p250 = scmp.eq.s32.totalorder %s23, 1
      %p251 = scmp.ne.s32.totalorder %s246, %s248
      %p252 = scmp.eq.s32.totalorder %s23, 0
      %p253 = por %p251, %p252
      %p254 = scmp.ne.s32.totalorder %s246, %s248
      %p255 = scmp.eq.s32.totalorder %s28, 1
      %p256 = por %p254, %p255
      %p257 = scmp.ne.s32.totalorder %s248, %s249
      %p258 = scmp.eq.s32.totalorder %s28, 0
      %p259 = por %p257, %p258
      %p260 = scmp.ne.s32.totalorder %s248, %s249
      %p261 = scmp.eq.s32.totalorder %s29, 1
      %p262 = por %p260, %p261
      %p264 = scmp.ne.s32.totalorder %s249, %s263
      %p265 = scmp.eq.s32.totalorder %s29, 0
      %p266 = por %p264, %p265
      %s268 = sadd.s32 %s267, 1
      %p271 = scmp.eq.s32.totalorder %s23, 1
      %p272 = scmp.ne.s32.totalorder %s267, %s269
      %p273 = scmp.eq.s32.totalorder %s23, 0
      %p274 = por %p272, %p273
      %p275 = scmp.ne.s32.totalorder %s267, %s269
      %p276 = scmp.eq.s32.totalorder %s28, 1
      %p277 = por %p275, %p276
      %p278 = scmp.ne.s32.totalorder %s269, %s270
      %p279 = scmp.eq.s32.totalorder %s28, 0
      %p280 = por %p278, %p279
      %p281 = scmp.ne.s32.totalorder %s269, %s270
      %p282 = scmp.eq.s32.totalorder %s29, 1
      %p283 = por %p281, %p282
      %p285 = scmp.ne.s32.totalorder %s270, %s284
      %p286 = scmp.eq.s32.totalorder %s29, 0
      %p287 = por %p285, %p286
      %s289 = sadd.s32 %s288, 1
      %p292 = scmp.eq.s32.totalorder %s23, 1
      %p293 = scmp.ne.s32.totalorder %s288, %s290
      %p294 = scmp.eq.s32.totalorder %s23, 0
      %p295 = por %p293, %p294
      %p296 = scmp.ne.s32.totalorder %s288, %s290
      %p297 = scmp.eq.s32.totalorder %s28, 1
      %p298 = por %p296, %p297
      %p299 = scmp.ne.s32.totalorder %s290, %s291
      %p300 = scmp.eq.s32.totalorder %s28, 0
      %p301 = por %p299, %p300
      %p302 = scmp.ne.s32.totalorder %s290, %s291
      %p303 = scmp.eq.s32.totalorder %s29, 1
      %p304 = por %p302, %p303
      %p306 = scmp.ne.s32.totalorder %s291, %s305
      %p307 = scmp.eq.s32.totalorder %s29, 0
      %p308 = por %p306, %p307
      %s310 = sadd.s32 %s309, 1
      %p313 = scmp.eq.s32.totalorder %s23, 1
      %p314 = scmp.ne.s32.totalorder %s309, %s311
      %p315 = scmp.eq.s32.totalorder %s23, 0
      %p316 = por %p314, %p315
      %p317 = scmp.ne.s32.totalorder %s309, %s311
      %p318 = scmp.eq.s32.totalorder %s28, 1
      %p319 = por %p317, %p318
      %p320 = scmp.ne.s32.totalorder %s311, %s312
      %p321 = scmp.eq.s32.totalorder %s28, 0
      %p322 = por %p320, %p321
      %p323 = scmp.ne.s32.totalorder %s311, %s312
      %p324 = scmp.eq.s32.totalorder %s29, 1
      %p325 = por %p323, %p324
      %p327 = scmp.ne.s32.totalorder %s312, %s326
      %p328 = scmp.eq.s32.totalorder %s29, 0
      %p329 = por %p327, %p328
      %s330 = ssub.s32 %s23, %s30
      %p331 = scmp.eq.s32.totalorder %s330, 0
      %s333 = sadd.s32 %s332, 1
      %s334 = scalar_select %p331, %s332, %s333
      %p337 = pneg %p331
      %p338 = scmp.eq.s32.totalorder %s23, 1
      %p339 = por %p337, %p338
      %p340 = scmp.ne.s32.totalorder %s332, %s335
      %p341 = scmp.eq.s32.totalorder %s23, 0
      %p342 = por %p340, %p341
      %p343 = scmp.ne.s32.totalorder %s332, %s335
      %p344 = scmp.eq.s32.totalorder %s28, 1
      %p345 = por %p343, %p344
      %p346 = scmp.ne.s32.totalorder %s335, %s336
      %p347 = scmp.eq.s32.totalorder %s28, 0
      %p348 = por %p346, %p347
      %p349 = scmp.ne.s32.totalorder %s335, %s336
      %p350 = scmp.eq.s32.totalorder %s29, 1
      %p351 = por %p349, %p350
      %p353 = scmp.ne.s32.totalorder %s336, %s352
      %p354 = scmp.eq.s32.totalorder %s29, 0
      %p355 = por %p353, %p354
      %p356 = scmp.le.s32.totalorder 1, %s23
      %p357 = scmp.lt.s32.totalorder %s23, 3
      %p358 = pnand %p356, %p357
      %p359 = pneg %p358
      // Predicated region
      $region9: #{tpu_custom_call.1} parent=5 // pred_check
        _
      $region10: #{tpu_custom_call.1} parent=5 // pred_check_branch
        %361 = sbr.rel (%p358) target = $region12
      $region11: #{tpu_custom_call.1} parent=5 // pred_region
        %s362 = ssub.s32 %s23, 1
        // Predicated region
        $region13: #{tpu_custom_call.1} parent=11 // pred_check
          %p363 = pneg %p70
        $region14: #{tpu_custom_call.1} parent=11 // pred_check_branch
          %365 = sbr.rel (%p363) target = $region16
        $region15: #{tpu_custom_call.1} parent=11 // pred_region
          _
        $region16: #{tpu_custom_call.1} parent=11 // pred_fallthru
          _
        // Predicated region
        $region17: #{tpu_custom_call.1} parent=11 // pred_check
          %p366 = pneg %p91
        $region18: #{tpu_custom_call.1} parent=11 // pred_check_branch
          %368 = sbr.rel (%p366) target = $region20
        $region19: #{tpu_custom_call.1} parent=11 // pred_region
          _
        $region20: #{tpu_custom_call.1} parent=11 // pred_fallthru
          _
        // Predicated region
        $region21: #{tpu_custom_call.1} parent=11 // pred_check
          %p369 = pneg %p112
        $region22: #{tpu_custom_call.1} parent=11 // pred_check_branch
          %371 = sbr.rel (%p369) target = $region24
        $region23: #{tpu_custom_call.1} parent=11 // pred_region
          _
        $region24: #{tpu_custom_call.1} parent=11 // pred_fallthru
          _
        // Predicated region
        $region25: #{tpu_custom_call.1} parent=11 // pred_check
          %p372 = pneg %p133
        $region26: #{tpu_custom_call.1} parent=11 // pred_check_branch
          %374 = sbr.rel (%p372) target = $region28
        $region27: #{tpu_custom_call.1} parent=11 // pred_region
          _
        $region28: #{tpu_custom_call.1} parent=11 // pred_fallthru
          _
        // Predicated region
        $region29: #{tpu_custom_call.1} parent=11 // pred_check
          %p375 = pneg %p154
        $region30: #{tpu_custom_call.1} parent=11 // pred_check_branch
          %377 = sbr.rel (%p375) target = $region32
        $region31: #{tpu_custom_call.1} parent=11 // pred_region
          _
        $region32: #{tpu_custom_call.1} parent=11 // pred_fallthru
          _
        // Predicated region
        $region33: #{tpu_custom_call.1} parent=11 // pred_check
          %p378 = pneg %p175
        $region34: #{tpu_custom_call.1} parent=11 // pred_check_branch
          %380 = sbr.rel (%p378) target = $region36
        $region35: #{tpu_custom_call.1} parent=11 // pred_region
          _
        $region36: #{tpu_custom_call.1} parent=11 // pred_fallthru
          _
        // Predicated region
        $region37: #{tpu_custom_call.1} parent=11 // pred_check
          %p381 = pneg %p196
        $region38: #{tpu_custom_call.1} parent=11 // pred_check_branch
          %383 = sbr.rel (%p381) target = $region40
        $region39: #{tpu_custom_call.1} parent=11 // pred_region
          _
        $region40: #{tpu_custom_call.1} parent=11 // pred_fallthru
          _
        // Predicated region
        $region41: #{tpu_custom_call.1} parent=11 // pred_check
          %p384 = pneg %p217
        $region42: #{tpu_custom_call.1} parent=11 // pred_check_branch
          %386 = sbr.rel (%p384) target = $region44
        $region43: #{tpu_custom_call.1} parent=11 // pred_region
          _
        $region44: #{tpu_custom_call.1} parent=11 // pred_fallthru
          _
        // Predicated region
        $region45: #{tpu_custom_call.1} parent=11 // pred_check
          %p387 = pneg %p238
        $region46: #{tpu_custom_call.1} parent=11 // pred_check_branch
          %389 = sbr.rel (%p387) target = $region48
        $region47: #{tpu_custom_call.1} parent=11 // pred_region
          _
        $region48: #{tpu_custom_call.1} parent=11 // pred_fallthru
          _
        // Predicated region
        $region49: #{tpu_custom_call.1} parent=11 // pred_check
          %p390 = pneg %p259
        $region50: #{tpu_custom_call.1} parent=11 // pred_check_branch
          %392 = sbr.rel (%p390) target = $region52
        $region51: #{tpu_custom_call.1} parent=11 // pred_region
          _
        $region52: #{tpu_custom_call.1} parent=11 // pred_fallthru
          _
        // Predicated region
        $region53: #{tpu_custom_call.1} parent=11 // pred_check
          %p393 = pneg %p280
        $region54: #{tpu_custom_call.1} parent=11 // pred_check_branch
          %395 = sbr.rel (%p393) target = $region56
        $region55: #{tpu_custom_call.1} parent=11 // pred_region
          _
        $region56: #{tpu_custom_call.1} parent=11 // pred_fallthru
          _
        // Predicated region
        $region57: #{tpu_custom_call.1} parent=11 // pred_check
          %p396 = pneg %p301
        $region58: #{tpu_custom_call.1} parent=11 // pred_check_branch
          %398 = sbr.rel (%p396) target = $region60
        $region59: #{tpu_custom_call.1} parent=11 // pred_region
          _
        $region60: #{tpu_custom_call.1} parent=11 // pred_fallthru
          _
        // Predicated region
        $region61: #{tpu_custom_call.1} parent=11 // pred_check
          %p399 = pneg %p322
        $region62: #{tpu_custom_call.1} parent=11 // pred_check_branch
          %401 = sbr.rel (%p399) target = $region64
        $region63: #{tpu_custom_call.1} parent=11 // pred_region
          _
        $region64: #{tpu_custom_call.1} parent=11 // pred_fallthru
          _
      $region12: #{tpu_custom_call.1} parent=5 // pred_fallthru
        _
      %p402 = scmp.lt.s32.totalorder %s23, 2
      // Predicated region
      $region65: #{tpu_custom_call.1} parent=5 // pred_check
        %p403 = pneg %p402
      $region66: #{tpu_custom_call.1} parent=5 // pred_check_branch
        %405 = sbr.rel (%p403) target = $region68
      $region67: #{tpu_custom_call.1} parent=5 // pred_region
        // Predicated region
        $region69: #{tpu_custom_call.1} parent=67 // pred_check
          %p406 = pneg %p43
        $region70: #{tpu_custom_call.1} parent=67 // pred_check_branch
          %408 = sbr.rel (%p406) target = $region72
        $region71: #{tpu_custom_call.1} parent=67 // pred_region
          %s409 = smul.u32 2, %s23
          %p410 = scmp.lt.s32.totalorder %s409, 3
          %s411 = scalar_select %p410, %s409, 3
          %s412 = smul.addr %s411, 8
          %s413 = scalar_lea.vmem %s0, %s412
          %s414 = smul.u32 2, %s23
        $region72: #{tpu_custom_call.1} parent=67 // pred_fallthru
          _
      $region68: #{tpu_custom_call.1} parent=5 // pred_fallthru
        _
      %p415 = scmp.le.s32.totalorder 1, %s23
      %p416 = scmp.lt.s32.totalorder %s23, 3
      %p417 = pnand %p415, %p416
      %p418 = pneg %p417
      // Predicated region
      $region73: #{tpu_custom_call.1} parent=5 // pred_check
        _
      $region74: #{tpu_custom_call.1} parent=5 // pred_check_branch
        %420 = sbr.rel (%p417) target = $region76
      $region75: #{tpu_custom_call.1} parent=5 // pred_region
        %s421 = ssub.s32 %s23, 1
        %s422 = smul.u32 2, %s28
        %p423 = scmp.lt.s32.totalorder %s422, 3
        %s424 = scalar_select %p423, %s422, 3
        %s425 = smul.addr %s424, 8
        %s426 = scalar_lea.vmem %s0, %s425
        %p427 = pneg %p49
        %p428 = pneg %p46
        %p429 = pneg %p70
        %p430 = pneg %p67
        %p431 = pneg %p91
        %p432 = pneg %p88
        %p433 = pneg %p112
        %p434 = pneg %p109
        %p435 = pneg %p133
        %p436 = pneg %p130
        %p437 = pneg %p154
        %p438 = pneg %p151
        %p439 = pneg %p175
        %p440 = pneg %p172
        %p441 = pneg %p196
        %p442 = pneg %p193
        %p443 = pneg %p217
        %p444 = pneg %p214
        %p445 = pneg %p238
        %p446 = pneg %p235
        %p447 = pneg %p259
        %p448 = pneg %p256
        %p449 = pneg %p280
        %p450 = pneg %p277
        %p451 = pneg %p301
        %p452 = pneg %p298
        %p453 = pneg %p322
        %p454 = pneg %p319
        %p455 = pneg %p348
        %p456 = pneg %p345
        %s457 = sand.u32 %s335, 1
        %s458 = scalar_lea.sflag [#allocation3], %s457
        %s459 = sand.u32 %s335, 1
        %s460 = smul.addr %s459, 16
        %s461 = scalar_lea.vmem [#allocation2], %s460
        %s462 = smul.u32 2, %s28
        %p463 = scmp.lt.s32.totalorder %s462, 3
        %s464 = scalar_select %p463, %s462, 3
        %s465 = smul.addr %s464, 8
        %s466 = scalar_lea.vmem %s0, %s465
        %s467 = smul.u32 2, %s28
        %s468 = smul.u32 2, %s28
        %v470 = vld [vmem:[%s466] sm:$0xff]
        %v471 = vld [vmem:[%s466 + $0x8] sm:$0xff]
        %v472 = vlaneseq
        %v473 = vand.u32 %v472, 127
        %474 = vset.pattern.permute.xlu0 0
        %475 = vperm.xlu0 %474, %v470
        %v476 = vpop.permute.xlu0 %475
        %477 = vset.pattern.permute.xlu0 0
        %478 = vperm.xlu0 %477, %v471
        %v479 = vpop.permute.xlu0 %478
        %vm480 = vcmp.eq.s32.totalorder %v476, %v473
        %vm481 = vcmp.eq.s32.totalorder %v479, %v473
        %v482 = vsel %vm480, 1.0, 0.0
        %v483 = vsel %vm481, 1.0, 0.0
        %v484 = vpack.c.bf16 %v483, %v482
        %v485 = vld [vmem:[%s1] sm:$0xf]
        %vm486 = vcmask 64512
        %v488 = vsel %vm486, %v484, 0
        %vm490 = vcmask 1043456
        %v492 = vsel %vm490, %v485, 0
        %494 = vmatprep.subr.bf16.mxu0 0
        %495 = vmatpush1.bf16.msra.mxu0 %v492
        %496 = vmatprep.subr.bf16.mxu0 0
        %497 = vmatpush1.bf16.msra.mxu0 0
        %498 = vmatprep.subr.bf16.mxu0 0
        %499 = vmatpush1.bf16.msra.mxu0 0
        %500 = vmatprep.subr.bf16.mxu0 0
        %501 = vmatpush1.bf16.msra.mxu0 0
        %502 = vmatprep.subr.bf16.mxu0 0
        %503 = vmatpush1.bf16.msra.mxu0 0
        %504 = vmatprep.subr.bf16.mxu0 0
        %505 = vmatpush1.bf16.msra.mxu0 0
        %506 = vmatprep.subr.bf16.mxu0 0
        %507 = vmatpush1.bf16.msra.mxu0 0
        %508 = vmatprep.subr.bf16.mxu0 0
        %509 = vmatpush1.bf16.msra.mxu0 0
        %510 = vmatprep.subr.bf16.mxu0 0
        %511 = vmatpush1.bf16.msra.mxu0 0
        %512 = vmatprep.subr.bf16.mxu0 0
        %513 = vmatpush1.bf16.msra.mxu0 0
        %514 = vmatprep.subr.bf16.mxu0 0
        %515 = vmatpush1.bf16.msra.mxu0 0
        %516 = vmatprep.subr.bf16.mxu0 0
        %517 = vmatpush1.bf16.msra.mxu0 0
        %518 = vmatprep.subr.bf16.mxu0 0
        %519 = vmatpush1.bf16.msra.mxu0 0
        %520 = vmatprep.subr.bf16.mxu0 0
        %521 = vmatpush1.bf16.msra.mxu0 0
        %522 = vmatprep.subr.bf16.mxu0 0
        %523 = vmatpush1.bf16.msra.mxu0 0
        %524 = vmatprep.subr.bf16.mxu0 0
        %525 = vmatpush1.bf16.msra.mxu0 0
        %526 = vmatprep.mubr.bf16.mxu0 0
        %527 = vmatmul.mubr.bf16.gmra.mrb[0].mxu0 %v488
        %v528 = vpop.f32.mrb[0].mxu0
        %v529 = vadd.f32 0.0, %v528
        %v530 = vpop.f32.mrb[0].mxu0
        %v531 = vpop.f32.mrb[0].mxu0
        %v532 = vadd.f32 0.0, %v531
        %v533 = vpop.f32.mrb[0].mxu0
        %534 = vdwg.mxu0
        %v535 = vld [vmem:[%s2] sm:$0xff]
        %v536 = vld [vmem:[%s2 + $0x8] sm:$0xff]
        %v537 = vld [vmem:[%s2 + $0x10] sm:$0xff]
        %v538 = vld [vmem:[%s2 + $0x18] sm:$0xff]
        %v539 = vld [vmem:[%s2 + $0x20] sm:$0xff]
        %v540 = vld [vmem:[%s2 + $0x28] sm:$0xff]
        %v541 = vld [vmem:[%s2 + $0x30] sm:$0xff]
        %v542 = vld [vmem:[%s2 + $0x38] sm:$0xff]
        %v543 = vld [vmem:[%s3] sm:$0x3]
        %v544 = vld [vmem:[%s4] sm:$0xf]
        %v545 = vld [vmem:[%s4 + $0x4] sm:$0xf]
        %v546 = vld [vmem:[%s4 + $0x8] sm:$0xf]
        %v547 = vld [vmem:[%s4 + $0xc] sm:$0xf]
        %v548 = vld [vmem:[%s4 + $0x10] sm:$0xf]
        %v549 = vld [vmem:[%s4 + $0x14] sm:$0xf]
        %v550 = vld [vmem:[%s4 + $0x18] sm:$0xf]
        %v551 = vld [vmem:[%s4 + $0x1c] sm:$0xf]
        %v552 = vld [vmem:[%s5] sm:$0xff]
        %v553 = vld [vmem:[%s5 + $0x8] sm:$0xff]
        %v554 = vld [vmem:[%s5 + $0x10] sm:$0xff]
        %v555 = vld [vmem:[%s5 + $0x18] sm:$0xff]
        %v556 = vld [vmem:[%s5 + $0x20] sm:$0xff]
        %v557 = vld [vmem:[%s5 + $0x28] sm:$0xff]
        %v558 = vld [vmem:[%s5 + $0x30] sm:$0xff]
        %v559 = vld [vmem:[%s5 + $0x38] sm:$0xff]
        %v560 = vld [vmem:[%s5 + $0x40] sm:$0xff]
        %v561 = vld [vmem:[%s5 + $0x48] sm:$0xff]
        %v562 = vld [vmem:[%s5 + $0x50] sm:$0xff]
        %v563 = vld [vmem:[%s5 + $0x58] sm:$0xff]
        %v564 = vld [vmem:[%s5 + $0x60] sm:$0xff]
        %v565 = vld [vmem:[%s5 + $0x68] sm:$0xff]
        %v566 = vld [vmem:[%s5 + $0x70] sm:$0xff]
        %v567 = vld [vmem:[%s5 + $0x78] sm:$0xff]
        %v568 = vld [vmem:[%s5 + $0x80] sm:$0xff]
        %v569 = vld [vmem:[%s5 + $0x88] sm:$0xff]
        %v570 = vld [vmem:[%s5 + $0x90] sm:$0xff]
        %v571 = vld [vmem:[%s5 + $0x98] sm:$0xff]
        %v572 = vld [vmem:[%s5 + $0xa0] sm:$0xff]
        %v573 = vld [vmem:[%s5 + $0xa8] sm:$0xff]
        %v574 = vld [vmem:[%s5 + $0xb0] sm:$0xff]
        %v575 = vld [vmem:[%s5 + $0xb8] sm:$0xff]
        %v576 = vld [vmem:[%s5 + $0xc0] sm:$0xff]
        %v577 = vld [vmem:[%s5 + $0xc8] sm:$0xff]
        %v578 = vld [vmem:[%s5 + $0xd0] sm:$0xff]
        %v579 = vld [vmem:[%s5 + $0xd8] sm:$0xff]
        %v580 = vld [vmem:[%s5 + $0xe0] sm:$0xff]
        %v581 = vld [vmem:[%s5 + $0xe8] sm:$0xff]
        %v582 = vld [vmem:[%s5 + $0xf0] sm:$0xff]
        %v583 = vld [vmem:[%s5 + $0xf8] sm:$0xff]
        %v584 = vld [vmem:[%s5 + $0x100] sm:$0xff]
        %v585 = vld [vmem:[%s5 + $0x108] sm:$0xff]
        %v586 = vld [vmem:[%s5 + $0x110] sm:$0xff]
        %v587 = vld [vmem:[%s5 + $0x118] sm:$0xff]
        %v588 = vld [vmem:[%s5 + $0x120] sm:$0xff]
        %v589 = vld [vmem:[%s5 + $0x128] sm:$0xff]
        %v590 = vld [vmem:[%s5 + $0x130] sm:$0xff]
        %v591 = vld [vmem:[%s5 + $0x138] sm:$0xff]
        %v592 = vld [vmem:[%s5 + $0x140] sm:$0xff]
        %v593 = vld [vmem:[%s5 + $0x148] sm:$0xff]
        %v594 = vld [vmem:[%s5 + $0x150] sm:$0xff]
        %v595 = vld [vmem:[%s5 + $0x158] sm:$0xff]
        %v596 = vld [vmem:[%s5 + $0x160] sm:$0xff]
        %v597 = vld [vmem:[%s5 + $0x168] sm:$0xff]
        %v598 = vld [vmem:[%s5 + $0x170] sm:$0xff]
        %v599 = vld [vmem:[%s5 + $0x178] sm:$0xff]
        %v600 = vld [vmem:[%s5 + $0x180] sm:$0xff]
        %v601 = vld [vmem:[%s5 + $0x188] sm:$0xff]
        %v602 = vld [vmem:[%s5 + $0x190] sm:$0xff]
        %v603 = vld [vmem:[%s5 + $0x198] sm:$0xff]
        %v604 = vld [vmem:[%s5 + $0x1a0] sm:$0xff]
        %v605 = vld [vmem:[%s5 + $0x1a8] sm:$0xff]
        %v606 = vld [vmem:[%s5 + $0x1b0] sm:$0xff]
        %v607 = vld [vmem:[%s5 + $0x1b8] sm:$0xff]
        %v608 = vld [vmem:[%s5 + $0x1c0] sm:$0xff]
        %v609 = vld [vmem:[%s5 + $0x1c8] sm:$0xff]
        %v610 = vld [vmem:[%s5 + $0x1d0] sm:$0xff]
        %v611 = vld [vmem:[%s5 + $0x1d8] sm:$0xff]
        %v612 = vld [vmem:[%s5 + $0x1e0] sm:$0xff]
        %v613 = vld [vmem:[%s5 + $0x1e8] sm:$0xff]
        %v614 = vld [vmem:[%s5 + $0x1f0] sm:$0xff]
        %v615 = vld [vmem:[%s5 + $0x1f8] sm:$0xff]
        %v616 = vld [vmem:[%s6] sm:$0xff]
        %v617 = vld [vmem:[%s6 + $0x8] sm:$0xff]
        %v618 = vld [vmem:[%s7] sm:$0xf]
        %v619 = vld [vmem:[%s7 + $0x4] sm:$0xf]
        %v620 = vld [vmem:[%s7 + $0x8] sm:$0xf]
        %v621 = vld [vmem:[%s7 + $0xc] sm:$0xf]
        %v622 = vld [vmem:[%s7 + $0x10] sm:$0xf]
        %v623 = vld [vmem:[%s7 + $0x14] sm:$0xf]
        %v624 = vld [vmem:[%s7 + $0x18] sm:$0xf]
        %v625 = vld [vmem:[%s7 + $0x1c] sm:$0xf]
        %v626 = vld [vmem:[%s7 + $0x20] sm:$0xf]
        %v627 = vld [vmem:[%s7 + $0x24] sm:$0xf]
        %v628 = vld [vmem:[%s7 + $0x28] sm:$0xf]
        %v629 = vld [vmem:[%s7 + $0x2c] sm:$0xf]
        %v630 = vld [vmem:[%s7 + $0x30] sm:$0xf]
        %v631 = vld [vmem:[%s7 + $0x34] sm:$0xf]
        %v632 = vld [vmem:[%s7 + $0x38] sm:$0xf]
        %v633 = vld [vmem:[%s7 + $0x3c] sm:$0xf]
        %v634 = vld [vmem:[%s7 + $0x40] sm:$0xf]
        %v635 = vld [vmem:[%s7 + $0x44] sm:$0xf]
        %v636 = vld [vmem:[%s7 + $0x48] sm:$0xf]
        %v637 = vld [vmem:[%s7 + $0x4c] sm:$0xf]
        %v638 = vld [vmem:[%s7 + $0x50] sm:$0xf]
        %v639 = vld [vmem:[%s7 + $0x54] sm:$0xf]
        %v640 = vld [vmem:[%s7 + $0x58] sm:$0xf]
        %v641 = vld [vmem:[%s7 + $0x5c] sm:$0xf]
        %v642 = vld [vmem:[%s7 + $0x60] sm:$0xf]
        %v643 = vld [vmem:[%s7 + $0x64] sm:$0xf]
        %v644 = vld [vmem:[%s7 + $0x68] sm:$0xf]
        %v645 = vld [vmem:[%s7 + $0x6c] sm:$0xf]
        %v646 = vld [vmem:[%s7 + $0x70] sm:$0xf]
        %v647 = vld [vmem:[%s7 + $0x74] sm:$0xf]
        %v648 = vld [vmem:[%s7 + $0x78] sm:$0xf]
        %v649 = vld [vmem:[%s7 + $0x7c] sm:$0xf]
        %v650 = vld [vmem:[%s7 + $0x80] sm:$0xf]
        %v651 = vld [vmem:[%s7 + $0x84] sm:$0xf]
        %v652 = vld [vmem:[%s7 + $0x88] sm:$0xf]
        %v653 = vld [vmem:[%s7 + $0x8c] sm:$0xf]
        %v654 = vld [vmem:[%s7 + $0x90] sm:$0xf]
        %v655 = vld [vmem:[%s7 + $0x94] sm:$0xf]
        %v656 = vld [vmem:[%s7 + $0x98] sm:$0xf]
        %v657 = vld [vmem:[%s7 + $0x9c] sm:$0xf]
        %v658 = vld [vmem:[%s7 + $0xa0] sm:$0xf]
        %v659 = vld [vmem:[%s7 + $0xa4] sm:$0xf]
        %v660 = vld [vmem:[%s7 + $0xa8] sm:$0xf]
        %v661 = vld [vmem:[%s7 + $0xac] sm:$0xf]
        %v662 = vld [vmem:[%s7 + $0xb0] sm:$0xf]
        %v663 = vld [vmem:[%s7 + $0xb4] sm:$0xf]
        %v664 = vld [vmem:[%s7 + $0xb8] sm:$0xf]
        %v665 = vld [vmem:[%s7 + $0xbc] sm:$0xf]
        %v666 = vld [vmem:[%s7 + $0xc0] sm:$0xf]
        %v667 = vld [vmem:[%s7 + $0xc4] sm:$0xf]
        %v668 = vld [vmem:[%s7 + $0xc8] sm:$0xf]
        %v669 = vld [vmem:[%s7 + $0xcc] sm:$0xf]
        %v670 = vld [vmem:[%s7 + $0xd0] sm:$0xf]
        %v671 = vld [vmem:[%s7 + $0xd4] sm:$0xf]
        %v672 = vld [vmem:[%s7 + $0xd8] sm:$0xf]
        %v673 = vld [vmem:[%s7 + $0xdc] sm:$0xf]
        %v674 = vld [vmem:[%s7 + $0xe0] sm:$0xf]
        %v675 = vld [vmem:[%s7 + $0xe4] sm:$0xf]
        %v676 = vld [vmem:[%s7 + $0xe8] sm:$0xf]
        %v677 = vld [vmem:[%s7 + $0xec] sm:$0xf]
        %v678 = vld [vmem:[%s7 + $0xf0] sm:$0xf]
        %v679 = vld [vmem:[%s7 + $0xf4] sm:$0xf]
        %v680 = vld [vmem:[%s7 + $0xf8] sm:$0xf]
        %v681 = vld [vmem:[%s7 + $0xfc] sm:$0xf]
        %v682 = vld [vmem:[%s7 + $0x100] sm:$0xf]
        %v683 = vld [vmem:[%s7 + $0x104] sm:$0xf]
        %v684 = vld [vmem:[%s7 + $0x108] sm:$0xf]
        %v685 = vld [vmem:[%s7 + $0x10c] sm:$0xf]
        %v686 = vld [vmem:[%s7 + $0x110] sm:$0xf]
        %v687 = vld [vmem:[%s7 + $0x114] sm:$0xf]
        %v688 = vld [vmem:[%s7 + $0x118] sm:$0xf]
        %v689 = vld [vmem:[%s7 + $0x11c] sm:$0xf]
        %v690 = vld [vmem:[%s7 + $0x120] sm:$0xf]
        %v691 = vld [vmem:[%s7 + $0x124] sm:$0xf]
        %v692 = vld [vmem:[%s7 + $0x128] sm:$0xf]
        %v693 = vld [vmem:[%s7 + $0x12c] sm:$0xf]
        %v694 = vld [vmem:[%s7 + $0x130] sm:$0xf]
        %v695 = vld [vmem:[%s7 + $0x134] sm:$0xf]
        %v696 = vld [vmem:[%s7 + $0x138] sm:$0xf]
        %v697 = vld [vmem:[%s7 + $0x13c] sm:$0xf]
        %v698 = vld [vmem:[%s7 + $0x140] sm:$0xf]
        %v699 = vld [vmem:[%s7 + $0x144] sm:$0xf]
        %v700 = vld [vmem:[%s7 + $0x148] sm:$0xf]
        %v701 = vld [vmem:[%s7 + $0x14c] sm:$0xf]
        %v702 = vld [vmem:[%s7 + $0x150] sm:$0xf]
        %v703 = vld [vmem:[%s7 + $0x154] sm:$0xf]
        %v704 = vld [vmem:[%s7 + $0x158] sm:$0xf]
        %v705 = vld [vmem:[%s7 + $0x15c] sm:$0xf]
        %v706 = vld [vmem:[%s7 + $0x160] sm:$0xf]
        %v707 = vld [vmem:[%s7 + $0x164] sm:$0xf]
        %v708 = vld [vmem:[%s7 + $0x168] sm:$0xf]
        %v709 = vld [vmem:[%s7 + $0x16c] sm:$0xf]
        %v710 = vld [vmem:[%s7 + $0x170] sm:$0xf]
        %v711 = vld [vmem:[%s7 + $0x174] sm:$0xf]
        %v712 = vld [vmem:[%s7 + $0x178] sm:$0xf]
        %v713 = vld [vmem:[%s7 + $0x17c] sm:$0xf]
        %v714 = vld [vmem:[%s7 + $0x180] sm:$0xf]
        %v715 = vld [vmem:[%s7 + $0x184] sm:$0xf]
        %v716 = vld [vmem:[%s7 + $0x188] sm:$0xf]
        %v717 = vld [vmem:[%s7 + $0x18c] sm:$0xf]
        %v718 = vld [vmem:[%s7 + $0x190] sm:$0xf]
        %v719 = vld [vmem:[%s7 + $0x194] sm:$0xf]
        %v720 = vld [vmem:[%s7 + $0x198] sm:$0xf]
        %v721 = vld [vmem:[%s7 + $0x19c] sm:$0xf]
        %v722 = vld [vmem:[%s7 + $0x1a0] sm:$0xf]
        %v723 = vld [vmem:[%s7 + $0x1a4] sm:$0xf]
        %v724 = vld [vmem:[%s7 + $0x1a8] sm:$0xf]
        %v725 = vld [vmem:[%s7 + $0x1ac] sm:$0xf]
        %v726 = vld [vmem:[%s7 + $0x1b0] sm:$0xf]
        %v727 = vld [vmem:[%s7 + $0x1b4] sm:$0xf]
        %v728 = vld [vmem:[%s7 + $0x1b8] sm:$0xf]
        %v729 = vld [vmem:[%s7 + $0x1bc] sm:$0xf]
        %v730 = vld [vmem:[%s7 + $0x1c0] sm:$0xf]
        %v731 = vld [vmem:[%s7 + $0x1c4] sm:$0xf]
        %v732 = vld [vmem:[%s7 + $0x1c8] sm:$0xf]
        %v733 = vld [vmem:[%s7 + $0x1cc] sm:$0xf]
        %v734 = vld [vmem:[%s7 + $0x1d0] sm:$0xf]
        %v735 = vld [vmem:[%s7 + $0x1d4] sm:$0xf]
        %v736 = vld [vmem:[%s7 + $0x1d8] sm:$0xf]
        %v737 = vld [vmem:[%s7 + $0x1dc] sm:$0xf]
        %v738 = vld [vmem:[%s7 + $0x1e0] sm:$0xf]
        %v739 = vld [vmem:[%s7 + $0x1e4] sm:$0xf]
        %v740 = vld [vmem:[%s7 + $0x1e8] sm:$0xf]
        %v741 = vld [vmem:[%s7 + $0x1ec] sm:$0xf]
        %v742 = vld [vmem:[%s7 + $0x1f0] sm:$0xf]
        %v743 = vld [vmem:[%s7 + $0x1f4] sm:$0xf]
        %v744 = vld [vmem:[%s7 + $0x1f8] sm:$0xf]
        %v745 = vld [vmem:[%s7 + $0x1fc] sm:$0xf]
        %v746 = vld [vmem:[%s7 + $0x200] sm:$0xf]
        %v747 = vld [vmem:[%s7 + $0x204] sm:$0xf]
        %v748 = vld [vmem:[%s7 + $0x208] sm:$0xf]
        %v749 = vld [vmem:[%s7 + $0x20c] sm:$0xf]
        %v750 = vld [vmem:[%s7 + $0x210] sm:$0xf]
        %v751 = vld [vmem:[%s7 + $0x214] sm:$0xf]
        %v752 = vld [vmem:[%s7 + $0x218] sm:$0xf]
        %v753 = vld [vmem:[%s7 + $0x21c] sm:$0xf]
        %v754 = vld [vmem:[%s7 + $0x220] sm:$0xf]
        %v755 = vld [vmem:[%s7 + $0x224] sm:$0xf]
        %v756 = vld [vmem:[%s7 + $0x228] sm:$0xf]
        %v757 = vld [vmem:[%s7 + $0x22c] sm:$0xf]
        %v758 = vld [vmem:[%s7 + $0x230] sm:$0xf]
        %v759 = vld [vmem:[%s7 + $0x234] sm:$0xf]
        %v760 = vld [vmem:[%s7 + $0x238] sm:$0xf]
        %v761 = vld [vmem:[%s7 + $0x23c] sm:$0xf]
        %v762 = vld [vmem:[%s7 + $0x240] sm:$0xf]
        %v763 = vld [vmem:[%s7 + $0x244] sm:$0xf]
        %v764 = vld [vmem:[%s7 + $0x248] sm:$0xf]
        %v765 = vld [vmem:[%s7 + $0x24c] sm:$0xf]
        %v766 = vld [vmem:[%s7 + $0x250] sm:$0xf]
        %v767 = vld [vmem:[%s7 + $0x254] sm:$0xf]
        %v768 = vld [vmem:[%s7 + $0x258] sm:$0xf]
        %v769 = vld [vmem:[%s7 + $0x25c] sm:$0xf]
        %v770 = vld [vmem:[%s7 + $0x260] sm:$0xf]
        %v771 = vld [vmem:[%s7 + $0x264] sm:$0xf]
        %v772 = vld [vmem:[%s7 + $0x268] sm:$0xf]
        %v773 = vld [vmem:[%s7 + $0x26c] sm:$0xf]
        %v774 = vld [vmem:[%s7 + $0x270] sm:$0xf]
        %v775 = vld [vmem:[%s7 + $0x274] sm:$0xf]
        %v776 = vld [vmem:[%s7 + $0x278] sm:$0xf]
        %v777 = vld [vmem:[%s7 + $0x27c] sm:$0xf]
        %v778 = vld [vmem:[%s7 + $0x280] sm:$0xf]
        %v779 = vld [vmem:[%s7 + $0x284] sm:$0xf]
        %v780 = vld [vmem:[%s7 + $0x288] sm:$0xf]
        %v781 = vld [vmem:[%s7 + $0x28c] sm:$0xf]
        %v782 = vld [vmem:[%s7 + $0x290] sm:$0xf]
        %v783 = vld [vmem:[%s7 + $0x294] sm:$0xf]
        %v784 = vld [vmem:[%s7 + $0x298] sm:$0xf]
        %v785 = vld [vmem:[%s7 + $0x29c] sm:$0xf]
        %v786 = vld [vmem:[%s7 + $0x2a0] sm:$0xf]
        %v787 = vld [vmem:[%s7 + $0x2a4] sm:$0xf]
        %v788 = vld [vmem:[%s7 + $0x2a8] sm:$0xf]
        %v789 = vld [vmem:[%s7 + $0x2ac] sm:$0xf]
        %v790 = vld [vmem:[%s7 + $0x2b0] sm:$0xf]
        %v791 = vld [vmem:[%s7 + $0x2b4] sm:$0xf]
        %v792 = vld [vmem:[%s7 + $0x2b8] sm:$0xf]
        %v793 = vld [vmem:[%s7 + $0x2bc] sm:$0xf]
        %v794 = vld [vmem:[%s7 + $0x2c0] sm:$0xf]
        %v795 = vld [vmem:[%s7 + $0x2c4] sm:$0xf]
        %v796 = vld [vmem:[%s7 + $0x2c8] sm:$0xf]
        %v797 = vld [vmem:[%s7 + $0x2cc] sm:$0xf]
        %v798 = vld [vmem:[%s7 + $0x2d0] sm:$0xf]
        %v799 = vld [vmem:[%s7 + $0x2d4] sm:$0xf]
        %v800 = vld [vmem:[%s7 + $0x2d8] sm:$0xf]
        %v801 = vld [vmem:[%s7 + $0x2dc] sm:$0xf]
        %v802 = vld [vmem:[%s7 + $0x2e0] sm:$0xf]
        %v803 = vld [vmem:[%s7 + $0x2e4] sm:$0xf]
        %v804 = vld [vmem:[%s7 + $0x2e8] sm:$0xf]
        %v805 = vld [vmem:[%s7 + $0x2ec] sm:$0xf]
        %v806 = vld [vmem:[%s7 + $0x2f0] sm:$0xf]
        %v807 = vld [vmem:[%s7 + $0x2f4] sm:$0xf]
        %v808 = vld [vmem:[%s7 + $0x2f8] sm:$0xf]
        %v809 = vld [vmem:[%s7 + $0x2fc] sm:$0xf]
        %v810 = vld [vmem:[%s7 + $0x300] sm:$0xf]
        %v811 = vld [vmem:[%s7 + $0x304] sm:$0xf]
        %v812 = vld [vmem:[%s7 + $0x308] sm:$0xf]
        %v813 = vld [vmem:[%s7 + $0x30c] sm:$0xf]
        %v814 = vld [vmem:[%s7 + $0x310] sm:$0xf]
        %v815 = vld [vmem:[%s7 + $0x314] sm:$0xf]
        %v816 = vld [vmem:[%s7 + $0x318] sm:$0xf]
        %v817 = vld [vmem:[%s7 + $0x31c] sm:$0xf]
        %v818 = vld [vmem:[%s7 + $0x320] sm:$0xf]
        %v819 = vld [vmem:[%s7 + $0x324] sm:$0xf]
        %v820 = vld [vmem:[%s7 + $0x328] sm:$0xf]
        %v821 = vld [vmem:[%s7 + $0x32c] sm:$0xf]
        %v822 = vld [vmem:[%s7 + $0x330] sm:$0xf]
        %v823 = vld [vmem:[%s7 + $0x334] sm:$0xf]
        %v824 = vld [vmem:[%s7 + $0x338] sm:$0xf]
        %v825 = vld [vmem:[%s7 + $0x33c] sm:$0xf]
        %v826 = vld [vmem:[%s7 + $0x340] sm:$0xf]
        %v827 = vld [vmem:[%s7 + $0x344] sm:$0xf]
        %v828 = vld [vmem:[%s7 + $0x348] sm:$0xf]
        %v829 = vld [vmem:[%s7 + $0x34c] sm:$0xf]
        %v830 = vld [vmem:[%s7 + $0x350] sm:$0xf]
        %v831 = vld [vmem:[%s7 + $0x354] sm:$0xf]
        %v832 = vld [vmem:[%s7 + $0x358] sm:$0xf]
        %v833 = vld [vmem:[%s7 + $0x35c] sm:$0xf]
        %v834 = vld [vmem:[%s7 + $0x360] sm:$0xf]
        %v835 = vld [vmem:[%s7 + $0x364] sm:$0xf]
        %v836 = vld [vmem:[%s7 + $0x368] sm:$0xf]
        %v837 = vld [vmem:[%s7 + $0x36c] sm:$0xf]
        %v838 = vld [vmem:[%s7 + $0x370] sm:$0xf]
        %v839 = vld [vmem:[%s7 + $0x374] sm:$0xf]
        %v840 = vld [vmem:[%s7 + $0x378] sm:$0xf]
        %v841 = vld [vmem:[%s7 + $0x37c] sm:$0xf]
        %v842 = vld [vmem:[%s7 + $0x380] sm:$0xf]
        %v843 = vld [vmem:[%s7 + $0x384] sm:$0xf]
        %v844 = vld [vmem:[%s7 + $0x388] sm:$0xf]
        %v845 = vld [vmem:[%s7 + $0x38c] sm:$0xf]
        %v846 = vld [vmem:[%s7 + $0x390] sm:$0xf]
        %v847 = vld [vmem:[%s7 + $0x394] sm:$0xf]
        %v848 = vld [vmem:[%s7 + $0x398] sm:$0xf]
        %v849 = vld [vmem:[%s7 + $0x39c] sm:$0xf]
        %v850 = vld [vmem:[%s7 + $0x3a0] sm:$0xf]
        %v851 = vld [vmem:[%s7 + $0x3a4] sm:$0xf]
        %v852 = vld [vmem:[%s7 + $0x3a8] sm:$0xf]
        %v853 = vld [vmem:[%s7 + $0x3ac] sm:$0xf]
        %v854 = vld [vmem:[%s7 + $0x3b0] sm:$0xf]
        %v855 = vld [vmem:[%s7 + $0x3b4] sm:$0xf]
        %v856 = vld [vmem:[%s7 + $0x3b8] sm:$0xf]
        %v857 = vld [vmem:[%s7 + $0x3bc] sm:$0xf]
        %v858 = vld [vmem:[%s7 + $0x3c0] sm:$0xf]
        %v859 = vld [vmem:[%s7 + $0x3c4] sm:$0xf]
        %v860 = vld [vmem:[%s7 + $0x3c8] sm:$0xf]
        %v861 = vld [vmem:[%s7 + $0x3cc] sm:$0xf]
        %v862 = vld [vmem:[%s7 + $0x3d0] sm:$0xf]
        %v863 = vld [vmem:[%s7 + $0x3d4] sm:$0xf]
        %v864 = vld [vmem:[%s7 + $0x3d8] sm:$0xf]
        %v865 = vld [vmem:[%s7 + $0x3dc] sm:$0xf]
        %v866 = vld [vmem:[%s7 + $0x3e0] sm:$0xf]
        %v867 = vld [vmem:[%s7 + $0x3e4] sm:$0xf]
        %v868 = vld [vmem:[%s7 + $0x3e8] sm:$0xf]
        %v869 = vld [vmem:[%s7 + $0x3ec] sm:$0xf]
        %v870 = vld [vmem:[%s7 + $0x3f0] sm:$0xf]
        %v871 = vld [vmem:[%s7 + $0x3f4] sm:$0xf]
        %v872 = vld [vmem:[%s7 + $0x3f8] sm:$0xf]
        %v873 = vld [vmem:[%s7 + $0x3fc] sm:$0xf]
        %v874 = vld [vmem:[%s8] sm:$0x3f]
        %v875 = vpack.c.bf16 %v532, %v529
        %v877 = vlaneseq
        %v878 = vshrl.u32 %v877, 7
        %v879 = vsub.s32 0, %v878
        %v880 = vrot.slane %v543, %v879
        %v881 = vlaneseq
        %v882 = vshrl.u32 %v881, 7
        %v883 = vsub.s32 1, %v882
        %v884 = vrot.slane %v543, %v883
        %v895 = vunpack.c.l.b16 %v535
        %v896 = vunpack.c.h.b16 %v535
        %v897 = vunpack.c.l.b16 %v536
        %v898 = vunpack.c.h.b16 %v536
        %v899 = vunpack.c.l.b16 %v537
        %v900 = vunpack.c.h.b16 %v537
        %v901 = vunpack.c.l.b16 %v538
        %v902 = vunpack.c.h.b16 %v538
        %v903 = vunpack.c.l.b16 %v539
        %v904 = vunpack.c.h.b16 %v539
        %v905 = vunpack.c.l.b16 %v540
        %v906 = vunpack.c.h.b16 %v540
        %v907 = vunpack.c.l.b16 %v541
        %v908 = vunpack.c.h.b16 %v541
        %v909 = vunpack.c.l.b16 %v542
        %v910 = vunpack.c.h.b16 %v542
        %v911 = vpack.c.b16 %v897, %v895
        %v912 = vpack.c.b16 %v898, %v896
        %v913 = vpack.c.b16 %v901, %v899
        %v914 = vpack.c.b16 %v902, %v900
        %v915 = vpack.c.b16 %v905, %v903
        %v916 = vpack.c.b16 %v906, %v904
        %v917 = vpack.c.b16 %v909, %v907
        %v918 = vpack.c.b16 %v910, %v908
        %vm927 = vcmask 523264
        %v929 = vsel %vm927, %v875, 0
        %931 = vmatprep.subr.bf16.mxu0 %v912
        %932 = vmatpush1.bf16.msra.mxu0 %v911
        %933 = vmatprep.subr.bf16.mxu0 %v914
        %934 = vmatpush1.bf16.msra.mxu0 %v913
        %935 = vmatprep.subr.bf16.mxu0 %v916
        %936 = vmatpush1.bf16.msra.mxu0 %v915
        %937 = vmatprep.subr.bf16.mxu0 %v918
        %938 = vmatpush1.bf16.msra.mxu0 %v917
        %939 = vmatprep.subr.bf16.mxu0 0
        %940 = vmatpush1.bf16.msra.mxu0 0
        %941 = vmatprep.subr.bf16.mxu0 0
        %942 = vmatpush1.bf16.msra.mxu0 0
        %943 = vmatprep.subr.bf16.mxu0 0
        %944 = vmatpush1.bf16.msra.mxu0 0
        %945 = vmatprep.subr.bf16.mxu0 0
        %946 = vmatpush1.bf16.msra.mxu0 0
        %947 = vmatprep.subr.bf16.mxu0 0
        %948 = vmatpush1.bf16.msra.mxu0 0
        %949 = vmatprep.subr.bf16.mxu0 0
        %950 = vmatpush1.bf16.msra.mxu0 0
        %951 = vmatprep.subr.bf16.mxu0 0
        %952 = vmatpush1.bf16.msra.mxu0 0
        %953 = vmatprep.subr.bf16.mxu0 0
        %954 = vmatpush1.bf16.msra.mxu0 0
        %955 = vmatprep.subr.bf16.mxu0 0
        %956 = vmatpush1.bf16.msra.mxu0 0
        %957 = vmatprep.subr.bf16.mxu0 0
        %958 = vmatpush1.bf16.msra.mxu0 0
        %959 = vmatprep.subr.bf16.mxu0 0
        %960 = vmatpush1.bf16.msra.mxu0 0
        %961 = vmatprep.subr.bf16.mxu0 0
        %962 = vmatpush1.bf16.msra.mxu0 0
        %963 = vmatprep.mubr.bf16.mxu0 0
        %964 = vmatmul.mubr.bf16.gmra.mrb[0].mxu0 %v929
        %v965 = vpop.f32.mrb[0].mxu0
        %v966 = vadd.f32 %v880, %v965
        %v967 = vpop.f32.mrb[0].mxu0
        %v968 = vadd.f32 %v884, %v967
        %v969 = vpop.f32.mrb[0].mxu0
        %v970 = vadd.f32 %v880, %v969
        %v971 = vpop.f32.mrb[0].mxu0
        %v972 = vadd.f32 %v884, %v971
        %973 = vdwg.mxu0
        %v974 = vpack.c.bf16 %v970, %v966
        %v976 = vunpack.c.l.b16 %v974
        %v977 = vunpack.c.h.b16 %v974
        %v978 = vpack.c.b16 %v976, %v976
        %v979 = vpack.c.b16 %v977, %v977
        %v980 = vpack.c.bf16 %v972, %v968
        %v982 = vunpack.c.l.b16 %v980
        %v983 = vunpack.c.h.b16 %v980
        %v984 = vpack.c.b16 %v982, %v982
        %v985 = vpack.c.b16 %v983, %v983
        %986 = vrot.lane.b32.xlu0 %v978, 64
        %v987 = vpop.permute.xlu0 %986
        %vm988 = vcmask 130048
        %v990 = vsel %vm988, %v978, 0
        %v993 = vsel %vm988, %v987, 0
        %995 = vmatprep.subr.bf16.mxu0 0
        %996 = vmatpush1.bf16.xpose.msra.mxu0 %v993
        %997 = vmatprep.subr.bf16.mxu0 0
        %998 = vmatpush1.bf16.xpose.msra.mxu0 0
        %999 = vmatprep.subr.bf16.mxu0 0
        %1000 = vmatpush1.bf16.xpose.msra.mxu0 0
        %1001 = vmatprep.subr.bf16.mxu0 0
        %1002 = vmatpush1.bf16.xpose.msra.mxu0 0
        %1003 = vmatprep.subr.bf16.mxu0 0
        %1004 = vmatpush1.bf16.xpose.msra.mxu0 0
        %1005 = vmatprep.subr.bf16.mxu0 0
        %1006 = vmatpush1.bf16.xpose.msra.mxu0 0
        %1007 = vmatprep.subr.bf16.mxu0 0
        %1008 = vmatpush1.bf16.xpose.msra.mxu0 0
        %1009 = vmatprep.subr.bf16.mxu0 0
        %1010 = vmatpush1.bf16.xpose.msra.mxu0 0
        %1011 = vmatprep.subr.bf16.mxu0 0
        %1012 = vmatpush1.bf16.xpose.msra.mxu0 0
        %1013 = vmatprep.subr.bf16.mxu0 0
        %1014 = vmatpush1.bf16.xpose.msra.mxu0 0
        %1015 = vmatprep.subr.bf16.mxu0 0
        %1016 = vmatpush1.bf16.xpose.msra.mxu0 0
        %1017 = vmatprep.subr.bf16.mxu0 0
        %1018 = vmatpush1.bf16.xpose.msra.mxu0 0
        %1019 = vmatprep.subr.bf16.mxu0 0
        %1020 = vmatpush1.bf16.xpose.msra.mxu0 0
        %1021 = vmatprep.subr.bf16.mxu0 0
        %1022 = vmatpush1.bf16.xpose.msra.mxu0 0
        %1023 = vmatprep.subr.bf16.mxu0 0
        %1024 = vmatpush1.bf16.xpose.msra.mxu0 0
        %1025 = vmatprep.subr.bf16.mxu0 0
        %1026 = vmatpush1.bf16.xpose.msra.mxu0 0
        %1027 = vmatprep.mubr.bf16.mxu0 0
        %1028 = vmatmul.mubr.bf16.gmra.mrb[0].mxu0 %v990
        %v1029 = vpop.f32.mrb[0].mxu0
        %v1030 = vadd.f32 0.0, %v1029
        %v1031 = vpop.f32.mrb[0].mxu0
        %v1032 = vpop.f32.mrb[0].mxu0
        %v1033 = vpop.f32.mrb[0].mxu0
        %1034 = vdwg.mxu0
        %1035 = vrot.lane.b32.xlu0 %v979, 64
        %v1036 = vpop.permute.xlu0 %1035
        %v1038 = vsel %vm988, %v979, 0
        %v1041 = vsel %vm988, %v1036, 0
        %1043 = vmatprep.subr.bf16.mxu0 0
        %1044 = vmatpush1.bf16.xpose.msra.mxu0 %v1041
        %1045 = vmatprep.subr.bf16.mxu0 0
        %1046 = vmatpush1.bf16.xpose.msra.mxu0 0
        %1047 = vmatprep.subr.bf16.mxu0 0
        %1048 = vmatpush1.bf16.xpose.msra.mxu0 0
        %1049 = vmatprep.subr.bf16.mxu0 0
        %1050 = vmatpush1.bf16.xpose.msra.mxu0 0
        %1051 = vmatprep.subr.bf16.mxu0 0
        %1052 = vmatpush1.bf16.xpose.msra.mxu0 0
        %1053 = vmatprep.subr.bf16.mxu0 0
        %1054 = vmatpush1.bf16.xpose.msra.mxu0 0
        %1055 = vmatprep.subr.bf16.mxu0 0
        %1056 = vmatpush1.bf16.xpose.msra.mxu0 0
        %1057 = vmatprep.subr.bf16.mxu0 0
        %1058 = vmatpush1.bf16.xpose.msra.mxu0 0
        %1059 = vmatprep.subr.bf16.mxu0 0
        %1060 = vmatpush1.bf16.xpose.msra.mxu0 0
        %1061 = vmatprep.subr.bf16.mxu0 0
        %1062 = vmatpush1.bf16.xpose.msra.mxu0 0
        %1063 = vmatprep.subr.bf16.mxu0 0
        %1064 = vmatpush1.bf16.xpose.msra.mxu0 0
        %1065 = vmatprep.subr.bf16.mxu0 0
        %1066 = vmatpush1.bf16.xpose.msra.mxu0 0
        %1067 = vmatprep.subr.bf16.mxu0 0
        %1068 = vmatpush1.bf16.xpose.msra.mxu0 0
        %1069 = vmatprep.subr.bf16.mxu0 0
        %1070 = vmatpush1.bf16.xpose.msra.mxu0 0
        %1071 = vmatprep.subr.bf16.mxu0 0
        %1072 = vmatpush1.bf16.xpose.msra.mxu0 0
        %1073 = vmatprep.subr.bf16.mxu0 0
        %1074 = vmatpush1.bf16.xpose.msra.mxu0 0
        %1075 = vmatprep.mubr.bf16.mxu0 0
        %1076 = vmatmul.mubr.bf16.gmra.mrb[0].mxu0 %v1038
        %v1077 = vpop.f32.mrb[0].mxu0
        %v1078 = vadd.f32 0.0, %v1077
        %v1079 = vpop.f32.mrb[0].mxu0
        %v1080 = vpop.f32.mrb[0].mxu0
        %v1081 = vpop.f32.mrb[0].mxu0
        %1082 = vdwg.mxu0
        %v1083 = vsel %vm486, %v1030, -inf
        %1084 = vmax.xlane.f32.xlu0 %v1083
        %v1085 = vpop.xlane.xlu0 %1084
        %v1086 = vsel %vm486, %v1078, -inf
        %1087 = vmax.xlane.f32.xlu0 %v1086
        %v1088 = vpop.xlane.xlu0 %1087
        %v1089 = vsub.f32 %v1030, %v1085
        %v1090 = vsub.f32 %v1078, %v1088
        %v1091 = vmul.f32 %v1089, 1.442695
        %v1092 = vpow.pop %v1091
        %v1093 = vmul.f32 %v1090, 1.442695
        %v1094 = vpow.pop %v1093
        %v1095 = vsel %vm486, %v1092, 0.0
        %1096 = vadd.xlane.f32.xlu0 %v1095
        %v1097 = vpop.xlane.xlu0 %1096
        %v1098 = vsel %vm486, %v1094, 0.0
        %1099 = vadd.xlane.f32.xlu0 %v1098
        %v1100 = vpop.xlane.xlu0 %1099
        %v1101 = vrcp.pop %v1097
        %v1102 = vrcp.pop %v1100
        %v1103 = vmul.f32 %v1092, %v1101
        %v1104 = vmul.f32 %v1094, %v1102
        %v1105 = vpack.c.bf16 %v1103, %v1103
        %v1106 = vpack.c.bf16 %v1104, %v1104
        %v1108 = vsel %vm486, %v1105, 0
        %v1111 = vsel %vm490, %v984, 0
        %1113 = vmatprep.subr.bf16.mxu0 0
        %1114 = vmatpush1.bf16.msra.mxu0 %v1111
        %1115 = vmatprep.subr.bf16.mxu0 0
        %1116 = vmatpush1.bf16.msra.mxu0 0
        %1117 = vmatprep.subr.bf16.mxu0 0
        %1118 = vmatpush1.bf16.msra.mxu0 0
        %1119 = vmatprep.subr.bf16.mxu0 0
        %1120 = vmatpush1.bf16.msra.mxu0 0
        %1121 = vmatprep.subr.bf16.mxu0 0
        %1122 = vmatpush1.bf16.msra.mxu0 0
        %1123 = vmatprep.subr.bf16.mxu0 0
        %1124 = vmatpush1.bf16.msra.mxu0 0
        %1125 = vmatprep.subr.bf16.mxu0 0
        %1126 = vmatpush1.bf16.msra.mxu0 0
        %1127 = vmatprep.subr.bf16.mxu0 0
        %1128 = vmatpush1.bf16.msra.mxu0 0
        %1129 = vmatprep.subr.bf16.mxu0 0
        %1130 = vmatpush1.bf16.msra.mxu0 0
        %1131 = vmatprep.subr.bf16.mxu0 0
        %1132 = vmatpush1.bf16.msra.mxu0 0
        %1133 = vmatprep.subr.bf16.mxu0 0
        %1134 = vmatpush1.bf16.msra.mxu0 0
        %1135 = vmatprep.subr.bf16.mxu0 0
        %1136 = vmatpush1.bf16.msra.mxu0 0
        %1137 = vmatprep.subr.bf16.mxu0 0
        %1138 = vmatpush1.bf16.msra.mxu0 0
        %1139 = vmatprep.subr.bf16.mxu0 0
        %1140 = vmatpush1.bf16.msra.mxu0 0
        %1141 = vmatprep.subr.bf16.mxu0 0
        %1142 = vmatpush1.bf16.msra.mxu0 0
        %1143 = vmatprep.subr.bf16.mxu0 0
        %1144 = vmatpush1.bf16.msra.mxu0 0
        %1145 = vmatprep.mubr.bf16.mxu0 0
        %1146 = vmatmul.mubr.bf16.gmra.mrb[0].mxu0 %v1108
        %v1147 = vpop.f32.mrb[0].mxu0
        %v1148 = vadd.f32 0.0, %v1147
        %v1149 = vpop.f32.mrb[0].mxu0
        %v1150 = vpop.f32.mrb[0].mxu0
        %v1151 = vpop.f32.mrb[0].mxu0
        %1152 = vdwg.mxu0
        %v1154 = vsel %vm486, %v1106, 0
        %v1157 = vsel %vm490, %v985, 0
        %1159 = vmatprep.subr.bf16.mxu0 0
        %1160 = vmatpush1.bf16.msra.mxu0 %v1157
        %1161 = vmatprep.subr.bf16.mxu0 0
        %1162 = vmatpush1.bf16.msra.mxu0 0
        %1163 = vmatprep.subr.bf16.mxu0 0
        %1164 = vmatpush1.bf16.msra.mxu0 0
        %1165 = vmatprep.subr.bf16.mxu0 0
        %1166 = vmatpush1.bf16.msra.mxu0 0
        %1167 = vmatprep.subr.bf16.mxu0 0
        %1168 = vmatpush1.bf16.msra.mxu0 0
        %1169 = vmatprep.subr.bf16.mxu0 0
        %1170 = vmatpush1.bf16.msra.mxu0 0
        %1171 = vmatprep.subr.bf16.mxu0 0
        %1172 = vmatpush1.bf16.msra.mxu0 0
        %1173 = vmatprep.subr.bf16.mxu0 0
        %1174 = vmatpush1.bf16.msra.mxu0 0
        %1175 = vmatprep.subr.bf16.mxu0 0
        %1176 = vmatpush1.bf16.msra.mxu0 0
        %1177 = vmatprep.subr.bf16.mxu0 0
        %1178 = vmatpush1.bf16.msra.mxu0 0
        %1179 = vmatprep.subr.bf16.mxu0 0
        %1180 = vmatpush1.bf16.msra.mxu0 0
        %1181 = vmatprep.subr.bf16.mxu0 0
        %1182 = vmatpush1.bf16.msra.mxu0 0
        %1183 = vmatprep.subr.bf16.mxu0 0
        %1184 = vmatpush1.bf16.msra.mxu0 0
        %1185 = vmatprep.subr.bf16.mxu0 0
        %1186 = vmatpush1.bf16.msra.mxu0 0
        %1187 = vmatprep.subr.bf16.mxu0 0
        %1188 = vmatpush1.bf16.msra.mxu0 0
        %1189 = vmatprep.subr.bf16.mxu0 0
        %1190 = vmatpush1.bf16.msra.mxu0 0
        %1191 = vmatprep.mubr.bf16.mxu0 0
        %1192 = vmatmul.mubr.bf16.gmra.mrb[0].mxu0 %v1154
        %v1193 = vpop.f32.mrb[0].mxu0
        %v1194 = vadd.f32 0.0, %v1193
        %v1195 = vpop.f32.mrb[0].mxu0
        %v1196 = vpop.f32.mrb[0].mxu0
        %v1197 = vpop.f32.mrb[0].mxu0
        %1198 = vdwg.mxu0
        %1199 = vrot.lane.b32.xlu0 %v978, 112
        %v1200 = vpop.permute.xlu0 %1199
        %1201 = vrot.lane.b32.xlu0 %v978, 48
        %v1202 = vpop.permute.xlu0 %1201
        %v1204 = vsel %vm988, %v1200, 0
        %v1207 = vsel %vm988, %v1202, 0
        %1209 = vmatprep.subr.bf16.mxu0 0
        %1210 = vmatpush1.bf16.xpose.msra.mxu0 %v1207
        %1211 = vmatprep.subr.bf16.mxu0 0
        %1212 = vmatpush1.bf16.xpose.msra.mxu0 0
        %1213 = vmatprep.subr.bf16.mxu0 0
        %1214 = vmatpush1.bf16.xpose.msra.mxu0 0
        %1215 = vmatprep.subr.bf16.mxu0 0
        %1216 = vmatpush1.bf16.xpose.msra.mxu0 0
        %1217 = vmatprep.subr.bf16.mxu0 0
        %1218 = vmatpush1.bf16.xpose.msra.mxu0 0
        %1219 = vmatprep.subr.bf16.mxu0 0
        %1220 = vmatpush1.bf16.xpose.msra.mxu0 0
        %1221 = vmatprep.subr.bf16.mxu0 0
        %1222 = vmatpush1.bf16.xpose.msra.mxu0 0
        %1223 = vmatprep.subr.bf16.mxu0 0
        %1224 = vmatpush1.bf16.xpose.msra.mxu0 0
        %1225 = vmatprep.subr.bf16.mxu0 0
        %1226 = vmatpush1.bf16.xpose.msra.mxu0 0
        %1227 = vmatprep.subr.bf16.mxu0 0
        %1228 = vmatpush1.bf16.xpose.msra.mxu0 0
        %1229 = vmatprep.subr.bf16.mxu0 0
        %1230 = vmatpush1.bf16.xpose.msra.mxu0 0
        %1231 = vmatprep.subr.bf16.mxu0 0
        %1232 = vmatpush1.bf16.xpose.msra.mxu0 0
        %1233 = vmatprep.subr.bf16.mxu0 0
        %1234 = vmatpush1.bf16.xpose.msra.mxu0 0
        %1235 = vmatprep.subr.bf16.mxu0 0
        %1236 = vmatpush1.bf16.xpose.msra.mxu0 0
        %1237 = vmatprep.subr.bf16.mxu0 0
        %1238 = vmatpush1.bf16.xpose.msra.mxu0 0
        %1239 = vmatprep.subr.bf16.mxu0 0
        %1240 = vmatpush1.bf16.xpose.msra.mxu0 0
        %1241 = vmatprep.mubr.bf16.mxu0 0
        %1242 = vmatmul.mubr.bf16.gmra.mrb[0].mxu0 %v1204
        %v1243 = vpop.f32.mrb[0].mxu0
        %v1244 = vadd.f32 0.0, %v1243
        %v1245 = vpop.f32.mrb[0].mxu0
        %v1246 = vpop.f32.mrb[0].mxu0
        %v1247 = vpop.f32.mrb[0].mxu0
        %1248 = vdwg.mxu0
        %1249 = vrot.lane.b32.xlu0 %v979, 112
        %v1250 = vpop.permute.xlu0 %1249
        %1251 = vrot.lane.b32.xlu0 %v979, 48
        %v1252 = vpop.permute.xlu0 %1251
        %v1254 = vsel %vm988, %v1250, 0
        %v1257 = vsel %vm988, %v1252, 0
        %1259 = vmatprep.subr.bf16.mxu0 0
        %1260 = vmatpush1.bf16.xpose.msra.mxu0 %v1257
        %1261 = vmatprep.subr.bf16.mxu0 0
        %1262 = vmatpush1.bf16.xpose.msra.mxu0 0
        %1263 = vmatprep.subr.bf16.mxu0 0
        %1264 = vmatpush1.bf16.xpose.msra.mxu0 0
        %1265 = vmatprep.subr.bf16.mxu0 0
        %1266 = vmatpush1.bf16.xpose.msra.mxu0 0
        %1267 = vmatprep.subr.bf16.mxu0 0
        %1268 = vmatpush1.bf16.xpose.msra.mxu0 0
        %1269 = vmatprep.subr.bf16.mxu0 0
        %1270 = vmatpush1.bf16.xpose.msra.mxu0 0
        %1271 = vmatprep.subr.bf16.mxu0 0
        %1272 = vmatpush1.bf16.xpose.msra.mxu0 0
        %1273 = vmatprep.subr.bf16.mxu0 0
        %1274 = vmatpush1.bf16.xpose.msra.mxu0 0
        %1275 = vmatprep.subr.bf16.mxu0 0
        %1276 = vmatpush1.bf16.xpose.msra.mxu0 0
        %1277 = vmatprep.subr.bf16.mxu0 0
        %1278 = vmatpush1.bf16.xpose.msra.mxu0 0
        %1279 = vmatprep.subr.bf16.mxu0 0
        %1280 = vmatpush1.bf16.xpose.msra.mxu0 0
        %1281 = vmatprep.subr.bf16.mxu0 0
        %1282 = vmatpush1.bf16.xpose.msra.mxu0 0
        %1283 = vmatprep.subr.bf16.mxu0 0
        %1284 = vmatpush1.bf16.xpose.msra.mxu0 0
        %1285 = vmatprep.subr.bf16.mxu0 0
        %1286 = vmatpush1.bf16.xpose.msra.mxu0 0
        %1287 = vmatprep.subr.bf16.mxu0 0
        %1288 = vmatpush1.bf16.xpose.msra.mxu0 0
        %1289 = vmatprep.subr.bf16.mxu0 0
        %1290 = vmatpush1.bf16.xpose.msra.mxu0 0
        %1291 = vmatprep.mubr.bf16.mxu0 0
        %1292 = vmatmul.mubr.bf16.gmra.mrb[0].mxu0 %v1254
        %v1293 = vpop.f32.mrb[0].mxu0
        %v1294 = vadd.f32 0.0, %v1293
        %v1295 = vpop.f32.mrb[0].mxu0
        %v1296 = vpop.f32.mrb[0].mxu0
        %v1297 = vpop.f32.mrb[0].mxu0
        %1298 = vdwg.mxu0
        %v1299 = vsel %vm486, %v1244, -inf
        %1300 = vmax.xlane.f32.xlu0 %v1299
        %v1301 = vpop.xlane.xlu0 %1300
        %v1302 = vsel %vm486, %v1294, -inf
        %1303 = vmax.xlane.f32.xlu0 %v1302
        %v1304 = vpop.xlane.xlu0 %1303
        %v1305 = vsub.f32 %v1244, %v1301
        %v1306 = vsub.f32 %v1294, %v1304
        %v1307 = vmul.f32 %v1305, 1.442695
        %v1308 = vpow.pop %v1307
        %v1309 = vmul.f32 %v1306, 1.442695
        %v1310 = vpow.pop %v1309
        %v1311 = vsel %vm486, %v1308, 0.0
        %1312 = vadd.xlane.f32.xlu0 %v1311
        %v1313 = vpop.xlane.xlu0 %1312
        %v1314 = vsel %vm486, %v1310, 0.0
        %1315 = vadd.xlane.f32.xlu0 %v1314
        %v1316 = vpop.xlane.xlu0 %1315
        %v1317 = vrcp.pop %v1313
        %v1318 = vrcp.pop %v1316
        %v1319 = vmul.f32 %v1308, %v1317
        %v1320 = vmul.f32 %v1310, %v1318
        %v1321 = vpack.c.bf16 %v1319, %v1319
        %v1322 = vpack.c.bf16 %v1320, %v1320
        %1323 = vrot.lane.b32.xlu0 %v984, 112
        %v1324 = vpop.permute.xlu0 %1323
        %v1326 = vsel %vm486, %v1321, 0
        %v1329 = vsel %vm490, %v1324, 0
        %1331 = vmatprep.subr.bf16.mxu0 0
        %1332 = vmatpush1.bf16.msra.mxu0 %v1329
        %1333 = vmatprep.subr.bf16.mxu0 0
        %1334 = vmatpush1.bf16.msra.mxu0 0
        %1335 = vmatprep.subr.bf16.mxu0 0
        %1336 = vmatpush1.bf16.msra.mxu0 0
        %1337 = vmatprep.subr.bf16.mxu0 0
        %1338 = vmatpush1.bf16.msra.mxu0 0
        %1339 = vmatprep.subr.bf16.mxu0 0
        %1340 = vmatpush1.bf16.msra.mxu0 0
        %1341 = vmatprep.subr.bf16.mxu0 0
        %1342 = vmatpush1.bf16.msra.mxu0 0
        %1343 = vmatprep.subr.bf16.mxu0 0
        %1344 = vmatpush1.bf16.msra.mxu0 0
        %1345 = vmatprep.subr.bf16.mxu0 0
        %1346 = vmatpush1.bf16.msra.mxu0 0
        %1347 = vmatprep.subr.bf16.mxu0 0
        %1348 = vmatpush1.bf16.msra.mxu0 0
        %1349 = vmatprep.subr.bf16.mxu0 0
        %1350 = vmatpush1.bf16.msra.mxu0 0
        %1351 = vmatprep.subr.bf16.mxu0 0
        %1352 = vmatpush1.bf16.msra.mxu0 0
        %1353 = vmatprep.subr.bf16.mxu0 0
        %1354 = vmatpush1.bf16.msra.mxu0 0
        %1355 = vmatprep.subr.bf16.mxu0 0
        %1356 = vmatpush1.bf16.msra.mxu0 0
        %1357 = vmatprep.subr.bf16.mxu0 0
        %1358 = vmatpush1.bf16.msra.mxu0 0
        %1359 = vmatprep.subr.bf16.mxu0 0
        %1360 = vmatpush1.bf16.msra.mxu0 0
        %1361 = vmatprep.subr.bf16.mxu0 0
        %1362 = vmatpush1.bf16.msra.mxu0 0
        %1363 = vmatprep.mubr.bf16.mxu0 0
        %1364 = vmatmul.mubr.bf16.gmra.mrb[0].mxu0 %v1326
        %v1365 = vpop.f32.mrb[0].mxu0
        %v1366 = vadd.f32 0.0, %v1365
        %v1367 = vpop.f32.mrb[0].mxu0
        %v1368 = vpop.f32.mrb[0].mxu0
        %v1369 = vpop.f32.mrb[0].mxu0
        %1370 = vdwg.mxu0
        %1371 = vrot.lane.b32.xlu0 %v985, 112
        %v1372 = vpop.permute.xlu0 %1371
        %v1374 = vsel %vm486, %v1322, 0
        %v1377 = vsel %vm490, %v1372, 0
        %1379 = vmatprep.subr.bf16.mxu0 0
        %1380 = vmatpush1.bf16.msra.mxu0 %v1377
        %1381 = vmatprep.subr.bf16.mxu0 0
        %1382 = vmatpush1.bf16.msra.mxu0 0
        %1383 = vmatprep.subr.bf16.mxu0 0
        %1384 = vmatpush1.bf16.msra.mxu0 0
        %1385 = vmatprep.subr.bf16.mxu0 0
        %1386 = vmatpush1.bf16.msra.mxu0 0
        %1387 = vmatprep.subr.bf16.mxu0 0
        %1388 = vmatpush1.bf16.msra.mxu0 0
        %1389 = vmatprep.subr.bf16.mxu0 0
        %1390 = vmatpush1.bf16.msra.mxu0 0
        %1391 = vmatprep.subr.bf16.mxu0 0
        %1392 = vmatpush1.bf16.msra.mxu0 0
        %1393 = vmatprep.subr.bf16.mxu0 0
        %1394 = vmatpush1.bf16.msra.mxu0 0
        %1395 = vmatprep.subr.bf16.mxu0 0
        %1396 = vmatpush1.bf16.msra.mxu0 0
        %1397 = vmatprep.subr.bf16.mxu0 0
        %1398 = vmatpush1.bf16.msra.mxu0 0
        %1399 = vmatprep.subr.bf16.mxu0 0
        %1400 = vmatpush1.bf16.msra.mxu0 0
        %1401 = vmatprep.subr.bf16.mxu0 0
        %1402 = vmatpush1.bf16.msra.mxu0 0
        %1403 = vmatprep.subr.bf16.mxu0 0
        %1404 = vmatpush1.bf16.msra.mxu0 0
        %1405 = vmatprep.subr.bf16.mxu0 0
        %1406 = vmatpush1.bf16.msra.mxu0 0
        %1407 = vmatprep.subr.bf16.mxu0 0
        %1408 = vmatpush1.bf16.msra.mxu0 0
        %1409 = vmatprep.subr.bf16.mxu0 0
        %1410 = vmatpush1.bf16.msra.mxu0 0
        %1411 = vmatprep.mubr.bf16.mxu0 0
        %1412 = vmatmul.mubr.bf16.gmra.mrb[0].mxu0 %v1374
        %v1413 = vpop.f32.mrb[0].mxu0
        %v1414 = vadd.f32 0.0, %v1413
        %v1415 = vpop.f32.mrb[0].mxu0
        %v1416 = vpop.f32.mrb[0].mxu0
        %v1417 = vpop.f32.mrb[0].mxu0
        %1418 = vdwg.mxu0
        %1419 = vrot.lane.b32.xlu0 %v978, 96
        %v1420 = vpop.permute.xlu0 %1419
        %1421 = vrot.lane.b32.xlu0 %v978, 32
        %v1422 = vpop.permute.xlu0 %1421
        %v1424 = vsel %vm988, %v1420, 0
        %v1427 = vsel %vm988, %v1422, 0
        %1429 = vmatprep.subr.bf16.mxu0 0
        %1430 = vmatpush1.bf16.xpose.msra.mxu0 %v1427
        %1431 = vmatprep.subr.bf16.mxu0 0
        %1432 = vmatpush1.bf16.xpose.msra.mxu0 0
        %1433 = vmatprep.subr.bf16.mxu0 0
        %1434 = vmatpush1.bf16.xpose.msra.mxu0 0
        %1435 = vmatprep.subr.bf16.mxu0 0
        %1436 = vmatpush1.bf16.xpose.msra.mxu0 0
        %1437 = vmatprep.subr.bf16.mxu0 0
        %1438 = vmatpush1.bf16.xpose.msra.mxu0 0
        %1439 = vmatprep.subr.bf16.mxu0 0
        %1440 = vmatpush1.bf16.xpose.msra.mxu0 0
        %1441 = vmatprep.subr.bf16.mxu0 0
        %1442 = vmatpush1.bf16.xpose.msra.mxu0 0
        %1443 = vmatprep.subr.bf16.mxu0 0
        %1444 = vmatpush1.bf16.xpose.msra.mxu0 0
        %1445 = vmatprep.subr.bf16.mxu0 0
        %1446 = vmatpush1.bf16.xpose.msra.mxu0 0
        %1447 = vmatprep.subr.bf16.mxu0 0
        %1448 = vmatpush1.bf16.xpose.msra.mxu0 0
        %1449 = vmatprep.subr.bf16.mxu0 0
        %1450 = vmatpush1.bf16.xpose.msra.mxu0 0
        %1451 = vmatprep.subr.bf16.mxu0 0
        %1452 = vmatpush1.bf16.xpose.msra.mxu0 0
        %1453 = vmatprep.subr.bf16.mxu0 0
        %1454 = vmatpush1.bf16.xpose.msra.mxu0 0
        %1455 = vmatprep.subr.bf16.mxu0 0
        %1456 = vmatpush1.bf16.xpose.msra.mxu0 0
        %1457 = vmatprep.subr.bf16.mxu0 0
        %1458 = vmatpush1.bf16.xpose.msra.mxu0 0
        %1459 = vmatprep.subr.bf16.mxu0 0
        %1460 = vmatpush1.bf16.xpose.msra.mxu0 0
        %1461 = vmatprep.mubr.bf16.mxu0 0
        %1462 = vmatmul.mubr.bf16.gmra.mrb[0].mxu0 %v1424
        %v1463 = vpop.f32.mrb[0].mxu0
        %v1464 = vadd.f32 0.0, %v1463
        %v1465 = vpop.f32.mrb[0].mxu0
        %v1466 = vpop.f32.mrb[0].mxu0
        %v1467 = vpop.f32.mrb[0].mxu0
        %1468 = vdwg.mxu0
        %1469 = vrot.lane.b32.xlu0 %v979, 96
        %v1470 = vpop.permute.xlu0 %1469
        %1471 = vrot.lane.b32.xlu0 %v979, 32
        %v1472 = vpop.permute.xlu0 %1471
        %v1474 = vsel %vm988, %v1470, 0
        %v1477 = vsel %vm988, %v1472, 0
        %1479 = vmatprep.subr.bf16.mxu0 0
        %1480 = vmatpush1.bf16.xpose.msra.mxu0 %v1477
        %1481 = vmatprep.subr.bf16.mxu0 0
        %1482 = vmatpush1.bf16.xpose.msra.mxu0 0
        %1483 = vmatprep.subr.bf16.mxu0 0
        %1484 = vmatpush1.bf16.xpose.msra.mxu0 0
        %1485 = vmatprep.subr.bf16.mxu0 0
        %1486 = vmatpush1.bf16.xpose.msra.mxu0 0
        %1487 = vmatprep.subr.bf16.mxu0 0
        %1488 = vmatpush1.bf16.xpose.msra.mxu0 0
        %1489 = vmatprep.subr.bf16.mxu0 0
        %1490 = vmatpush1.bf16.xpose.msra.mxu0 0
        %1491 = vmatprep.subr.bf16.mxu0 0
        %1492 = vmatpush1.bf16.xpose.msra.mxu0 0
        %1493 = vmatprep.subr.bf16.mxu0 0
        %1494 = vmatpush1.bf16.xpose.msra.mxu0 0
        %1495 = vmatprep.subr.bf16.mxu0 0
        %1496 = vmatpush1.bf16.xpose.msra.mxu0 0
        %1497 = vmatprep.subr.bf16.mxu0 0
        %1498 = vmatpush1.bf16.xpose.msra.mxu0 0
        %1499 = vmatprep.subr.bf16.mxu0 0
        %1500 = vmatpush1.bf16.xpose.msra.mxu0 0
        %1501 = vmatprep.subr.bf16.mxu0 0
        %1502 = vmatpush1.bf16.xpose.msra.mxu0 0
        %1503 = vmatprep.subr.bf16.mxu0 0
        %1504 = vmatpush1.bf16.xpose.msra.mxu0 0
        %1505 = vmatprep.subr.bf16.mxu0 0
        %1506 = vmatpush1.bf16.xpose.msra.mxu0 0
        %1507 = vmatprep.subr.bf16.mxu0 0
        %1508 = vmatpush1.bf16.xpose.msra.mxu0 0
        %1509 = vmatprep.subr.bf16.mxu0 0
        %1510 = vmatpush1.bf16.xpose.msra.mxu0 0
        %1511 = vmatprep.mubr.bf16.mxu0 0
        %1512 = vmatmul.mubr.bf16.gmra.mrb[0].mxu0 %v1474
        %v1513 = vpop.f32.mrb[0].mxu0
        %v1514 = vadd.f32 0.0, %v1513
        %v1515 = vpop.f32.mrb[0].mxu0
        %v1516 = vpop.f32.mrb[0].mxu0
        %v1517 = vpop.f32.mrb[0].mxu0
        %1518 = vdwg.mxu0
        %v1519 = vsel %vm486, %v1464, -inf
        %1520 = vmax.xlane.f32.xlu0 %v1519
        %v1521 = vpop.xlane.xlu0 %1520
        %v1522 = vsel %vm486, %v1514, -inf
        %1523 = vmax.xlane.f32.xlu0 %v1522
        %v1524 = vpop.xlane.xlu0 %1523
        %v1525 = vsub.f32 %v1464, %v1521
        %v1526 = vsub.f32 %v1514, %v1524
        %v1527 = vmul.f32 %v1525, 1.442695
        %v1528 = vpow.pop %v1527
        %v1529 = vmul.f32 %v1526, 1.442695
        %v1530 = vpow.pop %v1529
        %v1531 = vsel %vm486, %v1528, 0.0
        %1532 = vadd.xlane.f32.xlu0 %v1531
        %v1533 = vpop.xlane.xlu0 %1532
        %v1534 = vsel %vm486, %v1530, 0.0
        %1535 = vadd.xlane.f32.xlu0 %v1534
        %v1536 = vpop.xlane.xlu0 %1535
        %v1537 = vrcp.pop %v1533
        %v1538 = vrcp.pop %v1536
        %v1539 = vmul.f32 %v1528, %v1537
        %v1540 = vmul.f32 %v1530, %v1538
        %v1541 = vpack.c.bf16 %v1539, %v1539
        %v1542 = vpack.c.bf16 %v1540, %v1540
        %1543 = vrot.lane.b32.xlu0 %v984, 96
        %v1544 = vpop.permute.xlu0 %1543
        %v1546 = vsel %vm486, %v1541, 0
        %v1549 = vsel %vm490, %v1544, 0
        %1551 = vmatprep.subr.bf16.mxu0 0
        %1552 = vmatpush1.bf16.msra.mxu0 %v1549
        %1553 = vmatprep.subr.bf16.mxu0 0
        %1554 = vmatpush1.bf16.msra.mxu0 0
        %1555 = vmatprep.subr.bf16.mxu0 0
        %1556 = vmatpush1.bf16.msra.mxu0 0
        %1557 = vmatprep.subr.bf16.mxu0 0
        %1558 = vmatpush1.bf16.msra.mxu0 0
        %1559 = vmatprep.subr.bf16.mxu0 0
        %1560 = vmatpush1.bf16.msra.mxu0 0
        %1561 = vmatprep.subr.bf16.mxu0 0
        %1562 = vmatpush1.bf16.msra.mxu0 0
        %1563 = vmatprep.subr.bf16.mxu0 0
        %1564 = vmatpush1.bf16.msra.mxu0 0
        %1565 = vmatprep.subr.bf16.mxu0 0
        %1566 = vmatpush1.bf16.msra.mxu0 0
        %1567 = vmatprep.subr.bf16.mxu0 0
        %1568 = vmatpush1.bf16.msra.mxu0 0
        %1569 = vmatprep.subr.bf16.mxu0 0
        %1570 = vmatpush1.bf16.msra.mxu0 0
        %1571 = vmatprep.subr.bf16.mxu0 0
        %1572 = vmatpush1.bf16.msra.mxu0 0
        %1573 = vmatprep.subr.bf16.mxu0 0
        %1574 = vmatpush1.bf16.msra.mxu0 0
        %1575 = vmatprep.subr.bf16.mxu0 0
        %1576 = vmatpush1.bf16.msra.mxu0 0
        %1577 = vmatprep.subr.bf16.mxu0 0
        %1578 = vmatpush1.bf16.msra.mxu0 0
        %1579 = vmatprep.subr.bf16.mxu0 0
        %1580 = vmatpush1.bf16.msra.mxu0 0
        %1581 = vmatprep.subr.bf16.mxu0 0
        %1582 = vmatpush1.bf16.msra.mxu0 0
        %1583 = vmatprep.mubr.bf16.mxu0 0
        %1584 = vmatmul.mubr.bf16.gmra.mrb[0].mxu0 %v1546
        %v1585 = vpop.f32.mrb[0].mxu0
        %v1586 = vadd.f32 0.0, %v1585
        %v1587 = vpop.f32.mrb[0].mxu0
        %v1588 = vpop.f32.mrb[0].mxu0
        %v1589 = vpop.f32.mrb[0].mxu0
        %1590 = vdwg.mxu0
        %1591 = vrot.lane.b32.xlu0 %v985, 96
        %v1592 = vpop.permute.xlu0 %1591
        %v1594 = vsel %vm486, %v1542, 0
        %v1597 = vsel %vm490, %v1592, 0
        %1599 = vmatprep.subr.bf16.mxu0 0
        %1600 = vmatpush1.bf16.msra.mxu0 %v1597
        %1601 = vmatprep.subr.bf16.mxu0 0
        %1602 = vmatpush1.bf16.msra.mxu0 0
        %1603 = vmatprep.subr.bf16.mxu0 0
        %1604 = vmatpush1.bf16.msra.mxu0 0
        %1605 = vmatprep.subr.bf16.mxu0 0
        %1606 = vmatpush1.bf16.msra.mxu0 0
        %1607 = vmatprep.subr.bf16.mxu0 0
        %1608 = vmatpush1.bf16.msra.mxu0 0
        %1609 = vmatprep.subr.bf16.mxu0 0
        %1610 = vmatpush1.bf16.msra.mxu0 0
        %1611 = vmatprep.subr.bf16.mxu0 0
        %1612 = vmatpush1.bf16.msra.mxu0 0
        %1613 = vmatprep.subr.bf16.mxu0 0
        %1614 = vmatpush1.bf16.msra.mxu0 0
        %1615 = vmatprep.subr.bf16.mxu0 0
        %1616 = vmatpush1.bf16.msra.mxu0 0
        %1617 = vmatprep.subr.bf16.mxu0 0
        %1618 = vmatpush1.bf16.msra.mxu0 0
        %1619 = vmatprep.subr.bf16.mxu0 0
        %1620 = vmatpush1.bf16.msra.mxu0 0
        %1621 = vmatprep.subr.bf16.mxu0 0
        %1622 = vmatpush1.bf16.msra.mxu0 0
        %1623 = vmatprep.subr.bf16.mxu0 0
        %1624 = vmatpush1.bf16.msra.mxu0 0
        %1625 = vmatprep.subr.bf16.mxu0 0
        %1626 = vmatpush1.bf16.msra.mxu0 0
        %1627 = vmatprep.subr.bf16.mxu0 0
        %1628 = vmatpush1.bf16.msra.mxu0 0
        %1629 = vmatprep.subr.bf16.mxu0 0
        %1630 = vmatpush1.bf16.msra.mxu0 0
        %1631 = vmatprep.mubr.bf16.mxu0 0
        %1632 = vmatmul.mubr.bf16.gmra.mrb[0].mxu0 %v1594
        %v1633 = vpop.f32.mrb[0].mxu0
        %v1634 = vadd.f32 0.0, %v1633
        %v1635 = vpop.f32.mrb[0].mxu0
        %v1636 = vpop.f32.mrb[0].mxu0
        %v1637 = vpop.f32.mrb[0].mxu0
        %1638 = vdwg.mxu0
        %1639 = vrot.lane.b32.xlu0 %v978, 80
        %v1640 = vpop.permute.xlu0 %1639
        %1641 = vrot.lane.b32.xlu0 %v978, 16
        %v1642 = vpop.permute.xlu0 %1641
        %v1644 = vsel %vm988, %v1640, 0
        %v1647 = vsel %vm988, %v1642, 0
        %1649 = vmatprep.subr.bf16.mxu0 0
        %1650 = vmatpush1.bf16.xpose.msra.mxu0 %v1647
        %1651 = vmatprep.subr.bf16.mxu0 0
        %1652 = vmatpush1.bf16.xpose.msra.mxu0 0
        %1653 = vmatprep.subr.bf16.mxu0 0
        %1654 = vmatpush1.bf16.xpose.msra.mxu0 0
        %1655 = vmatprep.subr.bf16.mxu0 0
        %1656 = vmatpush1.bf16.xpose.msra.mxu0 0
        %1657 = vmatprep.subr.bf16.mxu0 0
        %1658 = vmatpush1.bf16.xpose.msra.mxu0 0
        %1659 = vmatprep.subr.bf16.mxu0 0
        %1660 = vmatpush1.bf16.xpose.msra.mxu0 0
        %1661 = vmatprep.subr.bf16.mxu0 0
        %1662 = vmatpush1.bf16.xpose.msra.mxu0 0
        %1663 = vmatprep.subr.bf16.mxu0 0
        %1664 = vmatpush1.bf16.xpose.msra.mxu0 0
        %1665 = vmatprep.subr.bf16.mxu0 0
        %1666 = vmatpush1.bf16.xpose.msra.mxu0 0
        %1667 = vmatprep.subr.bf16.mxu0 0
        %1668 = vmatpush1.bf16.xpose.msra.mxu0 0
        %1669 = vmatprep.subr.bf16.mxu0 0
        %1670 = vmatpush1.bf16.xpose.msra.mxu0 0
        %1671 = vmatprep.subr.bf16.mxu0 0
        %1672 = vmatpush1.bf16.xpose.msra.mxu0 0
        %1673 = vmatprep.subr.bf16.mxu0 0
        %1674 = vmatpush1.bf16.xpose.msra.mxu0 0
        %1675 = vmatprep.subr.bf16.mxu0 0
        %1676 = vmatpush1.bf16.xpose.msra.mxu0 0
        %1677 = vmatprep.subr.bf16.mxu0 0
        %1678 = vmatpush1.bf16.xpose.msra.mxu0 0
        %1679 = vmatprep.subr.bf16.mxu0 0
        %1680 = vmatpush1.bf16.xpose.msra.mxu0 0
        %1681 = vmatprep.mubr.bf16.mxu0 0
        %1682 = vmatmul.mubr.bf16.gmra.mrb[0].mxu0 %v1644
        %v1683 = vpop.f32.mrb[0].mxu0
        %v1684 = vadd.f32 0.0, %v1683
        %v1685 = vpop.f32.mrb[0].mxu0
        %v1686 = vpop.f32.mrb[0].mxu0
        %v1687 = vpop.f32.mrb[0].mxu0
        %1688 = vdwg.mxu0
        %1689 = vrot.lane.b32.xlu0 %v979, 80
        %v1690 = vpop.permute.xlu0 %1689
        %1691 = vrot.lane.b32.xlu0 %v979, 16
        %v1692 = vpop.permute.xlu0 %1691
        %v1694 = vsel %vm988, %v1690, 0
        %v1697 = vsel %vm988, %v1692, 0
        %1699 = vmatprep.subr.bf16.mxu0 0
        %1700 = vmatpush1.bf16.xpose.msra.mxu0 %v1697
        %1701 = vmatprep.subr.bf16.mxu0 0
        %1702 = vmatpush1.bf16.xpose.msra.mxu0 0
        %1703 = vmatprep.subr.bf16.mxu0 0
        %1704 = vmatpush1.bf16.xpose.msra.mxu0 0
        %1705 = vmatprep.subr.bf16.mxu0 0
        %1706 = vmatpush1.bf16.xpose.msra.mxu0 0
        %1707 = vmatprep.subr.bf16.mxu0 0
        %1708 = vmatpush1.bf16.xpose.msra.mxu0 0
        %1709 = vmatprep.subr.bf16.mxu0 0
        %1710 = vmatpush1.bf16.xpose.msra.mxu0 0
        %1711 = vmatprep.subr.bf16.mxu0 0
        %1712 = vmatpush1.bf16.xpose.msra.mxu0 0
        %1713 = vmatprep.subr.bf16.mxu0 0
        %1714 = vmatpush1.bf16.xpose.msra.mxu0 0
        %1715 = vmatprep.subr.bf16.mxu0 0
        %1716 = vmatpush1.bf16.xpose.msra.mxu0 0
        %1717 = vmatprep.subr.bf16.mxu0 0
        %1718 = vmatpush1.bf16.xpose.msra.mxu0 0
        %1719 = vmatprep.subr.bf16.mxu0 0
        %1720 = vmatpush1.bf16.xpose.msra.mxu0 0
        %1721 = vmatprep.subr.bf16.mxu0 0
        %1722 = vmatpush1.bf16.xpose.msra.mxu0 0
        %1723 = vmatprep.subr.bf16.mxu0 0
        %1724 = vmatpush1.bf16.xpose.msra.mxu0 0
        %1725 = vmatprep.subr.bf16.mxu0 0
        %1726 = vmatpush1.bf16.xpose.msra.mxu0 0
        %1727 = vmatprep.subr.bf16.mxu0 0
        %1728 = vmatpush1.bf16.xpose.msra.mxu0 0
        %1729 = vmatprep.subr.bf16.mxu0 0
        %1730 = vmatpush1.bf16.xpose.msra.mxu0 0
        %1731 = vmatprep.mubr.bf16.mxu0 0
        %1732 = vmatmul.mubr.bf16.gmra.mrb[0].mxu0 %v1694
        %v1733 = vpop.f32.mrb[0].mxu0
        %v1734 = vadd.f32 0.0, %v1733
        %v1735 = vpop.f32.mrb[0].mxu0
        %v1736 = vpop.f32.mrb[0].mxu0
        %v1737 = vpop.f32.mrb[0].mxu0
        %1738 = vdwg.mxu0
        %v1739 = vsel %vm486, %v1684, -inf
        %1740 = vmax.xlane.f32.xlu0 %v1739
        %v1741 = vpop.xlane.xlu0 %1740
        %v1742 = vsel %vm486, %v1734, -inf
        %1743 = vmax.xlane.f32.xlu0 %v1742
        %v1744 = vpop.xlane.xlu0 %1743
        %v1745 = vsub.f32 %v1684, %v1741
        %v1746 = vsub.f32 %v1734, %v1744
        %v1747 = vmul.f32 %v1745, 1.442695
        %v1748 = vpow.pop %v1747
        %v1749 = vmul.f32 %v1746, 1.442695
        %v1750 = vpow.pop %v1749
        %v1751 = vsel %vm486, %v1748, 0.0
        %1752 = vadd.xlane.f32.xlu0 %v1751
        %v1753 = vpop.xlane.xlu0 %1752
        %v1754 = vsel %vm486, %v1750, 0.0
        %1755 = vadd.xlane.f32.xlu0 %v1754
        %v1756 = vpop.xlane.xlu0 %1755
        %v1757 = vrcp.pop %v1753
        %v1758 = vrcp.pop %v1756
        %v1759 = vmul.f32 %v1748, %v1757
        %v1760 = vmul.f32 %v1750, %v1758
        %v1761 = vpack.c.bf16 %v1759, %v1759
        %v1762 = vpack.c.bf16 %v1760, %v1760
        %1763 = vrot.lane.b32.xlu0 %v984, 80
        %v1764 = vpop.permute.xlu0 %1763
        %v1766 = vsel %vm486, %v1761, 0
        %v1769 = vsel %vm490, %v1764, 0
        %1771 = vmatprep.subr.bf16.mxu0 0
        %1772 = vmatpush1.bf16.msra.mxu0 %v1769
        %1773 = vmatprep.subr.bf16.mxu0 0
        %1774 = vmatpush1.bf16.msra.mxu0 0
        %1775 = vmatprep.subr.bf16.mxu0 0
        %1776 = vmatpush1.bf16.msra.mxu0 0
        %1777 = vmatprep.subr.bf16.mxu0 0
        %1778 = vmatpush1.bf16.msra.mxu0 0
        %1779 = vmatprep.subr.bf16.mxu0 0
        %1780 = vmatpush1.bf16.msra.mxu0 0
        %1781 = vmatprep.subr.bf16.mxu0 0
        %1782 = vmatpush1.bf16.msra.mxu0 0
        %1783 = vmatprep.subr.bf16.mxu0 0
        %1784 = vmatpush1.bf16.msra.mxu0 0
        %1785 = vmatprep.subr.bf16.mxu0 0
        %1786 = vmatpush1.bf16.msra.mxu0 0
        %1787 = vmatprep.subr.bf16.mxu0 0
        %1788 = vmatpush1.bf16.msra.mxu0 0
        %1789 = vmatprep.subr.bf16.mxu0 0
        %1790 = vmatpush1.bf16.msra.mxu0 0
        %1791 = vmatprep.subr.bf16.mxu0 0
        %1792 = vmatpush1.bf16.msra.mxu0 0
        %1793 = vmatprep.subr.bf16.mxu0 0
        %1794 = vmatpush1.bf16.msra.mxu0 0
        %1795 = vmatprep.subr.bf16.mxu0 0
        %1796 = vmatpush1.bf16.msra.mxu0 0
        %1797 = vmatprep.subr.bf16.mxu0 0
        %1798 = vmatpush1.bf16.msra.mxu0 0
        %1799 = vmatprep.subr.bf16.mxu0 0
        %1800 = vmatpush1.bf16.msra.mxu0 0
        %1801 = vmatprep.subr.bf16.mxu0 0
        %1802 = vmatpush1.bf16.msra.mxu0 0
        %1803 = vmatprep.mubr.bf16.mxu0 0
        %1804 = vmatmul.mubr.bf16.gmra.mrb[0].mxu0 %v1766
        %v1805 = vpop.f32.mrb[0].mxu0
        %v1806 = vadd.f32 0.0, %v1805
        %v1807 = vpop.f32.mrb[0].mxu0
        %v1808 = vpop.f32.mrb[0].mxu0
        %v1809 = vpop.f32.mrb[0].mxu0
        %1810 = vdwg.mxu0
        %1811 = vrot.lane.b32.xlu0 %v985, 80
        %v1812 = vpop.permute.xlu0 %1811
        %v1814 = vsel %vm486, %v1762, 0
        %v1817 = vsel %vm490, %v1812, 0
        %1819 = vmatprep.subr.bf16.mxu0 0
        %1820 = vmatpush1.bf16.msra.mxu0 %v1817
        %1821 = vmatprep.subr.bf16.mxu0 0
        %1822 = vmatpush1.bf16.msra.mxu0 0
        %1823 = vmatprep.subr.bf16.mxu0 0
        %1824 = vmatpush1.bf16.msra.mxu0 0
        %1825 = vmatprep.subr.bf16.mxu0 0
        %1826 = vmatpush1.bf16.msra.mxu0 0
        %1827 = vmatprep.subr.bf16.mxu0 0
        %1828 = vmatpush1.bf16.msra.mxu0 0
        %1829 = vmatprep.subr.bf16.mxu0 0
        %1830 = vmatpush1.bf16.msra.mxu0 0
        %1831 = vmatprep.subr.bf16.mxu0 0
        %1832 = vmatpush1.bf16.msra.mxu0 0
        %1833 = vmatprep.subr.bf16.mxu0 0
        %1834 = vmatpush1.bf16.msra.mxu0 0
        %1835 = vmatprep.subr.bf16.mxu0 0
        %1836 = vmatpush1.bf16.msra.mxu0 0
        %1837 = vmatprep.subr.bf16.mxu0 0
        %1838 = vmatpush1.bf16.msra.mxu0 0
        %1839 = vmatprep.subr.bf16.mxu0 0
        %1840 = vmatpush1.bf16.msra.mxu0 0
        %1841 = vmatprep.subr.bf16.mxu0 0
        %1842 = vmatpush1.bf16.msra.mxu0 0
        %1843 = vmatprep.subr.bf16.mxu0 0
        %1844 = vmatpush1.bf16.msra.mxu0 0
        %1845 = vmatprep.subr.bf16.mxu0 0
        %1846 = vmatpush1.bf16.msra.mxu0 0
        %1847 = vmatprep.subr.bf16.mxu0 0
        %1848 = vmatpush1.bf16.msra.mxu0 0
        %1849 = vmatprep.subr.bf16.mxu0 0
        %1850 = vmatpush1.bf16.msra.mxu0 0
        %1851 = vmatprep.mubr.bf16.mxu0 0
        %1852 = vmatmul.mubr.bf16.gmra.mrb[0].mxu0 %v1814
        %v1853 = vpop.f32.mrb[0].mxu0
        %v1854 = vadd.f32 0.0, %v1853
        %v1855 = vpop.f32.mrb[0].mxu0
        %v1856 = vpop.f32.mrb[0].mxu0
        %v1857 = vpop.f32.mrb[0].mxu0
        %1858 = vdwg.mxu0
        %1861 = vrot.lane.b32.xlu0 %v1366, 16
        %v1862 = vpop.permute.xlu0 %1861
        %1863 = vrot.lane.b32.xlu0 %v1414, 16
        %v1864 = vpop.permute.xlu0 %1863
        %1869 = vrot.lane.b32.xlu0 %v1586, 32
        %v1870 = vpop.permute.xlu0 %1869
        %1871 = vrot.lane.b32.xlu0 %v1634, 32
        %v1872 = vpop.permute.xlu0 %1871
        %1877 = vrot.lane.b32.xlu0 %v1806, 48
        %v1878 = vpop.permute.xlu0 %1877
        %1879 = vrot.lane.b32.xlu0 %v1854, 48
        %v1880 = vpop.permute.xlu0 %1879
        %v1883 = vsel %vm988, %v1148, %v1862
        %v1884 = vsel %vm988, %v1194, %v1864
        %vm1885 = vcmask 261120
        %v1886 = vsel %vm1885, %v1883, %v1870
        %v1887 = vsel %vm1885, %v1884, %v1872
        %vm1888 = vcmask 392192
        %v1889 = vsel %vm1888, %v1886, %v1878
        %v1890 = vsel %vm1888, %v1887, %v1880
        %v1891 = vpack.c.bf16 %v1890, %v1889
        %v1892 = vlaneseq
        %v1893 = vshrl.u32 %v1892, 7
        %v1894 = vsub.s32 0, %v1893
        %v1895 = vrot.slane %v874, %v1894
        %v1904 = vunpack.c.l.b16 %v544
        %v1905 = vunpack.c.l.b16 %v545
        %v1906 = vunpack.c.l.b16 %v546
        %v1907 = vunpack.c.l.b16 %v547
        %v1908 = vunpack.c.l.b16 %v548
        %v1909 = vunpack.c.l.b16 %v549
        %v1910 = vunpack.c.l.b16 %v550
        %v1911 = vunpack.c.l.b16 %v551
        %v1912 = vpack.c.b16 %v1905, %v1904
        %v1913 = vpack.c.b16 %v1907, %v1906
        %v1914 = vpack.c.b16 %v1909, %v1908
        %v1915 = vpack.c.b16 %v1911, %v1910
        %v1921 = vsel %vm927, %v1891, 0
        %1923 = vmatprep.subr.bf16.mxu0 0
        %1924 = vmatpush1.bf16.msra.mxu0 %v1912
        %1925 = vmatprep.subr.bf16.mxu0 0
        %1926 = vmatpush1.bf16.msra.mxu0 %v1913
        %1927 = vmatprep.subr.bf16.mxu0 0
        %1928 = vmatpush1.bf16.msra.mxu0 %v1914
        %1929 = vmatprep.subr.bf16.mxu0 0
        %1930 = vmatpush1.bf16.msra.mxu0 %v1915
        %1931 = vmatprep.subr.bf16.mxu0 0
        %1932 = vmatpush1.bf16.msra.mxu0 0
        %1933 = vmatprep.subr.bf16.mxu0 0
        %1934 = vmatpush1.bf16.msra.mxu0 0
        %1935 = vmatprep.subr.bf16.mxu0 0
        %1936 = vmatpush1.bf16.msra.mxu0 0
        %1937 = vmatprep.subr.bf16.mxu0 0
        %1938 = vmatpush1.bf16.msra.mxu0 0
        %1939 = vmatprep.subr.bf16.mxu0 0
        %1940 = vmatpush1.bf16.msra.mxu0 0
        %1941 = vmatprep.subr.bf16.mxu0 0
        %1942 = vmatpush1.bf16.msra.mxu0 0
        %1943 = vmatprep.subr.bf16.mxu0 0
        %1944 = vmatpush1.bf16.msra.mxu0 0
        %1945 = vmatprep.subr.bf16.mxu0 0
        %1946 = vmatpush1.bf16.msra.mxu0 0
        %1947 = vmatprep.subr.bf16.mxu0 0
        %1948 = vmatpush1.bf16.msra.mxu0 0
        %1949 = vmatprep.subr.bf16.mxu0 0
        %1950 = vmatpush1.bf16.msra.mxu0 0
        %1951 = vmatprep.subr.bf16.mxu0 0
        %1952 = vmatpush1.bf16.msra.mxu0 0
        %1953 = vmatprep.subr.bf16.mxu0 0
        %1954 = vmatpush1.bf16.msra.mxu0 0
        %1955 = vmatprep.mubr.bf16.mxu0 0
        %1956 = vmatmul.mubr.bf16.gmra.mrb[0].mxu0 %v1921
        %v1957 = vpop.f32.mrb[0].mxu0
        %v1958 = vadd.f32 %v1895, %v1957
        %v1959 = vpop.f32.mrb[0].mxu0
        %v1960 = vpop.f32.mrb[0].mxu0
        %v1961 = vadd.f32 %v1895, %v1960
        %v1962 = vpop.f32.mrb[0].mxu0
        %1963 = vdwg.mxu0
        %v1964 = vadd.f32 %v529, %v1958
        %v1965 = vadd.f32 %v532, %v1961
        %v1966 = vsel %vm927, %v1964, 0.0
        %1967 = vadd.xlane.f32.xlu0 %v1966
        %v1968 = vpop.xlane.xlu0 %1967
        %v1969 = vsel %vm927, %v1965, 0.0
        %1970 = vadd.xlane.f32.xlu0 %v1969
        %v1971 = vpop.xlane.xlu0 %1970
        %v1972 = vrcp.pop 64.0
        %v1973 = vmul.f32 %v1968, %v1972
        %v1974 = vmul.f32 %v1971, %v1972
        %v1975 = vsub.f32 %v1964, %v1973
        %v1976 = vsub.f32 %v1965, %v1974
        %v1977 = vmul.f32 %v1975, %v1975
        %v1978 = vmul.f32 %v1976, %v1976
        %v1979 = vsel %vm927, %v1977, 0.0
        %1980 = vadd.xlane.f32.xlu0 %v1979
        %v1981 = vpop.xlane.xlu0 %1980
        %v1982 = vsel %vm927, %v1978, 0.0
        %1983 = vadd.xlane.f32.xlu0 %v1982
        %v1984 = vpop.xlane.xlu0 %1983
        %v1985 = vmul.f32 %v1981, %v1972
        %v1986 = vmul.f32 %v1984, %v1972
        %v1987 = vadd.f32 %v1985, 1e-05
        %v1988 = vadd.f32 %v1986, 1e-05
        %v1989 = vrsqrt.pop %v1987
        %v1990 = vrsqrt.pop %v1988
        %v1991 = vmul.f32 %v1975, %v1989
        %v1992 = vmul.f32 %v1976, %v1990
        %v1993 = vlaneseq
        %v1994 = vshrl.u32 %v1993, 7
        %v1995 = vsub.s32 1, %v1994
        %v1996 = vrot.slane %v874, %v1995
        %v1997 = vmul.f32 %v1991, %v1996
        %v1998 = vmul.f32 %v1992, %v1996
        %v1999 = vlaneseq
        %v2000 = vshrl.u32 %v1999, 7
        %v2001 = vsub.s32 2, %v2000
        %v2002 = vrot.slane %v874, %v2001
        %v2003 = vadd.f32 %v1997, %v2002
        %v2004 = vadd.f32 %v1998, %v2002
        %v2005 = vpack.c.bf16 %v2004, %v2003
        %v2008 = vlaneseq
        %v2009 = vshrl.u32 %v2008, 7
        %v2010 = vsub.s32 0, %v2009
        %v2011 = vrot.slane %v616, %v2010
        %v2012 = vlaneseq
        %v2013 = vshrl.u32 %v2012, 7
        %v2014 = vsub.s32 1, %v2013
        %v2015 = vrot.slane %v616, %v2014
        %v2016 = vlaneseq
        %v2017 = vshrl.u32 %v2016, 7
        %v2018 = vsub.s32 2, %v2017
        %v2019 = vrot.slane %v616, %v2018
        %v2020 = vlaneseq
        %v2021 = vshrl.u32 %v2020, 7
        %v2022 = vsub.s32 3, %v2021
        %v2023 = vrot.slane %v616, %v2022
        %v2024 = vlaneseq
        %v2025 = vshrl.u32 %v2024, 7
        %v2026 = vsub.s32 4, %v2025
        %v2027 = vrot.slane %v616, %v2026
        %v2028 = vlaneseq
        %v2029 = vshrl.u32 %v2028, 7
        %v2030 = vsub.s32 5, %v2029
        %v2031 = vrot.slane %v616, %v2030
        %v2032 = vlaneseq
        %v2033 = vshrl.u32 %v2032, 7
        %v2034 = vsub.s32 6, %v2033
        %v2035 = vrot.slane %v616, %v2034
        %v2036 = vlaneseq
        %v2037 = vshrl.u32 %v2036, 7
        %v2038 = vsub.s32 7, %v2037
        %v2039 = vrot.slane %v616, %v2038
        %v2040 = vlaneseq
        %v2041 = vshrl.u32 %v2040, 7
        %v2042 = vsub.s32 0, %v2041
        %v2043 = vrot.slane %v617, %v2042
        %v2044 = vlaneseq
        %v2045 = vshrl.u32 %v2044, 7
        %v2046 = vsub.s32 1, %v2045
        %v2047 = vrot.slane %v617, %v2046
        %v2048 = vlaneseq
        %v2049 = vshrl.u32 %v2048, 7
        %v2050 = vsub.s32 2, %v2049
        %v2051 = vrot.slane %v617, %v2050
        %v2052 = vlaneseq
        %v2053 = vshrl.u32 %v2052, 7
        %v2054 = vsub.s32 3, %v2053
        %v2055 = vrot.slane %v617, %v2054
        %v2056 = vlaneseq
        %v2057 = vshrl.u32 %v2056, 7
        %v2058 = vsub.s32 4, %v2057
        %v2059 = vrot.slane %v617, %v2058
        %v2060 = vlaneseq
        %v2061 = vshrl.u32 %v2060, 7
        %v2062 = vsub.s32 5, %v2061
        %v2063 = vrot.slane %v617, %v2062
        %v2064 = vlaneseq
        %v2065 = vshrl.u32 %v2064, 7
        %v2066 = vsub.s32 6, %v2065
        %v2067 = vrot.slane %v617, %v2066
        %v2068 = vlaneseq
        %v2069 = vshrl.u32 %v2068, 7
        %v2070 = vsub.s32 7, %v2069
        %v2071 = vrot.slane %v617, %v2070
        %v2152 = vunpack.c.l.b16 %v552
        %v2153 = vunpack.c.h.b16 %v552
        %v2154 = vunpack.c.l.b16 %v553
        %v2155 = vunpack.c.h.b16 %v553
        %v2156 = vunpack.c.l.b16 %v554
        %v2157 = vunpack.c.h.b16 %v554
        %v2158 = vunpack.c.l.b16 %v555
        %v2159 = vunpack.c.h.b16 %v555
        %v2160 = vunpack.c.l.b16 %v556
        %v2161 = vunpack.c.h.b16 %v556
        %v2162 = vunpack.c.l.b16 %v557
        %v2163 = vunpack.c.h.b16 %v557
        %v2164 = vunpack.c.l.b16 %v558
        %v2165 = vunpack.c.h.b16 %v558
        %v2166 = vunpack.c.l.b16 %v559
        %v2167 = vunpack.c.h.b16 %v559
        %v2168 = vunpack.c.l.b16 %v560
        %v2169 = vunpack.c.h.b16 %v560
        %v2170 = vunpack.c.l.b16 %v561
        %v2171 = vunpack.c.h.b16 %v561
        %v2172 = vunpack.c.l.b16 %v562
        %v2173 = vunpack.c.h.b16 %v562
        %v2174 = vunpack.c.l.b16 %v563
        %v2175 = vunpack.c.h.b16 %v563
        %v2176 = vunpack.c.l.b16 %v564
        %v2177 = vunpack.c.h.b16 %v564
        %v2178 = vunpack.c.l.b16 %v565
        %v2179 = vunpack.c.h.b16 %v565
        %v2180 = vunpack.c.l.b16 %v566
        %v2181 = vunpack.c.h.b16 %v566
        %v2182 = vunpack.c.l.b16 %v567
        %v2183 = vunpack.c.h.b16 %v567
        %v2184 = vunpack.c.l.b16 %v568
        %v2185 = vunpack.c.h.b16 %v568
        %v2186 = vunpack.c.l.b16 %v569
        %v2187 = vunpack.c.h.b16 %v569
        %v2188 = vunpack.c.l.b16 %v570
        %v2189 = vunpack.c.h.b16 %v570
        %v2190 = vunpack.c.l.b16 %v571
        %v2191 = vunpack.c.h.b16 %v571
        %v2192 = vunpack.c.l.b16 %v572
        %v2193 = vunpack.c.h.b16 %v572
        %v2194 = vunpack.c.l.b16 %v573
        %v2195 = vunpack.c.h.b16 %v573
        %v2196 = vunpack.c.l.b16 %v574
        %v2197 = vunpack.c.h.b16 %v574
        %v2198 = vunpack.c.l.b16 %v575
        %v2199 = vunpack.c.h.b16 %v575
        %v2200 = vunpack.c.l.b16 %v576
        %v2201 = vunpack.c.h.b16 %v576
        %v2202 = vunpack.c.l.b16 %v577
        %v2203 = vunpack.c.h.b16 %v577
        %v2204 = vunpack.c.l.b16 %v578
        %v2205 = vunpack.c.h.b16 %v578
        %v2206 = vunpack.c.l.b16 %v579
        %v2207 = vunpack.c.h.b16 %v579
        %v2208 = vunpack.c.l.b16 %v580
        %v2209 = vunpack.c.h.b16 %v580
        %v2210 = vunpack.c.l.b16 %v581
        %v2211 = vunpack.c.h.b16 %v581
        %v2212 = vunpack.c.l.b16 %v582
        %v2213 = vunpack.c.h.b16 %v582
        %v2214 = vunpack.c.l.b16 %v583
        %v2215 = vunpack.c.h.b16 %v583
        %v2216 = vunpack.c.l.b16 %v584
        %v2217 = vunpack.c.h.b16 %v584
        %v2218 = vunpack.c.l.b16 %v585
        %v2219 = vunpack.c.h.b16 %v585
        %v2220 = vunpack.c.l.b16 %v586
        %v2221 = vunpack.c.h.b16 %v586
        %v2222 = vunpack.c.l.b16 %v587
        %v2223 = vunpack.c.h.b16 %v587
        %v2224 = vunpack.c.l.b16 %v588
        %v2225 = vunpack.c.h.b16 %v588
        %v2226 = vunpack.c.l.b16 %v589
        %v2227 = vunpack.c.h.b16 %v589
        %v2228 = vunpack.c.l.b16 %v590
        %v2229 = vunpack.c.h.b16 %v590
        %v2230 = vunpack.c.l.b16 %v591
        %v2231 = vunpack.c.h.b16 %v591
        %v2232 = vunpack.c.l.b16 %v592
        %v2233 = vunpack.c.h.b16 %v592
        %v2234 = vunpack.c.l.b16 %v593
        %v2235 = vunpack.c.h.b16 %v593
        %v2236 = vunpack.c.l.b16 %v594
        %v2237 = vunpack.c.h.b16 %v594
        %v2238 = vunpack.c.l.b16 %v595
        %v2239 = vunpack.c.h.b16 %v595
        %v2240 = vunpack.c.l.b16 %v596
        %v2241 = vunpack.c.h.b16 %v596
        %v2242 = vunpack.c.l.b16 %v597
        %v2243 = vunpack.c.h.b16 %v597
        %v2244 = vunpack.c.l.b16 %v598
        %v2245 = vunpack.c.h.b16 %v598
        %v2246 = vunpack.c.l.b16 %v599
        %v2247 = vunpack.c.h.b16 %v599
        %v2248 = vunpack.c.l.b16 %v600
        %v2249 = vunpack.c.h.b16 %v600
        %v2250 = vunpack.c.l.b16 %v601
        %v2251 = vunpack.c.h.b16 %v601
        %v2252 = vunpack.c.l.b16 %v602
        %v2253 = vunpack.c.h.b16 %v602
        %v2254 = vunpack.c.l.b16 %v603
        %v2255 = vunpack.c.h.b16 %v603
        %v2256 = vunpack.c.l.b16 %v604
        %v2257 = vunpack.c.h.b16 %v604
        %v2258 = vunpack.c.l.b16 %v605
        %v2259 = vunpack.c.h.b16 %v605
        %v2260 = vunpack.c.l.b16 %v606
        %v2261 = vunpack.c.h.b16 %v606
        %v2262 = vunpack.c.l.b16 %v607
        %v2263 = vunpack.c.h.b16 %v607
        %v2264 = vunpack.c.l.b16 %v608
        %v2265 = vunpack.c.h.b16 %v608
        %v2266 = vunpack.c.l.b16 %v609
        %v2267 = vunpack.c.h.b16 %v609
        %v2268 = vunpack.c.l.b16 %v610
        %v2269 = vunpack.c.h.b16 %v610
        %v2270 = vunpack.c.l.b16 %v611
        %v2271 = vunpack.c.h.b16 %v611
        %v2272 = vunpack.c.l.b16 %v612
        %v2273 = vunpack.c.h.b16 %v612
        %v2274 = vunpack.c.l.b16 %v613
        %v2275 = vunpack.c.h.b16 %v613
        %v2276 = vunpack.c.l.b16 %v614
        %v2277 = vunpack.c.h.b16 %v614
        %v2278 = vunpack.c.l.b16 %v615
        %v2279 = vunpack.c.h.b16 %v615
        %v2280 = vpack.c.b16 %v2168, %v2152
        %v2281 = vpack.c.b16 %v2169, %v2153
        %v2282 = vpack.c.b16 %v2170, %v2154
        %v2283 = vpack.c.b16 %v2171, %v2155
        %v2284 = vpack.c.b16 %v2172, %v2156
        %v2285 = vpack.c.b16 %v2173, %v2157
        %v2286 = vpack.c.b16 %v2174, %v2158
        %v2287 = vpack.c.b16 %v2175, %v2159
        %v2288 = vpack.c.b16 %v2176, %v2160
        %v2289 = vpack.c.b16 %v2177, %v2161
        %v2290 = vpack.c.b16 %v2178, %v2162
        %v2291 = vpack.c.b16 %v2179, %v2163
        %v2292 = vpack.c.b16 %v2180, %v2164
        %v2293 = vpack.c.b16 %v2181, %v2165
        %v2294 = vpack.c.b16 %v2182, %v2166
        %v2295 = vpack.c.b16 %v2183, %v2167
        %v2296 = vpack.c.b16 %v2200, %v2184
        %v2297 = vpack.c.b16 %v2201, %v2185
        %v2298 = vpack.c.b16 %v2202, %v2186
        %v2299 = vpack.c.b16 %v2203, %v2187
        %v2300 = vpack.c.b16 %v2204, %v2188
        %v2301 = vpack.c.b16 %v2205, %v2189
        %v2302 = vpack.c.b16 %v2206, %v2190
        %v2303 = vpack.c.b16 %v2207, %v2191
        %v2304 = vpack.c.b16 %v2208, %v2192
        %v2305 = vpack.c.b16 %v2209, %v2193
        %v2306 = vpack.c.b16 %v2210, %v2194
        %v2307 = vpack.c.b16 %v2211, %v2195
        %v2308 = vpack.c.b16 %v2212, %v2196
        %v2309 = vpack.c.b16 %v2213, %v2197
        %v2310 = vpack.c.b16 %v2214, %v2198
        %v2311 = vpack.c.b16 %v2215, %v2199
        %v2312 = vpack.c.b16 %v2232, %v2216
        %v2313 = vpack.c.b16 %v2233, %v2217
        %v2314 = vpack.c.b16 %v2234, %v2218
        %v2315 = vpack.c.b16 %v2235, %v2219
        %v2316 = vpack.c.b16 %v2236, %v2220
        %v2317 = vpack.c.b16 %v2237, %v2221
        %v2318 = vpack.c.b16 %v2238, %v2222
        %v2319 = vpack.c.b16 %v2239, %v2223
        %v2320 = vpack.c.b16 %v2240, %v2224
        %v2321 = vpack.c.b16 %v2241, %v2225
        %v2322 = vpack.c.b16 %v2242, %v2226
        %v2323 = vpack.c.b16 %v2243, %v2227
        %v2324 = vpack.c.b16 %v2244, %v2228
        %v2325 = vpack.c.b16 %v2245, %v2229
        %v2326 = vpack.c.b16 %v2246, %v2230
        %v2327 = vpack.c.b16 %v2247, %v2231
        %v2328 = vpack.c.b16 %v2264, %v2248
        %v2329 = vpack.c.b16 %v2265, %v2249
        %v2330 = vpack.c.b16 %v2266, %v2250
        %v2331 = vpack.c.b16 %v2267, %v2251
        %v2332 = vpack.c.b16 %v2268, %v2252
        %v2333 = vpack.c.b16 %v2269, %v2253
        %v2334 = vpack.c.b16 %v2270, %v2254
        %v2335 = vpack.c.b16 %v2271, %v2255
        %v2336 = vpack.c.b16 %v2272, %v2256
        %v2337 = vpack.c.b16 %v2273, %v2257
        %v2338 = vpack.c.b16 %v2274, %v2258
        %v2339 = vpack.c.b16 %v2275, %v2259
        %v2340 = vpack.c.b16 %v2276, %v2260
        %v2341 = vpack.c.b16 %v2277, %v2261
        %v2342 = vpack.c.b16 %v2278, %v2262
        %v2343 = vpack.c.b16 %v2279, %v2263
        %v2409 = vsel %vm927, %v2005, 0
        %2411 = vmatprep.subr.bf16.mxu0 %v2281
        %2412 = vmatpush1.bf16.msra.mxu0 %v2280
        %2413 = vmatprep.subr.bf16.mxu0 %v2297
        %2414 = vmatpush1.bf16.msra.mxu0 %v2296
        %2415 = vmatprep.subr.bf16.mxu0 %v2313
        %2416 = vmatpush1.bf16.msra.mxu0 %v2312
        %2417 = vmatprep.subr.bf16.mxu0 %v2329
        %2418 = vmatpush1.bf16.msra.mxu0 %v2328
        %2419 = vmatprep.subr.bf16.mxu0 0
        %2420 = vmatpush1.bf16.msra.mxu0 0
        %2421 = vmatprep.subr.bf16.mxu0 0
        %2422 = vmatpush1.bf16.msra.mxu0 0
        %2423 = vmatprep.subr.bf16.mxu0 0
        %2424 = vmatpush1.bf16.msra.mxu0 0
        %2425 = vmatprep.subr.bf16.mxu0 0
        %2426 = vmatpush1.bf16.msra.mxu0 0
        %2427 = vmatprep.subr.bf16.mxu0 0
        %2428 = vmatpush1.bf16.msra.mxu0 0
        %2429 = vmatprep.subr.bf16.mxu0 0
        %2430 = vmatpush1.bf16.msra.mxu0 0
        %2431 = vmatprep.subr.bf16.mxu0 0
        %2432 = vmatpush1.bf16.msra.mxu0 0
        %2433 = vmatprep.subr.bf16.mxu0 0
        %2434 = vmatpush1.bf16.msra.mxu0 0
        %2435 = vmatprep.subr.bf16.mxu0 0
        %2436 = vmatpush1.bf16.msra.mxu0 0
        %2437 = vmatprep.subr.bf16.mxu0 0
        %2438 = vmatpush1.bf16.msra.mxu0 0
        %2439 = vmatprep.subr.bf16.mxu0 0
        %2440 = vmatpush1.bf16.msra.mxu0 0
        %2441 = vmatprep.subr.bf16.mxu0 0
        %2442 = vmatpush1.bf16.msra.mxu0 0
        %2443 = vmatprep.mubr.bf16.mxu0 0
        %2444 = vmatmul.mubr.bf16.gmra.mrb[0].mxu0 %v2409
        %v2445 = vpop.f32.mrb[0].mxu0
        %v2446 = vadd.f32 %v2011, %v2445
        %v2447 = vpop.f32.mrb[0].mxu0
        %v2448 = vadd.f32 %v2015, %v2447
        %v2449 = vpop.f32.mrb[0].mxu0
        %v2450 = vadd.f32 %v2011, %v2449
        %v2451 = vpop.f32.mrb[0].mxu0
        %v2452 = vadd.f32 %v2015, %v2451
        %2453 = vdwg.mxu0
        %2454 = vmatprep.subr.bf16.mxu0 %v2283
        %2455 = vmatpush1.bf16.msra.mxu0 %v2282
        %2456 = vmatprep.subr.bf16.mxu0 %v2299
        %2457 = vmatpush1.bf16.msra.mxu0 %v2298
        %2458 = vmatprep.subr.bf16.mxu0 %v2315
        %2459 = vmatpush1.bf16.msra.mxu0 %v2314
        %2460 = vmatprep.subr.bf16.mxu0 %v2331
        %2461 = vmatpush1.bf16.msra.mxu0 %v2330
        %2462 = vmatprep.subr.bf16.mxu0 0
        %2463 = vmatpush1.bf16.msra.mxu0 0
        %2464 = vmatprep.subr.bf16.mxu0 0
        %2465 = vmatpush1.bf16.msra.mxu0 0
        %2466 = vmatprep.subr.bf16.mxu0 0
        %2467 = vmatpush1.bf16.msra.mxu0 0
        %2468 = vmatprep.subr.bf16.mxu0 0
        %2469 = vmatpush1.bf16.msra.mxu0 0
        %2470 = vmatprep.subr.bf16.mxu0 0
        %2471 = vmatpush1.bf16.msra.mxu0 0
        %2472 = vmatprep.subr.bf16.mxu0 0
        %2473 = vmatpush1.bf16.msra.mxu0 0
        %2474 = vmatprep.subr.bf16.mxu0 0
        %2475 = vmatpush1.bf16.msra.mxu0 0
        %2476 = vmatprep.subr.bf16.mxu0 0
        %2477 = vmatpush1.bf16.msra.mxu0 0
        %2478 = vmatprep.subr.bf16.mxu0 0
        %2479 = vmatpush1.bf16.msra.mxu0 0
        %2480 = vmatprep.subr.bf16.mxu0 0
        %2481 = vmatpush1.bf16.msra.mxu0 0
        %2482 = vmatprep.subr.bf16.mxu0 0
        %2483 = vmatpush1.bf16.msra.mxu0 0
        %2484 = vmatprep.subr.bf16.mxu0 0
        %2485 = vmatpush1.bf16.msra.mxu0 0
        %2486 = vmatprep.mubr.bf16.mxu0 0
        %2487 = vmatmul.mubr.bf16.gmra.mrb[0].mxu0 %v2409
        %v2488 = vpop.f32.mrb[0].mxu0
        %v2489 = vadd.f32 %v2019, %v2488
        %v2490 = vpop.f32.mrb[0].mxu0
        %v2491 = vadd.f32 %v2023, %v2490
        %v2492 = vpop.f32.mrb[0].mxu0
        %v2493 = vadd.f32 %v2019, %v2492
        %v2494 = vpop.f32.mrb[0].mxu0
        %v2495 = vadd.f32 %v2023, %v2494
        %2496 = vdwg.mxu0
        %2497 = vmatprep.subr.bf16.mxu0 %v2285
        %2498 = vmatpush1.bf16.msra.mxu0 %v2284
        %2499 = vmatprep.subr.bf16.mxu0 %v2301
        %2500 = vmatpush1.bf16.msra.mxu0 %v2300
        %2501 = vmatprep.subr.bf16.mxu0 %v2317
        %2502 = vmatpush1.bf16.msra.mxu0 %v2316
        %2503 = vmatprep.subr.bf16.mxu0 %v2333
        %2504 = vmatpush1.bf16.msra.mxu0 %v2332
        %2505 = vmatprep.subr.bf16.mxu0 0
        %2506 = vmatpush1.bf16.msra.mxu0 0
        %2507 = vmatprep.subr.bf16.mxu0 0
        %2508 = vmatpush1.bf16.msra.mxu0 0
        %2509 = vmatprep.subr.bf16.mxu0 0
        %2510 = vmatpush1.bf16.msra.mxu0 0
        %2511 = vmatprep.subr.bf16.mxu0 0
        %2512 = vmatpush1.bf16.msra.mxu0 0
        %2513 = vmatprep.subr.bf16.mxu0 0
        %2514 = vmatpush1.bf16.msra.mxu0 0
        %2515 = vmatprep.subr.bf16.mxu0 0
        %2516 = vmatpush1.bf16.msra.mxu0 0
        %2517 = vmatprep.subr.bf16.mxu0 0
        %2518 = vmatpush1.bf16.msra.mxu0 0
        %2519 = vmatprep.subr.bf16.mxu0 0
        %2520 = vmatpush1.bf16.msra.mxu0 0
        %2521 = vmatprep.subr.bf16.mxu0 0
        %2522 = vmatpush1.bf16.msra.mxu0 0
        %2523 = vmatprep.subr.bf16.mxu0 0
        %2524 = vmatpush1.bf16.msra.mxu0 0
        %2525 = vmatprep.subr.bf16.mxu0 0
        %2526 = vmatpush1.bf16.msra.mxu0 0
        %2527 = vmatprep.subr.bf16.mxu0 0
        %2528 = vmatpush1.bf16.msra.mxu0 0
        %2529 = vmatprep.mubr.bf16.mxu0 0
        %2530 = vmatmul.mubr.bf16.gmra.mrb[0].mxu0 %v2409
        %v2531 = vpop.f32.mrb[0].mxu0
        %v2532 = vadd.f32 %v2027, %v2531
        %v2533 = vpop.f32.mrb[0].mxu0
        %v2534 = vadd.f32 %v2031, %v2533
        %v2535 = vpop.f32.mrb[0].mxu0
        %v2536 = vadd.f32 %v2027, %v2535
        %v2537 = vpop.f32.mrb[0].mxu0
        %v2538 = vadd.f32 %v2031, %v2537
        %2539 = vdwg.mxu0
        %2540 = vmatprep.subr.bf16.mxu0 %v2287
        %2541 = vmatpush1.bf16.msra.mxu0 %v2286
        %2542 = vmatprep.subr.bf16.mxu0 %v2303
        %2543 = vmatpush1.bf16.msra.mxu0 %v2302
        %2544 = vmatprep.subr.bf16.mxu0 %v2319
        %2545 = vmatpush1.bf16.msra.mxu0 %v2318
        %2546 = vmatprep.subr.bf16.mxu0 %v2335
        %2547 = vmatpush1.bf16.msra.mxu0 %v2334
        %2548 = vmatprep.subr.bf16.mxu0 0
        %2549 = vmatpush1.bf16.msra.mxu0 0
        %2550 = vmatprep.subr.bf16.mxu0 0
        %2551 = vmatpush1.bf16.msra.mxu0 0
        %2552 = vmatprep.subr.bf16.mxu0 0
        %2553 = vmatpush1.bf16.msra.mxu0 0
        %2554 = vmatprep.subr.bf16.mxu0 0
        %2555 = vmatpush1.bf16.msra.mxu0 0
        %2556 = vmatprep.subr.bf16.mxu0 0
        %2557 = vmatpush1.bf16.msra.mxu0 0
        %2558 = vmatprep.subr.bf16.mxu0 0
        %2559 = vmatpush1.bf16.msra.mxu0 0
        %2560 = vmatprep.subr.bf16.mxu0 0
        %2561 = vmatpush1.bf16.msra.mxu0 0
        %2562 = vmatprep.subr.bf16.mxu0 0
        %2563 = vmatpush1.bf16.msra.mxu0 0
        %2564 = vmatprep.subr.bf16.mxu0 0
        %2565 = vmatpush1.bf16.msra.mxu0 0
        %2566 = vmatprep.subr.bf16.mxu0 0
        %2567 = vmatpush1.bf16.msra.mxu0 0
        %2568 = vmatprep.subr.bf16.mxu0 0
        %2569 = vmatpush1.bf16.msra.mxu0 0
        %2570 = vmatprep.subr.bf16.mxu0 0
        %2571 = vmatpush1.bf16.msra.mxu0 0
        %2572 = vmatprep.mubr.bf16.mxu0 0
        %2573 = vmatmul.mubr.bf16.gmra.mrb[0].mxu0 %v2409
        %v2574 = vpop.f32.mrb[0].mxu0
        %v2575 = vadd.f32 %v2035, %v2574
        %v2576 = vpop.f32.mrb[0].mxu0
        %v2577 = vadd.f32 %v2039, %v2576
        %v2578 = vpop.f32.mrb[0].mxu0
        %v2579 = vadd.f32 %v2035, %v2578
        %v2580 = vpop.f32.mrb[0].mxu0
        %v2581 = vadd.f32 %v2039, %v2580
        %2582 = vdwg.mxu0
        %2583 = vmatprep.subr.bf16.mxu0 %v2289
        %2584 = vmatpush1.bf16.msra.mxu0 %v2288
        %2585 = vmatprep.subr.bf16.mxu0 %v2305
        %2586 = vmatpush1.bf16.msra.mxu0 %v2304
        %2587 = vmatprep.subr.bf16.mxu0 %v2321
        %2588 = vmatpush1.bf16.msra.mxu0 %v2320
        %2589 = vmatprep.subr.bf16.mxu0 %v2337
        %2590 = vmatpush1.bf16.msra.mxu0 %v2336
        %2591 = vmatprep.subr.bf16.mxu0 0
        %2592 = vmatpush1.bf16.msra.mxu0 0
        %2593 = vmatprep.subr.bf16.mxu0 0
        %2594 = vmatpush1.bf16.msra.mxu0 0
        %2595 = vmatprep.subr.bf16.mxu0 0
        %2596 = vmatpush1.bf16.msra.mxu0 0
        %2597 = vmatprep.subr.bf16.mxu0 0
        %2598 = vmatpush1.bf16.msra.mxu0 0
        %2599 = vmatprep.subr.bf16.mxu0 0
        %2600 = vmatpush1.bf16.msra.mxu0 0
        %2601 = vmatprep.subr.bf16.mxu0 0
        %2602 = vmatpush1.bf16.msra.mxu0 0
        %2603 = vmatprep.subr.bf16.mxu0 0
        %2604 = vmatpush1.bf16.msra.mxu0 0
        %2605 = vmatprep.subr.bf16.mxu0 0
        %2606 = vmatpush1.bf16.msra.mxu0 0
        %2607 = vmatprep.subr.bf16.mxu0 0
        %2608 = vmatpush1.bf16.msra.mxu0 0
        %2609 = vmatprep.subr.bf16.mxu0 0
        %2610 = vmatpush1.bf16.msra.mxu0 0
        %2611 = vmatprep.subr.bf16.mxu0 0
        %2612 = vmatpush1.bf16.msra.mxu0 0
        %2613 = vmatprep.subr.bf16.mxu0 0
        %2614 = vmatpush1.bf16.msra.mxu0 0
        %2615 = vmatprep.mubr.bf16.mxu0 0
        %2616 = vmatmul.mubr.bf16.gmra.mrb[0].mxu0 %v2409
        %v2617 = vpop.f32.mrb[0].mxu0
        %v2618 = vadd.f32 %v2043, %v2617
        %v2619 = vpop.f32.mrb[0].mxu0
        %v2620 = vadd.f32 %v2047, %v2619
        %v2621 = vpop.f32.mrb[0].mxu0
        %v2622 = vadd.f32 %v2043, %v2621
        %v2623 = vpop.f32.mrb[0].mxu0
        %v2624 = vadd.f32 %v2047, %v2623
        %2625 = vdwg.mxu0
        %2626 = vmatprep.subr.bf16.mxu0 %v2291
        %2627 = vmatpush1.bf16.msra.mxu0 %v2290
        %2628 = vmatprep.subr.bf16.mxu0 %v2307
        %2629 = vmatpush1.bf16.msra.mxu0 %v2306
        %2630 = vmatprep.subr.bf16.mxu0 %v2323
        %2631 = vmatpush1.bf16.msra.mxu0 %v2322
        %2632 = vmatprep.subr.bf16.mxu0 %v2339
        %2633 = vmatpush1.bf16.msra.mxu0 %v2338
        %2634 = vmatprep.subr.bf16.mxu0 0
        %2635 = vmatpush1.bf16.msra.mxu0 0
        %2636 = vmatprep.subr.bf16.mxu0 0
        %2637 = vmatpush1.bf16.msra.mxu0 0
        %2638 = vmatprep.subr.bf16.mxu0 0
        %2639 = vmatpush1.bf16.msra.mxu0 0
        %2640 = vmatprep.subr.bf16.mxu0 0
        %2641 = vmatpush1.bf16.msra.mxu0 0
        %2642 = vmatprep.subr.bf16.mxu0 0
        %2643 = vmatpush1.bf16.msra.mxu0 0
        %2644 = vmatprep.subr.bf16.mxu0 0
        %2645 = vmatpush1.bf16.msra.mxu0 0
        %2646 = vmatprep.subr.bf16.mxu0 0
        %2647 = vmatpush1.bf16.msra.mxu0 0
        %2648 = vmatprep.subr.bf16.mxu0 0
        %2649 = vmatpush1.bf16.msra.mxu0 0
        %2650 = vmatprep.subr.bf16.mxu0 0
        %2651 = vmatpush1.bf16.msra.mxu0 0
        %2652 = vmatprep.subr.bf16.mxu0 0
        %2653 = vmatpush1.bf16.msra.mxu0 0
        %2654 = vmatprep.subr.bf16.mxu0 0
        %2655 = vmatpush1.bf16.msra.mxu0 0
        %2656 = vmatprep.subr.bf16.mxu0 0
        %2657 = vmatpush1.bf16.msra.mxu0 0
        %2658 = vmatprep.mubr.bf16.mxu0 0
        %2659 = vmatmul.mubr.bf16.gmra.mrb[0].mxu0 %v2409
        %v2660 = vpop.f32.mrb[0].mxu0
        %v2661 = vadd.f32 %v2051, %v2660
        %v2662 = vpop.f32.mrb[0].mxu0
        %v2663 = vadd.f32 %v2055, %v2662
        %v2664 = vpop.f32.mrb[0].mxu0
        %v2665 = vadd.f32 %v2051, %v2664
        %v2666 = vpop.f32.mrb[0].mxu0
        %v2667 = vadd.f32 %v2055, %v2666
        %2668 = vdwg.mxu0
        %2669 = vmatprep.subr.bf16.mxu0 %v2293
        %2670 = vmatpush1.bf16.msra.mxu0 %v2292
        %2671 = vmatprep.subr.bf16.mxu0 %v2309
        %2672 = vmatpush1.bf16.msra.mxu0 %v2308
        %2673 = vmatprep.subr.bf16.mxu0 %v2325
        %2674 = vmatpush1.bf16.msra.mxu0 %v2324
        %2675 = vmatprep.subr.bf16.mxu0 %v2341
        %2676 = vmatpush1.bf16.msra.mxu0 %v2340
        %2677 = vmatprep.subr.bf16.mxu0 0
        %2678 = vmatpush1.bf16.msra.mxu0 0
        %2679 = vmatprep.subr.bf16.mxu0 0
        %2680 = vmatpush1.bf16.msra.mxu0 0
        %2681 = vmatprep.subr.bf16.mxu0 0
        %2682 = vmatpush1.bf16.msra.mxu0 0
        %2683 = vmatprep.subr.bf16.mxu0 0
        %2684 = vmatpush1.bf16.msra.mxu0 0
        %2685 = vmatprep.subr.bf16.mxu0 0
        %2686 = vmatpush1.bf16.msra.mxu0 0
        %2687 = vmatprep.subr.bf16.mxu0 0
        %2688 = vmatpush1.bf16.msra.mxu0 0
        %2689 = vmatprep.subr.bf16.mxu0 0
        %2690 = vmatpush1.bf16.msra.mxu0 0
        %2691 = vmatprep.subr.bf16.mxu0 0
        %2692 = vmatpush1.bf16.msra.mxu0 0
        %2693 = vmatprep.subr.bf16.mxu0 0
        %2694 = vmatpush1.bf16.msra.mxu0 0
        %2695 = vmatprep.subr.bf16.mxu0 0
        %2696 = vmatpush1.bf16.msra.mxu0 0
        %2697 = vmatprep.subr.bf16.mxu0 0
        %2698 = vmatpush1.bf16.msra.mxu0 0
        %2699 = vmatprep.subr.bf16.mxu0 0
        %2700 = vmatpush1.bf16.msra.mxu0 0
        %2701 = vmatprep.mubr.bf16.mxu0 0
        %2702 = vmatmul.mubr.bf16.gmra.mrb[0].mxu0 %v2409
        %v2703 = vpop.f32.mrb[0].mxu0
        %v2704 = vadd.f32 %v2059, %v2703
        %v2705 = vpop.f32.mrb[0].mxu0
        %v2706 = vadd.f32 %v2063, %v2705
        %v2707 = vpop.f32.mrb[0].mxu0
        %v2708 = vadd.f32 %v2059, %v2707
        %v2709 = vpop.f32.mrb[0].mxu0
        %v2710 = vadd.f32 %v2063, %v2709
        %2711 = vdwg.mxu0
        %2712 = vmatprep.subr.bf16.mxu0 %v2295
        %2713 = vmatpush1.bf16.msra.mxu0 %v2294
        %2714 = vmatprep.subr.bf16.mxu0 %v2311
        %2715 = vmatpush1.bf16.msra.mxu0 %v2310
        %2716 = vmatprep.subr.bf16.mxu0 %v2327
        %2717 = vmatpush1.bf16.msra.mxu0 %v2326
        %2718 = vmatprep.subr.bf16.mxu0 %v2343
        %2719 = vmatpush1.bf16.msra.mxu0 %v2342
        %2720 = vmatprep.subr.bf16.mxu0 0
        %2721 = vmatpush1.bf16.msra.mxu0 0
        %2722 = vmatprep.subr.bf16.mxu0 0
        %2723 = vmatpush1.bf16.msra.mxu0 0
        %2724 = vmatprep.subr.bf16.mxu0 0
        %2725 = vmatpush1.bf16.msra.mxu0 0
        %2726 = vmatprep.subr.bf16.mxu0 0
        %2727 = vmatpush1.bf16.msra.mxu0 0
        %2728 = vmatprep.subr.bf16.mxu0 0
        %2729 = vmatpush1.bf16.msra.mxu0 0
        %2730 = vmatprep.subr.bf16.mxu0 0
        %2731 = vmatpush1.bf16.msra.mxu0 0
        %2732 = vmatprep.subr.bf16.mxu0 0
        %2733 = vmatpush1.bf16.msra.mxu0 0
        %2734 = vmatprep.subr.bf16.mxu0 0
        %2735 = vmatpush1.bf16.msra.mxu0 0
        %2736 = vmatprep.subr.bf16.mxu0 0
        %2737 = vmatpush1.bf16.msra.mxu0 0
        %2738 = vmatprep.subr.bf16.mxu0 0
        %2739 = vmatpush1.bf16.msra.mxu0 0
        %2740 = vmatprep.subr.bf16.mxu0 0
        %2741 = vmatpush1.bf16.msra.mxu0 0
        %2742 = vmatprep.subr.bf16.mxu0 0
        %2743 = vmatpush1.bf16.msra.mxu0 0
        %2744 = vmatprep.mubr.bf16.mxu0 0
        %2745 = vmatmul.mubr.bf16.gmra.mrb[0].mxu0 %v2409
        %v2746 = vpop.f32.mrb[0].mxu0
        %v2747 = vadd.f32 %v2067, %v2746
        %v2748 = vpop.f32.mrb[0].mxu0
        %v2749 = vadd.f32 %v2071, %v2748
        %v2750 = vpop.f32.mrb[0].mxu0
        %v2751 = vadd.f32 %v2067, %v2750
        %v2752 = vpop.f32.mrb[0].mxu0
        %v2753 = vadd.f32 %v2071, %v2752
        %2754 = vdwg.mxu0
        %v2755 = vmax.f32 %v2446, 0.0
        %v2756 = vmax.f32 %v2448, 0.0
        %v2757 = vmax.f32 %v2489, 0.0
        %v2758 = vmax.f32 %v2491, 0.0
        %v2759 = vmax.f32 %v2532, 0.0
        %v2760 = vmax.f32 %v2534, 0.0
        %v2761 = vmax.f32 %v2575, 0.0
        %v2762 = vmax.f32 %v2577, 0.0
        %v2763 = vmax.f32 %v2618, 0.0
        %v2764 = vmax.f32 %v2620, 0.0
        %v2765 = vmax.f32 %v2661, 0.0
        %v2766 = vmax.f32 %v2663, 0.0
        %v2767 = vmax.f32 %v2704, 0.0
        %v2768 = vmax.f32 %v2706, 0.0
        %v2769 = vmax.f32 %v2747, 0.0
        %v2770 = vmax.f32 %v2749, 0.0
        %v2771 = vmax.f32 %v2450, 0.0
        %v2772 = vmax.f32 %v2452, 0.0
        %v2773 = vmax.f32 %v2493, 0.0
        %v2774 = vmax.f32 %v2495, 0.0
        %v2775 = vmax.f32 %v2536, 0.0
        %v2776 = vmax.f32 %v2538, 0.0
        %v2777 = vmax.f32 %v2579, 0.0
        %v2778 = vmax.f32 %v2581, 0.0
        %v2779 = vmax.f32 %v2622, 0.0
        %v2780 = vmax.f32 %v2624, 0.0
        %v2781 = vmax.f32 %v2665, 0.0
        %v2782 = vmax.f32 %v2667, 0.0
        %v2783 = vmax.f32 %v2708, 0.0
        %v2784 = vmax.f32 %v2710, 0.0
        %v2785 = vmax.f32 %v2751, 0.0
        %v2786 = vmax.f32 %v2753, 0.0
        %v2787 = vpack.c.bf16 %v2771, %v2755
        %v2788 = vpack.c.bf16 %v2772, %v2756
        %v2789 = vpack.c.bf16 %v2773, %v2757
        %v2790 = vpack.c.bf16 %v2774, %v2758
        %v2791 = vpack.c.bf16 %v2775, %v2759
        %v2792 = vpack.c.bf16 %v2776, %v2760
        %v2793 = vpack.c.bf16 %v2777, %v2761
        %v2794 = vpack.c.bf16 %v2778, %v2762
        %v2795 = vpack.c.bf16 %v2779, %v2763
        %v2796 = vpack.c.bf16 %v2780, %v2764
        %v2797 = vpack.c.bf16 %v2781, %v2765
        %v2798 = vpack.c.bf16 %v2782, %v2766
        %v2799 = vpack.c.bf16 %v2783, %v2767
        %v2800 = vpack.c.bf16 %v2784, %v2768
        %v2801 = vpack.c.bf16 %v2785, %v2769
        %v2802 = vpack.c.bf16 %v2786, %v2770
        %v2803 = vlaneseq
        %v2804 = vshrl.u32 %v2803, 7
        %v2805 = vsub.s32 3, %v2804
        %v2806 = vrot.slane %v874, %v2805
        %v3063 = vunpack.c.l.b16 %v618
        %v3064 = vunpack.c.l.b16 %v619
        %v3065 = vunpack.c.l.b16 %v620
        %v3066 = vunpack.c.l.b16 %v621
        %v3067 = vunpack.c.l.b16 %v622
        %v3068 = vunpack.c.l.b16 %v623
        %v3069 = vunpack.c.l.b16 %v624
        %v3070 = vunpack.c.l.b16 %v625
        %v3071 = vunpack.c.l.b16 %v626
        %v3072 = vunpack.c.l.b16 %v627
        %v3073 = vunpack.c.l.b16 %v628
        %v3074 = vunpack.c.l.b16 %v629
        %v3075 = vunpack.c.l.b16 %v630
        %v3076 = vunpack.c.l.b16 %v631
        %v3077 = vunpack.c.l.b16 %v632
        %v3078 = vunpack.c.l.b16 %v633
        %v3079 = vunpack.c.l.b16 %v634
        %v3080 = vunpack.c.l.b16 %v635
        %v3081 = vunpack.c.l.b16 %v636
        %v3082 = vunpack.c.l.b16 %v637
        %v3083 = vunpack.c.l.b16 %v638
        %v3084 = vunpack.c.l.b16 %v639
        %v3085 = vunpack.c.l.b16 %v640
        %v3086 = vunpack.c.l.b16 %v641
        %v3087 = vunpack.c.l.b16 %v642
        %v3088 = vunpack.c.l.b16 %v643
        %v3089 = vunpack.c.l.b16 %v644
        %v3090 = vunpack.c.l.b16 %v645
        %v3091 = vunpack.c.l.b16 %v646
        %v3092 = vunpack.c.l.b16 %v647
        %v3093 = vunpack.c.l.b16 %v648
        %v3094 = vunpack.c.l.b16 %v649
        %v3095 = vunpack.c.l.b16 %v650
        %v3096 = vunpack.c.l.b16 %v651
        %v3097 = vunpack.c.l.b16 %v652
        %v3098 = vunpack.c.l.b16 %v653
        %v3099 = vunpack.c.l.b16 %v654
        %v3100 = vunpack.c.l.b16 %v655
        %v3101 = vunpack.c.l.b16 %v656
        %v3102 = vunpack.c.l.b16 %v657
        %v3103 = vunpack.c.l.b16 %v658
        %v3104 = vunpack.c.l.b16 %v659
        %v3105 = vunpack.c.l.b16 %v660
        %v3106 = vunpack.c.l.b16 %v661
        %v3107 = vunpack.c.l.b16 %v662
        %v3108 = vunpack.c.l.b16 %v663
        %v3109 = vunpack.c.l.b16 %v664
        %v3110 = vunpack.c.l.b16 %v665
        %v3111 = vunpack.c.l.b16 %v666
        %v3112 = vunpack.c.l.b16 %v667
        %v3113 = vunpack.c.l.b16 %v668
        %v3114 = vunpack.c.l.b16 %v669
        %v3115 = vunpack.c.l.b16 %v670
        %v3116 = vunpack.c.l.b16 %v671
        %v3117 = vunpack.c.l.b16 %v672
        %v3118 = vunpack.c.l.b16 %v673
        %v3119 = vunpack.c.l.b16 %v674
        %v3120 = vunpack.c.l.b16 %v675
        %v3121 = vunpack.c.l.b16 %v676
        %v3122 = vunpack.c.l.b16 %v677
        %v3123 = vunpack.c.l.b16 %v678
        %v3124 = vunpack.c.l.b16 %v679
        %v3125 = vunpack.c.l.b16 %v680
        %v3126 = vunpack.c.l.b16 %v681
        %v3127 = vunpack.c.l.b16 %v682
        %v3128 = vunpack.c.l.b16 %v683
        %v3129 = vunpack.c.l.b16 %v684
        %v3130 = vunpack.c.l.b16 %v685
        %v3131 = vunpack.c.l.b16 %v686
        %v3132 = vunpack.c.l.b16 %v687
        %v3133 = vunpack.c.l.b16 %v688
        %v3134 = vunpack.c.l.b16 %v689
        %v3135 = vunpack.c.l.b16 %v690
        %v3136 = vunpack.c.l.b16 %v691
        %v3137 = vunpack.c.l.b16 %v692
        %v3138 = vunpack.c.l.b16 %v693
        %v3139 = vunpack.c.l.b16 %v694
        %v3140 = vunpack.c.l.b16 %v695
        %v3141 = vunpack.c.l.b16 %v696
        %v3142 = vunpack.c.l.b16 %v697
        %v3143 = vunpack.c.l.b16 %v698
        %v3144 = vunpack.c.l.b16 %v699
        %v3145 = vunpack.c.l.b16 %v700
        %v3146 = vunpack.c.l.b16 %v701
        %v3147 = vunpack.c.l.b16 %v702
        %v3148 = vunpack.c.l.b16 %v703
        %v3149 = vunpack.c.l.b16 %v704
        %v3150 = vunpack.c.l.b16 %v705
        %v3151 = vunpack.c.l.b16 %v706
        %v3152 = vunpack.c.l.b16 %v707
        %v3153 = vunpack.c.l.b16 %v708
        %v3154 = vunpack.c.l.b16 %v709
        %v3155 = vunpack.c.l.b16 %v710
        %v3156 = vunpack.c.l.b16 %v711
        %v3157 = vunpack.c.l.b16 %v712
        %v3158 = vunpack.c.l.b16 %v713
        %v3159 = vunpack.c.l.b16 %v714
        %v3160 = vunpack.c.l.b16 %v715
        %v3161 = vunpack.c.l.b16 %v716
        %v3162 = vunpack.c.l.b16 %v717
        %v3163 = vunpack.c.l.b16 %v718
        %v3164 = vunpack.c.l.b16 %v719
        %v3165 = vunpack.c.l.b16 %v720
        %v3166 = vunpack.c.l.b16 %v721
        %v3167 = vunpack.c.l.b16 %v722
        %v3168 = vunpack.c.l.b16 %v723
        %v3169 = vunpack.c.l.b16 %v724
        %v3170 = vunpack.c.l.b16 %v725
        %v3171 = vunpack.c.l.b16 %v726
        %v3172 = vunpack.c.l.b16 %v727
        %v3173 = vunpack.c.l.b16 %v728
        %v3174 = vunpack.c.l.b16 %v729
        %v3175 = vunpack.c.l.b16 %v730
        %v3176 = vunpack.c.l.b16 %v731
        %v3177 = vunpack.c.l.b16 %v732
        %v3178 = vunpack.c.l.b16 %v733
        %v3179 = vunpack.c.l.b16 %v734
        %v3180 = vunpack.c.l.b16 %v735
        %v3181 = vunpack.c.l.b16 %v736
        %v3182 = vunpack.c.l.b16 %v737
        %v3183 = vunpack.c.l.b16 %v738
        %v3184 = vunpack.c.l.b16 %v739
        %v3185 = vunpack.c.l.b16 %v740
        %v3186 = vunpack.c.l.b16 %v741
        %v3187 = vunpack.c.l.b16 %v742
        %v3188 = vunpack.c.l.b16 %v743
        %v3189 = vunpack.c.l.b16 %v744
        %v3190 = vunpack.c.l.b16 %v745
        %v3191 = vunpack.c.l.b16 %v746
        %v3192 = vunpack.c.l.b16 %v747
        %v3193 = vunpack.c.l.b16 %v748
        %v3194 = vunpack.c.l.b16 %v749
        %v3195 = vunpack.c.l.b16 %v750
        %v3196 = vunpack.c.l.b16 %v751
        %v3197 = vunpack.c.l.b16 %v752
        %v3198 = vunpack.c.l.b16 %v753
        %v3199 = vunpack.c.l.b16 %v754
        %v3200 = vunpack.c.l.b16 %v755
        %v3201 = vunpack.c.l.b16 %v756
        %v3202 = vunpack.c.l.b16 %v757
        %v3203 = vunpack.c.l.b16 %v758
        %v3204 = vunpack.c.l.b16 %v759
        %v3205 = vunpack.c.l.b16 %v760
        %v3206 = vunpack.c.l.b16 %v761
        %v3207 = vunpack.c.l.b16 %v762
        %v3208 = vunpack.c.l.b16 %v763
        %v3209 = vunpack.c.l.b16 %v764
        %v3210 = vunpack.c.l.b16 %v765
        %v3211 = vunpack.c.l.b16 %v766
        %v3212 = vunpack.c.l.b16 %v767
        %v3213 = vunpack.c.l.b16 %v768
        %v3214 = vunpack.c.l.b16 %v769
        %v3215 = vunpack.c.l.b16 %v770
        %v3216 = vunpack.c.l.b16 %v771
        %v3217 = vunpack.c.l.b16 %v772
        %v3218 = vunpack.c.l.b16 %v773
        %v3219 = vunpack.c.l.b16 %v774
        %v3220 = vunpack.c.l.b16 %v775
        %v3221 = vunpack.c.l.b16 %v776
        %v3222 = vunpack.c.l.b16 %v777
        %v3223 = vunpack.c.l.b16 %v778
        %v3224 = vunpack.c.l.b16 %v779
        %v3225 = vunpack.c.l.b16 %v780
        %v3226 = vunpack.c.l.b16 %v781
        %v3227 = vunpack.c.l.b16 %v782
        %v3228 = vunpack.c.l.b16 %v783
        %v3229 = vunpack.c.l.b16 %v784
        %v3230 = vunpack.c.l.b16 %v785
        %v3231 = vunpack.c.l.b16 %v786
        %v3232 = vunpack.c.l.b16 %v787
        %v3233 = vunpack.c.l.b16 %v788
        %v3234 = vunpack.c.l.b16 %v789
        %v3235 = vunpack.c.l.b16 %v790
        %v3236 = vunpack.c.l.b16 %v791
        %v3237 = vunpack.c.l.b16 %v792
        %v3238 = vunpack.c.l.b16 %v793
        %v3239 = vunpack.c.l.b16 %v794
        %v3240 = vunpack.c.l.b16 %v795
        %v3241 = vunpack.c.l.b16 %v796
        %v3242 = vunpack.c.l.b16 %v797
        %v3243 = vunpack.c.l.b16 %v798
        %v3244 = vunpack.c.l.b16 %v799
        %v3245 = vunpack.c.l.b16 %v800
        %v3246 = vunpack.c.l.b16 %v801
        %v3247 = vunpack.c.l.b16 %v802
        %v3248 = vunpack.c.l.b16 %v803
        %v3249 = vunpack.c.l.b16 %v804
        %v3250 = vunpack.c.l.b16 %v805
        %v3251 = vunpack.c.l.b16 %v806
        %v3252 = vunpack.c.l.b16 %v807
        %v3253 = vunpack.c.l.b16 %v808
        %v3254 = vunpack.c.l.b16 %v809
        %v3255 = vunpack.c.l.b16 %v810
        %v3256 = vunpack.c.l.b16 %v811
        %v3257 = vunpack.c.l.b16 %v812
        %v3258 = vunpack.c.l.b16 %v813
        %v3259 = vunpack.c.l.b16 %v814
        %v3260 = vunpack.c.l.b16 %v815
        %v3261 = vunpack.c.l.b16 %v816
        %v3262 = vunpack.c.l.b16 %v817
        %v3263 = vunpack.c.l.b16 %v818
        %v3264 = vunpack.c.l.b16 %v819
        %v3265 = vunpack.c.l.b16 %v820
        %v3266 = vunpack.c.l.b16 %v821
        %v3267 = vunpack.c.l.b16 %v822
        %v3268 = vunpack.c.l.b16 %v823
        %v3269 = vunpack.c.l.b16 %v824
        %v3270 = vunpack.c.l.b16 %v825
        %v3271 = vunpack.c.l.b16 %v826
        %v3272 = vunpack.c.l.b16 %v827
        %v3273 = vunpack.c.l.b16 %v828
        %v3274 = vunpack.c.l.b16 %v829
        %v3275 = vunpack.c.l.b16 %v830
        %v3276 = vunpack.c.l.b16 %v831
        %v3277 = vunpack.c.l.b16 %v832
        %v3278 = vunpack.c.l.b16 %v833
        %v3279 = vunpack.c.l.b16 %v834
        %v3280 = vunpack.c.l.b16 %v835
        %v3281 = vunpack.c.l.b16 %v836
        %v3282 = vunpack.c.l.b16 %v837
        %v3283 = vunpack.c.l.b16 %v838
        %v3284 = vunpack.c.l.b16 %v839
        %v3285 = vunpack.c.l.b16 %v840
        %v3286 = vunpack.c.l.b16 %v841
        %v3287 = vunpack.c.l.b16 %v842
        %v3288 = vunpack.c.l.b16 %v843
        %v3289 = vunpack.c.l.b16 %v844
        %v3290 = vunpack.c.l.b16 %v845
        %v3291 = vunpack.c.l.b16 %v846
        %v3292 = vunpack.c.l.b16 %v847
        %v3293 = vunpack.c.l.b16 %v848
        %v3294 = vunpack.c.l.b16 %v849
        %v3295 = vunpack.c.l.b16 %v850
        %v3296 = vunpack.c.l.b16 %v851
        %v3297 = vunpack.c.l.b16 %v852
        %v3298 = vunpack.c.l.b16 %v853
        %v3299 = vunpack.c.l.b16 %v854
        %v3300 = vunpack.c.l.b16 %v855
        %v3301 = vunpack.c.l.b16 %v856
        %v3302 = vunpack.c.l.b16 %v857
        %v3303 = vunpack.c.l.b16 %v858
        %v3304 = vunpack.c.l.b16 %v859
        %v3305 = vunpack.c.l.b16 %v860
        %v3306 = vunpack.c.l.b16 %v861
        %v3307 = vunpack.c.l.b16 %v862
        %v3308 = vunpack.c.l.b16 %v863
        %v3309 = vunpack.c.l.b16 %v864
        %v3310 = vunpack.c.l.b16 %v865
        %v3311 = vunpack.c.l.b16 %v866
        %v3312 = vunpack.c.l.b16 %v867
        %v3313 = vunpack.c.l.b16 %v868
        %v3314 = vunpack.c.l.b16 %v869
        %v3315 = vunpack.c.l.b16 %v870
        %v3316 = vunpack.c.l.b16 %v871
        %v3317 = vunpack.c.l.b16 %v872
        %v3318 = vunpack.c.l.b16 %v873
        %v3319 = vpack.c.b16 %v3064, %v3063
        %v3320 = vpack.c.b16 %v3066, %v3065
        %v3321 = vpack.c.b16 %v3068, %v3067
        %v3322 = vpack.c.b16 %v3070, %v3069
        %v3323 = vpack.c.b16 %v3072, %v3071
        %v3324 = vpack.c.b16 %v3074, %v3073
        %v3325 = vpack.c.b16 %v3076, %v3075
        %v3326 = vpack.c.b16 %v3078, %v3077
        %v3327 = vpack.c.b16 %v3080, %v3079
        %v3328 = vpack.c.b16 %v3082, %v3081
        %v3329 = vpack.c.b16 %v3084, %v3083
        %v3330 = vpack.c.b16 %v3086, %v3085
        %v3331 = vpack.c.b16 %v3088, %v3087
        %v3332 = vpack.c.b16 %v3090, %v3089
        %v3333 = vpack.c.b16 %v3092, %v3091
        %v3334 = vpack.c.b16 %v3094, %v3093
        %v3335 = vpack.c.b16 %v3096, %v3095
        %v3336 = vpack.c.b16 %v3098, %v3097
        %v3337 = vpack.c.b16 %v3100, %v3099
        %v3338 = vpack.c.b16 %v3102, %v3101
        %v3339 = vpack.c.b16 %v3104, %v3103
        %v3340 = vpack.c.b16 %v3106, %v3105
        %v3341 = vpack.c.b16 %v3108, %v3107
        %v3342 = vpack.c.b16 %v3110, %v3109
        %v3343 = vpack.c.b16 %v3112, %v3111
        %v3344 = vpack.c.b16 %v3114, %v3113
        %v3345 = vpack.c.b16 %v3116, %v3115
        %v3346 = vpack.c.b16 %v3118, %v3117
        %v3347 = vpack.c.b16 %v3120, %v3119
        %v3348 = vpack.c.b16 %v3122, %v3121
        %v3349 = vpack.c.b16 %v3124, %v3123
        %v3350 = vpack.c.b16 %v3126, %v3125
        %v3351 = vpack.c.b16 %v3128, %v3127
        %v3352 = vpack.c.b16 %v3130, %v3129
        %v3353 = vpack.c.b16 %v3132, %v3131
        %v3354 = vpack.c.b16 %v3134, %v3133
        %v3355 = vpack.c.b16 %v3136, %v3135
        %v3356 = vpack.c.b16 %v3138, %v3137
        %v3357 = vpack.c.b16 %v3140, %v3139
        %v3358 = vpack.c.b16 %v3142, %v3141
        %v3359 = vpack.c.b16 %v3144, %v3143
        %v3360 = vpack.c.b16 %v3146, %v3145
        %v3361 = vpack.c.b16 %v3148, %v3147
        %v3362 = vpack.c.b16 %v3150, %v3149
        %v3363 = vpack.c.b16 %v3152, %v3151
        %v3364 = vpack.c.b16 %v3154, %v3153
        %v3365 = vpack.c.b16 %v3156, %v3155
        %v3366 = vpack.c.b16 %v3158, %v3157
        %v3367 = vpack.c.b16 %v3160, %v3159
        %v3368 = vpack.c.b16 %v3162, %v3161
        %v3369 = vpack.c.b16 %v3164, %v3163
        %v3370 = vpack.c.b16 %v3166, %v3165
        %v3371 = vpack.c.b16 %v3168, %v3167
        %v3372 = vpack.c.b16 %v3170, %v3169
        %v3373 = vpack.c.b16 %v3172, %v3171
        %v3374 = vpack.c.b16 %v3174, %v3173
        %v3375 = vpack.c.b16 %v3176, %v3175
        %v3376 = vpack.c.b16 %v3178, %v3177
        %v3377 = vpack.c.b16 %v3180, %v3179
        %v3378 = vpack.c.b16 %v3182, %v3181
        %v3379 = vpack.c.b16 %v3184, %v3183
        %v3380 = vpack.c.b16 %v3186, %v3185
        %v3381 = vpack.c.b16 %v3188, %v3187
        %v3382 = vpack.c.b16 %v3190, %v3189
        %v3383 = vpack.c.b16 %v3192, %v3191
        %v3384 = vpack.c.b16 %v3194, %v3193
        %v3385 = vpack.c.b16 %v3196, %v3195
        %v3386 = vpack.c.b16 %v3198, %v3197
        %v3387 = vpack.c.b16 %v3200, %v3199
        %v3388 = vpack.c.b16 %v3202, %v3201
        %v3389 = vpack.c.b16 %v3204, %v3203
        %v3390 = vpack.c.b16 %v3206, %v3205
        %v3391 = vpack.c.b16 %v3208, %v3207
        %v3392 = vpack.c.b16 %v3210, %v3209
        %v3393 = vpack.c.b16 %v3212, %v3211
        %v3394 = vpack.c.b16 %v3214, %v3213
        %v3395 = vpack.c.b16 %v3216, %v3215
        %v3396 = vpack.c.b16 %v3218, %v3217
        %v3397 = vpack.c.b16 %v3220, %v3219
        %v3398 = vpack.c.b16 %v3222, %v3221
        %v3399 = vpack.c.b16 %v3224, %v3223
        %v3400 = vpack.c.b16 %v3226, %v3225
        %v3401 = vpack.c.b16 %v3228, %v3227
        %v3402 = vpack.c.b16 %v3230, %v3229
        %v3403 = vpack.c.b16 %v3232, %v3231
        %v3404 = vpack.c.b16 %v3234, %v3233
        %v3405 = vpack.c.b16 %v3236, %v3235
        %v3406 = vpack.c.b16 %v3238, %v3237
        %v3407 = vpack.c.b16 %v3240, %v3239
        %v3408 = vpack.c.b16 %v3242, %v3241
        %v3409 = vpack.c.b16 %v3244, %v3243
        %v3410 = vpack.c.b16 %v3246, %v3245
        %v3411 = vpack.c.b16 %v3248, %v3247
        %v3412 = vpack.c.b16 %v3250, %v3249
        %v3413 = vpack.c.b16 %v3252, %v3251
        %v3414 = vpack.c.b16 %v3254, %v3253
        %v3415 = vpack.c.b16 %v3256, %v3255
        %v3416 = vpack.c.b16 %v3258, %v3257
        %v3417 = vpack.c.b16 %v3260, %v3259
        %v3418 = vpack.c.b16 %v3262, %v3261
        %v3419 = vpack.c.b16 %v3264, %v3263
        %v3420 = vpack.c.b16 %v3266, %v3265
        %v3421 = vpack.c.b16 %v3268, %v3267
        %v3422 = vpack.c.b16 %v3270, %v3269
        %v3423 = vpack.c.b16 %v3272, %v3271
        %v3424 = vpack.c.b16 %v3274, %v3273
        %v3425 = vpack.c.b16 %v3276, %v3275
        %v3426 = vpack.c.b16 %v3278, %v3277
        %v3427 = vpack.c.b16 %v3280, %v3279
        %v3428 = vpack.c.b16 %v3282, %v3281
        %v3429 = vpack.c.b16 %v3284, %v3283
        %v3430 = vpack.c.b16 %v3286, %v3285
        %v3431 = vpack.c.b16 %v3288, %v3287
        %v3432 = vpack.c.b16 %v3290, %v3289
        %v3433 = vpack.c.b16 %v3292, %v3291
        %v3434 = vpack.c.b16 %v3294, %v3293
        %v3435 = vpack.c.b16 %v3296, %v3295
        %v3436 = vpack.c.b16 %v3298, %v3297
        %v3437 = vpack.c.b16 %v3300, %v3299
        %v3438 = vpack.c.b16 %v3302, %v3301
        %v3439 = vpack.c.b16 %v3304, %v3303
        %v3440 = vpack.c.b16 %v3306, %v3305
        %v3441 = vpack.c.b16 %v3308, %v3307
        %v3442 = vpack.c.b16 %v3310, %v3309
        %v3443 = vpack.c.b16 %v3312, %v3311
        %v3444 = vpack.c.b16 %v3314, %v3313
        %v3445 = vpack.c.b16 %v3316, %v3315
        %v3446 = vpack.c.b16 %v3318, %v3317
        %3575 = vmatprep.subr.bf16.mxu0 0
        %3576 = vmatpush1.bf16.msra.mxu0 %v3319
        %3577 = vmatprep.subr.bf16.mxu0 0
        %3578 = vmatpush1.bf16.msra.mxu0 %v3320
        %3579 = vmatprep.subr.bf16.mxu0 0
        %3580 = vmatpush1.bf16.msra.mxu0 %v3321
        %3581 = vmatprep.subr.bf16.mxu0 0
        %3582 = vmatpush1.bf16.msra.mxu0 %v3322
        %3583 = vmatprep.subr.bf16.mxu0 0
        %3584 = vmatpush1.bf16.msra.mxu0 %v3323
        %3585 = vmatprep.subr.bf16.mxu0 0
        %3586 = vmatpush1.bf16.msra.mxu0 %v3324
        %3587 = vmatprep.subr.bf16.mxu0 0
        %3588 = vmatpush1.bf16.msra.mxu0 %v3325
        %3589 = vmatprep.subr.bf16.mxu0 0
        %3590 = vmatpush1.bf16.msra.mxu0 %v3326
        %3591 = vmatprep.subr.bf16.mxu0 0
        %3592 = vmatpush1.bf16.msra.mxu0 %v3327
        %3593 = vmatprep.subr.bf16.mxu0 0
        %3594 = vmatpush1.bf16.msra.mxu0 %v3328
        %3595 = vmatprep.subr.bf16.mxu0 0
        %3596 = vmatpush1.bf16.msra.mxu0 %v3329
        %3597 = vmatprep.subr.bf16.mxu0 0
        %3598 = vmatpush1.bf16.msra.mxu0 %v3330
        %3599 = vmatprep.subr.bf16.mxu0 0
        %3600 = vmatpush1.bf16.msra.mxu0 %v3331
        %3601 = vmatprep.subr.bf16.mxu0 0
        %3602 = vmatpush1.bf16.msra.mxu0 %v3332
        %3603 = vmatprep.subr.bf16.mxu0 0
        %3604 = vmatpush1.bf16.msra.mxu0 %v3333
        %3605 = vmatprep.subr.bf16.mxu0 0
        %3606 = vmatpush1.bf16.msra.mxu0 %v3334
        %3607 = vmatprep.mubr.bf16.mxu0 %v2788
        %3608 = vmatmul.mubr.bf16.gmra.mrb[0].mxu0 %v2787
        %v3609 = vpop.f32.mrb[0].mxu0
        %v3610 = vadd.f32 %v2806, %v3609
        %v3611 = vpop.f32.mrb[0].mxu0
        %v3612 = vpop.f32.mrb[0].mxu0
        %v3613 = vadd.f32 %v2806, %v3612
        %v3614 = vpop.f32.mrb[0].mxu0
        %3615 = vdwg.mxu0
        %3616 = vmatprep.subr.bf16.mxu0 0
        %3617 = vmatpush1.bf16.msra.mxu0 %v3335
        %3618 = vmatprep.subr.bf16.mxu0 0
        %3619 = vmatpush1.bf16.msra.mxu0 %v3336
        %3620 = vmatprep.subr.bf16.mxu0 0
        %3621 = vmatpush1.bf16.msra.mxu0 %v3337
        %3622 = vmatprep.subr.bf16.mxu0 0
        %3623 = vmatpush1.bf16.msra.mxu0 %v3338
        %3624 = vmatprep.subr.bf16.mxu0 0
        %3625 = vmatpush1.bf16.msra.mxu0 %v3339
        %3626 = vmatprep.subr.bf16.mxu0 0
        %3627 = vmatpush1.bf16.msra.mxu0 %v3340
        %3628 = vmatprep.subr.bf16.mxu0 0
        %3629 = vmatpush1.bf16.msra.mxu0 %v3341
        %3630 = vmatprep.subr.bf16.mxu0 0
        %3631 = vmatpush1.bf16.msra.mxu0 %v3342
        %3632 = vmatprep.subr.bf16.mxu0 0
        %3633 = vmatpush1.bf16.msra.mxu0 %v3343
        %3634 = vmatprep.subr.bf16.mxu0 0
        %3635 = vmatpush1.bf16.msra.mxu0 %v3344
        %3636 = vmatprep.subr.bf16.mxu0 0
        %3637 = vmatpush1.bf16.msra.mxu0 %v3345
        %3638 = vmatprep.subr.bf16.mxu0 0
        %3639 = vmatpush1.bf16.msra.mxu0 %v3346
        %3640 = vmatprep.subr.bf16.mxu0 0
        %3641 = vmatpush1.bf16.msra.mxu0 %v3347
        %3642 = vmatprep.subr.bf16.mxu0 0
        %3643 = vmatpush1.bf16.msra.mxu0 %v3348
        %3644 = vmatprep.subr.bf16.mxu0 0
        %3645 = vmatpush1.bf16.msra.mxu0 %v3349
        %3646 = vmatprep.subr.bf16.mxu0 0
        %3647 = vmatpush1.bf16.msra.mxu0 %v3350
        %3648 = vmatprep.mubr.bf16.mxu0 %v2790
        %3649 = vmatmul.mubr.bf16.gmra.mrb[0].mxu0 %v2789
        %v3650 = vpop.f32.mrb[0].mxu0
        %v3651 = vadd.f32 %v3610, %v3650
        %v3652 = vpop.f32.mrb[0].mxu0
        %v3653 = vpop.f32.mrb[0].mxu0
        %v3654 = vadd.f32 %v3613, %v3653
        %v3655 = vpop.f32.mrb[0].mxu0
        %3656 = vdwg.mxu0
        %3657 = vmatprep.subr.bf16.mxu0 0
        %3658 = vmatpush1.bf16.msra.mxu0 %v3351
        %3659 = vmatprep.subr.bf16.mxu0 0
        %3660 = vmatpush1.bf16.msra.mxu0 %v3352
        %3661 = vmatprep.subr.bf16.mxu0 0
        %3662 = vmatpush1.bf16.msra.mxu0 %v3353
        %3663 = vmatprep.subr.bf16.mxu0 0
        %3664 = vmatpush1.bf16.msra.mxu0 %v3354
        %3665 = vmatprep.subr.bf16.mxu0 0
        %3666 = vmatpush1.bf16.msra.mxu0 %v3355
        %3667 = vmatprep.subr.bf16.mxu0 0
        %3668 = vmatpush1.bf16.msra.mxu0 %v3356
        %3669 = vmatprep.subr.bf16.mxu0 0
        %3670 = vmatpush1.bf16.msra.mxu0 %v3357
        %3671 = vmatprep.subr.bf16.mxu0 0
        %3672 = vmatpush1.bf16.msra.mxu0 %v3358
        %3673 = vmatprep.subr.bf16.mxu0 0
        %3674 = vmatpush1.bf16.msra.mxu0 %v3359
        %3675 = vmatprep.subr.bf16.mxu0 0
        %3676 = vmatpush1.bf16.msra.mxu0 %v3360
        %3677 = vmatprep.subr.bf16.mxu0 0
        %3678 = vmatpush1.bf16.msra.mxu0 %v3361
        %3679 = vmatprep.subr.bf16.mxu0 0
        %3680 = vmatpush1.bf16.msra.mxu0 %v3362
        %3681 = vmatprep.subr.bf16.mxu0 0
        %3682 = vmatpush1.bf16.msra.mxu0 %v3363
        %3683 = vmatprep.subr.bf16.mxu0 0
        %3684 = vmatpush1.bf16.msra.mxu0 %v3364
        %3685 = vmatprep.subr.bf16.mxu0 0
        %3686 = vmatpush1.bf16.msra.mxu0 %v3365
        %3687 = vmatprep.subr.bf16.mxu0 0
        %3688 = vmatpush1.bf16.msra.mxu0 %v3366
        %3689 = vmatprep.mubr.bf16.mxu0 %v2792
        %3690 = vmatmul.mubr.bf16.gmra.mrb[0].mxu0 %v2791
        %v3691 = vpop.f32.mrb[0].mxu0
        %v3692 = vadd.f32 %v3651, %v3691
        %v3693 = vpop.f32.mrb[0].mxu0
        %v3694 = vpop.f32.mrb[0].mxu0
        %v3695 = vadd.f32 %v3654, %v3694
        %v3696 = vpop.f32.mrb[0].mxu0
        %3697 = vdwg.mxu0
        %3698 = vmatprep.subr.bf16.mxu0 0
        %3699 = vmatpush1.bf16.msra.mxu0 %v3367
        %3700 = vmatprep.subr.bf16.mxu0 0
        %3701 = vmatpush1.bf16.msra.mxu0 %v3368
        %3702 = vmatprep.subr.bf16.mxu0 0
        %3703 = vmatpush1.bf16.msra.mxu0 %v3369
        %3704 = vmatprep.subr.bf16.mxu0 0
        %3705 = vmatpush1.bf16.msra.mxu0 %v3370
        %3706 = vmatprep.subr.bf16.mxu0 0
        %3707 = vmatpush1.bf16.msra.mxu0 %v3371
        %3708 = vmatprep.subr.bf16.mxu0 0
        %3709 = vmatpush1.bf16.msra.mxu0 %v3372
        %3710 = vmatprep.subr.bf16.mxu0 0
        %3711 = vmatpush1.bf16.msra.mxu0 %v3373
        %3712 = vmatprep.subr.bf16.mxu0 0
        %3713 = vmatpush1.bf16.msra.mxu0 %v3374
        %3714 = vmatprep.subr.bf16.mxu0 0
        %3715 = vmatpush1.bf16.msra.mxu0 %v3375
        %3716 = vmatprep.subr.bf16.mxu0 0
        %3717 = vmatpush1.bf16.msra.mxu0 %v3376
        %3718 = vmatprep.subr.bf16.mxu0 0
        %3719 = vmatpush1.bf16.msra.mxu0 %v3377
        %3720 = vmatprep.subr.bf16.mxu0 0
        %3721 = vmatpush1.bf16.msra.mxu0 %v3378
        %3722 = vmatprep.subr.bf16.mxu0 0
        %3723 = vmatpush1.bf16.msra.mxu0 %v3379
        %3724 = vmatprep.subr.bf16.mxu0 0
        %3725 = vmatpush1.bf16.msra.mxu0 %v3380
        %3726 = vmatprep.subr.bf16.mxu0 0
        %3727 = vmatpush1.bf16.msra.mxu0 %v3381
        %3728 = vmatprep.subr.bf16.mxu0 0
        %3729 = vmatpush1.bf16.msra.mxu0 %v3382
        %3730 = vmatprep.mubr.bf16.mxu0 %v2794
        %3731 = vmatmul.mubr.bf16.gmra.mrb[0].mxu0 %v2793
        %v3732 = vpop.f32.mrb[0].mxu0
        %v3733 = vadd.f32 %v3692, %v3732
        %v3734 = vpop.f32.mrb[0].mxu0
        %v3735 = vpop.f32.mrb[0].mxu0
        %v3736 = vadd.f32 %v3695, %v3735
        %v3737 = vpop.f32.mrb[0].mxu0
        %3738 = vdwg.mxu0
        %3739 = vmatprep.subr.bf16.mxu0 0
        %3740 = vmatpush1.bf16.msra.mxu0 %v3383
        %3741 = vmatprep.subr.bf16.mxu0 0
        %3742 = vmatpush1.bf16.msra.mxu0 %v3384
        %3743 = vmatprep.subr.bf16.mxu0 0
        %3744 = vmatpush1.bf16.msra.mxu0 %v3385
        %3745 = vmatprep.subr.bf16.mxu0 0
        %3746 = vmatpush1.bf16.msra.mxu0 %v3386
        %3747 = vmatprep.subr.bf16.mxu0 0
        %3748 = vmatpush1.bf16.msra.mxu0 %v3387
        %3749 = vmatprep.subr.bf16.mxu0 0
        %3750 = vmatpush1.bf16.msra.mxu0 %v3388
        %3751 = vmatprep.subr.bf16.mxu0 0
        %3752 = vmatpush1.bf16.msra.mxu0 %v3389
        %3753 = vmatprep.subr.bf16.mxu0 0
        %3754 = vmatpush1.bf16.msra.mxu0 %v3390
        %3755 = vmatprep.subr.bf16.mxu0 0
        %3756 = vmatpush1.bf16.msra.mxu0 %v3391
        %3757 = vmatprep.subr.bf16.mxu0 0
        %3758 = vmatpush1.bf16.msra.mxu0 %v3392
        %3759 = vmatprep.subr.bf16.mxu0 0
        %3760 = vmatpush1.bf16.msra.mxu0 %v3393
        %3761 = vmatprep.subr.bf16.mxu0 0
        %3762 = vmatpush1.bf16.msra.mxu0 %v3394
        %3763 = vmatprep.subr.bf16.mxu0 0
        %3764 = vmatpush1.bf16.msra.mxu0 %v3395
        %3765 = vmatprep.subr.bf16.mxu0 0
        %3766 = vmatpush1.bf16.msra.mxu0 %v3396
        %3767 = vmatprep.subr.bf16.mxu0 0
        %3768 = vmatpush1.bf16.msra.mxu0 %v3397
        %3769 = vmatprep.subr.bf16.mxu0 0
        %3770 = vmatpush1.bf16.msra.mxu0 %v3398
        %3771 = vmatprep.mubr.bf16.mxu0 %v2796
        %3772 = vmatmul.mubr.bf16.gmra.mrb[0].mxu0 %v2795
        %v3773 = vpop.f32.mrb[0].mxu0
        %v3774 = vadd.f32 %v3733, %v3773
        %v3775 = vpop.f32.mrb[0].mxu0
        %v3776 = vpop.f32.mrb[0].mxu0
        %v3777 = vadd.f32 %v3736, %v3776
        %v3778 = vpop.f32.mrb[0].mxu0
        %3779 = vdwg.mxu0
        %3780 = vmatprep.subr.bf16.mxu0 0
        %3781 = vmatpush1.bf16.msra.mxu0 %v3399
        %3782 = vmatprep.subr.bf16.mxu0 0
        %3783 = vmatpush1.bf16.msra.mxu0 %v3400
        %3784 = vmatprep.subr.bf16.mxu0 0
        %3785 = vmatpush1.bf16.msra.mxu0 %v3401
        %3786 = vmatprep.subr.bf16.mxu0 0
        %3787 = vmatpush1.bf16.msra.mxu0 %v3402
        %3788 = vmatprep.subr.bf16.mxu0 0
        %3789 = vmatpush1.bf16.msra.mxu0 %v3403
        %3790 = vmatprep.subr.bf16.mxu0 0
        %3791 = vmatpush1.bf16.msra.mxu0 %v3404
        %3792 = vmatprep.subr.bf16.mxu0 0
        %3793 = vmatpush1.bf16.msra.mxu0 %v3405
        %3794 = vmatprep.subr.bf16.mxu0 0
        %3795 = vmatpush1.bf16.msra.mxu0 %v3406
        %3796 = vmatprep.subr.bf16.mxu0 0
        %3797 = vmatpush1.bf16.msra.mxu0 %v3407
        %3798 = vmatprep.subr.bf16.mxu0 0
        %3799 = vmatpush1.bf16.msra.mxu0 %v3408
        %3800 = vmatprep.subr.bf16.mxu0 0
        %3801 = vmatpush1.bf16.msra.mxu0 %v3409
        %3802 = vmatprep.subr.bf16.mxu0 0
        %3803 = vmatpush1.bf16.msra.mxu0 %v3410
        %3804 = vmatprep.subr.bf16.mxu0 0
        %3805 = vmatpush1.bf16.msra.mxu0 %v3411
        %3806 = vmatprep.subr.bf16.mxu0 0
        %3807 = vmatpush1.bf16.msra.mxu0 %v3412
        %3808 = vmatprep.subr.bf16.mxu0 0
        %3809 = vmatpush1.bf16.msra.mxu0 %v3413
        %3810 = vmatprep.subr.bf16.mxu0 0
        %3811 = vmatpush1.bf16.msra.mxu0 %v3414
        %3812 = vmatprep.mubr.bf16.mxu0 %v2798
        %3813 = vmatmul.mubr.bf16.gmra.mrb[0].mxu0 %v2797
        %v3814 = vpop.f32.mrb[0].mxu0
        %v3815 = vadd.f32 %v3774, %v3814
        %v3816 = vpop.f32.mrb[0].mxu0
        %v3817 = vpop.f32.mrb[0].mxu0
        %v3818 = vadd.f32 %v3777, %v3817
        %v3819 = vpop.f32.mrb[0].mxu0
        %3820 = vdwg.mxu0
        %3821 = vmatprep.subr.bf16.mxu0 0
        %3822 = vmatpush1.bf16.msra.mxu0 %v3415
        %3823 = vmatprep.subr.bf16.mxu0 0
        %3824 = vmatpush1.bf16.msra.mxu0 %v3416
        %3825 = vmatprep.subr.bf16.mxu0 0
        %3826 = vmatpush1.bf16.msra.mxu0 %v3417
        %3827 = vmatprep.subr.bf16.mxu0 0
        %3828 = vmatpush1.bf16.msra.mxu0 %v3418
        %3829 = vmatprep.subr.bf16.mxu0 0
        %3830 = vmatpush1.bf16.msra.mxu0 %v3419
        %3831 = vmatprep.subr.bf16.mxu0 0
        %3832 = vmatpush1.bf16.msra.mxu0 %v3420
        %3833 = vmatprep.subr.bf16.mxu0 0
        %3834 = vmatpush1.bf16.msra.mxu0 %v3421
        %3835 = vmatprep.subr.bf16.mxu0 0
        %3836 = vmatpush1.bf16.msra.mxu0 %v3422
        %3837 = vmatprep.subr.bf16.mxu0 0
        %3838 = vmatpush1.bf16.msra.mxu0 %v3423
        %3839 = vmatprep.subr.bf16.mxu0 0
        %3840 = vmatpush1.bf16.msra.mxu0 %v3424
        %3841 = vmatprep.subr.bf16.mxu0 0
        %3842 = vmatpush1.bf16.msra.mxu0 %v3425
        %3843 = vmatprep.subr.bf16.mxu0 0
        %3844 = vmatpush1.bf16.msra.mxu0 %v3426
        %3845 = vmatprep.subr.bf16.mxu0 0
        %3846 = vmatpush1.bf16.msra.mxu0 %v3427
        %3847 = vmatprep.subr.bf16.mxu0 0
        %3848 = vmatpush1.bf16.msra.mxu0 %v3428
        %3849 = vmatprep.subr.bf16.mxu0 0
        %3850 = vmatpush1.bf16.msra.mxu0 %v3429
        %3851 = vmatprep.subr.bf16.mxu0 0
        %3852 = vmatpush1.bf16.msra.mxu0 %v3430
        %3853 = vmatprep.mubr.bf16.mxu0 %v2800
        %3854 = vmatmul.mubr.bf16.gmra.mrb[0].mxu0 %v2799
        %v3855 = vpop.f32.mrb[0].mxu0
        %v3856 = vadd.f32 %v3815, %v3855
        %v3857 = vpop.f32.mrb[0].mxu0
        %v3858 = vpop.f32.mrb[0].mxu0
        %v3859 = vadd.f32 %v3818, %v3858
        %v3860 = vpop.f32.mrb[0].mxu0
        %3861 = vdwg.mxu0
        %3862 = vmatprep.subr.bf16.mxu0 0
        %3863 = vmatpush1.bf16.msra.mxu0 %v3431
        %3864 = vmatprep.subr.bf16.mxu0 0
        %3865 = vmatpush1.bf16.msra.mxu0 %v3432
        %3866 = vmatprep.subr.bf16.mxu0 0
        %3867 = vmatpush1.bf16.msra.mxu0 %v3433
        %3868 = vmatprep.subr.bf16.mxu0 0
        %3869 = vmatpush1.bf16.msra.mxu0 %v3434
        %3870 = vmatprep.subr.bf16.mxu0 0
        %3871 = vmatpush1.bf16.msra.mxu0 %v3435
        %3872 = vmatprep.subr.bf16.mxu0 0
        %3873 = vmatpush1.bf16.msra.mxu0 %v3436
        %3874 = vmatprep.subr.bf16.mxu0 0
        %3875 = vmatpush1.bf16.msra.mxu0 %v3437
        %3876 = vmatprep.subr.bf16.mxu0 0
        %3877 = vmatpush1.bf16.msra.mxu0 %v3438
        %3878 = vmatprep.subr.bf16.mxu0 0
        %3879 = vmatpush1.bf16.msra.mxu0 %v3439
        %3880 = vmatprep.subr.bf16.mxu0 0
        %3881 = vmatpush1.bf16.msra.mxu0 %v3440
        %3882 = vmatprep.subr.bf16.mxu0 0
        %3883 = vmatpush1.bf16.msra.mxu0 %v3441
        %3884 = vmatprep.subr.bf16.mxu0 0
        %3885 = vmatpush1.bf16.msra.mxu0 %v3442
        %3886 = vmatprep.subr.bf16.mxu0 0
        %3887 = vmatpush1.bf16.msra.mxu0 %v3443
        %3888 = vmatprep.subr.bf16.mxu0 0
        %3889 = vmatpush1.bf16.msra.mxu0 %v3444
        %3890 = vmatprep.subr.bf16.mxu0 0
        %3891 = vmatpush1.bf16.msra.mxu0 %v3445
        %3892 = vmatprep.subr.bf16.mxu0 0
        %3893 = vmatpush1.bf16.msra.mxu0 %v3446
        %3894 = vmatprep.mubr.bf16.mxu0 %v2802
        %3895 = vmatmul.mubr.bf16.gmra.mrb[0].mxu0 %v2801
        %v3896 = vpop.f32.mrb[0].mxu0
        %v3897 = vadd.f32 %v3856, %v3896
        %v3898 = vpop.f32.mrb[0].mxu0
        %v3899 = vpop.f32.mrb[0].mxu0
        %v3900 = vadd.f32 %v3859, %v3899
        %v3901 = vpop.f32.mrb[0].mxu0
        %3902 = vdwg.mxu0
        %v3903 = vadd.f32 %v2003, %v3897
        %v3904 = vadd.f32 %v2004, %v3900
        %v3905 = vsel %vm927, %v3903, 0.0
        %3906 = vadd.xlane.f32.xlu0 %v3905
        %v3907 = vpop.xlane.xlu0 %3906
        %v3908 = vsel %vm927, %v3904, 0.0
        %3909 = vadd.xlane.f32.xlu0 %v3908
        %v3910 = vpop.xlane.xlu0 %3909
        %v3911 = vmul.f32 %v3907, %v1972
        %v3912 = vmul.f32 %v3910, %v1972
        %v3913 = vsub.f32 %v3903, %v3911
        %v3914 = vsub.f32 %v3904, %v3912
        %v3915 = vmul.f32 %v3913, %v3913
        %v3916 = vmul.f32 %v3914, %v3914
        %v3917 = vsel %vm927, %v3915, 0.0
        %3918 = vadd.xlane.f32.xlu0 %v3917
        %v3919 = vpop.xlane.xlu0 %3918
        %v3920 = vsel %vm927, %v3916, 0.0
        %3921 = vadd.xlane.f32.xlu0 %v3920
        %v3922 = vpop.xlane.xlu0 %3921
        %v3923 = vmul.f32 %v3919, %v1972
        %v3924 = vmul.f32 %v3922, %v1972
        %v3925 = vadd.f32 %v3923, 1e-05
        %v3926 = vadd.f32 %v3924, 1e-05
        %v3927 = vrsqrt.pop %v3925
        %v3928 = vrsqrt.pop %v3926
        %v3929 = vmul.f32 %v3913, %v3927
        %v3930 = vmul.f32 %v3914, %v3928
        %v3931 = vlaneseq
        %v3932 = vshrl.u32 %v3931, 7
        %v3933 = vsub.s32 4, %v3932
        %v3934 = vrot.slane %v874, %v3933
        %v3935 = vmul.f32 %v3929, %v3934
        %v3936 = vmul.f32 %v3930, %v3934
        %v3937 = vlaneseq
        %v3938 = vshrl.u32 %v3937, 7
        %v3939 = vsub.s32 5, %v3938
        %v3940 = vrot.slane %v874, %v3939
        %v3941 = vadd.f32 %v3935, %v3940
        %v3942 = vadd.f32 %v3936, %v3940
        %s3943 = scalar_lea.vmem %s2, 64
        %v3944 = vld [vmem:[%s3943] sm:$0xff]
        %v3945 = vld [vmem:[%s3943 + $0x8] sm:$0xff]
        %v3946 = vld [vmem:[%s3943 + $0x10] sm:$0xff]
        %v3947 = vld [vmem:[%s3943 + $0x18] sm:$0xff]
        %v3948 = vld [vmem:[%s3943 + $0x20] sm:$0xff]
        %v3949 = vld [vmem:[%s3943 + $0x28] sm:$0xff]
        %v3950 = vld [vmem:[%s3943 + $0x30] sm:$0xff]
        %v3951 = vld [vmem:[%s3943 + $0x38] sm:$0xff]
        %s3952 = scalar_lea.vmem %s3, 2
        %v3953 = vld [vmem:[%s3952] sm:$0x3]
        %s3954 = scalar_lea.vmem %s4, 32
        %v3955 = vld [vmem:[%s3954] sm:$0xf]
        %v3956 = vld [vmem:[%s3954 + $0x4] sm:$0xf]
        %v3957 = vld [vmem:[%s3954 + $0x8] sm:$0xf]
        %v3958 = vld [vmem:[%s3954 + $0xc] sm:$0xf]
        %v3959 = vld [vmem:[%s3954 + $0x10] sm:$0xf]
        %v3960 = vld [vmem:[%s3954 + $0x14] sm:$0xf]
        %v3961 = vld [vmem:[%s3954 + $0x18] sm:$0xf]
        %v3962 = vld [vmem:[%s3954 + $0x1c] sm:$0xf]
        %s3963 = scalar_lea.vmem %s5, 512
        %v3964 = vld [vmem:[%s3963] sm:$0xff]
        %v3965 = vld [vmem:[%s3963 + $0x8] sm:$0xff]
        %v3966 = vld [vmem:[%s3963 + $0x10] sm:$0xff]
        %v3967 = vld [vmem:[%s3963 + $0x18] sm:$0xff]
        %v3968 = vld [vmem:[%s3963 + $0x20] sm:$0xff]
        %v3969 = vld [vmem:[%s3963 + $0x28] sm:$0xff]
        %v3970 = vld [vmem:[%s3963 + $0x30] sm:$0xff]
        %v3971 = vld [vmem:[%s3963 + $0x38] sm:$0xff]
        %v3972 = vld [vmem:[%s3963 + $0x40] sm:$0xff]
        %v3973 = vld [vmem:[%s3963 + $0x48] sm:$0xff]
        %v3974 = vld [vmem:[%s3963 + $0x50] sm:$0xff]
        %v3975 = vld [vmem:[%s3963 + $0x58] sm:$0xff]
        %v3976 = vld [vmem:[%s3963 + $0x60] sm:$0xff]
        %v3977 = vld [vmem:[%s3963 + $0x68] sm:$0xff]
        %v3978 = vld [vmem:[%s3963 + $0x70] sm:$0xff]
        %v3979 = vld [vmem:[%s3963 + $0x78] sm:$0xff]
        %v3980 = vld [vmem:[%s3963 + $0x80] sm:$0xff]
        %v3981 = vld [vmem:[%s3963 + $0x88] sm:$0xff]
        %v3982 = vld [vmem:[%s3963 + $0x90] sm:$0xff]
        %v3983 = vld [vmem:[%s3963 + $0x98] sm:$0xff]
        %v3984 = vld [vmem:[%s3963 + $0xa0] sm:$0xff]
        %v3985 = vld [vmem:[%s3963 + $0xa8] sm:$0xff]
        %v3986 = vld [vmem:[%s3963 + $0xb0] sm:$0xff]
        %v3987 = vld [vmem:[%s3963 + $0xb8] sm:$0xff]
        %v3988 = vld [vmem:[%s3963 + $0xc0] sm:$0xff]
        %v3989 = vld [vmem:[%s3963 + $0xc8] sm:$0xff]
        %v3990 = vld [vmem:[%s3963 + $0xd0] sm:$0xff]
        %v3991 = vld [vmem:[%s3963 + $0xd8] sm:$0xff]
        %v3992 = vld [vmem:[%s3963 + $0xe0] sm:$0xff]
        %v3993 = vld [vmem:[%s3963 + $0xe8] sm:$0xff]
        %v3994 = vld [vmem:[%s3963 + $0xf0] sm:$0xff]
        %v3995 = vld [vmem:[%s3963 + $0xf8] sm:$0xff]
        %v3996 = vld [vmem:[%s3963 + $0x100] sm:$0xff]
        %v3997 = vld [vmem:[%s3963 + $0x108] sm:$0xff]
        %v3998 = vld [vmem:[%s3963 + $0x110] sm:$0xff]
        %v3999 = vld [vmem:[%s3963 + $0x118] sm:$0xff]
        %v4000 = vld [vmem:[%s3963 + $0x120] sm:$0xff]
        %v4001 = vld [vmem:[%s3963 + $0x128] sm:$0xff]
        %v4002 = vld [vmem:[%s3963 + $0x130] sm:$0xff]
        %v4003 = vld [vmem:[%s3963 + $0x138] sm:$0xff]
        %v4004 = vld [vmem:[%s3963 + $0x140] sm:$0xff]
        %v4005 = vld [vmem:[%s3963 + $0x148] sm:$0xff]
        %v4006 = vld [vmem:[%s3963 + $0x150] sm:$0xff]
        %v4007 = vld [vmem:[%s3963 + $0x158] sm:$0xff]
        %v4008 = vld [vmem:[%s3963 + $0x160] sm:$0xff]
        %v4009 = vld [vmem:[%s3963 + $0x168] sm:$0xff]
        %v4010 = vld [vmem:[%s3963 + $0x170] sm:$0xff]
        %v4011 = vld [vmem:[%s3963 + $0x178] sm:$0xff]
        %v4012 = vld [vmem:[%s3963 + $0x180] sm:$0xff]
        %v4013 = vld [vmem:[%s3963 + $0x188] sm:$0xff]
        %v4014 = vld [vmem:[%s3963 + $0x190] sm:$0xff]
        %v4015 = vld [vmem:[%s3963 + $0x198] sm:$0xff]
        %v4016 = vld [vmem:[%s3963 + $0x1a0] sm:$0xff]
        %v4017 = vld [vmem:[%s3963 + $0x1a8] sm:$0xff]
        %v4018 = vld [vmem:[%s3963 + $0x1b0] sm:$0xff]
        %v4019 = vld [vmem:[%s3963 + $0x1b8] sm:$0xff]
        %v4020 = vld [vmem:[%s3963 + $0x1c0] sm:$0xff]
        %v4021 = vld [vmem:[%s3963 + $0x1c8] sm:$0xff]
        %v4022 = vld [vmem:[%s3963 + $0x1d0] sm:$0xff]
        %v4023 = vld [vmem:[%s3963 + $0x1d8] sm:$0xff]
        %v4024 = vld [vmem:[%s3963 + $0x1e0] sm:$0xff]
        %v4025 = vld [vmem:[%s3963 + $0x1e8] sm:$0xff]
        %v4026 = vld [vmem:[%s3963 + $0x1f0] sm:$0xff]
        %v4027 = vld [vmem:[%s3963 + $0x1f8] sm:$0xff]
        %s4028 = scalar_lea.vmem %s6, 16
        %v4029 = vld [vmem:[%s4028] sm:$0xff]
        %v4030 = vld [vmem:[%s4028 + $0x8] sm:$0xff]
        %s4031 = scalar_lea.vmem %s7, 1024
        %v4032 = vld [vmem:[%s4031] sm:$0xf]
        %v4033 = vld [vmem:[%s4031 + $0x4] sm:$0xf]
        %v4034 = vld [vmem:[%s4031 + $0x8] sm:$0xf]
        %v4035 = vld [vmem:[%s4031 + $0xc] sm:$0xf]
        %v4036 = vld [vmem:[%s4031 + $0x10] sm:$0xf]
        %v4037 = vld [vmem:[%s4031 + $0x14] sm:$0xf]
        %v4038 = vld [vmem:[%s4031 + $0x18] sm:$0xf]
        %v4039 = vld [vmem:[%s4031 + $0x1c] sm:$0xf]
        %v4040 = vld [vmem:[%s4031 + $0x20] sm:$0xf]
        %v4041 = vld [vmem:[%s4031 + $0x24] sm:$0xf]
        %v4042 = vld [vmem:[%s4031 + $0x28] sm:$0xf]
        %v4043 = vld [vmem:[%s4031 + $0x2c] sm:$0xf]
        %v4044 = vld [vmem:[%s4031 + $0x30] sm:$0xf]
        %v4045 = vld [vmem:[%s4031 + $0x34] sm:$0xf]
        %v4046 = vld [vmem:[%s4031 + $0x38] sm:$0xf]
        %v4047 = vld [vmem:[%s4031 + $0x3c] sm:$0xf]
        %v4048 = vld [vmem:[%s4031 + $0x40] sm:$0xf]
        %v4049 = vld [vmem:[%s4031 + $0x44] sm:$0xf]
        %v4050 = vld [vmem:[%s4031 + $0x48] sm:$0xf]
        %v4051 = vld [vmem:[%s4031 + $0x4c] sm:$0xf]
        %v4052 = vld [vmem:[%s4031 + $0x50] sm:$0xf]
        %v4053 = vld [vmem:[%s4031 + $0x54] sm:$0xf]
        %v4054 = vld [vmem:[%s4031 + $0x58] sm:$0xf]
        %v4055 = vld [vmem:[%s4031 + $0x5c] sm:$0xf]
        %v4056 = vld [vmem:[%s4031 + $0x60] sm:$0xf]
        %v4057 = vld [vmem:[%s4031 + $0x64] sm:$0xf]
        %v4058 = vld [vmem:[%s4031 + $0x68] sm:$0xf]
        %v4059 = vld [vmem:[%s4031 + $0x6c] sm:$0xf]
        %v4060 = vld [vmem:[%s4031 + $0x70] sm:$0xf]
        %v4061 = vld [vmem:[%s4031 + $0x74] sm:$0xf]
        %v4062 = vld [vmem:[%s4031 + $0x78] sm:$0xf]
        %v4063 = vld [vmem:[%s4031 + $0x7c] sm:$0xf]
        %v4064 = vld [vmem:[%s4031 + $0x80] sm:$0xf]
        %v4065 = vld [vmem:[%s4031 + $0x84] sm:$0xf]
        %v4066 = vld [vmem:[%s4031 + $0x88] sm:$0xf]
        %v4067 = vld [vmem:[%s4031 + $0x8c] sm:$0xf]
        %v4068 = vld [vmem:[%s4031 + $0x90] sm:$0xf]
        %v4069 = vld [vmem:[%s4031 + $0x94] sm:$0xf]
        %v4070 = vld [vmem:[%s4031 + $0x98] sm:$0xf]
        %v4071 = vld [vmem:[%s4031 + $0x9c] sm:$0xf]
        %v4072 = vld [vmem:[%s4031 + $0xa0] sm:$0xf]
        %v4073 = vld [vmem:[%s4031 + $0xa4] sm:$0xf]
        %v4074 = vld [vmem:[%s4031 + $0xa8] sm:$0xf]
        %v4075 = vld [vmem:[%s4031 + $0xac] sm:$0xf]
        %v4076 = vld [vmem:[%s4031 + $0xb0] sm:$0xf]
        %v4077 = vld [vmem:[%s4031 + $0xb4] sm:$0xf]
        %v4078 = vld [vmem:[%s4031 + $0xb8] sm:$0xf]
        %v4079 = vld [vmem:[%s4031 + $0xbc] sm:$0xf]
        %v4080 = vld [vmem:[%s4031 + $0xc0] sm:$0xf]
        %v4081 = vld [vmem:[%s4031 + $0xc4] sm:$0xf]
        %v4082 = vld [vmem:[%s4031 + $0xc8] sm:$0xf]
        %v4083 = vld [vmem:[%s4031 + $0xcc] sm:$0xf]
        %v4084 = vld [vmem:[%s4031 + $0xd0] sm:$0xf]
        %v4085 = vld [vmem:[%s4031 + $0xd4] sm:$0xf]
        %v4086 = vld [vmem:[%s4031 + $0xd8] sm:$0xf]
        %v4087 = vld [vmem:[%s4031 + $0xdc] sm:$0xf]
        %v4088 = vld [vmem:[%s4031 + $0xe0] sm:$0xf]
        %v4089 = vld [vmem:[%s4031 + $0xe4] sm:$0xf]
        %v4090 = vld [vmem:[%s4031 + $0xe8] sm:$0xf]
        %v4091 = vld [vmem:[%s4031 + $0xec] sm:$0xf]
        %v4092 = vld [vmem:[%s4031 + $0xf0] sm:$0xf]
        %v4093 = vld [vmem:[%s4031 + $0xf4] sm:$0xf]
        %v4094 = vld [vmem:[%s4031 + $0xf8] sm:$0xf]
        %v4095 = vld [vmem:[%s4031 + $0xfc] sm:$0xf]
        %v4096 = vld [vmem:[%s4031 + $0x100] sm:$0xf]
        %v4097 = vld [vmem:[%s4031 + $0x104] sm:$0xf]
        %v4098 = vld [vmem:[%s4031 + $0x108] sm:$0xf]
        %v4099 = vld [vmem:[%s4031 + $0x10c] sm:$0xf]
        %v4100 = vld [vmem:[%s4031 + $0x110] sm:$0xf]
        %v4101 = vld [vmem:[%s4031 + $0x114] sm:$0xf]
        %v4102 = vld [vmem:[%s4031 + $0x118] sm:$0xf]
        %v4103 = vld [vmem:[%s4031 + $0x11c] sm:$0xf]
        %v4104 = vld [vmem:[%s4031 + $0x120] sm:$0xf]
        %v4105 = vld [vmem:[%s4031 + $0x124] sm:$0xf]
        %v4106 = vld [vmem:[%s4031 + $0x128] sm:$0xf]
        %v4107 = vld [vmem:[%s4031 + $0x12c] sm:$0xf]
        %v4108 = vld [vmem:[%s4031 + $0x130] sm:$0xf]
        %v4109 = vld [vmem:[%s4031 + $0x134] sm:$0xf]
        %v4110 = vld [vmem:[%s4031 + $0x138] sm:$0xf]
        %v4111 = vld [vmem:[%s4031 + $0x13c] sm:$0xf]
        %v4112 = vld [vmem:[%s4031 + $0x140] sm:$0xf]
        %v4113 = vld [vmem:[%s4031 + $0x144] sm:$0xf]
        %v4114 = vld [vmem:[%s4031 + $0x148] sm:$0xf]
        %v4115 = vld [vmem:[%s4031 + $0x14c] sm:$0xf]
        %v4116 = vld [vmem:[%s4031 + $0x150] sm:$0xf]
        %v4117 = vld [vmem:[%s4031 + $0x154] sm:$0xf]
        %v4118 = vld [vmem:[%s4031 + $0x158] sm:$0xf]
        %v4119 = vld [vmem:[%s4031 + $0x15c] sm:$0xf]
        %v4120 = vld [vmem:[%s4031 + $0x160] sm:$0xf]
        %v4121 = vld [vmem:[%s4031 + $0x164] sm:$0xf]
        %v4122 = vld [vmem:[%s4031 + $0x168] sm:$0xf]
        %v4123 = vld [vmem:[%s4031 + $0x16c] sm:$0xf]
        %v4124 = vld [vmem:[%s4031 + $0x170] sm:$0xf]
        %v4125 = vld [vmem:[%s4031 + $0x174] sm:$0xf]
        %v4126 = vld [vmem:[%s4031 + $0x178] sm:$0xf]
        %v4127 = vld [vmem:[%s4031 + $0x17c] sm:$0xf]
        %v4128 = vld [vmem:[%s4031 + $0x180] sm:$0xf]
        %v4129 = vld [vmem:[%s4031 + $0x184] sm:$0xf]
        %v4130 = vld [vmem:[%s4031 + $0x188] sm:$0xf]
        %v4131 = vld [vmem:[%s4031 + $0x18c] sm:$0xf]
        %v4132 = vld [vmem:[%s4031 + $0x190] sm:$0xf]
        %v4133 = vld [vmem:[%s4031 + $0x194] sm:$0xf]
        %v4134 = vld [vmem:[%s4031 + $0x198] sm:$0xf]
        %v4135 = vld [vmem:[%s4031 + $0x19c] sm:$0xf]
        %v4136 = vld [vmem:[%s4031 + $0x1a0] sm:$0xf]
        %v4137 = vld [vmem:[%s4031 + $0x1a4] sm:$0xf]
        %v4138 = vld [vmem:[%s4031 + $0x1a8] sm:$0xf]
        %v4139 = vld [vmem:[%s4031 + $0x1ac] sm:$0xf]
        %v4140 = vld [vmem:[%s4031 + $0x1b0] sm:$0xf]
        %v4141 = vld [vmem:[%s4031 + $0x1b4] sm:$0xf]
        %v4142 = vld [vmem:[%s4031 + $0x1b8] sm:$0xf]
        %v4143 = vld [vmem:[%s4031 + $0x1bc] sm:$0xf]
        %v4144 = vld [vmem:[%s4031 + $0x1c0] sm:$0xf]
        %v4145 = vld [vmem:[%s4031 + $0x1c4] sm:$0xf]
        %v4146 = vld [vmem:[%s4031 + $0x1c8] sm:$0xf]
        %v4147 = vld [vmem:[%s4031 + $0x1cc] sm:$0xf]
        %v4148 = vld [vmem:[%s4031 + $0x1d0] sm:$0xf]
        %v4149 = vld [vmem:[%s4031 + $0x1d4] sm:$0xf]
        %v4150 = vld [vmem:[%s4031 + $0x1d8] sm:$0xf]
        %v4151 = vld [vmem:[%s4031 + $0x1dc] sm:$0xf]
        %v4152 = vld [vmem:[%s4031 + $0x1e0] sm:$0xf]
        %v4153 = vld [vmem:[%s4031 + $0x1e4] sm:$0xf]
        %v4154 = vld [vmem:[%s4031 + $0x1e8] sm:$0xf]
        %v4155 = vld [vmem:[%s4031 + $0x1ec] sm:$0xf]
        %v4156 = vld [vmem:[%s4031 + $0x1f0] sm:$0xf]
        %v4157 = vld [vmem:[%s4031 + $0x1f4] sm:$0xf]
        %v4158 = vld [vmem:[%s4031 + $0x1f8] sm:$0xf]
        %v4159 = vld [vmem:[%s4031 + $0x1fc] sm:$0xf]
        %v4160 = vld [vmem:[%s4031 + $0x200] sm:$0xf]
        %v4161 = vld [vmem:[%s4031 + $0x204] sm:$0xf]
        %v4162 = vld [vmem:[%s4031 + $0x208] sm:$0xf]
        %v4163 = vld [vmem:[%s4031 + $0x20c] sm:$0xf]
        %v4164 = vld [vmem:[%s4031 + $0x210] sm:$0xf]
        %v4165 = vld [vmem:[%s4031 + $0x214] sm:$0xf]
        %v4166 = vld [vmem:[%s4031 + $0x218] sm:$0xf]
        %v4167 = vld [vmem:[%s4031 + $0x21c] sm:$0xf]
        %v4168 = vld [vmem:[%s4031 + $0x220] sm:$0xf]
        %v4169 = vld [vmem:[%s4031 + $0x224] sm:$0xf]
        %v4170 = vld [vmem:[%s4031 + $0x228] sm:$0xf]
        %v4171 = vld [vmem:[%s4031 + $0x22c] sm:$0xf]
        %v4172 = vld [vmem:[%s4031 + $0x230] sm:$0xf]
        %v4173 = vld [vmem:[%s4031 + $0x234] sm:$0xf]
        %v4174 = vld [vmem:[%s4031 + $0x238] sm:$0xf]
        %v4175 = vld [vmem:[%s4031 + $0x23c] sm:$0xf]
        %v4176 = vld [vmem:[%s4031 + $0x240] sm:$0xf]
        %v4177 = vld [vmem:[%s4031 + $0x244] sm:$0xf]
        %v4178 = vld [vmem:[%s4031 + $0x248] sm:$0xf]
        %v4179 = vld [vmem:[%s4031 + $0x24c] sm:$0xf]
        %v4180 = vld [vmem:[%s4031 + $0x250] sm:$0xf]
        %v4181 = vld [vmem:[%s4031 + $0x254] sm:$0xf]
        %v4182 = vld [vmem:[%s4031 + $0x258] sm:$0xf]
        %v4183 = vld [vmem:[%s4031 + $0x25c] sm:$0xf]
        %v4184 = vld [vmem:[%s4031 + $0x260] sm:$0xf]
        %v4185 = vld [vmem:[%s4031 + $0x264] sm:$0xf]
        %v4186 = vld [vmem:[%s4031 + $0x268] sm:$0xf]
        %v4187 = vld [vmem:[%s4031 + $0x26c] sm:$0xf]
        %v4188 = vld [vmem:[%s4031 + $0x270] sm:$0xf]
        %v4189 = vld [vmem:[%s4031 + $0x274] sm:$0xf]
        %v4190 = vld [vmem:[%s4031 + $0x278] sm:$0xf]
        %v4191 = vld [vmem:[%s4031 + $0x27c] sm:$0xf]
        %v4192 = vld [vmem:[%s4031 + $0x280] sm:$0xf]
        %v4193 = vld [vmem:[%s4031 + $0x284] sm:$0xf]
        %v4194 = vld [vmem:[%s4031 + $0x288] sm:$0xf]
        %v4195 = vld [vmem:[%s4031 + $0x28c] sm:$0xf]
        %v4196 = vld [vmem:[%s4031 + $0x290] sm:$0xf]
        %v4197 = vld [vmem:[%s4031 + $0x294] sm:$0xf]
        %v4198 = vld [vmem:[%s4031 + $0x298] sm:$0xf]
        %v4199 = vld [vmem:[%s4031 + $0x29c] sm:$0xf]
        %v4200 = vld [vmem:[%s4031 + $0x2a0] sm:$0xf]
        %v4201 = vld [vmem:[%s4031 + $0x2a4] sm:$0xf]
        %v4202 = vld [vmem:[%s4031 + $0x2a8] sm:$0xf]
        %v4203 = vld [vmem:[%s4031 + $0x2ac] sm:$0xf]
        %v4204 = vld [vmem:[%s4031 + $0x2b0] sm:$0xf]
        %v4205 = vld [vmem:[%s4031 + $0x2b4] sm:$0xf]
        %v4206 = vld [vmem:[%s4031 + $0x2b8] sm:$0xf]
        %v4207 = vld [vmem:[%s4031 + $0x2bc] sm:$0xf]
        %v4208 = vld [vmem:[%s4031 + $0x2c0] sm:$0xf]
        %v4209 = vld [vmem:[%s4031 + $0x2c4] sm:$0xf]
        %v4210 = vld [vmem:[%s4031 + $0x2c8] sm:$0xf]
        %v4211 = vld [vmem:[%s4031 + $0x2cc] sm:$0xf]
        %v4212 = vld [vmem:[%s4031 + $0x2d0] sm:$0xf]
        %v4213 = vld [vmem:[%s4031 + $0x2d4] sm:$0xf]
        %v4214 = vld [vmem:[%s4031 + $0x2d8] sm:$0xf]
        %v4215 = vld [vmem:[%s4031 + $0x2dc] sm:$0xf]
        %v4216 = vld [vmem:[%s4031 + $0x2e0] sm:$0xf]
        %v4217 = vld [vmem:[%s4031 + $0x2e4] sm:$0xf]
        %v4218 = vld [vmem:[%s4031 + $0x2e8] sm:$0xf]
        %v4219 = vld [vmem:[%s4031 + $0x2ec] sm:$0xf]
        %v4220 = vld [vmem:[%s4031 + $0x2f0] sm:$0xf]
        %v4221 = vld [vmem:[%s4031 + $0x2f4] sm:$0xf]
        %v4222 = vld [vmem:[%s4031 + $0x2f8] sm:$0xf]
        %v4223 = vld [vmem:[%s4031 + $0x2fc] sm:$0xf]
        %v4224 = vld [vmem:[%s4031 + $0x300] sm:$0xf]
        %v4225 = vld [vmem:[%s4031 + $0x304] sm:$0xf]
        %v4226 = vld [vmem:[%s4031 + $0x308] sm:$0xf]
        %v4227 = vld [vmem:[%s4031 + $0x30c] sm:$0xf]
        %v4228 = vld [vmem:[%s4031 + $0x310] sm:$0xf]
        %v4229 = vld [vmem:[%s4031 + $0x314] sm:$0xf]
        %v4230 = vld [vmem:[%s4031 + $0x318] sm:$0xf]
        %v4231 = vld [vmem:[%s4031 + $0x31c] sm:$0xf]
        %v4232 = vld [vmem:[%s4031 + $0x320] sm:$0xf]
        %v4233 = vld [vmem:[%s4031 + $0x324] sm:$0xf]
        %v4234 = vld [vmem:[%s4031 + $0x328] sm:$0xf]
        %v4235 = vld [vmem:[%s4031 + $0x32c] sm:$0xf]
        %v4236 = vld [vmem:[%s4031 + $0x330] sm:$0xf]
        %v4237 = vld [vmem:[%s4031 + $0x334] sm:$0xf]
        %v4238 = vld [vmem:[%s4031 + $0x338] sm:$0xf]
        %v4239 = vld [vmem:[%s4031 + $0x33c] sm:$0xf]
        %v4240 = vld [vmem:[%s4031 + $0x340] sm:$0xf]
        %v4241 = vld [vmem:[%s4031 + $0x344] sm:$0xf]
        %v4242 = vld [vmem:[%s4031 + $0x348] sm:$0xf]
        %v4243 = vld [vmem:[%s4031 + $0x34c] sm:$0xf]
        %v4244 = vld [vmem:[%s4031 + $0x350] sm:$0xf]
        %v4245 = vld [vmem:[%s4031 + $0x354] sm:$0xf]
        %v4246 = vld [vmem:[%s4031 + $0x358] sm:$0xf]
        %v4247 = vld [vmem:[%s4031 + $0x35c] sm:$0xf]
        %v4248 = vld [vmem:[%s4031 + $0x360] sm:$0xf]
        %v4249 = vld [vmem:[%s4031 + $0x364] sm:$0xf]
        %v4250 = vld [vmem:[%s4031 + $0x368] sm:$0xf]
        %v4251 = vld [vmem:[%s4031 + $0x36c] sm:$0xf]
        %v4252 = vld [vmem:[%s4031 + $0x370] sm:$0xf]
        %v4253 = vld [vmem:[%s4031 + $0x374] sm:$0xf]
        %v4254 = vld [vmem:[%s4031 + $0x378] sm:$0xf]
        %v4255 = vld [vmem:[%s4031 + $0x37c] sm:$0xf]
        %v4256 = vld [vmem:[%s4031 + $0x380] sm:$0xf]
        %v4257 = vld [vmem:[%s4031 + $0x384] sm:$0xf]
        %v4258 = vld [vmem:[%s4031 + $0x388] sm:$0xf]
        %v4259 = vld [vmem:[%s4031 + $0x38c] sm:$0xf]
        %v4260 = vld [vmem:[%s4031 + $0x390] sm:$0xf]
        %v4261 = vld [vmem:[%s4031 + $0x394] sm:$0xf]
        %v4262 = vld [vmem:[%s4031 + $0x398] sm:$0xf]
        %v4263 = vld [vmem:[%s4031 + $0x39c] sm:$0xf]
        %v4264 = vld [vmem:[%s4031 + $0x3a0] sm:$0xf]
        %v4265 = vld [vmem:[%s4031 + $0x3a4] sm:$0xf]
        %v4266 = vld [vmem:[%s4031 + $0x3a8] sm:$0xf]
        %v4267 = vld [vmem:[%s4031 + $0x3ac] sm:$0xf]
        %v4268 = vld [vmem:[%s4031 + $0x3b0] sm:$0xf]
        %v4269 = vld [vmem:[%s4031 + $0x3b4] sm:$0xf]
        %v4270 = vld [vmem:[%s4031 + $0x3b8] sm:$0xf]
        %v4271 = vld [vmem:[%s4031 + $0x3bc] sm:$0xf]
        %v4272 = vld [vmem:[%s4031 + $0x3c0] sm:$0xf]
        %v4273 = vld [vmem:[%s4031 + $0x3c4] sm:$0xf]
        %v4274 = vld [vmem:[%s4031 + $0x3c8] sm:$0xf]
        %v4275 = vld [vmem:[%s4031 + $0x3cc] sm:$0xf]
        %v4276 = vld [vmem:[%s4031 + $0x3d0] sm:$0xf]
        %v4277 = vld [vmem:[%s4031 + $0x3d4] sm:$0xf]
        %v4278 = vld [vmem:[%s4031 + $0x3d8] sm:$0xf]
        %v4279 = vld [vmem:[%s4031 + $0x3dc] sm:$0xf]
        %v4280 = vld [vmem:[%s4031 + $0x3e0] sm:$0xf]
        %v4281 = vld [vmem:[%s4031 + $0x3e4] sm:$0xf]
        %v4282 = vld [vmem:[%s4031 + $0x3e8] sm:$0xf]
        %v4283 = vld [vmem:[%s4031 + $0x3ec] sm:$0xf]
        %v4284 = vld [vmem:[%s4031 + $0x3f0] sm:$0xf]
        %v4285 = vld [vmem:[%s4031 + $0x3f4] sm:$0xf]
        %v4286 = vld [vmem:[%s4031 + $0x3f8] sm:$0xf]
        %v4287 = vld [vmem:[%s4031 + $0x3fc] sm:$0xf]
        %s4288 = scalar_lea.vmem %s8, 8
        %v4289 = vld [vmem:[%s4288] sm:$0x3f]
        %v4290 = vpack.c.bf16 %v3942, %v3941
        %v4292 = vlaneseq
        %v4293 = vshrl.u32 %v4292, 7
        %v4294 = vsub.s32 0, %v4293
        %v4295 = vrot.slane %v3953, %v4294
        %v4296 = vlaneseq
        %v4297 = vshrl.u32 %v4296, 7
        %v4298 = vsub.s32 1, %v4297
        %v4299 = vrot.slane %v3953, %v4298
        %v4310 = vunpack.c.l.b16 %v3944
        %v4311 = vunpack.c.h.b16 %v3944
        %v4312 = vunpack.c.l.b16 %v3945
        %v4313 = vunpack.c.h.b16 %v3945
        %v4314 = vunpack.c.l.b16 %v3946
        %v4315 = vunpack.c.h.b16 %v3946
        %v4316 = vunpack.c.l.b16 %v3947
        %v4317 = vunpack.c.h.b16 %v3947
        %v4318 = vunpack.c.l.b16 %v3948
        %v4319 = vunpack.c.h.b16 %v3948
        %v4320 = vunpack.c.l.b16 %v3949
        %v4321 = vunpack.c.h.b16 %v3949
        %v4322 = vunpack.c.l.b16 %v3950
        %v4323 = vunpack.c.h.b16 %v3950
        %v4324 = vunpack.c.l.b16 %v3951
        %v4325 = vunpack.c.h.b16 %v3951
        %v4326 = vpack.c.b16 %v4312, %v4310
        %v4327 = vpack.c.b16 %v4313, %v4311
        %v4328 = vpack.c.b16 %v4316, %v4314
        %v4329 = vpack.c.b16 %v4317, %v4315
        %v4330 = vpack.c.b16 %v4320, %v4318
        %v4331 = vpack.c.b16 %v4321, %v4319
        %v4332 = vpack.c.b16 %v4324, %v4322
        %v4333 = vpack.c.b16 %v4325, %v4323
        %v4343 = vsel %vm927, %v4290, 0
        %4345 = vmatprep.subr.bf16.mxu0 %v4327
        %4346 = vmatpush1.bf16.msra.mxu0 %v4326
        %4347 = vmatprep.subr.bf16.mxu0 %v4329
        %4348 = vmatpush1.bf16.msra.mxu0 %v4328
        %4349 = vmatprep.subr.bf16.mxu0 %v4331
        %4350 = vmatpush1.bf16.msra.mxu0 %v4330
        %4351 = vmatprep.subr.bf16.mxu0 %v4333
        %4352 = vmatpush1.bf16.msra.mxu0 %v4332
        %4353 = vmatprep.subr.bf16.mxu0 0
        %4354 = vmatpush1.bf16.msra.mxu0 0
        %4355 = vmatprep.subr.bf16.mxu0 0
        %4356 = vmatpush1.bf16.msra.mxu0 0
        %4357 = vmatprep.subr.bf16.mxu0 0
        %4358 = vmatpush1.bf16.msra.mxu0 0
        %4359 = vmatprep.subr.bf16.mxu0 0
        %4360 = vmatpush1.bf16.msra.mxu0 0
        %4361 = vmatprep.subr.bf16.mxu0 0
        %4362 = vmatpush1.bf16.msra.mxu0 0
        %4363 = vmatprep.subr.bf16.mxu0 0
        %4364 = vmatpush1.bf16.msra.mxu0 0
        %4365 = vmatprep.subr.bf16.mxu0 0
        %4366 = vmatpush1.bf16.msra.mxu0 0
        %4367 = vmatprep.subr.bf16.mxu0 0
        %4368 = vmatpush1.bf16.msra.mxu0 0
        %4369 = vmatprep.subr.bf16.mxu0 0
        %4370 = vmatpush1.bf16.msra.mxu0 0
        %4371 = vmatprep.subr.bf16.mxu0 0
        %4372 = vmatpush1.bf16.msra.mxu0 0
        %4373 = vmatprep.subr.bf16.mxu0 0
        %4374 = vmatpush1.bf16.msra.mxu0 0
        %4375 = vmatprep.subr.bf16.mxu0 0
        %4376 = vmatpush1.bf16.msra.mxu0 0
        %4377 = vmatprep.mubr.bf16.mxu0 0
        %4378 = vmatmul.mubr.bf16.gmra.mrb[0].mxu0 %v4343
        %v4379 = vpop.f32.mrb[0].mxu0
        %v4380 = vadd.f32 %v4295, %v4379
        %v4381 = vpop.f32.mrb[0].mxu0
        %v4382 = vadd.f32 %v4299, %v4381
        %v4383 = vpop.f32.mrb[0].mxu0
        %v4384 = vadd.f32 %v4295, %v4383
        %v4385 = vpop.f32.mrb[0].mxu0
        %v4386 = vadd.f32 %v4299, %v4385
        %4387 = vdwg.mxu0
        %v4388 = vpack.c.bf16 %v4384, %v4380
        %v4390 = vunpack.c.l.b16 %v4388
        %v4391 = vunpack.c.h.b16 %v4388
        %v4392 = vpack.c.b16 %v4390, %v4390
        %v4393 = vpack.c.b16 %v4391, %v4391
        %v4394 = vpack.c.bf16 %v4386, %v4382
        %v4396 = vunpack.c.l.b16 %v4394
        %v4397 = vunpack.c.h.b16 %v4394
        %v4398 = vpack.c.b16 %v4396, %v4396
        %v4399 = vpack.c.b16 %v4397, %v4397
        %4400 = vrot.lane.b32.xlu0 %v4392, 64
        %v4401 = vpop.permute.xlu0 %4400
        %v4403 = vsel %vm988, %v4392, 0
        %v4406 = vsel %vm988, %v4401, 0
        %4408 = vmatprep.subr.bf16.mxu0 0
        %4409 = vmatpush1.bf16.xpose.msra.mxu0 %v4406
        %4410 = vmatprep.subr.bf16.mxu0 0
        %4411 = vmatpush1.bf16.xpose.msra.mxu0 0
        %4412 = vmatprep.subr.bf16.mxu0 0
        %4413 = vmatpush1.bf16.xpose.msra.mxu0 0
        %4414 = vmatprep.subr.bf16.mxu0 0
        %4415 = vmatpush1.bf16.xpose.msra.mxu0 0
        %4416 = vmatprep.subr.bf16.mxu0 0
        %4417 = vmatpush1.bf16.xpose.msra.mxu0 0
        %4418 = vmatprep.subr.bf16.mxu0 0
        %4419 = vmatpush1.bf16.xpose.msra.mxu0 0
        %4420 = vmatprep.subr.bf16.mxu0 0
        %4421 = vmatpush1.bf16.xpose.msra.mxu0 0
        %4422 = vmatprep.subr.bf16.mxu0 0
        %4423 = vmatpush1.bf16.xpose.msra.mxu0 0
        %4424 = vmatprep.subr.bf16.mxu0 0
        %4425 = vmatpush1.bf16.xpose.msra.mxu0 0
        %4426 = vmatprep.subr.bf16.mxu0 0
        %4427 = vmatpush1.bf16.xpose.msra.mxu0 0
        %4428 = vmatprep.subr.bf16.mxu0 0
        %4429 = vmatpush1.bf16.xpose.msra.mxu0 0
        %4430 = vmatprep.subr.bf16.mxu0 0
        %4431 = vmatpush1.bf16.xpose.msra.mxu0 0
        %4432 = vmatprep.subr.bf16.mxu0 0
        %4433 = vmatpush1.bf16.xpose.msra.mxu0 0
        %4434 = vmatprep.subr.bf16.mxu0 0
        %4435 = vmatpush1.bf16.xpose.msra.mxu0 0
        %4436 = vmatprep.subr.bf16.mxu0 0
        %4437 = vmatpush1.bf16.xpose.msra.mxu0 0
        %4438 = vmatprep.subr.bf16.mxu0 0
        %4439 = vmatpush1.bf16.xpose.msra.mxu0 0
        %4440 = vmatprep.mubr.bf16.mxu0 0
        %4441 = vmatmul.mubr.bf16.gmra.mrb[0].mxu0 %v4403
        %v4442 = vpop.f32.mrb[0].mxu0
        %v4443 = vadd.f32 0.0, %v4442
        %v4444 = vpop.f32.mrb[0].mxu0
        %v4445 = vpop.f32.mrb[0].mxu0
        %v4446 = vpop.f32.mrb[0].mxu0
        %4447 = vdwg.mxu0
        %4448 = vrot.lane.b32.xlu0 %v4393, 64
        %v4449 = vpop.permute.xlu0 %4448
        %v4451 = vsel %vm988, %v4393, 0
        %v4454 = vsel %vm988, %v4449, 0
        %4456 = vmatprep.subr.bf16.mxu0 0
        %4457 = vmatpush1.bf16.xpose.msra.mxu0 %v4454
        %4458 = vmatprep.subr.bf16.mxu0 0
        %4459 = vmatpush1.bf16.xpose.msra.mxu0 0
        %4460 = vmatprep.subr.bf16.mxu0 0
        %4461 = vmatpush1.bf16.xpose.msra.mxu0 0
        %4462 = vmatprep.subr.bf16.mxu0 0
        %4463 = vmatpush1.bf16.xpose.msra.mxu0 0
        %4464 = vmatprep.subr.bf16.mxu0 0
        %4465 = vmatpush1.bf16.xpose.msra.mxu0 0
        %4466 = vmatprep.subr.bf16.mxu0 0
        %4467 = vmatpush1.bf16.xpose.msra.mxu0 0
        %4468 = vmatprep.subr.bf16.mxu0 0
        %4469 = vmatpush1.bf16.xpose.msra.mxu0 0
        %4470 = vmatprep.subr.bf16.mxu0 0
        %4471 = vmatpush1.bf16.xpose.msra.mxu0 0
        %4472 = vmatprep.subr.bf16.mxu0 0
        %4473 = vmatpush1.bf16.xpose.msra.mxu0 0
        %4474 = vmatprep.subr.bf16.mxu0 0
        %4475 = vmatpush1.bf16.xpose.msra.mxu0 0
        %4476 = vmatprep.subr.bf16.mxu0 0
        %4477 = vmatpush1.bf16.xpose.msra.mxu0 0
        %4478 = vmatprep.subr.bf16.mxu0 0
        %4479 = vmatpush1.bf16.xpose.msra.mxu0 0
        %4480 = vmatprep.subr.bf16.mxu0 0
        %4481 = vmatpush1.bf16.xpose.msra.mxu0 0
        %4482 = vmatprep.subr.bf16.mxu0 0
        %4483 = vmatpush1.bf16.xpose.msra.mxu0 0
        %4484 = vmatprep.subr.bf16.mxu0 0
        %4485 = vmatpush1.bf16.xpose.msra.mxu0 0
        %4486 = vmatprep.subr.bf16.mxu0 0
        %4487 = vmatpush1.bf16.xpose.msra.mxu0 0
        %4488 = vmatprep.mubr.bf16.mxu0 0
        %4489 = vmatmul.mubr.bf16.gmra.mrb[0].mxu0 %v4451
        %v4490 = vpop.f32.mrb[0].mxu0
        %v4491 = vadd.f32 0.0, %v4490
        %v4492 = vpop.f32.mrb[0].mxu0
        %v4493 = vpop.f32.mrb[0].mxu0
        %v4494 = vpop.f32.mrb[0].mxu0
        %4495 = vdwg.mxu0
        %v4496 = vsel %vm486, %v4443, -inf
        %4497 = vmax.xlane.f32.xlu0 %v4496
        %v4498 = vpop.xlane.xlu0 %4497
        %v4499 = vsel %vm486, %v4491, -inf
        %4500 = vmax.xlane.f32.xlu0 %v4499
        %v4501 = vpop.xlane.xlu0 %4500
        %v4502 = vsub.f32 %v4443, %v4498
        %v4503 = vsub.f32 %v4491, %v4501
        %v4504 = vmul.f32 %v4502, 1.442695
        %v4505 = vpow.pop %v4504
        %v4506 = vmul.f32 %v4503, 1.442695
        %v4507 = vpow.pop %v4506
        %v4508 = vsel %vm486, %v4505, 0.0
        %4509 = vadd.xlane.f32.xlu0 %v4508
        %v4510 = vpop.xlane.xlu0 %4509
        %v4511 = vsel %vm486, %v4507, 0.0
        %4512 = vadd.xlane.f32.xlu0 %v4511
        %v4513 = vpop.xlane.xlu0 %4512
        %v4514 = vrcp.pop %v4510
        %v4515 = vrcp.pop %v4513
        %v4516 = vmul.f32 %v4505, %v4514
        %v4517 = vmul.f32 %v4507, %v4515
        %v4518 = vpack.c.bf16 %v4516, %v4516
        %v4519 = vpack.c.bf16 %v4517, %v4517
        %v4521 = vsel %vm486, %v4518, 0
        %v4524 = vsel %vm490, %v4398, 0
        %4526 = vmatprep.subr.bf16.mxu0 0
        %4527 = vmatpush1.bf16.msra.mxu0 %v4524
        %4528 = vmatprep.subr.bf16.mxu0 0
        %4529 = vmatpush1.bf16.msra.mxu0 0
        %4530 = vmatprep.subr.bf16.mxu0 0
        %4531 = vmatpush1.bf16.msra.mxu0 0
        %4532 = vmatprep.subr.bf16.mxu0 0
        %4533 = vmatpush1.bf16.msra.mxu0 0
        %4534 = vmatprep.subr.bf16.mxu0 0
        %4535 = vmatpush1.bf16.msra.mxu0 0
        %4536 = vmatprep.subr.bf16.mxu0 0
        %4537 = vmatpush1.bf16.msra.mxu0 0
        %4538 = vmatprep.subr.bf16.mxu0 0
        %4539 = vmatpush1.bf16.msra.mxu0 0
        %4540 = vmatprep.subr.bf16.mxu0 0
        %4541 = vmatpush1.bf16.msra.mxu0 0
        %4542 = vmatprep.subr.bf16.mxu0 0
        %4543 = vmatpush1.bf16.msra.mxu0 0
        %4544 = vmatprep.subr.bf16.mxu0 0
        %4545 = vmatpush1.bf16.msra.mxu0 0
        %4546 = vmatprep.subr.bf16.mxu0 0
        %4547 = vmatpush1.bf16.msra.mxu0 0
        %4548 = vmatprep.subr.bf16.mxu0 0
        %4549 = vmatpush1.bf16.msra.mxu0 0
        %4550 = vmatprep.subr.bf16.mxu0 0
        %4551 = vmatpush1.bf16.msra.mxu0 0
        %4552 = vmatprep.subr.bf16.mxu0 0
        %4553 = vmatpush1.bf16.msra.mxu0 0
        %4554 = vmatprep.subr.bf16.mxu0 0
        %4555 = vmatpush1.bf16.msra.mxu0 0
        %4556 = vmatprep.subr.bf16.mxu0 0
        %4557 = vmatpush1.bf16.msra.mxu0 0
        %4558 = vmatprep.mubr.bf16.mxu0 0
        %4559 = vmatmul.mubr.bf16.gmra.mrb[0].mxu0 %v4521
        %v4560 = vpop.f32.mrb[0].mxu0
        %v4561 = vadd.f32 0.0, %v4560
        %v4562 = vpop.f32.mrb[0].mxu0
        %v4563 = vpop.f32.mrb[0].mxu0
        %v4564 = vpop.f32.mrb[0].mxu0
        %4565 = vdwg.mxu0
        %v4567 = vsel %vm486, %v4519, 0
        %v4570 = vsel %vm490, %v4399, 0
        %4572 = vmatprep.subr.bf16.mxu0 0
        %4573 = vmatpush1.bf16.msra.mxu0 %v4570
        %4574 = vmatprep.subr.bf16.mxu0 0
        %4575 = vmatpush1.bf16.msra.mxu0 0
        %4576 = vmatprep.subr.bf16.mxu0 0
        %4577 = vmatpush1.bf16.msra.mxu0 0
        %4578 = vmatprep.subr.bf16.mxu0 0
        %4579 = vmatpush1.bf16.msra.mxu0 0
        %4580 = vmatprep.subr.bf16.mxu0 0
        %4581 = vmatpush1.bf16.msra.mxu0 0
        %4582 = vmatprep.subr.bf16.mxu0 0
        %4583 = vmatpush1.bf16.msra.mxu0 0
        %4584 = vmatprep.subr.bf16.mxu0 0
        %4585 = vmatpush1.bf16.msra.mxu0 0
        %4586 = vmatprep.subr.bf16.mxu0 0
        %4587 = vmatpush1.bf16.msra.mxu0 0
        %4588 = vmatprep.subr.bf16.mxu0 0
        %4589 = vmatpush1.bf16.msra.mxu0 0
        %4590 = vmatprep.subr.bf16.mxu0 0
        %4591 = vmatpush1.bf16.msra.mxu0 0
        %4592 = vmatprep.subr.bf16.mxu0 0
        %4593 = vmatpush1.bf16.msra.mxu0 0
        %4594 = vmatprep.subr.bf16.mxu0 0
        %4595 = vmatpush1.bf16.msra.mxu0 0
        %4596 = vmatprep.subr.bf16.mxu0 0
        %4597 = vmatpush1.bf16.msra.mxu0 0
        %4598 = vmatprep.subr.bf16.mxu0 0
        %4599 = vmatpush1.bf16.msra.mxu0 0
        %4600 = vmatprep.subr.bf16.mxu0 0
        %4601 = vmatpush1.bf16.msra.mxu0 0
        %4602 = vmatprep.subr.bf16.mxu0 0
        %4603 = vmatpush1.bf16.msra.mxu0 0
        %4604 = vmatprep.mubr.bf16.mxu0 0
        %4605 = vmatmul.mubr.bf16.gmra.mrb[0].mxu0 %v4567
        %v4606 = vpop.f32.mrb[0].mxu0
        %v4607 = vadd.f32 0.0, %v4606
        %v4608 = vpop.f32.mrb[0].mxu0
        %v4609 = vpop.f32.mrb[0].mxu0
        %v4610 = vpop.f32.mrb[0].mxu0
        %4611 = vdwg.mxu0
        %4612 = vrot.lane.b32.xlu0 %v4392, 112
        %v4613 = vpop.permute.xlu0 %4612
        %4614 = vrot.lane.b32.xlu0 %v4392, 48
        %v4615 = vpop.permute.xlu0 %4614
        %v4617 = vsel %vm988, %v4613, 0
        %v4620 = vsel %vm988, %v4615, 0
        %4622 = vmatprep.subr.bf16.mxu0 0
        %4623 = vmatpush1.bf16.xpose.msra.mxu0 %v4620
        %4624 = vmatprep.subr.bf16.mxu0 0
        %4625 = vmatpush1.bf16.xpose.msra.mxu0 0
        %4626 = vmatprep.subr.bf16.mxu0 0
        %4627 = vmatpush1.bf16.xpose.msra.mxu0 0
        %4628 = vmatprep.subr.bf16.mxu0 0
        %4629 = vmatpush1.bf16.xpose.msra.mxu0 0
        %4630 = vmatprep.subr.bf16.mxu0 0
        %4631 = vmatpush1.bf16.xpose.msra.mxu0 0
        %4632 = vmatprep.subr.bf16.mxu0 0
        %4633 = vmatpush1.bf16.xpose.msra.mxu0 0
        %4634 = vmatprep.subr.bf16.mxu0 0
        %4635 = vmatpush1.bf16.xpose.msra.mxu0 0
        %4636 = vmatprep.subr.bf16.mxu0 0
        %4637 = vmatpush1.bf16.xpose.msra.mxu0 0
        %4638 = vmatprep.subr.bf16.mxu0 0
        %4639 = vmatpush1.bf16.xpose.msra.mxu0 0
        %4640 = vmatprep.subr.bf16.mxu0 0
        %4641 = vmatpush1.bf16.xpose.msra.mxu0 0
        %4642 = vmatprep.subr.bf16.mxu0 0
        %4643 = vmatpush1.bf16.xpose.msra.mxu0 0
        %4644 = vmatprep.subr.bf16.mxu0 0
        %4645 = vmatpush1.bf16.xpose.msra.mxu0 0
        %4646 = vmatprep.subr.bf16.mxu0 0
        %4647 = vmatpush1.bf16.xpose.msra.mxu0 0
        %4648 = vmatprep.subr.bf16.mxu0 0
        %4649 = vmatpush1.bf16.xpose.msra.mxu0 0
        %4650 = vmatprep.subr.bf16.mxu0 0
        %4651 = vmatpush1.bf16.xpose.msra.mxu0 0
        %4652 = vmatprep.subr.bf16.mxu0 0
        %4653 = vmatpush1.bf16.xpose.msra.mxu0 0
        %4654 = vmatprep.mubr.bf16.mxu0 0
        %4655 = vmatmul.mubr.bf16.gmra.mrb[0].mxu0 %v4617
        %v4656 = vpop.f32.mrb[0].mxu0
        %v4657 = vadd.f32 0.0, %v4656
        %v4658 = vpop.f32.mrb[0].mxu0
        %v4659 = vpop.f32.mrb[0].mxu0
        %v4660 = vpop.f32.mrb[0].mxu0
        %4661 = vdwg.mxu0
        %4662 = vrot.lane.b32.xlu0 %v4393, 112
        %v4663 = vpop.permute.xlu0 %4662
        %4664 = vrot.lane.b32.xlu0 %v4393, 48
        %v4665 = vpop.permute.xlu0 %4664
        %v4667 = vsel %vm988, %v4663, 0
        %v4670 = vsel %vm988, %v4665, 0
        %4672 = vmatprep.subr.bf16.mxu0 0
        %4673 = vmatpush1.bf16.xpose.msra.mxu0 %v4670
        %4674 = vmatprep.subr.bf16.mxu0 0
        %4675 = vmatpush1.bf16.xpose.msra.mxu0 0
        %4676 = vmatprep.subr.bf16.mxu0 0
        %4677 = vmatpush1.bf16.xpose.msra.mxu0 0
        %4678 = vmatprep.subr.bf16.mxu0 0
        %4679 = vmatpush1.bf16.xpose.msra.mxu0 0
        %4680 = vmatprep.subr.bf16.mxu0 0
        %4681 = vmatpush1.bf16.xpose.msra.mxu0 0
        %4682 = vmatprep.subr.bf16.mxu0 0
        %4683 = vmatpush1.bf16.xpose.msra.mxu0 0
        %4684 = vmatprep.subr.bf16.mxu0 0
        %4685 = vmatpush1.bf16.xpose.msra.mxu0 0
        %4686 = vmatprep.subr.bf16.mxu0 0
        %4687 = vmatpush1.bf16.xpose.msra.mxu0 0
        %4688 = vmatprep.subr.bf16.mxu0 0
        %4689 = vmatpush1.bf16.xpose.msra.mxu0 0
        %4690 = vmatprep.subr.bf16.mxu0 0
        %4691 = vmatpush1.bf16.xpose.msra.mxu0 0
        %4692 = vmatprep.subr.bf16.mxu0 0
        %4693 = vmatpush1.bf16.xpose.msra.mxu0 0
        %4694 = vmatprep.subr.bf16.mxu0 0
        %4695 = vmatpush1.bf16.xpose.msra.mxu0 0
        %4696 = vmatprep.subr.bf16.mxu0 0
        %4697 = vmatpush1.bf16.xpose.msra.mxu0 0
        %4698 = vmatprep.subr.bf16.mxu0 0
        %4699 = vmatpush1.bf16.xpose.msra.mxu0 0
        %4700 = vmatprep.subr.bf16.mxu0 0
        %4701 = vmatpush1.bf16.xpose.msra.mxu0 0
        %4702 = vmatprep.subr.bf16.mxu0 0
        %4703 = vmatpush1.bf16.xpose.msra.mxu0 0
        %4704 = vmatprep.mubr.bf16.mxu0 0
        %4705 = vmatmul.mubr.bf16.gmra.mrb[0].mxu0 %v4667
        %v4706 = vpop.f32.mrb[0].mxu0
        %v4707 = vadd.f32 0.0, %v4706
        %v4708 = vpop.f32.mrb[0].mxu0
        %v4709 = vpop.f32.mrb[0].mxu0
        %v4710 = vpop.f32.mrb[0].mxu0
        %4711 = vdwg.mxu0
        %v4712 = vsel %vm486, %v4657, -inf
        %4713 = vmax.xlane.f32.xlu0 %v4712
        %v4714 = vpop.xlane.xlu0 %4713
        %v4715 = vsel %vm486, %v4707, -inf
        %4716 = vmax.xlane.f32.xlu0 %v4715
        %v4717 = vpop.xlane.xlu0 %4716
        %v4718 = vsub.f32 %v4657, %v4714
        %v4719 = vsub.f32 %v4707, %v4717
        %v4720 = vmul.f32 %v4718, 1.442695
        %v4721 = vpow.pop %v4720
        %v4722 = vmul.f32 %v4719, 1.442695
        %v4723 = vpow.pop %v4722
        %v4724 = vsel %vm486, %v4721, 0.0
        %4725 = vadd.xlane.f32.xlu0 %v4724
        %v4726 = vpop.xlane.xlu0 %4725
        %v4727 = vsel %vm486, %v4723, 0.0
        %4728 = vadd.xlane.f32.xlu0 %v4727
        %v4729 = vpop.xlane.xlu0 %4728
        %v4730 = vrcp.pop %v4726
        %v4731 = vrcp.pop %v4729
        %v4732 = vmul.f32 %v4721, %v4730
        %v4733 = vmul.f32 %v4723, %v4731
        %v4734 = vpack.c.bf16 %v4732, %v4732
        %v4735 = vpack.c.bf16 %v4733, %v4733
        %4736 = vrot.lane.b32.xlu0 %v4398, 112
        %v4737 = vpop.permute.xlu0 %4736
        %v4739 = vsel %vm486, %v4734, 0
        %v4742 = vsel %vm490, %v4737, 0
        %4744 = vmatprep.subr.bf16.mxu0 0
        %4745 = vmatpush1.bf16.msra.mxu0 %v4742
        %4746 = vmatprep.subr.bf16.mxu0 0
        %4747 = vmatpush1.bf16.msra.mxu0 0
        %4748 = vmatprep.subr.bf16.mxu0 0
        %4749 = vmatpush1.bf16.msra.mxu0 0
        %4750 = vmatprep.subr.bf16.mxu0 0
        %4751 = vmatpush1.bf16.msra.mxu0 0
        %4752 = vmatprep.subr.bf16.mxu0 0
        %4753 = vmatpush1.bf16.msra.mxu0 0
        %4754 = vmatprep.subr.bf16.mxu0 0
        %4755 = vmatpush1.bf16.msra.mxu0 0
        %4756 = vmatprep.subr.bf16.mxu0 0
        %4757 = vmatpush1.bf16.msra.mxu0 0
        %4758 = vmatprep.subr.bf16.mxu0 0
        %4759 = vmatpush1.bf16.msra.mxu0 0
        %4760 = vmatprep.subr.bf16.mxu0 0
        %4761 = vmatpush1.bf16.msra.mxu0 0
        %4762 = vmatprep.subr.bf16.mxu0 0
        %4763 = vmatpush1.bf16.msra.mxu0 0
        %4764 = vmatprep.subr.bf16.mxu0 0
        %4765 = vmatpush1.bf16.msra.mxu0 0
        %4766 = vmatprep.subr.bf16.mxu0 0
        %4767 = vmatpush1.bf16.msra.mxu0 0
        %4768 = vmatprep.subr.bf16.mxu0 0
        %4769 = vmatpush1.bf16.msra.mxu0 0
        %4770 = vmatprep.subr.bf16.mxu0 0
        %4771 = vmatpush1.bf16.msra.mxu0 0
        %4772 = vmatprep.subr.bf16.mxu0 0
        %4773 = vmatpush1.bf16.msra.mxu0 0
        %4774 = vmatprep.subr.bf16.mxu0 0
        %4775 = vmatpush1.bf16.msra.mxu0 0
        %4776 = vmatprep.mubr.bf16.mxu0 0
        %4777 = vmatmul.mubr.bf16.gmra.mrb[0].mxu0 %v4739
        %v4778 = vpop.f32.mrb[0].mxu0
        %v4779 = vadd.f32 0.0, %v4778
        %v4780 = vpop.f32.mrb[0].mxu0
        %v4781 = vpop.f32.mrb[0].mxu0
        %v4782 = vpop.f32.mrb[0].mxu0
        %4783 = vdwg.mxu0
        %4784 = vrot.lane.b32.xlu0 %v4399, 112
        %v4785 = vpop.permute.xlu0 %4784
        %v4787 = vsel %vm486, %v4735, 0
        %v4790 = vsel %vm490, %v4785, 0
        %4792 = vmatprep.subr.bf16.mxu0 0
        %4793 = vmatpush1.bf16.msra.mxu0 %v4790
        %4794 = vmatprep.subr.bf16.mxu0 0
        %4795 = vmatpush1.bf16.msra.mxu0 0
        %4796 = vmatprep.subr.bf16.mxu0 0
        %4797 = vmatpush1.bf16.msra.mxu0 0
        %4798 = vmatprep.subr.bf16.mxu0 0
        %4799 = vmatpush1.bf16.msra.mxu0 0
        %4800 = vmatprep.subr.bf16.mxu0 0
        %4801 = vmatpush1.bf16.msra.mxu0 0
        %4802 = vmatprep.subr.bf16.mxu0 0
        %4803 = vmatpush1.bf16.msra.mxu0 0
        %4804 = vmatprep.subr.bf16.mxu0 0
        %4805 = vmatpush1.bf16.msra.mxu0 0
        %4806 = vmatprep.subr.bf16.mxu0 0
        %4807 = vmatpush1.bf16.msra.mxu0 0
        %4808 = vmatprep.subr.bf16.mxu0 0
        %4809 = vmatpush1.bf16.msra.mxu0 0
        %4810 = vmatprep.subr.bf16.mxu0 0
        %4811 = vmatpush1.bf16.msra.mxu0 0
        %4812 = vmatprep.subr.bf16.mxu0 0
        %4813 = vmatpush1.bf16.msra.mxu0 0
        %4814 = vmatprep.subr.bf16.mxu0 0
        %4815 = vmatpush1.bf16.msra.mxu0 0
        %4816 = vmatprep.subr.bf16.mxu0 0
        %4817 = vmatpush1.bf16.msra.mxu0 0
        %4818 = vmatprep.subr.bf16.mxu0 0
        %4819 = vmatpush1.bf16.msra.mxu0 0
        %4820 = vmatprep.subr.bf16.mxu0 0
        %4821 = vmatpush1.bf16.msra.mxu0 0
        %4822 = vmatprep.subr.bf16.mxu0 0
        %4823 = vmatpush1.bf16.msra.mxu0 0
        %4824 = vmatprep.mubr.bf16.mxu0 0
        %4825 = vmatmul.mubr.bf16.gmra.mrb[0].mxu0 %v4787
        %v4826 = vpop.f32.mrb[0].mxu0
        %v4827 = vadd.f32 0.0, %v4826
        %v4828 = vpop.f32.mrb[0].mxu0
        %v4829 = vpop.f32.mrb[0].mxu0
        %v4830 = vpop.f32.mrb[0].mxu0
        %4831 = vdwg.mxu0
        %4832 = vrot.lane.b32.xlu0 %v4392, 96
        %v4833 = vpop.permute.xlu0 %4832
        %4834 = vrot.lane.b32.xlu0 %v4392, 32
        %v4835 = vpop.permute.xlu0 %4834
        %v4837 = vsel %vm988, %v4833, 0
        %v4840 = vsel %vm988, %v4835, 0
        %4842 = vmatprep.subr.bf16.mxu0 0
        %4843 = vmatpush1.bf16.xpose.msra.mxu0 %v4840
        %4844 = vmatprep.subr.bf16.mxu0 0
        %4845 = vmatpush1.bf16.xpose.msra.mxu0 0
        %4846 = vmatprep.subr.bf16.mxu0 0
        %4847 = vmatpush1.bf16.xpose.msra.mxu0 0
        %4848 = vmatprep.subr.bf16.mxu0 0
        %4849 = vmatpush1.bf16.xpose.msra.mxu0 0
        %4850 = vmatprep.subr.bf16.mxu0 0
        %4851 = vmatpush1.bf16.xpose.msra.mxu0 0
        %4852 = vmatprep.subr.bf16.mxu0 0
        %4853 = vmatpush1.bf16.xpose.msra.mxu0 0
        %4854 = vmatprep.subr.bf16.mxu0 0
        %4855 = vmatpush1.bf16.xpose.msra.mxu0 0
        %4856 = vmatprep.subr.bf16.mxu0 0
        %4857 = vmatpush1.bf16.xpose.msra.mxu0 0
        %4858 = vmatprep.subr.bf16.mxu0 0
        %4859 = vmatpush1.bf16.xpose.msra.mxu0 0
        %4860 = vmatprep.subr.bf16.mxu0 0
        %4861 = vmatpush1.bf16.xpose.msra.mxu0 0
        %4862 = vmatprep.subr.bf16.mxu0 0
        %4863 = vmatpush1.bf16.xpose.msra.mxu0 0
        %4864 = vmatprep.subr.bf16.mxu0 0
        %4865 = vmatpush1.bf16.xpose.msra.mxu0 0
        %4866 = vmatprep.subr.bf16.mxu0 0
        %4867 = vmatpush1.bf16.xpose.msra.mxu0 0
        %4868 = vmatprep.subr.bf16.mxu0 0
        %4869 = vmatpush1.bf16.xpose.msra.mxu0 0
        %4870 = vmatprep.subr.bf16.mxu0 0
        %4871 = vmatpush1.bf16.xpose.msra.mxu0 0
        %4872 = vmatprep.subr.bf16.mxu0 0
        %4873 = vmatpush1.bf16.xpose.msra.mxu0 0
        %4874 = vmatprep.mubr.bf16.mxu0 0
        %4875 = vmatmul.mubr.bf16.gmra.mrb[0].mxu0 %v4837
        %v4876 = vpop.f32.mrb[0].mxu0
        %v4877 = vadd.f32 0.0, %v4876
        %v4878 = vpop.f32.mrb[0].mxu0
        %v4879 = vpop.f32.mrb[0].mxu0
        %v4880 = vpop.f32.mrb[0].mxu0
        %4881 = vdwg.mxu0
        %4882 = vrot.lane.b32.xlu0 %v4393, 96
        %v4883 = vpop.permute.xlu0 %4882
        %4884 = vrot.lane.b32.xlu0 %v4393, 32
        %v4885 = vpop.permute.xlu0 %4884
        %v4887 = vsel %vm988, %v4883, 0
        %v4890 = vsel %vm988, %v4885, 0
        %4892 = vmatprep.subr.bf16.mxu0 0
        %4893 = vmatpush1.bf16.xpose.msra.mxu0 %v4890
        %4894 = vmatprep.subr.bf16.mxu0 0
        %4895 = vmatpush1.bf16.xpose.msra.mxu0 0
        %4896 = vmatprep.subr.bf16.mxu0 0
        %4897 = vmatpush1.bf16.xpose.msra.mxu0 0
        %4898 = vmatprep.subr.bf16.mxu0 0
        %4899 = vmatpush1.bf16.xpose.msra.mxu0 0
        %4900 = vmatprep.subr.bf16.mxu0 0
        %4901 = vmatpush1.bf16.xpose.msra.mxu0 0
        %4902 = vmatprep.subr.bf16.mxu0 0
        %4903 = vmatpush1.bf16.xpose.msra.mxu0 0
        %4904 = vmatprep.subr.bf16.mxu0 0
        %4905 = vmatpush1.bf16.xpose.msra.mxu0 0
        %4906 = vmatprep.subr.bf16.mxu0 0
        %4907 = vmatpush1.bf16.xpose.msra.mxu0 0
        %4908 = vmatprep.subr.bf16.mxu0 0
        %4909 = vmatpush1.bf16.xpose.msra.mxu0 0
        %4910 = vmatprep.subr.bf16.mxu0 0
        %4911 = vmatpush1.bf16.xpose.msra.mxu0 0
        %4912 = vmatprep.subr.bf16.mxu0 0
        %4913 = vmatpush1.bf16.xpose.msra.mxu0 0
        %4914 = vmatprep.subr.bf16.mxu0 0
        %4915 = vmatpush1.bf16.xpose.msra.mxu0 0
        %4916 = vmatprep.subr.bf16.mxu0 0
        %4917 = vmatpush1.bf16.xpose.msra.mxu0 0
        %4918 = vmatprep.subr.bf16.mxu0 0
        %4919 = vmatpush1.bf16.xpose.msra.mxu0 0
        %4920 = vmatprep.subr.bf16.mxu0 0
        %4921 = vmatpush1.bf16.xpose.msra.mxu0 0
        %4922 = vmatprep.subr.bf16.mxu0 0
        %4923 = vmatpush1.bf16.xpose.msra.mxu0 0
        %4924 = vmatprep.mubr.bf16.mxu0 0
        %4925 = vmatmul.mubr.bf16.gmra.mrb[0].mxu0 %v4887
        %v4926 = vpop.f32.mrb[0].mxu0
        %v4927 = vadd.f32 0.0, %v4926
        %v4928 = vpop.f32.mrb[0].mxu0
        %v4929 = vpop.f32.mrb[0].mxu0
        %v4930 = vpop.f32.mrb[0].mxu0
        %4931 = vdwg.mxu0
        %v4932 = vsel %vm486, %v4877, -inf
        %4933 = vmax.xlane.f32.xlu0 %v4932
        %v4934 = vpop.xlane.xlu0 %4933
        %v4935 = vsel %vm486, %v4927, -inf
        %4936 = vmax.xlane.f32.xlu0 %v4935
        %v4937 = vpop.xlane.xlu0 %4936
        %v4938 = vsub.f32 %v4877, %v4934
        %v4939 = vsub.f32 %v4927, %v4937
        %v4940 = vmul.f32 %v4938, 1.442695
        %v4941 = vpow.pop %v4940
        %v4942 = vmul.f32 %v4939, 1.442695
        %v4943 = vpow.pop %v4942
        %v4944 = vsel %vm486, %v4941, 0.0
        %4945 = vadd.xlane.f32.xlu0 %v4944
        %v4946 = vpop.xlane.xlu0 %4945
        %v4947 = vsel %vm486, %v4943, 0.0
        %4948 = vadd.xlane.f32.xlu0 %v4947
        %v4949 = vpop.xlane.xlu0 %4948
        %v4950 = vrcp.pop %v4946
        %v4951 = vrcp.pop %v4949
        %v4952 = vmul.f32 %v4941, %v4950
        %v4953 = vmul.f32 %v4943, %v4951
        %v4954 = vpack.c.bf16 %v4952, %v4952
        %v4955 = vpack.c.bf16 %v4953, %v4953
        %4956 = vrot.lane.b32.xlu0 %v4398, 96
        %v4957 = vpop.permute.xlu0 %4956
        %v4959 = vsel %vm486, %v4954, 0
        %v4962 = vsel %vm490, %v4957, 0
        %4964 = vmatprep.subr.bf16.mxu0 0
        %4965 = vmatpush1.bf16.msra.mxu0 %v4962
        %4966 = vmatprep.subr.bf16.mxu0 0
        %4967 = vmatpush1.bf16.msra.mxu0 0
        %4968 = vmatprep.subr.bf16.mxu0 0
        %4969 = vmatpush1.bf16.msra.mxu0 0
        %4970 = vmatprep.subr.bf16.mxu0 0
        %4971 = vmatpush1.bf16.msra.mxu0 0
        %4972 = vmatprep.subr.bf16.mxu0 0
        %4973 = vmatpush1.bf16.msra.mxu0 0
        %4974 = vmatprep.subr.bf16.mxu0 0
        %4975 = vmatpush1.bf16.msra.mxu0 0
        %4976 = vmatprep.subr.bf16.mxu0 0
        %4977 = vmatpush1.bf16.msra.mxu0 0
        %4978 = vmatprep.subr.bf16.mxu0 0
        %4979 = vmatpush1.bf16.msra.mxu0 0
        %4980 = vmatprep.subr.bf16.mxu0 0
        %4981 = vmatpush1.bf16.msra.mxu0 0
        %4982 = vmatprep.subr.bf16.mxu0 0
        %4983 = vmatpush1.bf16.msra.mxu0 0
        %4984 = vmatprep.subr.bf16.mxu0 0
        %4985 = vmatpush1.bf16.msra.mxu0 0
        %4986 = vmatprep.subr.bf16.mxu0 0
        %4987 = vmatpush1.bf16.msra.mxu0 0
        %4988 = vmatprep.subr.bf16.mxu0 0
        %4989 = vmatpush1.bf16.msra.mxu0 0
        %4990 = vmatprep.subr.bf16.mxu0 0
        %4991 = vmatpush1.bf16.msra.mxu0 0
        %4992 = vmatprep.subr.bf16.mxu0 0
        %4993 = vmatpush1.bf16.msra.mxu0 0
        %4994 = vmatprep.subr.bf16.mxu0 0
        %4995 = vmatpush1.bf16.msra.mxu0 0
        %4996 = vmatprep.mubr.bf16.mxu0 0
        %4997 = vmatmul.mubr.bf16.gmra.mrb[0].mxu0 %v4959
        %v4998 = vpop.f32.mrb[0].mxu0
        %v4999 = vadd.f32 0.0, %v4998
        %v5000 = vpop.f32.mrb[0].mxu0
        %v5001 = vpop.f32.mrb[0].mxu0
        %v5002 = vpop.f32.mrb[0].mxu0
        %5003 = vdwg.mxu0
        %5004 = vrot.lane.b32.xlu0 %v4399, 96
        %v5005 = vpop.permute.xlu0 %5004
        %v5007 = vsel %vm486, %v4955, 0
        %v5010 = vsel %vm490, %v5005, 0
        %5012 = vmatprep.subr.bf16.mxu0 0
        %5013 = vmatpush1.bf16.msra.mxu0 %v5010
        %5014 = vmatprep.subr.bf16.mxu0 0
        %5015 = vmatpush1.bf16.msra.mxu0 0
        %5016 = vmatprep.subr.bf16.mxu0 0
        %5017 = vmatpush1.bf16.msra.mxu0 0
        %5018 = vmatprep.subr.bf16.mxu0 0
        %5019 = vmatpush1.bf16.msra.mxu0 0
        %5020 = vmatprep.subr.bf16.mxu0 0
        %5021 = vmatpush1.bf16.msra.mxu0 0
        %5022 = vmatprep.subr.bf16.mxu0 0
        %5023 = vmatpush1.bf16.msra.mxu0 0
        %5024 = vmatprep.subr.bf16.mxu0 0
        %5025 = vmatpush1.bf16.msra.mxu0 0
        %5026 = vmatprep.subr.bf16.mxu0 0
        %5027 = vmatpush1.bf16.msra.mxu0 0
        %5028 = vmatprep.subr.bf16.mxu0 0
        %5029 = vmatpush1.bf16.msra.mxu0 0
        %5030 = vmatprep.subr.bf16.mxu0 0
        %5031 = vmatpush1.bf16.msra.mxu0 0
        %5032 = vmatprep.subr.bf16.mxu0 0
        %5033 = vmatpush1.bf16.msra.mxu0 0
        %5034 = vmatprep.subr.bf16.mxu0 0
        %5035 = vmatpush1.bf16.msra.mxu0 0
        %5036 = vmatprep.subr.bf16.mxu0 0
        %5037 = vmatpush1.bf16.msra.mxu0 0
        %5038 = vmatprep.subr.bf16.mxu0 0
        %5039 = vmatpush1.bf16.msra.mxu0 0
        %5040 = vmatprep.subr.bf16.mxu0 0
        %5041 = vmatpush1.bf16.msra.mxu0 0
        %5042 = vmatprep.subr.bf16.mxu0 0
        %5043 = vmatpush1.bf16.msra.mxu0 0
        %5044 = vmatprep.mubr.bf16.mxu0 0
        %5045 = vmatmul.mubr.bf16.gmra.mrb[0].mxu0 %v5007
        %v5046 = vpop.f32.mrb[0].mxu0
        %v5047 = vadd.f32 0.0, %v5046
        %v5048 = vpop.f32.mrb[0].mxu0
        %v5049 = vpop.f32.mrb[0].mxu0
        %v5050 = vpop.f32.mrb[0].mxu0
        %5051 = vdwg.mxu0
        %5052 = vrot.lane.b32.xlu0 %v4392, 80
        %v5053 = vpop.permute.xlu0 %5052
        %5054 = vrot.lane.b32.xlu0 %v4392, 16
        %v5055 = vpop.permute.xlu0 %5054
        %v5057 = vsel %vm988, %v5053, 0
        %v5060 = vsel %vm988, %v5055, 0
        %5062 = vmatprep.subr.bf16.mxu0 0
        %5063 = vmatpush1.bf16.xpose.msra.mxu0 %v5060
        %5064 = vmatprep.subr.bf16.mxu0 0
        %5065 = vmatpush1.bf16.xpose.msra.mxu0 0
        %5066 = vmatprep.subr.bf16.mxu0 0
        %5067 = vmatpush1.bf16.xpose.msra.mxu0 0
        %5068 = vmatprep.subr.bf16.mxu0 0
        %5069 = vmatpush1.bf16.xpose.msra.mxu0 0
        %5070 = vmatprep.subr.bf16.mxu0 0
        %5071 = vmatpush1.bf16.xpose.msra.mxu0 0
        %5072 = vmatprep.subr.bf16.mxu0 0
        %5073 = vmatpush1.bf16.xpose.msra.mxu0 0
        %5074 = vmatprep.subr.bf16.mxu0 0
        %5075 = vmatpush1.bf16.xpose.msra.mxu0 0
        %5076 = vmatprep.subr.bf16.mxu0 0
        %5077 = vmatpush1.bf16.xpose.msra.mxu0 0
        %5078 = vmatprep.subr.bf16.mxu0 0
        %5079 = vmatpush1.bf16.xpose.msra.mxu0 0
        %5080 = vmatprep.subr.bf16.mxu0 0
        %5081 = vmatpush1.bf16.xpose.msra.mxu0 0
        %5082 = vmatprep.subr.bf16.mxu0 0
        %5083 = vmatpush1.bf16.xpose.msra.mxu0 0
        %5084 = vmatprep.subr.bf16.mxu0 0
        %5085 = vmatpush1.bf16.xpose.msra.mxu0 0
        %5086 = vmatprep.subr.bf16.mxu0 0
        %5087 = vmatpush1.bf16.xpose.msra.mxu0 0
        %5088 = vmatprep.subr.bf16.mxu0 0
        %5089 = vmatpush1.bf16.xpose.msra.mxu0 0
        %5090 = vmatprep.subr.bf16.mxu0 0
        %5091 = vmatpush1.bf16.xpose.msra.mxu0 0
        %5092 = vmatprep.subr.bf16.mxu0 0
        %5093 = vmatpush1.bf16.xpose.msra.mxu0 0
        %5094 = vmatprep.mubr.bf16.mxu0 0
        %5095 = vmatmul.mubr.bf16.gmra.mrb[0].mxu0 %v5057
        %v5096 = vpop.f32.mrb[0].mxu0
        %v5097 = vadd.f32 0.0, %v5096
        %v5098 = vpop.f32.mrb[0].mxu0
        %v5099 = vpop.f32.mrb[0].mxu0
        %v5100 = vpop.f32.mrb[0].mxu0
        %5101 = vdwg.mxu0
        %5102 = vrot.lane.b32.xlu0 %v4393, 80
        %v5103 = vpop.permute.xlu0 %5102
        %5104 = vrot.lane.b32.xlu0 %v4393, 16
        %v5105 = vpop.permute.xlu0 %5104
        %v5107 = vsel %vm988, %v5103, 0
        %v5110 = vsel %vm988, %v5105, 0
        %5112 = vmatprep.subr.bf16.mxu0 0
        %5113 = vmatpush1.bf16.xpose.msra.mxu0 %v5110
        %5114 = vmatprep.subr.bf16.mxu0 0
        %5115 = vmatpush1.bf16.xpose.msra.mxu0 0
        %5116 = vmatprep.subr.bf16.mxu0 0
        %5117 = vmatpush1.bf16.xpose.msra.mxu0 0
        %5118 = vmatprep.subr.bf16.mxu0 0
        %5119 = vmatpush1.bf16.xpose.msra.mxu0 0
        %5120 = vmatprep.subr.bf16.mxu0 0
        %5121 = vmatpush1.bf16.xpose.msra.mxu0 0
        %5122 = vmatprep.subr.bf16.mxu0 0
        %5123 = vmatpush1.bf16.xpose.msra.mxu0 0
        %5124 = vmatprep.subr.bf16.mxu0 0
        %5125 = vmatpush1.bf16.xpose.msra.mxu0 0
        %5126 = vmatprep.subr.bf16.mxu0 0
        %5127 = vmatpush1.bf16.xpose.msra.mxu0 0
        %5128 = vmatprep.subr.bf16.mxu0 0
        %5129 = vmatpush1.bf16.xpose.msra.mxu0 0
        %5130 = vmatprep.subr.bf16.mxu0 0
        %5131 = vmatpush1.bf16.xpose.msra.mxu0 0
        %5132 = vmatprep.subr.bf16.mxu0 0
        %5133 = vmatpush1.bf16.xpose.msra.mxu0 0
        %5134 = vmatprep.subr.bf16.mxu0 0
        %5135 = vmatpush1.bf16.xpose.msra.mxu0 0
        %5136 = vmatprep.subr.bf16.mxu0 0
        %5137 = vmatpush1.bf16.xpose.msra.mxu0 0
        %5138 = vmatprep.subr.bf16.mxu0 0
        %5139 = vmatpush1.bf16.xpose.msra.mxu0 0
        %5140 = vmatprep.subr.bf16.mxu0 0
        %5141 = vmatpush1.bf16.xpose.msra.mxu0 0
        %5142 = vmatprep.subr.bf16.mxu0 0
        %5143 = vmatpush1.bf16.xpose.msra.mxu0 0
        %5144 = vmatprep.mubr.bf16.mxu0 0
        %5145 = vmatmul.mubr.bf16.gmra.mrb[0].mxu0 %v5107
        %v5146 = vpop.f32.mrb[0].mxu0
        %v5147 = vadd.f32 0.0, %v5146
        %v5148 = vpop.f32.mrb[0].mxu0
        %v5149 = vpop.f32.mrb[0].mxu0
        %v5150 = vpop.f32.mrb[0].mxu0
        %5151 = vdwg.mxu0
        %v5152 = vsel %vm486, %v5097, -inf
        %5153 = vmax.xlane.f32.xlu0 %v5152
        %v5154 = vpop.xlane.xlu0 %5153
        %v5155 = vsel %vm486, %v5147, -inf
        %5156 = vmax.xlane.f32.xlu0 %v5155
        %v5157 = vpop.xlane.xlu0 %5156
        %v5158 = vsub.f32 %v5097, %v5154
        %v5159 = vsub.f32 %v5147, %v5157
        %v5160 = vmul.f32 %v5158, 1.442695
        %v5161 = vpow.pop %v5160
        %v5162 = vmul.f32 %v5159, 1.442695
        %v5163 = vpow.pop %v5162
        %v5164 = vsel %vm486, %v5161, 0.0
        %5165 = vadd.xlane.f32.xlu0 %v5164
        %v5166 = vpop.xlane.xlu0 %5165
        %v5167 = vsel %vm486, %v5163, 0.0
        %5168 = vadd.xlane.f32.xlu0 %v5167
        %v5169 = vpop.xlane.xlu0 %5168
        %v5170 = vrcp.pop %v5166
        %v5171 = vrcp.pop %v5169
        %v5172 = vmul.f32 %v5161, %v5170
        %v5173 = vmul.f32 %v5163, %v5171
        %v5174 = vpack.c.bf16 %v5172, %v5172
        %v5175 = vpack.c.bf16 %v5173, %v5173
        %5176 = vrot.lane.b32.xlu0 %v4398, 80
        %v5177 = vpop.permute.xlu0 %5176
        %v5179 = vsel %vm486, %v5174, 0
        %v5182 = vsel %vm490, %v5177, 0
        %5184 = vmatprep.subr.bf16.mxu0 0
        %5185 = vmatpush1.bf16.msra.mxu0 %v5182
        %5186 = vmatprep.subr.bf16.mxu0 0
        %5187 = vmatpush1.bf16.msra.mxu0 0
        %5188 = vmatprep.subr.bf16.mxu0 0
        %5189 = vmatpush1.bf16.msra.mxu0 0
        %5190 = vmatprep.subr.bf16.mxu0 0
        %5191 = vmatpush1.bf16.msra.mxu0 0
        %5192 = vmatprep.subr.bf16.mxu0 0
        %5193 = vmatpush1.bf16.msra.mxu0 0
        %5194 = vmatprep.subr.bf16.mxu0 0
        %5195 = vmatpush1.bf16.msra.mxu0 0
        %5196 = vmatprep.subr.bf16.mxu0 0
        %5197 = vmatpush1.bf16.msra.mxu0 0
        %5198 = vmatprep.subr.bf16.mxu0 0
        %5199 = vmatpush1.bf16.msra.mxu0 0
        %5200 = vmatprep.subr.bf16.mxu0 0
        %5201 = vmatpush1.bf16.msra.mxu0 0
        %5202 = vmatprep.subr.bf16.mxu0 0
        %5203 = vmatpush1.bf16.msra.mxu0 0
        %5204 = vmatprep.subr.bf16.mxu0 0
        %5205 = vmatpush1.bf16.msra.mxu0 0
        %5206 = vmatprep.subr.bf16.mxu0 0
        %5207 = vmatpush1.bf16.msra.mxu0 0
        %5208 = vmatprep.subr.bf16.mxu0 0
        %5209 = vmatpush1.bf16.msra.mxu0 0
        %5210 = vmatprep.subr.bf16.mxu0 0
        %5211 = vmatpush1.bf16.msra.mxu0 0
        %5212 = vmatprep.subr.bf16.mxu0 0
        %5213 = vmatpush1.bf16.msra.mxu0 0
        %5214 = vmatprep.subr.bf16.mxu0 0
        %5215 = vmatpush1.bf16.msra.mxu0 0
        %5216 = vmatprep.mubr.bf16.mxu0 0
        %5217 = vmatmul.mubr.bf16.gmra.mrb[0].mxu0 %v5179
        %v5218 = vpop.f32.mrb[0].mxu0
        %v5219 = vadd.f32 0.0, %v5218
        %v5220 = vpop.f32.mrb[0].mxu0
        %v5221 = vpop.f32.mrb[0].mxu0
        %v5222 = vpop.f32.mrb[0].mxu0
        %5223 = vdwg.mxu0
        %5224 = vrot.lane.b32.xlu0 %v4399, 80
        %v5225 = vpop.permute.xlu0 %5224
        %v5227 = vsel %vm486, %v5175, 0
        %v5230 = vsel %vm490, %v5225, 0
        %5232 = vmatprep.subr.bf16.mxu0 0
        %5233 = vmatpush1.bf16.msra.mxu0 %v5230
        %5234 = vmatprep.subr.bf16.mxu0 0
        %5235 = vmatpush1.bf16.msra.mxu0 0
        %5236 = vmatprep.subr.bf16.mxu0 0
        %5237 = vmatpush1.bf16.msra.mxu0 0
        %5238 = vmatprep.subr.bf16.mxu0 0
        %5239 = vmatpush1.bf16.msra.mxu0 0
        %5240 = vmatprep.subr.bf16.mxu0 0
        %5241 = vmatpush1.bf16.msra.mxu0 0
        %5242 = vmatprep.subr.bf16.mxu0 0
        %5243 = vmatpush1.bf16.msra.mxu0 0
        %5244 = vmatprep.subr.bf16.mxu0 0
        %5245 = vmatpush1.bf16.msra.mxu0 0
        %5246 = vmatprep.subr.bf16.mxu0 0
        %5247 = vmatpush1.bf16.msra.mxu0 0
        %5248 = vmatprep.subr.bf16.mxu0 0
        %5249 = vmatpush1.bf16.msra.mxu0 0
        %5250 = vmatprep.subr.bf16.mxu0 0
        %5251 = vmatpush1.bf16.msra.mxu0 0
        %5252 = vmatprep.subr.bf16.mxu0 0
        %5253 = vmatpush1.bf16.msra.mxu0 0
        %5254 = vmatprep.subr.bf16.mxu0 0
        %5255 = vmatpush1.bf16.msra.mxu0 0
        %5256 = vmatprep.subr.bf16.mxu0 0
        %5257 = vmatpush1.bf16.msra.mxu0 0
        %5258 = vmatprep.subr.bf16.mxu0 0
        %5259 = vmatpush1.bf16.msra.mxu0 0
        %5260 = vmatprep.subr.bf16.mxu0 0
        %5261 = vmatpush1.bf16.msra.mxu0 0
        %5262 = vmatprep.subr.bf16.mxu0 0
        %5263 = vmatpush1.bf16.msra.mxu0 0
        %5264 = vmatprep.mubr.bf16.mxu0 0
        %5265 = vmatmul.mubr.bf16.gmra.mrb[0].mxu0 %v5227
        %v5266 = vpop.f32.mrb[0].mxu0
        %v5267 = vadd.f32 0.0, %v5266
        %v5268 = vpop.f32.mrb[0].mxu0
        %v5269 = vpop.f32.mrb[0].mxu0
        %v5270 = vpop.f32.mrb[0].mxu0
        %5271 = vdwg.mxu0
        %5274 = vrot.lane.b32.xlu0 %v4779, 16
        %v5275 = vpop.permute.xlu0 %5274
        %5276 = vrot.lane.b32.xlu0 %v4827, 16
        %v5277 = vpop.permute.xlu0 %5276
        %5282 = vrot.lane.b32.xlu0 %v4999, 32
        %v5283 = vpop.permute.xlu0 %5282
        %5284 = vrot.lane.b32.xlu0 %v5047, 32
        %v5285 = vpop.permute.xlu0 %5284
        %5290 = vrot.lane.b32.xlu0 %v5219, 48
        %v5291 = vpop.permute.xlu0 %5290
        %5292 = vrot.lane.b32.xlu0 %v5267, 48
        %v5293 = vpop.permute.xlu0 %5292
        %v5296 = vsel %vm988, %v4561, %v5275
        %v5297 = vsel %vm988, %v4607, %v5277
        %v5298 = vsel %vm1885, %v5296, %v5283
        %v5299 = vsel %vm1885, %v5297, %v5285
        %v5300 = vsel %vm1888, %v5298, %v5291
        %v5301 = vsel %vm1888, %v5299, %v5293
        %v5302 = vpack.c.bf16 %v5301, %v5300
        %v5303 = vlaneseq
        %v5304 = vshrl.u32 %v5303, 7
        %v5305 = vsub.s32 0, %v5304
        %v5306 = vrot.slane %v4289, %v5305
        %v5315 = vunpack.c.l.b16 %v3955
        %v5316 = vunpack.c.l.b16 %v3956
        %v5317 = vunpack.c.l.b16 %v3957
        %v5318 = vunpack.c.l.b16 %v3958
        %v5319 = vunpack.c.l.b16 %v3959
        %v5320 = vunpack.c.l.b16 %v3960
        %v5321 = vunpack.c.l.b16 %v3961
        %v5322 = vunpack.c.l.b16 %v3962
        %v5323 = vpack.c.b16 %v5316, %v5315
        %v5324 = vpack.c.b16 %v5318, %v5317
        %v5325 = vpack.c.b16 %v5320, %v5319
        %v5326 = vpack.c.b16 %v5322, %v5321
        %v5332 = vsel %vm927, %v5302, 0
        %5334 = vmatprep.subr.bf16.mxu0 0
        %5335 = vmatpush1.bf16.msra.mxu0 %v5323
        %5336 = vmatprep.subr.bf16.mxu0 0
        %5337 = vmatpush1.bf16.msra.mxu0 %v5324
        %5338 = vmatprep.subr.bf16.mxu0 0
        %5339 = vmatpush1.bf16.msra.mxu0 %v5325
        %5340 = vmatprep.subr.bf16.mxu0 0
        %5341 = vmatpush1.bf16.msra.mxu0 %v5326
        %5342 = vmatprep.subr.bf16.mxu0 0
        %5343 = vmatpush1.bf16.msra.mxu0 0
        %5344 = vmatprep.subr.bf16.mxu0 0
        %5345 = vmatpush1.bf16.msra.mxu0 0
        %5346 = vmatprep.subr.bf16.mxu0 0
        %5347 = vmatpush1.bf16.msra.mxu0 0
        %5348 = vmatprep.subr.bf16.mxu0 0
        %5349 = vmatpush1.bf16.msra.mxu0 0
        %5350 = vmatprep.subr.bf16.mxu0 0
        %5351 = vmatpush1.bf16.msra.mxu0 0
        %5352 = vmatprep.subr.bf16.mxu0 0
        %5353 = vmatpush1.bf16.msra.mxu0 0
        %5354 = vmatprep.subr.bf16.mxu0 0
        %5355 = vmatpush1.bf16.msra.mxu0 0
        %5356 = vmatprep.subr.bf16.mxu0 0
        %5357 = vmatpush1.bf16.msra.mxu0 0
        %5358 = vmatprep.subr.bf16.mxu0 0
        %5359 = vmatpush1.bf16.msra.mxu0 0
        %5360 = vmatprep.subr.bf16.mxu0 0
        %5361 = vmatpush1.bf16.msra.mxu0 0
        %5362 = vmatprep.subr.bf16.mxu0 0
        %5363 = vmatpush1.bf16.msra.mxu0 0
        %5364 = vmatprep.subr.bf16.mxu0 0
        %5365 = vmatpush1.bf16.msra.mxu0 0
        %5366 = vmatprep.mubr.bf16.mxu0 0
        %5367 = vmatmul.mubr.bf16.gmra.mrb[0].mxu0 %v5332
        %v5368 = vpop.f32.mrb[0].mxu0
        %v5369 = vadd.f32 %v5306, %v5368
        %v5370 = vpop.f32.mrb[0].mxu0
        %v5371 = vpop.f32.mrb[0].mxu0
        %v5372 = vadd.f32 %v5306, %v5371
        %v5373 = vpop.f32.mrb[0].mxu0
        %5374 = vdwg.mxu0
        %v5375 = vadd.f32 %v3941, %v5369
        %v5376 = vadd.f32 %v3942, %v5372
        %v5377 = vsel %vm927, %v5375, 0.0
        %5378 = vadd.xlane.f32.xlu0 %v5377
        %v5379 = vpop.xlane.xlu0 %5378
        %v5380 = vsel %vm927, %v5376, 0.0
        %5381 = vadd.xlane.f32.xlu0 %v5380
        %v5382 = vpop.xlane.xlu0 %5381
        %v5383 = vmul.f32 %v5379, %v1972
        %v5384 = vmul.f32 %v5382, %v1972
        %v5385 = vsub.f32 %v5375, %v5383
        %v5386 = vsub.f32 %v5376, %v5384
        %v5387 = vmul.f32 %v5385, %v5385
        %v5388 = vmul.f32 %v5386, %v5386
        %v5389 = vsel %vm927, %v5387, 0.0
        %5390 = vadd.xlane.f32.xlu0 %v5389
        %v5391 = vpop.xlane.xlu0 %5390
        %v5392 = vsel %vm927, %v5388, 0.0
        %5393 = vadd.xlane.f32.xlu0 %v5392
        %v5394 = vpop.xlane.xlu0 %5393
        %v5395 = vmul.f32 %v5391, %v1972
        %v5396 = vmul.f32 %v5394, %v1972
        %v5397 = vadd.f32 %v5395, 1e-05
        %v5398 = vadd.f32 %v5396, 1e-05
        %v5399 = vrsqrt.pop %v5397
        %v5400 = vrsqrt.pop %v5398
        %v5401 = vmul.f32 %v5385, %v5399
        %v5402 = vmul.f32 %v5386, %v5400
        %v5403 = vlaneseq
        %v5404 = vshrl.u32 %v5403, 7
        %v5405 = vsub.s32 1, %v5404
        %v5406 = vrot.slane %v4289, %v5405
        %v5407 = vmul.f32 %v5401, %v5406
        %v5408 = vmul.f32 %v5402, %v5406
        %v5409 = vlaneseq
        %v5410 = vshrl.u32 %v5409, 7
        %v5411 = vsub.s32 2, %v5410
        %v5412 = vrot.slane %v4289, %v5411
        %v5413 = vadd.f32 %v5407, %v5412
        %v5414 = vadd.f32 %v5408, %v5412
        %v5415 = vpack.c.bf16 %v5414, %v5413
        %v5418 = vlaneseq
        %v5419 = vshrl.u32 %v5418, 7
        %v5420 = vsub.s32 0, %v5419
        %v5421 = vrot.slane %v4029, %v5420
        %v5422 = vlaneseq
        %v5423 = vshrl.u32 %v5422, 7
        %v5424 = vsub.s32 1, %v5423
        %v5425 = vrot.slane %v4029, %v5424
        %v5426 = vlaneseq
        %v5427 = vshrl.u32 %v5426, 7
        %v5428 = vsub.s32 2, %v5427
        %v5429 = vrot.slane %v4029, %v5428
        %v5430 = vlaneseq
        %v5431 = vshrl.u32 %v5430, 7
        %v5432 = vsub.s32 3, %v5431
        %v5433 = vrot.slane %v4029, %v5432
        %v5434 = vlaneseq
        %v5435 = vshrl.u32 %v5434, 7
        %v5436 = vsub.s32 4, %v5435
        %v5437 = vrot.slane %v4029, %v5436
        %v5438 = vlaneseq
        %v5439 = vshrl.u32 %v5438, 7
        %v5440 = vsub.s32 5, %v5439
        %v5441 = vrot.slane %v4029, %v5440
        %v5442 = vlaneseq
        %v5443 = vshrl.u32 %v5442, 7
        %v5444 = vsub.s32 6, %v5443
        %v5445 = vrot.slane %v4029, %v5444
        %v5446 = vlaneseq
        %v5447 = vshrl.u32 %v5446, 7
        %v5448 = vsub.s32 7, %v5447
        %v5449 = vrot.slane %v4029, %v5448
        %v5450 = vlaneseq
        %v5451 = vshrl.u32 %v5450, 7
        %v5452 = vsub.s32 0, %v5451
        %v5453 = vrot.slane %v4030, %v5452
        %v5454 = vlaneseq
        %v5455 = vshrl.u32 %v5454, 7
        %v5456 = vsub.s32 1, %v5455
        %v5457 = vrot.slane %v4030, %v5456
        %v5458 = vlaneseq
        %v5459 = vshrl.u32 %v5458, 7
        %v5460 = vsub.s32 2, %v5459
        %v5461 = vrot.slane %v4030, %v5460
        %v5462 = vlaneseq
        %v5463 = vshrl.u32 %v5462, 7
        %v5464 = vsub.s32 3, %v5463
        %v5465 = vrot.slane %v4030, %v5464
        %v5466 = vlaneseq
        %v5467 = vshrl.u32 %v5466, 7
        %v5468 = vsub.s32 4, %v5467
        %v5469 = vrot.slane %v4030, %v5468
        %v5470 = vlaneseq
        %v5471 = vshrl.u32 %v5470, 7
        %v5472 = vsub.s32 5, %v5471
        %v5473 = vrot.slane %v4030, %v5472
        %v5474 = vlaneseq
        %v5475 = vshrl.u32 %v5474, 7
        %v5476 = vsub.s32 6, %v5475
        %v5477 = vrot.slane %v4030, %v5476
        %v5478 = vlaneseq
        %v5479 = vshrl.u32 %v5478, 7
        %v5480 = vsub.s32 7, %v5479
        %v5481 = vrot.slane %v4030, %v5480
        %v5562 = vunpack.c.l.b16 %v3964
        %v5563 = vunpack.c.h.b16 %v3964
        %v5564 = vunpack.c.l.b16 %v3965
        %v5565 = vunpack.c.h.b16 %v3965
        %v5566 = vunpack.c.l.b16 %v3966
        %v5567 = vunpack.c.h.b16 %v3966
        %v5568 = vunpack.c.l.b16 %v3967
        %v5569 = vunpack.c.h.b16 %v3967
        %v5570 = vunpack.c.l.b16 %v3968
        %v5571 = vunpack.c.h.b16 %v3968
        %v5572 = vunpack.c.l.b16 %v3969
        %v5573 = vunpack.c.h.b16 %v3969
        %v5574 = vunpack.c.l.b16 %v3970
        %v5575 = vunpack.c.h.b16 %v3970
        %v5576 = vunpack.c.l.b16 %v3971
        %v5577 = vunpack.c.h.b16 %v3971
        %v5578 = vunpack.c.l.b16 %v3972
        %v5579 = vunpack.c.h.b16 %v3972
        %v5580 = vunpack.c.l.b16 %v3973
        %v5581 = vunpack.c.h.b16 %v3973
        %v5582 = vunpack.c.l.b16 %v3974
        %v5583 = vunpack.c.h.b16 %v3974
        %v5584 = vunpack.c.l.b16 %v3975
        %v5585 = vunpack.c.h.b16 %v3975
        %v5586 = vunpack.c.l.b16 %v3976
        %v5587 = vunpack.c.h.b16 %v3976
        %v5588 = vunpack.c.l.b16 %v3977
        %v5589 = vunpack.c.h.b16 %v3977
        %v5590 = vunpack.c.l.b16 %v3978
        %v5591 = vunpack.c.h.b16 %v3978
        %v5592 = vunpack.c.l.b16 %v3979
        %v5593 = vunpack.c.h.b16 %v3979
        %v5594 = vunpack.c.l.b16 %v3980
        %v5595 = vunpack.c.h.b16 %v3980
        %v5596 = vunpack.c.l.b16 %v3981
        %v5597 = vunpack.c.h.b16 %v3981
        %v5598 = vunpack.c.l.b16 %v3982
        %v5599 = vunpack.c.h.b16 %v3982
        %v5600 = vunpack.c.l.b16 %v3983
        %v5601 = vunpack.c.h.b16 %v3983
        %v5602 = vunpack.c.l.b16 %v3984
        %v5603 = vunpack.c.h.b16 %v3984
        %v5604 = vunpack.c.l.b16 %v3985
        %v5605 = vunpack.c.h.b16 %v3985
        %v5606 = vunpack.c.l.b16 %v3986
        %v5607 = vunpack.c.h.b16 %v3986
        %v5608 = vunpack.c.l.b16 %v3987
        %v5609 = vunpack.c.h.b16 %v3987
        %v5610 = vunpack.c.l.b16 %v3988
        %v5611 = vunpack.c.h.b16 %v3988
        %v5612 = vunpack.c.l.b16 %v3989
        %v5613 = vunpack.c.h.b16 %v3989
        %v5614 = vunpack.c.l.b16 %v3990
        %v5615 = vunpack.c.h.b16 %v3990
        %v5616 = vunpack.c.l.b16 %v3991
        %v5617 = vunpack.c.h.b16 %v3991
        %v5618 = vunpack.c.l.b16 %v3992
        %v5619 = vunpack.c.h.b16 %v3992
        %v5620 = vunpack.c.l.b16 %v3993
        %v5621 = vunpack.c.h.b16 %v3993
        %v5622 = vunpack.c.l.b16 %v3994
        %v5623 = vunpack.c.h.b16 %v3994
        %v5624 = vunpack.c.l.b16 %v3995
        %v5625 = vunpack.c.h.b16 %v3995
        %v5626 = vunpack.c.l.b16 %v3996
        %v5627 = vunpack.c.h.b16 %v3996
        %v5628 = vunpack.c.l.b16 %v3997
        %v5629 = vunpack.c.h.b16 %v3997
        %v5630 = vunpack.c.l.b16 %v3998
        %v5631 = vunpack.c.h.b16 %v3998
        %v5632 = vunpack.c.l.b16 %v3999
        %v5633 = vunpack.c.h.b16 %v3999
        %v5634 = vunpack.c.l.b16 %v4000
        %v5635 = vunpack.c.h.b16 %v4000
        %v5636 = vunpack.c.l.b16 %v4001
        %v5637 = vunpack.c.h.b16 %v4001
        %v5638 = vunpack.c.l.b16 %v4002
        %v5639 = vunpack.c.h.b16 %v4002
        %v5640 = vunpack.c.l.b16 %v4003
        %v5641 = vunpack.c.h.b16 %v4003
        %v5642 = vunpack.c.l.b16 %v4004
        %v5643 = vunpack.c.h.b16 %v4004
        %v5644 = vunpack.c.l.b16 %v4005
        %v5645 = vunpack.c.h.b16 %v4005
        %v5646 = vunpack.c.l.b16 %v4006
        %v5647 = vunpack.c.h.b16 %v4006
        %v5648 = vunpack.c.l.b16 %v4007
        %v5649 = vunpack.c.h.b16 %v4007
        %v5650 = vunpack.c.l.b16 %v4008
        %v5651 = vunpack.c.h.b16 %v4008
        %v5652 = vunpack.c.l.b16 %v4009
        %v5653 = vunpack.c.h.b16 %v4009
        %v5654 = vunpack.c.l.b16 %v4010
        %v5655 = vunpack.c.h.b16 %v4010
        %v5656 = vunpack.c.l.b16 %v4011
        %v5657 = vunpack.c.h.b16 %v4011
        %v5658 = vunpack.c.l.b16 %v4012
        %v5659 = vunpack.c.h.b16 %v4012
        %v5660 = vunpack.c.l.b16 %v4013
        %v5661 = vunpack.c.h.b16 %v4013
        %v5662 = vunpack.c.l.b16 %v4014
        %v5663 = vunpack.c.h.b16 %v4014
        %v5664 = vunpack.c.l.b16 %v4015
        %v5665 = vunpack.c.h.b16 %v4015
        %v5666 = vunpack.c.l.b16 %v4016
        %v5667 = vunpack.c.h.b16 %v4016
        %v5668 = vunpack.c.l.b16 %v4017
        %v5669 = vunpack.c.h.b16 %v4017
        %v5670 = vunpack.c.l.b16 %v4018
        %v5671 = vunpack.c.h.b16 %v4018
        %v5672 = vunpack.c.l.b16 %v4019
        %v5673 = vunpack.c.h.b16 %v4019
        %v5674 = vunpack.c.l.b16 %v4020
        %v5675 = vunpack.c.h.b16 %v4020
        %v5676 = vunpack.c.l.b16 %v4021
        %v5677 = vunpack.c.h.b16 %v4021
        %v5678 = vunpack.c.l.b16 %v4022
        %v5679 = vunpack.c.h.b16 %v4022
        %v5680 = vunpack.c.l.b16 %v4023
        %v5681 = vunpack.c.h.b16 %v4023
        %v5682 = vunpack.c.l.b16 %v4024
        %v5683 = vunpack.c.h.b16 %v4024
        %v5684 = vunpack.c.l.b16 %v4025
        %v5685 = vunpack.c.h.b16 %v4025
        %v5686 = vunpack.c.l.b16 %v4026
        %v5687 = vunpack.c.h.b16 %v4026
        %v5688 = vunpack.c.l.b16 %v4027
        %v5689 = vunpack.c.h.b16 %v4027
        %v5690 = vpack.c.b16 %v5578, %v5562
        %v5691 = vpack.c.b16 %v5579, %v5563
        %v5692 = vpack.c.b16 %v5580, %v5564
        %v5693 = vpack.c.b16 %v5581, %v5565
        %v5694 = vpack.c.b16 %v5582, %v5566
        %v5695 = vpack.c.b16 %v5583, %v5567
        %v5696 = vpack.c.b16 %v5584, %v5568
        %v5697 = vpack.c.b16 %v5585, %v5569
        %v5698 = vpack.c.b16 %v5586, %v5570
        %v5699 = vpack.c.b16 %v5587, %v5571
        %v5700 = vpack.c.b16 %v5588, %v5572
        %v5701 = vpack.c.b16 %v5589, %v5573
        %v5702 = vpack.c.b16 %v5590, %v5574
        %v5703 = vpack.c.b16 %v5591, %v5575
        %v5704 = vpack.c.b16 %v5592, %v5576
        %v5705 = vpack.c.b16 %v5593, %v5577
        %v5706 = vpack.c.b16 %v5610, %v5594
        %v5707 = vpack.c.b16 %v5611, %v5595
        %v5708 = vpack.c.b16 %v5612, %v5596
        %v5709 = vpack.c.b16 %v5613, %v5597
        %v5710 = vpack.c.b16 %v5614, %v5598
        %v5711 = vpack.c.b16 %v5615, %v5599
        %v5712 = vpack.c.b16 %v5616, %v5600
        %v5713 = vpack.c.b16 %v5617, %v5601
        %v5714 = vpack.c.b16 %v5618, %v5602
        %v5715 = vpack.c.b16 %v5619, %v5603
        %v5716 = vpack.c.b16 %v5620, %v5604
        %v5717 = vpack.c.b16 %v5621, %v5605
        %v5718 = vpack.c.b16 %v5622, %v5606
        %v5719 = vpack.c.b16 %v5623, %v5607
        %v5720 = vpack.c.b16 %v5624, %v5608
        %v5721 = vpack.c.b16 %v5625, %v5609
        %v5722 = vpack.c.b16 %v5642, %v5626
        %v5723 = vpack.c.b16 %v5643, %v5627
        %v5724 = vpack.c.b16 %v5644, %v5628
        %v5725 = vpack.c.b16 %v5645, %v5629
        %v5726 = vpack.c.b16 %v5646, %v5630
        %v5727 = vpack.c.b16 %v5647, %v5631
        %v5728 = vpack.c.b16 %v5648, %v5632
        %v5729 = vpack.c.b16 %v5649, %v5633
        %v5730 = vpack.c.b16 %v5650, %v5634
        %v5731 = vpack.c.b16 %v5651, %v5635
        %v5732 = vpack.c.b16 %v5652, %v5636
        %v5733 = vpack.c.b16 %v5653, %v5637
        %v5734 = vpack.c.b16 %v5654, %v5638
        %v5735 = vpack.c.b16 %v5655, %v5639
        %v5736 = vpack.c.b16 %v5656, %v5640
        %v5737 = vpack.c.b16 %v5657, %v5641
        %v5738 = vpack.c.b16 %v5674, %v5658
        %v5739 = vpack.c.b16 %v5675, %v5659
        %v5740 = vpack.c.b16 %v5676, %v5660
        %v5741 = vpack.c.b16 %v5677, %v5661
        %v5742 = vpack.c.b16 %v5678, %v5662
        %v5743 = vpack.c.b16 %v5679, %v5663
        %v5744 = vpack.c.b16 %v5680, %v5664
        %v5745 = vpack.c.b16 %v5681, %v5665
        %v5746 = vpack.c.b16 %v5682, %v5666
        %v5747 = vpack.c.b16 %v5683, %v5667
        %v5748 = vpack.c.b16 %v5684, %v5668
        %v5749 = vpack.c.b16 %v5685, %v5669
        %v5750 = vpack.c.b16 %v5686, %v5670
        %v5751 = vpack.c.b16 %v5687, %v5671
        %v5752 = vpack.c.b16 %v5688, %v5672
        %v5753 = vpack.c.b16 %v5689, %v5673
        %v5819 = vsel %vm927, %v5415, 0
        %5821 = vmatprep.subr.bf16.mxu0 %v5691
        %5822 = vmatpush1.bf16.msra.mxu0 %v5690
        %5823 = vmatprep.subr.bf16.mxu0 %v5707
        %5824 = vmatpush1.bf16.msra.mxu0 %v5706
        %5825 = vmatprep.subr.bf16.mxu0 %v5723
        %5826 = vmatpush1.bf16.msra.mxu0 %v5722
        %5827 = vmatprep.subr.bf16.mxu0 %v5739
        %5828 = vmatpush1.bf16.msra.mxu0 %v5738
        %5829 = vmatprep.subr.bf16.mxu0 0
        %5830 = vmatpush1.bf16.msra.mxu0 0
        %5831 = vmatprep.subr.bf16.mxu0 0
        %5832 = vmatpush1.bf16.msra.mxu0 0
        %5833 = vmatprep.subr.bf16.mxu0 0
        %5834 = vmatpush1.bf16.msra.mxu0 0
        %5835 = vmatprep.subr.bf16.mxu0 0
        %5836 = vmatpush1.bf16.msra.mxu0 0
        %5837 = vmatprep.subr.bf16.mxu0 0
        %5838 = vmatpush1.bf16.msra.mxu0 0
        %5839 = vmatprep.subr.bf16.mxu0 0
        %5840 = vmatpush1.bf16.msra.mxu0 0
        %5841 = vmatprep.subr.bf16.mxu0 0
        %5842 = vmatpush1.bf16.msra.mxu0 0
        %5843 = vmatprep.subr.bf16.mxu0 0
        %5844 = vmatpush1.bf16.msra.mxu0 0
        %5845 = vmatprep.subr.bf16.mxu0 0
        %5846 = vmatpush1.bf16.msra.mxu0 0
        %5847 = vmatprep.subr.bf16.mxu0 0
        %5848 = vmatpush1.bf16.msra.mxu0 0
        %5849 = vmatprep.subr.bf16.mxu0 0
        %5850 = vmatpush1.bf16.msra.mxu0 0
        %5851 = vmatprep.subr.bf16.mxu0 0
        %5852 = vmatpush1.bf16.msra.mxu0 0
        %5853 = vmatprep.mubr.bf16.mxu0 0
        %5854 = vmatmul.mubr.bf16.gmra.mrb[0].mxu0 %v5819
        %v5855 = vpop.f32.mrb[0].mxu0
        %v5856 = vadd.f32 %v5421, %v5855
        %v5857 = vpop.f32.mrb[0].mxu0
        %v5858 = vadd.f32 %v5425, %v5857
        %v5859 = vpop.f32.mrb[0].mxu0
        %v5860 = vadd.f32 %v5421, %v5859
        %v5861 = vpop.f32.mrb[0].mxu0
        %v5862 = vadd.f32 %v5425, %v5861
        %5863 = vdwg.mxu0
        %5864 = vmatprep.subr.bf16.mxu0 %v5693
        %5865 = vmatpush1.bf16.msra.mxu0 %v5692
        %5866 = vmatprep.subr.bf16.mxu0 %v5709
        %5867 = vmatpush1.bf16.msra.mxu0 %v5708
        %5868 = vmatprep.subr.bf16.mxu0 %v5725
        %5869 = vmatpush1.bf16.msra.mxu0 %v5724
        %5870 = vmatprep.subr.bf16.mxu0 %v5741
        %5871 = vmatpush1.bf16.msra.mxu0 %v5740
        %5872 = vmatprep.subr.bf16.mxu0 0
        %5873 = vmatpush1.bf16.msra.mxu0 0
        %5874 = vmatprep.subr.bf16.mxu0 0
        %5875 = vmatpush1.bf16.msra.mxu0 0
        %5876 = vmatprep.subr.bf16.mxu0 0
        %5877 = vmatpush1.bf16.msra.mxu0 0
        %5878 = vmatprep.subr.bf16.mxu0 0
        %5879 = vmatpush1.bf16.msra.mxu0 0
        %5880 = vmatprep.subr.bf16.mxu0 0
        %5881 = vmatpush1.bf16.msra.mxu0 0
        %5882 = vmatprep.subr.bf16.mxu0 0
        %5883 = vmatpush1.bf16.msra.mxu0 0
        %5884 = vmatprep.subr.bf16.mxu0 0
        %5885 = vmatpush1.bf16.msra.mxu0 0
        %5886 = vmatprep.subr.bf16.mxu0 0
        %5887 = vmatpush1.bf16.msra.mxu0 0
        %5888 = vmatprep.subr.bf16.mxu0 0
        %5889 = vmatpush1.bf16.msra.mxu0 0
        %5890 = vmatprep.subr.bf16.mxu0 0
        %5891 = vmatpush1.bf16.msra.mxu0 0
        %5892 = vmatprep.subr.bf16.mxu0 0
        %5893 = vmatpush1.bf16.msra.mxu0 0
        %5894 = vmatprep.subr.bf16.mxu0 0
        %5895 = vmatpush1.bf16.msra.mxu0 0
        %5896 = vmatprep.mubr.bf16.mxu0 0
        %5897 = vmatmul.mubr.bf16.gmra.mrb[0].mxu0 %v5819
        %v5898 = vpop.f32.mrb[0].mxu0
        %v5899 = vadd.f32 %v5429, %v5898
        %v5900 = vpop.f32.mrb[0].mxu0
        %v5901 = vadd.f32 %v5433, %v5900
        %v5902 = vpop.f32.mrb[0].mxu0
        %v5903 = vadd.f32 %v5429, %v5902
        %v5904 = vpop.f32.mrb[0].mxu0
        %v5905 = vadd.f32 %v5433, %v5904
        %5906 = vdwg.mxu0
        %5907 = vmatprep.subr.bf16.mxu0 %v5695
        %5908 = vmatpush1.bf16.msra.mxu0 %v5694
        %5909 = vmatprep.subr.bf16.mxu0 %v5711
        %5910 = vmatpush1.bf16.msra.mxu0 %v5710
        %5911 = vmatprep.subr.bf16.mxu0 %v5727
        %5912 = vmatpush1.bf16.msra.mxu0 %v5726
        %5913 = vmatprep.subr.bf16.mxu0 %v5743
        %5914 = vmatpush1.bf16.msra.mxu0 %v5742
        %5915 = vmatprep.subr.bf16.mxu0 0
        %5916 = vmatpush1.bf16.msra.mxu0 0
        %5917 = vmatprep.subr.bf16.mxu0 0
        %5918 = vmatpush1.bf16.msra.mxu0 0
        %5919 = vmatprep.subr.bf16.mxu0 0
        %5920 = vmatpush1.bf16.msra.mxu0 0
        %5921 = vmatprep.subr.bf16.mxu0 0
        %5922 = vmatpush1.bf16.msra.mxu0 0
        %5923 = vmatprep.subr.bf16.mxu0 0
        %5924 = vmatpush1.bf16.msra.mxu0 0
        %5925 = vmatprep.subr.bf16.mxu0 0
        %5926 = vmatpush1.bf16.msra.mxu0 0
        %5927 = vmatprep.subr.bf16.mxu0 0
        %5928 = vmatpush1.bf16.msra.mxu0 0
        %5929 = vmatprep.subr.bf16.mxu0 0
        %5930 = vmatpush1.bf16.msra.mxu0 0
        %5931 = vmatprep.subr.bf16.mxu0 0
        %5932 = vmatpush1.bf16.msra.mxu0 0
        %5933 = vmatprep.subr.bf16.mxu0 0
        %5934 = vmatpush1.bf16.msra.mxu0 0
        %5935 = vmatprep.subr.bf16.mxu0 0
        %5936 = vmatpush1.bf16.msra.mxu0 0
        %5937 = vmatprep.subr.bf16.mxu0 0
        %5938 = vmatpush1.bf16.msra.mxu0 0
        %5939 = vmatprep.mubr.bf16.mxu0 0
        %5940 = vmatmul.mubr.bf16.gmra.mrb[0].mxu0 %v5819
        %v5941 = vpop.f32.mrb[0].mxu0
        %v5942 = vadd.f32 %v5437, %v5941
        %v5943 = vpop.f32.mrb[0].mxu0
        %v5944 = vadd.f32 %v5441, %v5943
        %v5945 = vpop.f32.mrb[0].mxu0
        %v5946 = vadd.f32 %v5437, %v5945
        %v5947 = vpop.f32.mrb[0].mxu0
        %v5948 = vadd.f32 %v5441, %v5947
        %5949 = vdwg.mxu0
        %5950 = vmatprep.subr.bf16.mxu0 %v5697
        %5951 = vmatpush1.bf16.msra.mxu0 %v5696
        %5952 = vmatprep.subr.bf16.mxu0 %v5713
        %5953 = vmatpush1.bf16.msra.mxu0 %v5712
        %5954 = vmatprep.subr.bf16.mxu0 %v5729
        %5955 = vmatpush1.bf16.msra.mxu0 %v5728
        %5956 = vmatprep.subr.bf16.mxu0 %v5745
        %5957 = vmatpush1.bf16.msra.mxu0 %v5744
        %5958 = vmatprep.subr.bf16.mxu0 0
        %5959 = vmatpush1.bf16.msra.mxu0 0
        %5960 = vmatprep.subr.bf16.mxu0 0
        %5961 = vmatpush1.bf16.msra.mxu0 0
        %5962 = vmatprep.subr.bf16.mxu0 0
        %5963 = vmatpush1.bf16.msra.mxu0 0
        %5964 = vmatprep.subr.bf16.mxu0 0
        %5965 = vmatpush1.bf16.msra.mxu0 0
        %5966 = vmatprep.subr.bf16.mxu0 0
        %5967 = vmatpush1.bf16.msra.mxu0 0
        %5968 = vmatprep.subr.bf16.mxu0 0
        %5969 = vmatpush1.bf16.msra.mxu0 0
        %5970 = vmatprep.subr.bf16.mxu0 0
        %5971 = vmatpush1.bf16.msra.mxu0 0
        %5972 = vmatprep.subr.bf16.mxu0 0
        %5973 = vmatpush1.bf16.msra.mxu0 0
        %5974 = vmatprep.subr.bf16.mxu0 0
        %5975 = vmatpush1.bf16.msra.mxu0 0
        %5976 = vmatprep.subr.bf16.mxu0 0
        %5977 = vmatpush1.bf16.msra.mxu0 0
        %5978 = vmatprep.subr.bf16.mxu0 0
        %5979 = vmatpush1.bf16.msra.mxu0 0
        %5980 = vmatprep.subr.bf16.mxu0 0
        %5981 = vmatpush1.bf16.msra.mxu0 0
        %5982 = vmatprep.mubr.bf16.mxu0 0
        %5983 = vmatmul.mubr.bf16.gmra.mrb[0].mxu0 %v5819
        %v5984 = vpop.f32.mrb[0].mxu0
        %v5985 = vadd.f32 %v5445, %v5984
        %v5986 = vpop.f32.mrb[0].mxu0
        %v5987 = vadd.f32 %v5449, %v5986
        %v5988 = vpop.f32.mrb[0].mxu0
        %v5989 = vadd.f32 %v5445, %v5988
        %v5990 = vpop.f32.mrb[0].mxu0
        %v5991 = vadd.f32 %v5449, %v5990
        %5992 = vdwg.mxu0
        %5993 = vmatprep.subr.bf16.mxu0 %v5699
        %5994 = vmatpush1.bf16.msra.mxu0 %v5698
        %5995 = vmatprep.subr.bf16.mxu0 %v5715
        %5996 = vmatpush1.bf16.msra.mxu0 %v5714
        %5997 = vmatprep.subr.bf16.mxu0 %v5731
        %5998 = vmatpush1.bf16.msra.mxu0 %v5730
        %5999 = vmatprep.subr.bf16.mxu0 %v5747
        %6000 = vmatpush1.bf16.msra.mxu0 %v5746
        %6001 = vmatprep.subr.bf16.mxu0 0
        %6002 = vmatpush1.bf16.msra.mxu0 0
        %6003 = vmatprep.subr.bf16.mxu0 0
        %6004 = vmatpush1.bf16.msra.mxu0 0
        %6005 = vmatprep.subr.bf16.mxu0 0
        %6006 = vmatpush1.bf16.msra.mxu0 0
        %6007 = vmatprep.subr.bf16.mxu0 0
        %6008 = vmatpush1.bf16.msra.mxu0 0
        %6009 = vmatprep.subr.bf16.mxu0 0
        %6010 = vmatpush1.bf16.msra.mxu0 0
        %6011 = vmatprep.subr.bf16.mxu0 0
        %6012 = vmatpush1.bf16.msra.mxu0 0
        %6013 = vmatprep.subr.bf16.mxu0 0
        %6014 = vmatpush1.bf16.msra.mxu0 0
        %6015 = vmatprep.subr.bf16.mxu0 0
        %6016 = vmatpush1.bf16.msra.mxu0 0
        %6017 = vmatprep.subr.bf16.mxu0 0
        %6018 = vmatpush1.bf16.msra.mxu0 0
        %6019 = vmatprep.subr.bf16.mxu0 0
        %6020 = vmatpush1.bf16.msra.mxu0 0
        %6021 = vmatprep.subr.bf16.mxu0 0
        %6022 = vmatpush1.bf16.msra.mxu0 0
        %6023 = vmatprep.subr.bf16.mxu0 0
        %6024 = vmatpush1.bf16.msra.mxu0 0
        %6025 = vmatprep.mubr.bf16.mxu0 0
        %6026 = vmatmul.mubr.bf16.gmra.mrb[0].mxu0 %v5819
        %v6027 = vpop.f32.mrb[0].mxu0
        %v6028 = vadd.f32 %v5453, %v6027
        %v6029 = vpop.f32.mrb[0].mxu0
        %v6030 = vadd.f32 %v5457, %v6029
        %v6031 = vpop.f32.mrb[0].mxu0
        %v6032 = vadd.f32 %v5453, %v6031
        %v6033 = vpop.f32.mrb[0].mxu0
        %v6034 = vadd.f32 %v5457, %v6033
        %6035 = vdwg.mxu0
        %6036 = vmatprep.subr.bf16.mxu0 %v5701
        %6037 = vmatpush1.bf16.msra.mxu0 %v5700
        %6038 = vmatprep.subr.bf16.mxu0 %v5717
        %6039 = vmatpush1.bf16.msra.mxu0 %v5716
        %6040 = vmatprep.subr.bf16.mxu0 %v5733
        %6041 = vmatpush1.bf16.msra.mxu0 %v5732
        %6042 = vmatprep.subr.bf16.mxu0 %v5749
        %6043 = vmatpush1.bf16.msra.mxu0 %v5748
        %6044 = vmatprep.subr.bf16.mxu0 0
        %6045 = vmatpush1.bf16.msra.mxu0 0
        %6046 = vmatprep.subr.bf16.mxu0 0
        %6047 = vmatpush1.bf16.msra.mxu0 0
        %6048 = vmatprep.subr.bf16.mxu0 0
        %6049 = vmatpush1.bf16.msra.mxu0 0
        %6050 = vmatprep.subr.bf16.mxu0 0
        %6051 = vmatpush1.bf16.msra.mxu0 0
        %6052 = vmatprep.subr.bf16.mxu0 0
        %6053 = vmatpush1.bf16.msra.mxu0 0
        %6054 = vmatprep.subr.bf16.mxu0 0
        %6055 = vmatpush1.bf16.msra.mxu0 0
        %6056 = vmatprep.subr.bf16.mxu0 0
        %6057 = vmatpush1.bf16.msra.mxu0 0
        %6058 = vmatprep.subr.bf16.mxu0 0
        %6059 = vmatpush1.bf16.msra.mxu0 0
        %6060 = vmatprep.subr.bf16.mxu0 0
        %6061 = vmatpush1.bf16.msra.mxu0 0
        %6062 = vmatprep.subr.bf16.mxu0 0
        %6063 = vmatpush1.bf16.msra.mxu0 0
        %6064 = vmatprep.subr.bf16.mxu0 0
        %6065 = vmatpush1.bf16.msra.mxu0 0
        %6066 = vmatprep.subr.bf16.mxu0 0
        %6067 = vmatpush1.bf16.msra.mxu0 0
        %6068 = vmatprep.mubr.bf16.mxu0 0
        %6069 = vmatmul.mubr.bf16.gmra.mrb[0].mxu0 %v5819
        %v6070 = vpop.f32.mrb[0].mxu0
        %v6071 = vadd.f32 %v5461, %v6070
        %v6072 = vpop.f32.mrb[0].mxu0
        %v6073 = vadd.f32 %v5465, %v6072
        %v6074 = vpop.f32.mrb[0].mxu0
        %v6075 = vadd.f32 %v5461, %v6074
        %v6076 = vpop.f32.mrb[0].mxu0
        %v6077 = vadd.f32 %v5465, %v6076
        %6078 = vdwg.mxu0
        %6079 = vmatprep.subr.bf16.mxu0 %v5703
        %6080 = vmatpush1.bf16.msra.mxu0 %v5702
        %6081 = vmatprep.subr.bf16.mxu0 %v5719
        %6082 = vmatpush1.bf16.msra.mxu0 %v5718
        %6083 = vmatprep.subr.bf16.mxu0 %v5735
        %6084 = vmatpush1.bf16.msra.mxu0 %v5734
        %6085 = vmatprep.subr.bf16.mxu0 %v5751
        %6086 = vmatpush1.bf16.msra.mxu0 %v5750
        %6087 = vmatprep.subr.bf16.mxu0 0
        %6088 = vmatpush1.bf16.msra.mxu0 0
        %6089 = vmatprep.subr.bf16.mxu0 0
        %6090 = vmatpush1.bf16.msra.mxu0 0
        %6091 = vmatprep.subr.bf16.mxu0 0
        %6092 = vmatpush1.bf16.msra.mxu0 0
        %6093 = vmatprep.subr.bf16.mxu0 0
        %6094 = vmatpush1.bf16.msra.mxu0 0
        %6095 = vmatprep.subr.bf16.mxu0 0
        %6096 = vmatpush1.bf16.msra.mxu0 0
        %6097 = vmatprep.subr.bf16.mxu0 0
        %6098 = vmatpush1.bf16.msra.mxu0 0
        %6099 = vmatprep.subr.bf16.mxu0 0
        %6100 = vmatpush1.bf16.msra.mxu0 0
        %6101 = vmatprep.subr.bf16.mxu0 0
        %6102 = vmatpush1.bf16.msra.mxu0 0
        %6103 = vmatprep.subr.bf16.mxu0 0
        %6104 = vmatpush1.bf16.msra.mxu0 0
        %6105 = vmatprep.subr.bf16.mxu0 0
        %6106 = vmatpush1.bf16.msra.mxu0 0
        %6107 = vmatprep.subr.bf16.mxu0 0
        %6108 = vmatpush1.bf16.msra.mxu0 0
        %6109 = vmatprep.subr.bf16.mxu0 0
        %6110 = vmatpush1.bf16.msra.mxu0 0
        %6111 = vmatprep.mubr.bf16.mxu0 0
        %6112 = vmatmul.mubr.bf16.gmra.mrb[0].mxu0 %v5819
        %v6113 = vpop.f32.mrb[0].mxu0
        %v6114 = vadd.f32 %v5469, %v6113
        %v6115 = vpop.f32.mrb[0].mxu0
        %v6116 = vadd.f32 %v5473, %v6115
        %v6117 = vpop.f32.mrb[0].mxu0
        %v6118 = vadd.f32 %v5469, %v6117
        %v6119 = vpop.f32.mrb[0].mxu0
        %v6120 = vadd.f32 %v5473, %v6119
        %6121 = vdwg.mxu0
        %6122 = vmatprep.subr.bf16.mxu0 %v5705
        %6123 = vmatpush1.bf16.msra.mxu0 %v5704
        %6124 = vmatprep.subr.bf16.mxu0 %v5721
        %6125 = vmatpush1.bf16.msra.mxu0 %v5720
        %6126 = vmatprep.subr.bf16.mxu0 %v5737
        %6127 = vmatpush1.bf16.msra.mxu0 %v5736
        %6128 = vmatprep.subr.bf16.mxu0 %v5753
        %6129 = vmatpush1.bf16.msra.mxu0 %v5752
        %6130 = vmatprep.subr.bf16.mxu0 0
        %6131 = vmatpush1.bf16.msra.mxu0 0
        %6132 = vmatprep.subr.bf16.mxu0 0
        %6133 = vmatpush1.bf16.msra.mxu0 0
        %6134 = vmatprep.subr.bf16.mxu0 0
        %6135 = vmatpush1.bf16.msra.mxu0 0
        %6136 = vmatprep.subr.bf16.mxu0 0
        %6137 = vmatpush1.bf16.msra.mxu0 0
        %6138 = vmatprep.subr.bf16.mxu0 0
        %6139 = vmatpush1.bf16.msra.mxu0 0
        %6140 = vmatprep.subr.bf16.mxu0 0
        %6141 = vmatpush1.bf16.msra.mxu0 0
        %6142 = vmatprep.subr.bf16.mxu0 0
        %6143 = vmatpush1.bf16.msra.mxu0 0
        %6144 = vmatprep.subr.bf16.mxu0 0
        %6145 = vmatpush1.bf16.msra.mxu0 0
        %6146 = vmatprep.subr.bf16.mxu0 0
        %6147 = vmatpush1.bf16.msra.mxu0 0
        %6148 = vmatprep.subr.bf16.mxu0 0
        %6149 = vmatpush1.bf16.msra.mxu0 0
        %6150 = vmatprep.subr.bf16.mxu0 0
        %6151 = vmatpush1.bf16.msra.mxu0 0
        %6152 = vmatprep.subr.bf16.mxu0 0
        %6153 = vmatpush1.bf16.msra.mxu0 0
        %6154 = vmatprep.mubr.bf16.mxu0 0
        %6155 = vmatmul.mubr.bf16.gmra.mrb[0].mxu0 %v5819
        %v6156 = vpop.f32.mrb[0].mxu0
        %v6157 = vadd.f32 %v5477, %v6156
        %v6158 = vpop.f32.mrb[0].mxu0
        %v6159 = vadd.f32 %v5481, %v6158
        %v6160 = vpop.f32.mrb[0].mxu0
        %v6161 = vadd.f32 %v5477, %v6160
        %v6162 = vpop.f32.mrb[0].mxu0
        %v6163 = vadd.f32 %v5481, %v6162
        %6164 = vdwg.mxu0
        %v6165 = vmax.f32 %v5856, 0.0
        %v6166 = vmax.f32 %v5858, 0.0
        %v6167 = vmax.f32 %v5899, 0.0
        %v6168 = vmax.f32 %v5901, 0.0
        %v6169 = vmax.f32 %v5942, 0.0
        %v6170 = vmax.f32 %v5944, 0.0
        %v6171 = vmax.f32 %v5985, 0.0
        %v6172 = vmax.f32 %v5987, 0.0
        %v6173 = vmax.f32 %v6028, 0.0
        %v6174 = vmax.f32 %v6030, 0.0
        %v6175 = vmax.f32 %v6071, 0.0
        %v6176 = vmax.f32 %v6073, 0.0
        %v6177 = vmax.f32 %v6114, 0.0
        %v6178 = vmax.f32 %v6116, 0.0
        %v6179 = vmax.f32 %v6157, 0.0
        %v6180 = vmax.f32 %v6159, 0.0
        %v6181 = vmax.f32 %v5860, 0.0
        %v6182 = vmax.f32 %v5862, 0.0
        %v6183 = vmax.f32 %v5903, 0.0
        %v6184 = vmax.f32 %v5905, 0.0
        %v6185 = vmax.f32 %v5946, 0.0
        %v6186 = vmax.f32 %v5948, 0.0
        %v6187 = vmax.f32 %v5989, 0.0
        %v6188 = vmax.f32 %v5991, 0.0
        %v6189 = vmax.f32 %v6032, 0.0
        %v6190 = vmax.f32 %v6034, 0.0
        %v6191 = vmax.f32 %v6075, 0.0
        %v6192 = vmax.f32 %v6077, 0.0
        %v6193 = vmax.f32 %v6118, 0.0
        %v6194 = vmax.f32 %v6120, 0.0
        %v6195 = vmax.f32 %v6161, 0.0
        %v6196 = vmax.f32 %v6163, 0.0
        %v6197 = vpack.c.bf16 %v6181, %v6165
        %v6198 = vpack.c.bf16 %v6182, %v6166
        %v6199 = vpack.c.bf16 %v6183, %v6167
        %v6200 = vpack.c.bf16 %v6184, %v6168
        %v6201 = vpack.c.bf16 %v6185, %v6169
        %v6202 = vpack.c.bf16 %v6186, %v6170
        %v6203 = vpack.c.bf16 %v6187, %v6171
        %v6204 = vpack.c.bf16 %v6188, %v6172
        %v6205 = vpack.c.bf16 %v6189, %v6173
        %v6206 = vpack.c.bf16 %v6190, %v6174
        %v6207 = vpack.c.bf16 %v6191, %v6175
        %v6208 = vpack.c.bf16 %v6192, %v6176
        %v6209 = vpack.c.bf16 %v6193, %v6177
        %v6210 = vpack.c.bf16 %v6194, %v6178
        %v6211 = vpack.c.bf16 %v6195, %v6179
        %v6212 = vpack.c.bf16 %v6196, %v6180
        %v6213 = vlaneseq
        %v6214 = vshrl.u32 %v6213, 7
        %v6215 = vsub.s32 3, %v6214
        %v6216 = vrot.slane %v4289, %v6215
        %v6473 = vunpack.c.l.b16 %v4032
        %v6474 = vunpack.c.l.b16 %v4033
        %v6475 = vunpack.c.l.b16 %v4034
        %v6476 = vunpack.c.l.b16 %v4035
        %v6477 = vunpack.c.l.b16 %v4036
        %v6478 = vunpack.c.l.b16 %v4037
        %v6479 = vunpack.c.l.b16 %v4038
        %v6480 = vunpack.c.l.b16 %v4039
        %v6481 = vunpack.c.l.b16 %v4040
        %v6482 = vunpack.c.l.b16 %v4041
        %v6483 = vunpack.c.l.b16 %v4042
        %v6484 = vunpack.c.l.b16 %v4043
        %v6485 = vunpack.c.l.b16 %v4044
        %v6486 = vunpack.c.l.b16 %v4045
        %v6487 = vunpack.c.l.b16 %v4046
        %v6488 = vunpack.c.l.b16 %v4047
        %v6489 = vunpack.c.l.b16 %v4048
        %v6490 = vunpack.c.l.b16 %v4049
        %v6491 = vunpack.c.l.b16 %v4050
        %v6492 = vunpack.c.l.b16 %v4051
        %v6493 = vunpack.c.l.b16 %v4052
        %v6494 = vunpack.c.l.b16 %v4053
        %v6495 = vunpack.c.l.b16 %v4054
        %v6496 = vunpack.c.l.b16 %v4055
        %v6497 = vunpack.c.l.b16 %v4056
        %v6498 = vunpack.c.l.b16 %v4057
        %v6499 = vunpack.c.l.b16 %v4058
        %v6500 = vunpack.c.l.b16 %v4059
        %v6501 = vunpack.c.l.b16 %v4060
        %v6502 = vunpack.c.l.b16 %v4061
        %v6503 = vunpack.c.l.b16 %v4062
        %v6504 = vunpack.c.l.b16 %v4063
        %v6505 = vunpack.c.l.b16 %v4064
        %v6506 = vunpack.c.l.b16 %v4065
        %v6507 = vunpack.c.l.b16 %v4066
        %v6508 = vunpack.c.l.b16 %v4067
        %v6509 = vunpack.c.l.b16 %v4068
        %v6510 = vunpack.c.l.b16 %v4069
        %v6511 = vunpack.c.l.b16 %v4070
        %v6512 = vunpack.c.l.b16 %v4071
        %v6513 = vunpack.c.l.b16 %v4072
        %v6514 = vunpack.c.l.b16 %v4073
        %v6515 = vunpack.c.l.b16 %v4074
        %v6516 = vunpack.c.l.b16 %v4075
        %v6517 = vunpack.c.l.b16 %v4076
        %v6518 = vunpack.c.l.b16 %v4077
        %v6519 = vunpack.c.l.b16 %v4078
        %v6520 = vunpack.c.l.b16 %v4079
        %v6521 = vunpack.c.l.b16 %v4080
        %v6522 = vunpack.c.l.b16 %v4081
        %v6523 = vunpack.c.l.b16 %v4082
        %v6524 = vunpack.c.l.b16 %v4083
        %v6525 = vunpack.c.l.b16 %v4084
        %v6526 = vunpack.c.l.b16 %v4085
        %v6527 = vunpack.c.l.b16 %v4086
        %v6528 = vunpack.c.l.b16 %v4087
        %v6529 = vunpack.c.l.b16 %v4088
        %v6530 = vunpack.c.l.b16 %v4089
        %v6531 = vunpack.c.l.b16 %v4090
        %v6532 = vunpack.c.l.b16 %v4091
        %v6533 = vunpack.c.l.b16 %v4092
        %v6534 = vunpack.c.l.b16 %v4093
        %v6535 = vunpack.c.l.b16 %v4094
        %v6536 = vunpack.c.l.b16 %v4095
        %v6537 = vunpack.c.l.b16 %v4096
        %v6538 = vunpack.c.l.b16 %v4097
        %v6539 = vunpack.c.l.b16 %v4098
        %v6540 = vunpack.c.l.b16 %v4099
        %v6541 = vunpack.c.l.b16 %v4100
        %v6542 = vunpack.c.l.b16 %v4101
        %v6543 = vunpack.c.l.b16 %v4102
        %v6544 = vunpack.c.l.b16 %v4103
        %v6545 = vunpack.c.l.b16 %v4104
        %v6546 = vunpack.c.l.b16 %v4105
        %v6547 = vunpack.c.l.b16 %v4106
        %v6548 = vunpack.c.l.b16 %v4107
        %v6549 = vunpack.c.l.b16 %v4108
        %v6550 = vunpack.c.l.b16 %v4109
        %v6551 = vunpack.c.l.b16 %v4110
        %v6552 = vunpack.c.l.b16 %v4111
        %v6553 = vunpack.c.l.b16 %v4112
        %v6554 = vunpack.c.l.b16 %v4113
        %v6555 = vunpack.c.l.b16 %v4114
        %v6556 = vunpack.c.l.b16 %v4115
        %v6557 = vunpack.c.l.b16 %v4116
        %v6558 = vunpack.c.l.b16 %v4117
        %v6559 = vunpack.c.l.b16 %v4118
        %v6560 = vunpack.c.l.b16 %v4119
        %v6561 = vunpack.c.l.b16 %v4120
        %v6562 = vunpack.c.l.b16 %v4121
        %v6563 = vunpack.c.l.b16 %v4122
        %v6564 = vunpack.c.l.b16 %v4123
        %v6565 = vunpack.c.l.b16 %v4124
        %v6566 = vunpack.c.l.b16 %v4125
        %v6567 = vunpack.c.l.b16 %v4126
        %v6568 = vunpack.c.l.b16 %v4127
        %v6569 = vunpack.c.l.b16 %v4128
        %v6570 = vunpack.c.l.b16 %v4129
        %v6571 = vunpack.c.l.b16 %v4130
        %v6572 = vunpack.c.l.b16 %v4131
        %v6573 = vunpack.c.l.b16 %v4132
        %v6574 = vunpack.c.l.b16 %v4133
        %v6575 = vunpack.c.l.b16 %v4134
        %v6576 = vunpack.c.l.b16 %v4135
        %v6577 = vunpack.c.l.b16 %v4136
        %v6578 = vunpack.c.l.b16 %v4137
        %v6579 = vunpack.c.l.b16 %v4138
        %v6580 = vunpack.c.l.b16 %v4139
        %v6581 = vunpack.c.l.b16 %v4140
        %v6582 = vunpack.c.l.b16 %v4141
        %v6583 = vunpack.c.l.b16 %v4142
        %v6584 = vunpack.c.l.b16 %v4143
        %v6585 = vunpack.c.l.b16 %v4144
        %v6586 = vunpack.c.l.b16 %v4145
        %v6587 = vunpack.c.l.b16 %v4146
        %v6588 = vunpack.c.l.b16 %v4147
        %v6589 = vunpack.c.l.b16 %v4148
        %v6590 = vunpack.c.l.b16 %v4149
        %v6591 = vunpack.c.l.b16 %v4150
        %v6592 = vunpack.c.l.b16 %v4151
        %v6593 = vunpack.c.l.b16 %v4152
        %v6594 = vunpack.c.l.b16 %v4153
        %v6595 = vunpack.c.l.b16 %v4154
        %v6596 = vunpack.c.l.b16 %v4155
        %v6597 = vunpack.c.l.b16 %v4156
        %v6598 = vunpack.c.l.b16 %v4157
        %v6599 = vunpack.c.l.b16 %v4158
        %v6600 = vunpack.c.l.b16 %v4159
        %v6601 = vunpack.c.l.b16 %v4160
        %v6602 = vunpack.c.l.b16 %v4161
        %v6603 = vunpack.c.l.b16 %v4162
        %v6604 = vunpack.c.l.b16 %v4163
        %v6605 = vunpack.c.l.b16 %v4164
        %v6606 = vunpack.c.l.b16 %v4165
        %v6607 = vunpack.c.l.b16 %v4166
        %v6608 = vunpack.c.l.b16 %v4167
        %v6609 = vunpack.c.l.b16 %v4168
        %v6610 = vunpack.c.l.b16 %v4169
        %v6611 = vunpack.c.l.b16 %v4170
        %v6612 = vunpack.c.l.b16 %v4171
        %v6613 = vunpack.c.l.b16 %v4172
        %v6614 = vunpack.c.l.b16 %v4173
        %v6615 = vunpack.c.l.b16 %v4174
        %v6616 = vunpack.c.l.b16 %v4175
        %v6617 = vunpack.c.l.b16 %v4176
        %v6618 = vunpack.c.l.b16 %v4177
        %v6619 = vunpack.c.l.b16 %v4178
        %v6620 = vunpack.c.l.b16 %v4179
        %v6621 = vunpack.c.l.b16 %v4180
        %v6622 = vunpack.c.l.b16 %v4181
        %v6623 = vunpack.c.l.b16 %v4182
        %v6624 = vunpack.c.l.b16 %v4183
        %v6625 = vunpack.c.l.b16 %v4184
        %v6626 = vunpack.c.l.b16 %v4185
        %v6627 = vunpack.c.l.b16 %v4186
        %v6628 = vunpack.c.l.b16 %v4187
        %v6629 = vunpack.c.l.b16 %v4188
        %v6630 = vunpack.c.l.b16 %v4189
        %v6631 = vunpack.c.l.b16 %v4190
        %v6632 = vunpack.c.l.b16 %v4191
        %v6633 = vunpack.c.l.b16 %v4192
        %v6634 = vunpack.c.l.b16 %v4193
        %v6635 = vunpack.c.l.b16 %v4194
        %v6636 = vunpack.c.l.b16 %v4195
        %v6637 = vunpack.c.l.b16 %v4196
        %v6638 = vunpack.c.l.b16 %v4197
        %v6639 = vunpack.c.l.b16 %v4198
        %v6640 = vunpack.c.l.b16 %v4199
        %v6641 = vunpack.c.l.b16 %v4200
        %v6642 = vunpack.c.l.b16 %v4201
        %v6643 = vunpack.c.l.b16 %v4202
        %v6644 = vunpack.c.l.b16 %v4203
        %v6645 = vunpack.c.l.b16 %v4204
        %v6646 = vunpack.c.l.b16 %v4205
        %v6647 = vunpack.c.l.b16 %v4206
        %v6648 = vunpack.c.l.b16 %v4207
        %v6649 = vunpack.c.l.b16 %v4208
        %v6650 = vunpack.c.l.b16 %v4209
        %v6651 = vunpack.c.l.b16 %v4210
        %v6652 = vunpack.c.l.b16 %v4211
        %v6653 = vunpack.c.l.b16 %v4212
        %v6654 = vunpack.c.l.b16 %v4213
        %v6655 = vunpack.c.l.b16 %v4214
        %v6656 = vunpack.c.l.b16 %v4215
        %v6657 = vunpack.c.l.b16 %v4216
        %v6658 = vunpack.c.l.b16 %v4217
        %v6659 = vunpack.c.l.b16 %v4218
        %v6660 = vunpack.c.l.b16 %v4219
        %v6661 = vunpack.c.l.b16 %v4220
        %v6662 = vunpack.c.l.b16 %v4221
        %v6663 = vunpack.c.l.b16 %v4222
        %v6664 = vunpack.c.l.b16 %v4223
        %v6665 = vunpack.c.l.b16 %v4224
        %v6666 = vunpack.c.l.b16 %v4225
        %v6667 = vunpack.c.l.b16 %v4226
        %v6668 = vunpack.c.l.b16 %v4227
        %v6669 = vunpack.c.l.b16 %v4228
        %v6670 = vunpack.c.l.b16 %v4229
        %v6671 = vunpack.c.l.b16 %v4230
        %v6672 = vunpack.c.l.b16 %v4231
        %v6673 = vunpack.c.l.b16 %v4232
        %v6674 = vunpack.c.l.b16 %v4233
        %v6675 = vunpack.c.l.b16 %v4234
        %v6676 = vunpack.c.l.b16 %v4235
        %v6677 = vunpack.c.l.b16 %v4236
        %v6678 = vunpack.c.l.b16 %v4237
        %v6679 = vunpack.c.l.b16 %v4238
        %v6680 = vunpack.c.l.b16 %v4239
        %v6681 = vunpack.c.l.b16 %v4240
        %v6682 = vunpack.c.l.b16 %v4241
        %v6683 = vunpack.c.l.b16 %v4242
        %v6684 = vunpack.c.l.b16 %v4243
        %v6685 = vunpack.c.l.b16 %v4244
        %v6686 = vunpack.c.l.b16 %v4245
        %v6687 = vunpack.c.l.b16 %v4246
        %v6688 = vunpack.c.l.b16 %v4247
        %v6689 = vunpack.c.l.b16 %v4248
        %v6690 = vunpack.c.l.b16 %v4249
        %v6691 = vunpack.c.l.b16 %v4250
        %v6692 = vunpack.c.l.b16 %v4251
        %v6693 = vunpack.c.l.b16 %v4252
        %v6694 = vunpack.c.l.b16 %v4253
        %v6695 = vunpack.c.l.b16 %v4254
        %v6696 = vunpack.c.l.b16 %v4255
        %v6697 = vunpack.c.l.b16 %v4256
        %v6698 = vunpack.c.l.b16 %v4257
        %v6699 = vunpack.c.l.b16 %v4258
        %v6700 = vunpack.c.l.b16 %v4259
        %v6701 = vunpack.c.l.b16 %v4260
        %v6702 = vunpack.c.l.b16 %v4261
        %v6703 = vunpack.c.l.b16 %v4262
        %v6704 = vunpack.c.l.b16 %v4263
        %v6705 = vunpack.c.l.b16 %v4264
        %v6706 = vunpack.c.l.b16 %v4265
        %v6707 = vunpack.c.l.b16 %v4266
        %v6708 = vunpack.c.l.b16 %v4267
        %v6709 = vunpack.c.l.b16 %v4268
        %v6710 = vunpack.c.l.b16 %v4269
        %v6711 = vunpack.c.l.b16 %v4270
        %v6712 = vunpack.c.l.b16 %v4271
        %v6713 = vunpack.c.l.b16 %v4272
        %v6714 = vunpack.c.l.b16 %v4273
        %v6715 = vunpack.c.l.b16 %v4274
        %v6716 = vunpack.c.l.b16 %v4275
        %v6717 = vunpack.c.l.b16 %v4276
        %v6718 = vunpack.c.l.b16 %v4277
        %v6719 = vunpack.c.l.b16 %v4278
        %v6720 = vunpack.c.l.b16 %v4279
        %v6721 = vunpack.c.l.b16 %v4280
        %v6722 = vunpack.c.l.b16 %v4281
        %v6723 = vunpack.c.l.b16 %v4282
        %v6724 = vunpack.c.l.b16 %v4283
        %v6725 = vunpack.c.l.b16 %v4284
        %v6726 = vunpack.c.l.b16 %v4285
        %v6727 = vunpack.c.l.b16 %v4286
        %v6728 = vunpack.c.l.b16 %v4287
        %v6729 = vpack.c.b16 %v6474, %v6473
        %v6730 = vpack.c.b16 %v6476, %v6475
        %v6731 = vpack.c.b16 %v6478, %v6477
        %v6732 = vpack.c.b16 %v6480, %v6479
        %v6733 = vpack.c.b16 %v6482, %v6481
        %v6734 = vpack.c.b16 %v6484, %v6483
        %v6735 = vpack.c.b16 %v6486, %v6485
        %v6736 = vpack.c.b16 %v6488, %v6487
        %v6737 = vpack.c.b16 %v6490, %v6489
        %v6738 = vpack.c.b16 %v6492, %v6491
        %v6739 = vpack.c.b16 %v6494, %v6493
        %v6740 = vpack.c.b16 %v6496, %v6495
        %v6741 = vpack.c.b16 %v6498, %v6497
        %v6742 = vpack.c.b16 %v6500, %v6499
        %v6743 = vpack.c.b16 %v6502, %v6501
        %v6744 = vpack.c.b16 %v6504, %v6503
        %v6745 = vpack.c.b16 %v6506, %v6505
        %v6746 = vpack.c.b16 %v6508, %v6507
        %v6747 = vpack.c.b16 %v6510, %v6509
        %v6748 = vpack.c.b16 %v6512, %v6511
        %v6749 = vpack.c.b16 %v6514, %v6513
        %v6750 = vpack.c.b16 %v6516, %v6515
        %v6751 = vpack.c.b16 %v6518, %v6517
        %v6752 = vpack.c.b16 %v6520, %v6519
        %v6753 = vpack.c.b16 %v6522, %v6521
        %v6754 = vpack.c.b16 %v6524, %v6523
        %v6755 = vpack.c.b16 %v6526, %v6525
        %v6756 = vpack.c.b16 %v6528, %v6527
        %v6757 = vpack.c.b16 %v6530, %v6529
        %v6758 = vpack.c.b16 %v6532, %v6531
        %v6759 = vpack.c.b16 %v6534, %v6533
        %v6760 = vpack.c.b16 %v6536, %v6535
        %v6761 = vpack.c.b16 %v6538, %v6537
        %v6762 = vpack.c.b16 %v6540, %v6539
        %v6763 = vpack.c.b16 %v6542, %v6541
        %v6764 = vpack.c.b16 %v6544, %v6543
        %v6765 = vpack.c.b16 %v6546, %v6545
        %v6766 = vpack.c.b16 %v6548, %v6547
        %v6767 = vpack.c.b16 %v6550, %v6549
        %v6768 = vpack.c.b16 %v6552, %v6551
        %v6769 = vpack.c.b16 %v6554, %v6553
        %v6770 = vpack.c.b16 %v6556, %v6555
        %v6771 = vpack.c.b16 %v6558, %v6557
        %v6772 = vpack.c.b16 %v6560, %v6559
        %v6773 = vpack.c.b16 %v6562, %v6561
        %v6774 = vpack.c.b16 %v6564, %v6563
        %v6775 = vpack.c.b16 %v6566, %v6565
        %v6776 = vpack.c.b16 %v6568, %v6567
        %v6777 = vpack.c.b16 %v6570, %v6569
        %v6778 = vpack.c.b16 %v6572, %v6571
        %v6779 = vpack.c.b16 %v6574, %v6573
        %v6780 = vpack.c.b16 %v6576, %v6575
        %v6781 = vpack.c.b16 %v6578, %v6577
        %v6782 = vpack.c.b16 %v6580, %v6579
        %v6783 = vpack.c.b16 %v6582, %v6581
        %v6784 = vpack.c.b16 %v6584, %v6583
        %v6785 = vpack.c.b16 %v6586, %v6585
        %v6786 = vpack.c.b16 %v6588, %v6587
        %v6787 = vpack.c.b16 %v6590, %v6589
        %v6788 = vpack.c.b16 %v6592, %v6591
        %v6789 = vpack.c.b16 %v6594, %v6593
        %v6790 = vpack.c.b16 %v6596, %v6595
        %v6791 = vpack.c.b16 %v6598, %v6597
        %v6792 = vpack.c.b16 %v6600, %v6599
        %v6793 = vpack.c.b16 %v6602, %v6601
        %v6794 = vpack.c.b16 %v6604, %v6603
        %v6795 = vpack.c.b16 %v6606, %v6605
        %v6796 = vpack.c.b16 %v6608, %v6607
        %v6797 = vpack.c.b16 %v6610, %v6609
        %v6798 = vpack.c.b16 %v6612, %v6611
        %v6799 = vpack.c.b16 %v6614, %v6613
        %v6800 = vpack.c.b16 %v6616, %v6615
        %v6801 = vpack.c.b16 %v6618, %v6617
        %v6802 = vpack.c.b16 %v6620, %v6619
        %v6803 = vpack.c.b16 %v6622, %v6621
        %v6804 = vpack.c.b16 %v6624, %v6623
        %v6805 = vpack.c.b16 %v6626, %v6625
        %v6806 = vpack.c.b16 %v6628, %v6627
        %v6807 = vpack.c.b16 %v6630, %v6629
        %v6808 = vpack.c.b16 %v6632, %v6631
        %v6809 = vpack.c.b16 %v6634, %v6633
        %v6810 = vpack.c.b16 %v6636, %v6635
        %v6811 = vpack.c.b16 %v6638, %v6637
        %v6812 = vpack.c.b16 %v6640, %v6639
        %v6813 = vpack.c.b16 %v6642, %v6641
        %v6814 = vpack.c.b16 %v6644, %v6643
        %v6815 = vpack.c.b16 %v6646, %v6645
        %v6816 = vpack.c.b16 %v6648, %v6647
        %v6817 = vpack.c.b16 %v6650, %v6649
        %v6818 = vpack.c.b16 %v6652, %v6651
        %v6819 = vpack.c.b16 %v6654, %v6653
        %v6820 = vpack.c.b16 %v6656, %v6655
        %v6821 = vpack.c.b16 %v6658, %v6657
        %v6822 = vpack.c.b16 %v6660, %v6659
        %v6823 = vpack.c.b16 %v6662, %v6661
        %v6824 = vpack.c.b16 %v6664, %v6663
        %v6825 = vpack.c.b16 %v6666, %v6665
        %v6826 = vpack.c.b16 %v6668, %v6667
        %v6827 = vpack.c.b16 %v6670, %v6669
        %v6828 = vpack.c.b16 %v6672, %v6671
        %v6829 = vpack.c.b16 %v6674, %v6673
        %v6830 = vpack.c.b16 %v6676, %v6675
        %v6831 = vpack.c.b16 %v6678, %v6677
        %v6832 = vpack.c.b16 %v6680, %v6679
        %v6833 = vpack.c.b16 %v6682, %v6681
        %v6834 = vpack.c.b16 %v6684, %v6683
        %v6835 = vpack.c.b16 %v6686, %v6685
        %v6836 = vpack.c.b16 %v6688, %v6687
        %v6837 = vpack.c.b16 %v6690, %v6689
        %v6838 = vpack.c.b16 %v6692, %v6691
        %v6839 = vpack.c.b16 %v6694, %v6693
        %v6840 = vpack.c.b16 %v6696, %v6695
        %v6841 = vpack.c.b16 %v6698, %v6697
        %v6842 = vpack.c.b16 %v6700, %v6699
        %v6843 = vpack.c.b16 %v6702, %v6701
        %v6844 = vpack.c.b16 %v6704, %v6703
        %v6845 = vpack.c.b16 %v6706, %v6705
        %v6846 = vpack.c.b16 %v6708, %v6707
        %v6847 = vpack.c.b16 %v6710, %v6709
        %v6848 = vpack.c.b16 %v6712, %v6711
        %v6849 = vpack.c.b16 %v6714, %v6713
        %v6850 = vpack.c.b16 %v6716, %v6715
        %v6851 = vpack.c.b16 %v6718, %v6717
        %v6852 = vpack.c.b16 %v6720, %v6719
        %v6853 = vpack.c.b16 %v6722, %v6721
        %v6854 = vpack.c.b16 %v6724, %v6723
        %v6855 = vpack.c.b16 %v6726, %v6725
        %v6856 = vpack.c.b16 %v6728, %v6727
        %6985 = vmatprep.subr.bf16.mxu0 0
        %6986 = vmatpush1.bf16.msra.mxu0 %v6729
        %6987 = vmatprep.subr.bf16.mxu0 0
        %6988 = vmatpush1.bf16.msra.mxu0 %v6730
        %6989 = vmatprep.subr.bf16.mxu0 0
        %6990 = vmatpush1.bf16.msra.mxu0 %v6731
        %6991 = vmatprep.subr.bf16.mxu0 0
        %6992 = vmatpush1.bf16.msra.mxu0 %v6732
        %6993 = vmatprep.subr.bf16.mxu0 0
        %6994 = vmatpush1.bf16.msra.mxu0 %v6733
        %6995 = vmatprep.subr.bf16.mxu0 0
        %6996 = vmatpush1.bf16.msra.mxu0 %v6734
        %6997 = vmatprep.subr.bf16.mxu0 0
        %6998 = vmatpush1.bf16.msra.mxu0 %v6735
        %6999 = vmatprep.subr.bf16.mxu0 0
        %7000 = vmatpush1.bf16.msra.mxu0 %v6736
        %7001 = vmatprep.subr.bf16.mxu0 0
        %7002 = vmatpush1.bf16.msra.mxu0 %v6737
        %7003 = vmatprep.subr.bf16.mxu0 0
        %7004 = vmatpush1.bf16.msra.mxu0 %v6738
        %7005 = vmatprep.subr.bf16.mxu0 0
        %7006 = vmatpush1.bf16.msra.mxu0 %v6739
        %7007 = vmatprep.subr.bf16.mxu0 0
        %7008 = vmatpush1.bf16.msra.mxu0 %v6740
        %7009 = vmatprep.subr.bf16.mxu0 0
        %7010 = vmatpush1.bf16.msra.mxu0 %v6741
        %7011 = vmatprep.subr.bf16.mxu0 0
        %7012 = vmatpush1.bf16.msra.mxu0 %v6742
        %7013 = vmatprep.subr.bf16.mxu0 0
        %7014 = vmatpush1.bf16.msra.mxu0 %v6743
        %7015 = vmatprep.subr.bf16.mxu0 0
        %7016 = vmatpush1.bf16.msra.mxu0 %v6744
        %7017 = vmatprep.mubr.bf16.mxu0 %v6198
        %7018 = vmatmul.mubr.bf16.gmra.mrb[0].mxu0 %v6197
        %v7019 = vpop.f32.mrb[0].mxu0
        %v7020 = vadd.f32 %v6216, %v7019
        %v7021 = vpop.f32.mrb[0].mxu0
        %v7022 = vpop.f32.mrb[0].mxu0
        %v7023 = vadd.f32 %v6216, %v7022
        %v7024 = vpop.f32.mrb[0].mxu0
        %7025 = vdwg.mxu0
        %7026 = vmatprep.subr.bf16.mxu0 0
        %7027 = vmatpush1.bf16.msra.mxu0 %v6745
        %7028 = vmatprep.subr.bf16.mxu0 0
        %7029 = vmatpush1.bf16.msra.mxu0 %v6746
        %7030 = vmatprep.subr.bf16.mxu0 0
        %7031 = vmatpush1.bf16.msra.mxu0 %v6747
        %7032 = vmatprep.subr.bf16.mxu0 0
        %7033 = vmatpush1.bf16.msra.mxu0 %v6748
        %7034 = vmatprep.subr.bf16.mxu0 0
        %7035 = vmatpush1.bf16.msra.mxu0 %v6749
        %7036 = vmatprep.subr.bf16.mxu0 0
        %7037 = vmatpush1.bf16.msra.mxu0 %v6750
        %7038 = vmatprep.subr.bf16.mxu0 0
        %7039 = vmatpush1.bf16.msra.mxu0 %v6751
        %7040 = vmatprep.subr.bf16.mxu0 0
        %7041 = vmatpush1.bf16.msra.mxu0 %v6752
        %7042 = vmatprep.subr.bf16.mxu0 0
        %7043 = vmatpush1.bf16.msra.mxu0 %v6753
        %7044 = vmatprep.subr.bf16.mxu0 0
        %7045 = vmatpush1.bf16.msra.mxu0 %v6754
        %7046 = vmatprep.subr.bf16.mxu0 0
        %7047 = vmatpush1.bf16.msra.mxu0 %v6755
        %7048 = vmatprep.subr.bf16.mxu0 0
        %7049 = vmatpush1.bf16.msra.mxu0 %v6756
        %7050 = vmatprep.subr.bf16.mxu0 0
        %7051 = vmatpush1.bf16.msra.mxu0 %v6757
        %7052 = vmatprep.subr.bf16.mxu0 0
        %7053 = vmatpush1.bf16.msra.mxu0 %v6758
        %7054 = vmatprep.subr.bf16.mxu0 0
        %7055 = vmatpush1.bf16.msra.mxu0 %v6759
        %7056 = vmatprep.subr.bf16.mxu0 0
        %7057 = vmatpush1.bf16.msra.mxu0 %v6760
        %7058 = vmatprep.mubr.bf16.mxu0 %v6200
        %7059 = vmatmul.mubr.bf16.gmra.mrb[0].mxu0 %v6199
        %v7060 = vpop.f32.mrb[0].mxu0
        %v7061 = vadd.f32 %v7020, %v7060
        %v7062 = vpop.f32.mrb[0].mxu0
        %v7063 = vpop.f32.mrb[0].mxu0
        %v7064 = vadd.f32 %v7023, %v7063
        %v7065 = vpop.f32.mrb[0].mxu0
        %7066 = vdwg.mxu0
        %7067 = vmatprep.subr.bf16.mxu0 0
        %7068 = vmatpush1.bf16.msra.mxu0 %v6761
        %7069 = vmatprep.subr.bf16.mxu0 0
        %7070 = vmatpush1.bf16.msra.mxu0 %v6762
        %7071 = vmatprep.subr.bf16.mxu0 0
        %7072 = vmatpush1.bf16.msra.mxu0 %v6763
        %7073 = vmatprep.subr.bf16.mxu0 0
        %7074 = vmatpush1.bf16.msra.mxu0 %v6764
        %7075 = vmatprep.subr.bf16.mxu0 0
        %7076 = vmatpush1.bf16.msra.mxu0 %v6765
        %7077 = vmatprep.subr.bf16.mxu0 0
        %7078 = vmatpush1.bf16.msra.mxu0 %v6766
        %7079 = vmatprep.subr.bf16.mxu0 0
        %7080 = vmatpush1.bf16.msra.mxu0 %v6767
        %7081 = vmatprep.subr.bf16.mxu0 0
        %7082 = vmatpush1.bf16.msra.mxu0 %v6768
        %7083 = vmatprep.subr.bf16.mxu0 0
        %7084 = vmatpush1.bf16.msra.mxu0 %v6769
        %7085 = vmatprep.subr.bf16.mxu0 0
        %7086 = vmatpush1.bf16.msra.mxu0 %v6770
        %7087 = vmatprep.subr.bf16.mxu0 0
        %7088 = vmatpush1.bf16.msra.mxu0 %v6771
        %7089 = vmatprep.subr.bf16.mxu0 0
        %7090 = vmatpush1.bf16.msra.mxu0 %v6772
        %7091 = vmatprep.subr.bf16.mxu0 0
        %7092 = vmatpush1.bf16.msra.mxu0 %v6773
        %7093 = vmatprep.subr.bf16.mxu0 0
        %7094 = vmatpush1.bf16.msra.mxu0 %v6774
        %7095 = vmatprep.subr.bf16.mxu0 0
        %7096 = vmatpush1.bf16.msra.mxu0 %v6775
        %7097 = vmatprep.subr.bf16.mxu0 0
        %7098 = vmatpush1.bf16.msra.mxu0 %v6776
        %7099 = vmatprep.mubr.bf16.mxu0 %v6202
        %7100 = vmatmul.mubr.bf16.gmra.mrb[0].mxu0 %v6201
        %v7101 = vpop.f32.mrb[0].mxu0
        %v7102 = vadd.f32 %v7061, %v7101
        %v7103 = vpop.f32.mrb[0].mxu0
        %v7104 = vpop.f32.mrb[0].mxu0
        %v7105 = vadd.f32 %v7064, %v7104
        %v7106 = vpop.f32.mrb[0].mxu0
        %7107 = vdwg.mxu0
        %7108 = vmatprep.subr.bf16.mxu0 0
        %7109 = vmatpush1.bf16.msra.mxu0 %v6777
        %7110 = vmatprep.subr.bf16.mxu0 0
        %7111 = vmatpush1.bf16.msra.mxu0 %v6778
        %7112 = vmatprep.subr.bf16.mxu0 0
        %7113 = vmatpush1.bf16.msra.mxu0 %v6779
        %7114 = vmatprep.subr.bf16.mxu0 0
        %7115 = vmatpush1.bf16.msra.mxu0 %v6780
        %7116 = vmatprep.subr.bf16.mxu0 0
        %7117 = vmatpush1.bf16.msra.mxu0 %v6781
        %7118 = vmatprep.subr.bf16.mxu0 0
        %7119 = vmatpush1.bf16.msra.mxu0 %v6782
        %7120 = vmatprep.subr.bf16.mxu0 0
        %7121 = vmatpush1.bf16.msra.mxu0 %v6783
        %7122 = vmatprep.subr.bf16.mxu0 0
        %7123 = vmatpush1.bf16.msra.mxu0 %v6784
        %7124 = vmatprep.subr.bf16.mxu0 0
        %7125 = vmatpush1.bf16.msra.mxu0 %v6785
        %7126 = vmatprep.subr.bf16.mxu0 0
        %7127 = vmatpush1.bf16.msra.mxu0 %v6786
        %7128 = vmatprep.subr.bf16.mxu0 0
        %7129 = vmatpush1.bf16.msra.mxu0 %v6787
        %7130 = vmatprep.subr.bf16.mxu0 0
        %7131 = vmatpush1.bf16.msra.mxu0 %v6788
        %7132 = vmatprep.subr.bf16.mxu0 0
        %7133 = vmatpush1.bf16.msra.mxu0 %v6789
        %7134 = vmatprep.subr.bf16.mxu0 0
        %7135 = vmatpush1.bf16.msra.mxu0 %v6790
        %7136 = vmatprep.subr.bf16.mxu0 0
        %7137 = vmatpush1.bf16.msra.mxu0 %v6791
        %7138 = vmatprep.subr.bf16.mxu0 0
        %7139 = vmatpush1.bf16.msra.mxu0 %v6792
        %7140 = vmatprep.mubr.bf16.mxu0 %v6204
        %7141 = vmatmul.mubr.bf16.gmra.mrb[0].mxu0 %v6203
        %v7142 = vpop.f32.mrb[0].mxu0
        %v7143 = vadd.f32 %v7102, %v7142
        %v7144 = vpop.f32.mrb[0].mxu0
        %v7145 = vpop.f32.mrb[0].mxu0
        %v7146 = vadd.f32 %v7105, %v7145
        %v7147 = vpop.f32.mrb[0].mxu0
        %7148 = vdwg.mxu0
        %7149 = vmatprep.subr.bf16.mxu0 0
        %7150 = vmatpush1.bf16.msra.mxu0 %v6793
        %7151 = vmatprep.subr.bf16.mxu0 0
        %7152 = vmatpush1.bf16.msra.mxu0 %v6794
        %7153 = vmatprep.subr.bf16.mxu0 0
        %7154 = vmatpush1.bf16.msra.mxu0 %v6795
        %7155 = vmatprep.subr.bf16.mxu0 0
        %7156 = vmatpush1.bf16.msra.mxu0 %v6796
        %7157 = vmatprep.subr.bf16.mxu0 0
        %7158 = vmatpush1.bf16.msra.mxu0 %v6797
        %7159 = vmatprep.subr.bf16.mxu0 0
        %7160 = vmatpush1.bf16.msra.mxu0 %v6798
        %7161 = vmatprep.subr.bf16.mxu0 0
        %7162 = vmatpush1.bf16.msra.mxu0 %v6799
        %7163 = vmatprep.subr.bf16.mxu0 0
        %7164 = vmatpush1.bf16.msra.mxu0 %v6800
        %7165 = vmatprep.subr.bf16.mxu0 0
        %7166 = vmatpush1.bf16.msra.mxu0 %v6801
        %7167 = vmatprep.subr.bf16.mxu0 0
        %7168 = vmatpush1.bf16.msra.mxu0 %v6802
        %7169 = vmatprep.subr.bf16.mxu0 0
        %7170 = vmatpush1.bf16.msra.mxu0 %v6803
        %7171 = vmatprep.subr.bf16.mxu0 0
        %7172 = vmatpush1.bf16.msra.mxu0 %v6804
        %7173 = vmatprep.subr.bf16.mxu0 0
        %7174 = vmatpush1.bf16.msra.mxu0 %v6805
        %7175 = vmatprep.subr.bf16.mxu0 0
        %7176 = vmatpush1.bf16.msra.mxu0 %v6806
        %7177 = vmatprep.subr.bf16.mxu0 0
        %7178 = vmatpush1.bf16.msra.mxu0 %v6807
        %7179 = vmatprep.subr.bf16.mxu0 0
        %7180 = vmatpush1.bf16.msra.mxu0 %v6808
        %7181 = vmatprep.mubr.bf16.mxu0 %v6206
        %7182 = vmatmul.mubr.bf16.gmra.mrb[0].mxu0 %v6205
        %v7183 = vpop.f32.mrb[0].mxu0
        %v7184 = vadd.f32 %v7143, %v7183
        %v7185 = vpop.f32.mrb[0].mxu0
        %v7186 = vpop.f32.mrb[0].mxu0
        %v7187 = vadd.f32 %v7146, %v7186
        %v7188 = vpop.f32.mrb[0].mxu0
        %7189 = vdwg.mxu0
        %7190 = vmatprep.subr.bf16.mxu0 0
        %7191 = vmatpush1.bf16.msra.mxu0 %v6809
        %7192 = vmatprep.subr.bf16.mxu0 0
        %7193 = vmatpush1.bf16.msra.mxu0 %v6810
        %7194 = vmatprep.subr.bf16.mxu0 0
        %7195 = vmatpush1.bf16.msra.mxu0 %v6811
        %7196 = vmatprep.subr.bf16.mxu0 0
        %7197 = vmatpush1.bf16.msra.mxu0 %v6812
        %7198 = vmatprep.subr.bf16.mxu0 0
        %7199 = vmatpush1.bf16.msra.mxu0 %v6813
        %7200 = vmatprep.subr.bf16.mxu0 0
        %7201 = vmatpush1.bf16.msra.mxu0 %v6814
        %7202 = vmatprep.subr.bf16.mxu0 0
        %7203 = vmatpush1.bf16.msra.mxu0 %v6815
        %7204 = vmatprep.subr.bf16.mxu0 0
        %7205 = vmatpush1.bf16.msra.mxu0 %v6816
        %7206 = vmatprep.subr.bf16.mxu0 0
        %7207 = vmatpush1.bf16.msra.mxu0 %v6817
        %7208 = vmatprep.subr.bf16.mxu0 0
        %7209 = vmatpush1.bf16.msra.mxu0 %v6818
        %7210 = vmatprep.subr.bf16.mxu0 0
        %7211 = vmatpush1.bf16.msra.mxu0 %v6819
        %7212 = vmatprep.subr.bf16.mxu0 0
        %7213 = vmatpush1.bf16.msra.mxu0 %v6820
        %7214 = vmatprep.subr.bf16.mxu0 0
        %7215 = vmatpush1.bf16.msra.mxu0 %v6821
        %7216 = vmatprep.subr.bf16.mxu0 0
        %7217 = vmatpush1.bf16.msra.mxu0 %v6822
        %7218 = vmatprep.subr.bf16.mxu0 0
        %7219 = vmatpush1.bf16.msra.mxu0 %v6823
        %7220 = vmatprep.subr.bf16.mxu0 0
        %7221 = vmatpush1.bf16.msra.mxu0 %v6824
        %7222 = vmatprep.mubr.bf16.mxu0 %v6208
        %7223 = vmatmul.mubr.bf16.gmra.mrb[0].mxu0 %v6207
        %v7224 = vpop.f32.mrb[0].mxu0
        %v7225 = vadd.f32 %v7184, %v7224
        %v7226 = vpop.f32.mrb[0].mxu0
        %v7227 = vpop.f32.mrb[0].mxu0
        %v7228 = vadd.f32 %v7187, %v7227
        %v7229 = vpop.f32.mrb[0].mxu0
        %7230 = vdwg.mxu0
        %7231 = vmatprep.subr.bf16.mxu0 0
        %7232 = vmatpush1.bf16.msra.mxu0 %v6825
        %7233 = vmatprep.subr.bf16.mxu0 0
        %7234 = vmatpush1.bf16.msra.mxu0 %v6826
        %7235 = vmatprep.subr.bf16.mxu0 0
        %7236 = vmatpush1.bf16.msra.mxu0 %v6827
        %7237 = vmatprep.subr.bf16.mxu0 0
        %7238 = vmatpush1.bf16.msra.mxu0 %v6828
        %7239 = vmatprep.subr.bf16.mxu0 0
        %7240 = vmatpush1.bf16.msra.mxu0 %v6829
        %7241 = vmatprep.subr.bf16.mxu0 0
        %7242 = vmatpush1.bf16.msra.mxu0 %v6830
        %7243 = vmatprep.subr.bf16.mxu0 0
        %7244 = vmatpush1.bf16.msra.mxu0 %v6831
        %7245 = vmatprep.subr.bf16.mxu0 0
        %7246 = vmatpush1.bf16.msra.mxu0 %v6832
        %7247 = vmatprep.subr.bf16.mxu0 0
        %7248 = vmatpush1.bf16.msra.mxu0 %v6833
        %7249 = vmatprep.subr.bf16.mxu0 0
        %7250 = vmatpush1.bf16.msra.mxu0 %v6834
        %7251 = vmatprep.subr.bf16.mxu0 0
        %7252 = vmatpush1.bf16.msra.mxu0 %v6835
        %7253 = vmatprep.subr.bf16.mxu0 0
        %7254 = vmatpush1.bf16.msra.mxu0 %v6836
        %7255 = vmatprep.subr.bf16.mxu0 0
        %7256 = vmatpush1.bf16.msra.mxu0 %v6837
        %7257 = vmatprep.subr.bf16.mxu0 0
        %7258 = vmatpush1.bf16.msra.mxu0 %v6838
        %7259 = vmatprep.subr.bf16.mxu0 0
        %7260 = vmatpush1.bf16.msra.mxu0 %v6839
        %7261 = vmatprep.subr.bf16.mxu0 0
        %7262 = vmatpush1.bf16.msra.mxu0 %v6840
        %7263 = vmatprep.mubr.bf16.mxu0 %v6210
        %7264 = vmatmul.mubr.bf16.gmra.mrb[0].mxu0 %v6209
        %v7265 = vpop.f32.mrb[0].mxu0
        %v7266 = vadd.f32 %v7225, %v7265
        %v7267 = vpop.f32.mrb[0].mxu0
        %v7268 = vpop.f32.mrb[0].mxu0
        %v7269 = vadd.f32 %v7228, %v7268
        %v7270 = vpop.f32.mrb[0].mxu0
        %7271 = vdwg.mxu0
        %7272 = vmatprep.subr.bf16.mxu0 0
        %7273 = vmatpush1.bf16.msra.mxu0 %v6841
        %7274 = vmatprep.subr.bf16.mxu0 0
        %7275 = vmatpush1.bf16.msra.mxu0 %v6842
        %7276 = vmatprep.subr.bf16.mxu0 0
        %7277 = vmatpush1.bf16.msra.mxu0 %v6843
        %7278 = vmatprep.subr.bf16.mxu0 0
        %7279 = vmatpush1.bf16.msra.mxu0 %v6844
        %7280 = vmatprep.subr.bf16.mxu0 0
        %7281 = vmatpush1.bf16.msra.mxu0 %v6845
        %7282 = vmatprep.subr.bf16.mxu0 0
        %7283 = vmatpush1.bf16.msra.mxu0 %v6846
        %7284 = vmatprep.subr.bf16.mxu0 0
        %7285 = vmatpush1.bf16.msra.mxu0 %v6847
        %7286 = vmatprep.subr.bf16.mxu0 0
        %7287 = vmatpush1.bf16.msra.mxu0 %v6848
        %7288 = vmatprep.subr.bf16.mxu0 0
        %7289 = vmatpush1.bf16.msra.mxu0 %v6849
        %7290 = vmatprep.subr.bf16.mxu0 0
        %7291 = vmatpush1.bf16.msra.mxu0 %v6850
        %7292 = vmatprep.subr.bf16.mxu0 0
        %7293 = vmatpush1.bf16.msra.mxu0 %v6851
        %7294 = vmatprep.subr.bf16.mxu0 0
        %7295 = vmatpush1.bf16.msra.mxu0 %v6852
        %7296 = vmatprep.subr.bf16.mxu0 0
        %7297 = vmatpush1.bf16.msra.mxu0 %v6853
        %7298 = vmatprep.subr.bf16.mxu0 0
        %7299 = vmatpush1.bf16.msra.mxu0 %v6854
        %7300 = vmatprep.subr.bf16.mxu0 0
        %7301 = vmatpush1.bf16.msra.mxu0 %v6855
        %7302 = vmatprep.subr.bf16.mxu0 0
        %7303 = vmatpush1.bf16.msra.mxu0 %v6856
        %7304 = vmatprep.mubr.bf16.mxu0 %v6212
        %7305 = vmatmul.mubr.bf16.gmra.mrb[0].mxu0 %v6211
        %v7306 = vpop.f32.mrb[0].mxu0
        %v7307 = vadd.f32 %v7266, %v7306
        %v7308 = vpop.f32.mrb[0].mxu0
        %v7309 = vpop.f32.mrb[0].mxu0
        %v7310 = vadd.f32 %v7269, %v7309
        %v7311 = vpop.f32.mrb[0].mxu0
        %7312 = vdwg.mxu0
        %v7313 = vadd.f32 %v5413, %v7307
        %v7314 = vadd.f32 %v5414, %v7310
        %v7315 = vsel %vm927, %v7313, 0.0
        %7316 = vadd.xlane.f32.xlu0 %v7315
        %v7317 = vpop.xlane.xlu0 %7316
        %v7318 = vsel %vm927, %v7314, 0.0
        %7319 = vadd.xlane.f32.xlu0 %v7318
        %v7320 = vpop.xlane.xlu0 %7319
        %v7321 = vmul.f32 %v7317, %v1972
        %v7322 = vmul.f32 %v7320, %v1972
        %v7323 = vsub.f32 %v7313, %v7321
        %v7324 = vsub.f32 %v7314, %v7322
        %v7325 = vmul.f32 %v7323, %v7323
        %v7326 = vmul.f32 %v7324, %v7324
        %v7327 = vsel %vm927, %v7325, 0.0
        %7328 = vadd.xlane.f32.xlu0 %v7327
        %v7329 = vpop.xlane.xlu0 %7328
        %v7330 = vsel %vm927, %v7326, 0.0
        %7331 = vadd.xlane.f32.xlu0 %v7330
        %v7332 = vpop.xlane.xlu0 %7331
        %v7333 = vmul.f32 %v7329, %v1972
        %v7334 = vmul.f32 %v7332, %v1972
        %v7335 = vadd.f32 %v7333, 1e-05
        %v7336 = vadd.f32 %v7334, 1e-05
        %v7337 = vrsqrt.pop %v7335
        %v7338 = vrsqrt.pop %v7336
        %v7339 = vmul.f32 %v7323, %v7337
        %v7340 = vmul.f32 %v7324, %v7338
        %v7341 = vlaneseq
        %v7342 = vshrl.u32 %v7341, 7
        %v7343 = vsub.s32 4, %v7342
        %v7344 = vrot.slane %v4289, %v7343
        %v7345 = vmul.f32 %v7339, %v7344
        %v7346 = vmul.f32 %v7340, %v7344
        %v7347 = vlaneseq
        %v7348 = vshrl.u32 %v7347, 7
        %v7349 = vsub.s32 5, %v7348
        %v7350 = vrot.slane %v4289, %v7349
        %v7351 = vadd.f32 %v7345, %v7350
        %v7352 = vadd.f32 %v7346, %v7350
        %v7353 = vld [vmem:[%s9] sm:$0xff]
        %v7354 = vld [vmem:[%s9 + $0x8] sm:$0xff]
        %v7355 = vld [vmem:[%s9 + $0x10] sm:$0xff]
        %v7356 = vld [vmem:[%s9 + $0x18] sm:$0xff]
        %v7357 = vld [vmem:[%s9 + $0x20] sm:$0xff]
        %v7358 = vld [vmem:[%s9 + $0x28] sm:$0xff]
        %v7359 = vld [vmem:[%s9 + $0x30] sm:$0xff]
        %v7360 = vld [vmem:[%s9 + $0x38] sm:$0xff]
        %v7361 = vpack.c.bf16 %v7352, %v7351
        %v7362 = vld [vmem:[%s11] ss:$2 sm:$0x3]
        %v7364 = vlaneseq
        %v7365 = vshrl.u32 %v7364, 7
        %v7366 = vsub.s32 0, %v7365
        %v7367 = vrot.slane %v7362, %v7366
        %v7368 = vlaneseq
        %v7369 = vshrl.u32 %v7368, 7
        %v7370 = vsub.s32 1, %v7369
        %v7371 = vrot.slane %v7362, %v7370
        %v7382 = vunpack.c.l.b16 %v7353
        %v7383 = vunpack.c.h.b16 %v7353
        %v7384 = vunpack.c.l.b16 %v7354
        %v7385 = vunpack.c.h.b16 %v7354
        %v7386 = vunpack.c.l.b16 %v7355
        %v7387 = vunpack.c.h.b16 %v7355
        %v7388 = vunpack.c.l.b16 %v7356
        %v7389 = vunpack.c.h.b16 %v7356
        %v7390 = vunpack.c.l.b16 %v7357
        %v7391 = vunpack.c.h.b16 %v7357
        %v7392 = vunpack.c.l.b16 %v7358
        %v7393 = vunpack.c.h.b16 %v7358
        %v7394 = vunpack.c.l.b16 %v7359
        %v7395 = vunpack.c.h.b16 %v7359
        %v7396 = vunpack.c.l.b16 %v7360
        %v7397 = vunpack.c.h.b16 %v7360
        %v7398 = vpack.c.b16 %v7384, %v7382
        %v7399 = vpack.c.b16 %v7385, %v7383
        %v7400 = vpack.c.b16 %v7388, %v7386
        %v7401 = vpack.c.b16 %v7389, %v7387
        %v7402 = vpack.c.b16 %v7392, %v7390
        %v7403 = vpack.c.b16 %v7393, %v7391
        %v7404 = vpack.c.b16 %v7396, %v7394
        %v7405 = vpack.c.b16 %v7397, %v7395
        %v7415 = vsel %vm927, %v7361, 0
        %7417 = vmatprep.subr.bf16.mxu0 %v7399
        %7418 = vmatpush1.bf16.msra.mxu0 %v7398
        %7419 = vmatprep.subr.bf16.mxu0 %v7401
        %7420 = vmatpush1.bf16.msra.mxu0 %v7400
        %7421 = vmatprep.subr.bf16.mxu0 %v7403
        %7422 = vmatpush1.bf16.msra.mxu0 %v7402
        %7423 = vmatprep.subr.bf16.mxu0 %v7405
        %7424 = vmatpush1.bf16.msra.mxu0 %v7404
        %7425 = vmatprep.subr.bf16.mxu0 0
        %7426 = vmatpush1.bf16.msra.mxu0 0
        %7427 = vmatprep.subr.bf16.mxu0 0
        %7428 = vmatpush1.bf16.msra.mxu0 0
        %7429 = vmatprep.subr.bf16.mxu0 0
        %7430 = vmatpush1.bf16.msra.mxu0 0
        %7431 = vmatprep.subr.bf16.mxu0 0
        %7432 = vmatpush1.bf16.msra.mxu0 0
        %7433 = vmatprep.subr.bf16.mxu0 0
        %7434 = vmatpush1.bf16.msra.mxu0 0
        %7435 = vmatprep.subr.bf16.mxu0 0
        %7436 = vmatpush1.bf16.msra.mxu0 0
        %7437 = vmatprep.subr.bf16.mxu0 0
        %7438 = vmatpush1.bf16.msra.mxu0 0
        %7439 = vmatprep.subr.bf16.mxu0 0
        %7440 = vmatpush1.bf16.msra.mxu0 0
        %7441 = vmatprep.subr.bf16.mxu0 0
        %7442 = vmatpush1.bf16.msra.mxu0 0
        %7443 = vmatprep.subr.bf16.mxu0 0
        %7444 = vmatpush1.bf16.msra.mxu0 0
        %7445 = vmatprep.subr.bf16.mxu0 0
        %7446 = vmatpush1.bf16.msra.mxu0 0
        %7447 = vmatprep.subr.bf16.mxu0 0
        %7448 = vmatpush1.bf16.msra.mxu0 0
        %7449 = vmatprep.mubr.bf16.mxu0 0
        %7450 = vmatmul.mubr.bf16.gmra.mrb[0].mxu0 %v7415
        %v7451 = vpop.f32.mrb[0].mxu0
        %v7452 = vadd.f32 %v7367, %v7451
        %v7453 = vpop.f32.mrb[0].mxu0
        %v7454 = vadd.f32 %v7371, %v7453
        %v7455 = vpop.f32.mrb[0].mxu0
        %v7456 = vadd.f32 %v7367, %v7455
        %v7457 = vpop.f32.mrb[0].mxu0
        %v7458 = vadd.f32 %v7371, %v7457
        %7459 = vdwg.mxu0
        %v7460 = vld [vmem:[%s10] sm:$0xff]
        %v7461 = vld [vmem:[%s10 + $0x8] sm:$0xff]
        %v7462 = vld [vmem:[%s10 + $0x10] sm:$0xff]
        %v7463 = vld [vmem:[%s10 + $0x18] sm:$0xff]
        %v7464 = vld [vmem:[%s10 + $0x20] sm:$0xff]
        %v7465 = vld [vmem:[%s10 + $0x28] sm:$0xff]
        %v7466 = vld [vmem:[%s10 + $0x30] sm:$0xff]
        %v7467 = vld [vmem:[%s10 + $0x38] sm:$0xff]
        %v7468 = vld [vmem:[%s10 + $0x40] sm:$0xff]
        %v7469 = vld [vmem:[%s10 + $0x48] sm:$0xff]
        %v7470 = vld [vmem:[%s10 + $0x50] sm:$0xff]
        %v7471 = vld [vmem:[%s10 + $0x58] sm:$0xff]
        %v7472 = vld [vmem:[%s10 + $0x60] sm:$0xff]
        %v7473 = vld [vmem:[%s10 + $0x68] sm:$0xff]
        %v7474 = vld [vmem:[%s10 + $0x70] sm:$0xff]
        %v7475 = vld [vmem:[%s10 + $0x78] sm:$0xff]
        %v7476 = vld [vmem:[%s10 + $0x80] sm:$0xff]
        %v7477 = vld [vmem:[%s10 + $0x88] sm:$0xff]
        %v7478 = vld [vmem:[%s10 + $0x90] sm:$0xff]
        %v7479 = vld [vmem:[%s10 + $0x98] sm:$0xff]
        %v7480 = vld [vmem:[%s10 + $0xa0] sm:$0xff]
        %v7481 = vld [vmem:[%s10 + $0xa8] sm:$0xff]
        %v7482 = vld [vmem:[%s10 + $0xb0] sm:$0xff]
        %v7483 = vld [vmem:[%s10 + $0xb8] sm:$0xff]
        %v7484 = vld [vmem:[%s10 + $0xc0] sm:$0xff]
        %v7485 = vld [vmem:[%s10 + $0xc8] sm:$0xff]
        %v7486 = vld [vmem:[%s10 + $0xd0] sm:$0xff]
        %v7487 = vld [vmem:[%s10 + $0xd8] sm:$0xff]
        %v7488 = vld [vmem:[%s10 + $0xe0] sm:$0xff]
        %v7489 = vld [vmem:[%s10 + $0xe8] sm:$0xff]
        %v7490 = vld [vmem:[%s10 + $0xf0] sm:$0xff]
        %v7491 = vld [vmem:[%s10 + $0xf8] sm:$0xff]
        %v7492 = vpack.c.bf16 %v7456, %v7452
        %v7493 = vpack.c.bf16 %v7458, %v7454
        %s7494 = scalar_lea.vmem %s11, 1
        %v7495 = vld [vmem:[%s7494] ss:$2 sm:$0x3]
        %v7497 = vlaneseq
        %v7498 = vshrl.u32 %v7497, 7
        %v7499 = vsub.s32 0, %v7498
        %v7500 = vrot.slane %v7495, %v7499
        %v7501 = vlaneseq
        %v7502 = vshrl.u32 %v7501, 7
        %v7503 = vsub.s32 1, %v7502
        %v7504 = vrot.slane %v7495, %v7503
        %v7539 = vunpack.c.l.b16 %v7460
        %v7540 = vunpack.c.h.b16 %v7460
        %v7541 = vunpack.c.l.b16 %v7461
        %v7542 = vunpack.c.h.b16 %v7461
        %v7543 = vunpack.c.l.b16 %v7462
        %v7544 = vunpack.c.h.b16 %v7462
        %v7545 = vunpack.c.l.b16 %v7463
        %v7546 = vunpack.c.h.b16 %v7463
        %v7547 = vunpack.c.l.b16 %v7464
        %v7548 = vunpack.c.h.b16 %v7464
        %v7549 = vunpack.c.l.b16 %v7465
        %v7550 = vunpack.c.h.b16 %v7465
        %v7551 = vunpack.c.l.b16 %v7466
        %v7552 = vunpack.c.h.b16 %v7466
        %v7553 = vunpack.c.l.b16 %v7467
        %v7554 = vunpack.c.h.b16 %v7467
        %v7555 = vunpack.c.l.b16 %v7468
        %v7556 = vunpack.c.h.b16 %v7468
        %v7557 = vunpack.c.l.b16 %v7469
        %v7558 = vunpack.c.h.b16 %v7469
        %v7559 = vunpack.c.l.b16 %v7470
        %v7560 = vunpack.c.h.b16 %v7470
        %v7561 = vunpack.c.l.b16 %v7471
        %v7562 = vunpack.c.h.b16 %v7471
        %v7563 = vunpack.c.l.b16 %v7472
        %v7564 = vunpack.c.h.b16 %v7472
        %v7565 = vunpack.c.l.b16 %v7473
        %v7566 = vunpack.c.h.b16 %v7473
        %v7567 = vunpack.c.l.b16 %v7474
        %v7568 = vunpack.c.h.b16 %v7474
        %v7569 = vunpack.c.l.b16 %v7475
        %v7570 = vunpack.c.h.b16 %v7475
        %v7571 = vunpack.c.l.b16 %v7476
        %v7572 = vunpack.c.h.b16 %v7476
        %v7573 = vunpack.c.l.b16 %v7477
        %v7574 = vunpack.c.h.b16 %v7477
        %v7575 = vunpack.c.l.b16 %v7478
        %v7576 = vunpack.c.h.b16 %v7478
        %v7577 = vunpack.c.l.b16 %v7479
        %v7578 = vunpack.c.h.b16 %v7479
        %v7579 = vunpack.c.l.b16 %v7480
        %v7580 = vunpack.c.h.b16 %v7480
        %v7581 = vunpack.c.l.b16 %v7481
        %v7582 = vunpack.c.h.b16 %v7481
        %v7583 = vunpack.c.l.b16 %v7482
        %v7584 = vunpack.c.h.b16 %v7482
        %v7585 = vunpack.c.l.b16 %v7483
        %v7586 = vunpack.c.h.b16 %v7483
        %v7587 = vunpack.c.l.b16 %v7484
        %v7588 = vunpack.c.h.b16 %v7484
        %v7589 = vunpack.c.l.b16 %v7485
        %v7590 = vunpack.c.h.b16 %v7485
        %v7591 = vunpack.c.l.b16 %v7486
        %v7592 = vunpack.c.h.b16 %v7486
        %v7593 = vunpack.c.l.b16 %v7487
        %v7594 = vunpack.c.h.b16 %v7487
        %v7595 = vunpack.c.l.b16 %v7488
        %v7596 = vunpack.c.h.b16 %v7488
        %v7597 = vunpack.c.l.b16 %v7489
        %v7598 = vunpack.c.h.b16 %v7489
        %v7599 = vunpack.c.l.b16 %v7490
        %v7600 = vunpack.c.h.b16 %v7490
        %v7601 = vunpack.c.l.b16 %v7491
        %v7602 = vunpack.c.h.b16 %v7491
        %v7603 = vpack.c.b16 %v7541, %v7539
        %v7604 = vpack.c.b16 %v7542, %v7540
        %v7605 = vpack.c.b16 %v7545, %v7543
        %v7606 = vpack.c.b16 %v7546, %v7544
        %v7607 = vpack.c.b16 %v7549, %v7547
        %v7608 = vpack.c.b16 %v7550, %v7548
        %v7609 = vpack.c.b16 %v7553, %v7551
        %v7610 = vpack.c.b16 %v7554, %v7552
        %v7611 = vpack.c.b16 %v7557, %v7555
        %v7612 = vpack.c.b16 %v7558, %v7556
        %v7613 = vpack.c.b16 %v7561, %v7559
        %v7614 = vpack.c.b16 %v7562, %v7560
        %v7615 = vpack.c.b16 %v7565, %v7563
        %v7616 = vpack.c.b16 %v7566, %v7564
        %v7617 = vpack.c.b16 %v7569, %v7567
        %v7618 = vpack.c.b16 %v7570, %v7568
        %v7619 = vpack.c.b16 %v7573, %v7571
        %v7620 = vpack.c.b16 %v7574, %v7572
        %v7621 = vpack.c.b16 %v7577, %v7575
        %v7622 = vpack.c.b16 %v7578, %v7576
        %v7623 = vpack.c.b16 %v7581, %v7579
        %v7624 = vpack.c.b16 %v7582, %v7580
        %v7625 = vpack.c.b16 %v7585, %v7583
        %v7626 = vpack.c.b16 %v7586, %v7584
        %v7627 = vpack.c.b16 %v7589, %v7587
        %v7628 = vpack.c.b16 %v7590, %v7588
        %v7629 = vpack.c.b16 %v7593, %v7591
        %v7630 = vpack.c.b16 %v7594, %v7592
        %v7631 = vpack.c.b16 %v7597, %v7595
        %v7632 = vpack.c.b16 %v7598, %v7596
        %v7633 = vpack.c.b16 %v7601, %v7599
        %v7634 = vpack.c.b16 %v7602, %v7600
        %7667 = vmatprep.subr.bf16.mxu0 %v7604
        %7668 = vmatpush1.bf16.msra.mxu0 %v7603
        %7669 = vmatprep.subr.bf16.mxu0 %v7606
        %7670 = vmatpush1.bf16.msra.mxu0 %v7605
        %7671 = vmatprep.subr.bf16.mxu0 %v7608
        %7672 = vmatpush1.bf16.msra.mxu0 %v7607
        %7673 = vmatprep.subr.bf16.mxu0 %v7610
        %7674 = vmatpush1.bf16.msra.mxu0 %v7609
        %7675 = vmatprep.subr.bf16.mxu0 %v7612
        %7676 = vmatpush1.bf16.msra.mxu0 %v7611
        %7677 = vmatprep.subr.bf16.mxu0 %v7614
        %7678 = vmatpush1.bf16.msra.mxu0 %v7613
        %7679 = vmatprep.subr.bf16.mxu0 %v7616
        %7680 = vmatpush1.bf16.msra.mxu0 %v7615
        %7681 = vmatprep.subr.bf16.mxu0 %v7618
        %7682 = vmatpush1.bf16.msra.mxu0 %v7617
        %7683 = vmatprep.subr.bf16.mxu0 %v7620
        %7684 = vmatpush1.bf16.msra.mxu0 %v7619
        %7685 = vmatprep.subr.bf16.mxu0 %v7622
        %7686 = vmatpush1.bf16.msra.mxu0 %v7621
        %7687 = vmatprep.subr.bf16.mxu0 %v7624
        %7688 = vmatpush1.bf16.msra.mxu0 %v7623
        %7689 = vmatprep.subr.bf16.mxu0 %v7626
        %7690 = vmatpush1.bf16.msra.mxu0 %v7625
        %7691 = vmatprep.subr.bf16.mxu0 %v7628
        %7692 = vmatpush1.bf16.msra.mxu0 %v7627
        %7693 = vmatprep.subr.bf16.mxu0 %v7630
        %7694 = vmatpush1.bf16.msra.mxu0 %v7629
        %7695 = vmatprep.subr.bf16.mxu0 %v7632
        %7696 = vmatpush1.bf16.msra.mxu0 %v7631
        %7697 = vmatprep.subr.bf16.mxu0 %v7634
        %7698 = vmatpush1.bf16.msra.mxu0 %v7633
        %7699 = vmatprep.mubr.bf16.mxu0 %v7493
        %7700 = vmatmul.mubr.bf16.gmra.mrb[0].mxu0 %v7492
        %v7701 = vpop.f32.mrb[0].mxu0
        %v7702 = vadd.f32 %v7500, %v7701
        %v7703 = vpop.f32.mrb[0].mxu0
        %v7704 = vadd.f32 %v7504, %v7703
        %v7705 = vpop.f32.mrb[0].mxu0
        %v7706 = vadd.f32 %v7500, %v7705
        %v7707 = vpop.f32.mrb[0].mxu0
        %v7708 = vadd.f32 %v7504, %v7707
        %7709 = vdwg.mxu0
        %v7710 = vld [vmem:[%s12] sm:$0xf]
        %v7711 = vld [vmem:[%s12 + $0x4] sm:$0xf]
        %v7712 = vld [vmem:[%s12 + $0x8] sm:$0xf]
        %v7713 = vld [vmem:[%s12 + $0xc] sm:$0xf]
        %v7714 = vld [vmem:[%s12 + $0x10] sm:$0xf]
        %v7715 = vld [vmem:[%s12 + $0x14] sm:$0xf]
        %v7716 = vld [vmem:[%s12 + $0x18] sm:$0xf]
        %v7717 = vld [vmem:[%s12 + $0x1c] sm:$0xf]
        %v7718 = vld [vmem:[%s12 + $0x20] sm:$0xf]
        %v7719 = vld [vmem:[%s12 + $0x24] sm:$0xf]
        %v7720 = vld [vmem:[%s12 + $0x28] sm:$0xf]
        %v7721 = vld [vmem:[%s12 + $0x2c] sm:$0xf]
        %v7722 = vld [vmem:[%s12 + $0x30] sm:$0xf]
        %v7723 = vld [vmem:[%s12 + $0x34] sm:$0xf]
        %v7724 = vld [vmem:[%s12 + $0x38] sm:$0xf]
        %v7725 = vld [vmem:[%s12 + $0x3c] sm:$0xf]
        %v7726 = vld [vmem:[%s12 + $0x40] sm:$0xf]
        %v7727 = vld [vmem:[%s12 + $0x44] sm:$0xf]
        %v7728 = vld [vmem:[%s12 + $0x48] sm:$0xf]
        %v7729 = vld [vmem:[%s12 + $0x4c] sm:$0xf]
        %v7730 = vld [vmem:[%s12 + $0x50] sm:$0xf]
        %v7731 = vld [vmem:[%s12 + $0x54] sm:$0xf]
        %v7732 = vld [vmem:[%s12 + $0x58] sm:$0xf]
        %v7733 = vld [vmem:[%s12 + $0x5c] sm:$0xf]
        %v7734 = vld [vmem:[%s12 + $0x60] sm:$0xf]
        %v7735 = vld [vmem:[%s12 + $0x64] sm:$0xf]
        %v7736 = vld [vmem:[%s12 + $0x68] sm:$0xf]
        %v7737 = vld [vmem:[%s12 + $0x6c] sm:$0xf]
        %v7738 = vld [vmem:[%s12 + $0x70] sm:$0xf]
        %v7739 = vld [vmem:[%s12 + $0x74] sm:$0xf]
        %v7740 = vld [vmem:[%s12 + $0x78] sm:$0xf]
        %v7741 = vld [vmem:[%s12 + $0x7c] sm:$0xf]
        %v7742 = vpack.c.bf16 %v7706, %v7702
        %v7743 = vpack.c.bf16 %v7708, %v7704
        %v7744 = vld [vmem:[%s13] sm:$0x1]
        %v7746 = vlaneseq
        %v7747 = vshrl.u32 %v7746, 7
        %v7748 = vsub.s32 0, %v7747
        %v7749 = vrot.slane %v7744, %v7748
        %v7783 = vunpack.c.l.b16 %v7710
        %v7784 = vunpack.c.l.b16 %v7711
        %v7785 = vunpack.c.l.b16 %v7712
        %v7786 = vunpack.c.l.b16 %v7713
        %v7787 = vunpack.c.l.b16 %v7714
        %v7788 = vunpack.c.l.b16 %v7715
        %v7789 = vunpack.c.l.b16 %v7716
        %v7790 = vunpack.c.l.b16 %v7717
        %v7791 = vunpack.c.l.b16 %v7718
        %v7792 = vunpack.c.l.b16 %v7719
        %v7793 = vunpack.c.l.b16 %v7720
        %v7794 = vunpack.c.l.b16 %v7721
        %v7795 = vunpack.c.l.b16 %v7722
        %v7796 = vunpack.c.l.b16 %v7723
        %v7797 = vunpack.c.l.b16 %v7724
        %v7798 = vunpack.c.l.b16 %v7725
        %v7799 = vunpack.c.l.b16 %v7726
        %v7800 = vunpack.c.l.b16 %v7727
        %v7801 = vunpack.c.l.b16 %v7728
        %v7802 = vunpack.c.l.b16 %v7729
        %v7803 = vunpack.c.l.b16 %v7730
        %v7804 = vunpack.c.l.b16 %v7731
        %v7805 = vunpack.c.l.b16 %v7732
        %v7806 = vunpack.c.l.b16 %v7733
        %v7807 = vunpack.c.l.b16 %v7734
        %v7808 = vunpack.c.l.b16 %v7735
        %v7809 = vunpack.c.l.b16 %v7736
        %v7810 = vunpack.c.l.b16 %v7737
        %v7811 = vunpack.c.l.b16 %v7738
        %v7812 = vunpack.c.l.b16 %v7739
        %v7813 = vunpack.c.l.b16 %v7740
        %v7814 = vunpack.c.l.b16 %v7741
        %v7815 = vpack.c.b16 %v7784, %v7783
        %v7816 = vpack.c.b16 %v7786, %v7785
        %v7817 = vpack.c.b16 %v7788, %v7787
        %v7818 = vpack.c.b16 %v7790, %v7789
        %v7819 = vpack.c.b16 %v7792, %v7791
        %v7820 = vpack.c.b16 %v7794, %v7793
        %v7821 = vpack.c.b16 %v7796, %v7795
        %v7822 = vpack.c.b16 %v7798, %v7797
        %v7823 = vpack.c.b16 %v7800, %v7799
        %v7824 = vpack.c.b16 %v7802, %v7801
        %v7825 = vpack.c.b16 %v7804, %v7803
        %v7826 = vpack.c.b16 %v7806, %v7805
        %v7827 = vpack.c.b16 %v7808, %v7807
        %v7828 = vpack.c.b16 %v7810, %v7809
        %v7829 = vpack.c.b16 %v7812, %v7811
        %v7830 = vpack.c.b16 %v7814, %v7813
        %7847 = vmatprep.subr.bf16.mxu0 0
        %7848 = vmatpush1.bf16.msra.mxu0 %v7815
        %7849 = vmatprep.subr.bf16.mxu0 0
        %7850 = vmatpush1.bf16.msra.mxu0 %v7816
        %7851 = vmatprep.subr.bf16.mxu0 0
        %7852 = vmatpush1.bf16.msra.mxu0 %v7817
        %7853 = vmatprep.subr.bf16.mxu0 0
        %7854 = vmatpush1.bf16.msra.mxu0 %v7818
        %7855 = vmatprep.subr.bf16.mxu0 0
        %7856 = vmatpush1.bf16.msra.mxu0 %v7819
        %7857 = vmatprep.subr.bf16.mxu0 0
        %7858 = vmatpush1.bf16.msra.mxu0 %v7820
        %7859 = vmatprep.subr.bf16.mxu0 0
        %7860 = vmatpush1.bf16.msra.mxu0 %v7821
        %7861 = vmatprep.subr.bf16.mxu0 0
        %7862 = vmatpush1.bf16.msra.mxu0 %v7822
        %7863 = vmatprep.subr.bf16.mxu0 0
        %7864 = vmatpush1.bf16.msra.mxu0 %v7823
        %7865 = vmatprep.subr.bf16.mxu0 0
        %7866 = vmatpush1.bf16.msra.mxu0 %v7824
        %7867 = vmatprep.subr.bf16.mxu0 0
        %7868 = vmatpush1.bf16.msra.mxu0 %v7825
        %7869 = vmatprep.subr.bf16.mxu0 0
        %7870 = vmatpush1.bf16.msra.mxu0 %v7826
        %7871 = vmatprep.subr.bf16.mxu0 0
        %7872 = vmatpush1.bf16.msra.mxu0 %v7827
        %7873 = vmatprep.subr.bf16.mxu0 0
        %7874 = vmatpush1.bf16.msra.mxu0 %v7828
        %7875 = vmatprep.subr.bf16.mxu0 0
        %7876 = vmatpush1.bf16.msra.mxu0 %v7829
        %7877 = vmatprep.subr.bf16.mxu0 0
        %7878 = vmatpush1.bf16.msra.mxu0 %v7830
        %7879 = vmatprep.mubr.bf16.mxu0 %v7743
        %7880 = vmatmul.mubr.bf16.gmra.mrb[0].mxu0 %v7742
        %v7881 = vpop.f32.mrb[0].mxu0
        %v7882 = vadd.f32 %v7749, %v7881
        %v7883 = vpop.f32.mrb[0].mxu0
        %v7884 = vpop.f32.mrb[0].mxu0
        %v7885 = vadd.f32 %v7749, %v7884
        %v7886 = vpop.f32.mrb[0].mxu0
        %7887 = vdwg.mxu0
        %7888 = vst [vmem:[%s461] sm:$0xff] %v7882
        %7889 = vst [vmem:[%s461 + $0x8] sm:$0xff] %v7885
        %s7890 = sand.u32 %s335, 1
        %s7891 = scalar_lea.sflag [#allocation3], %s7890
        %s7892 = sand.u32 %s335, 1
        %s7893 = smul.addr %s7892, 16
        %s7894 = scalar_lea.vmem [#allocation2], %s7893
        // Predicated region
        $region77: #{tpu_custom_call.1} parent=75 // pred_check
          %p7895 = pneg %p345
        $region78: #{tpu_custom_call.1} parent=75 // pred_check_branch
          %7897 = sbr.rel (%p7895) target = $region80
        $region79: #{tpu_custom_call.1} parent=75 // pred_region
          %s7898 = smul.u32 2, %s28
          %s7900 = ssub.s32 256, 256
          %7901 = vsyncadd %s7891, %s7900
          %s7902 = smul.addr %s7898, 128
          %s7903 = scalar_lea.hbm %s14, %s7902
          %s7904 = sshll.u32 %s7894, 4
          %s7905 = int_to_ptr.vmem [resolvable:$true] %s7904
          %7910 = dma.vmem_to_hbm [thread:$0]  %s7905, 256, %s7903, %s7891, 128, 128, 8
        $region80: #{tpu_custom_call.1} parent=75 // pred_fallthru
          _
      $region76: #{tpu_custom_call.1} parent=5 // pred_fallthru
        _
      %p7911 = scmp.le.s32.totalorder 2, %s23
      // Predicated region
      $region81: #{tpu_custom_call.1} parent=5 // pred_check
        %p7912 = pneg %p7911
      $region82: #{tpu_custom_call.1} parent=5 // pred_check_branch
        %7914 = sbr.rel (%p7912) target = $region84
      $region83: #{tpu_custom_call.1} parent=5 // pred_region
        %s7915 = ssub.s32 %s23, 2
        // Predicated region
        $region85: #{tpu_custom_call.1} parent=83 // pred_check
          %p7916 = pneg %p351
        $region86: #{tpu_custom_call.1} parent=83 // pred_check_branch
          %7918 = sbr.rel (%p7916) target = $region88
        $region87: #{tpu_custom_call.1} parent=83 // pred_region
          %s7919 = sand.u32 %s336, 1
          %s7920 = scalar_lea.sflag [#allocation3], %s7919
          %s7921 = sand.u32 %s336, 1
          %s7922 = smul.addr %s7921, 16
          %s7923 = scalar_lea.vmem [#allocation2], %s7922
          %7924 = dma.done %s7920, 256
        $region88: #{tpu_custom_call.1} parent=83 // pred_fallthru
          _
      $region84: #{tpu_custom_call.1} parent=5 // pred_fallthru
        _
    $region6: #{tpu_custom_call.1} parent=1 // loop_footer
      %s27 = sadd.s32 1, %s23
    $region7: #{tpu_custom_call.1} parent=1 // loop_footer_branch
      %22 = sbr.rel target = $region3
    $region8: #{tpu_custom_call.1} parent=1 // loop_exit
      _
    %7925 = vsyncpa [#allocation3], 1
    %s7926 = scalar_lea.sflag [#allocation3], 1
    %7927 = vsyncpa %s7926, 1

</llo_original>
